<compile_context>
chip_gen: v6e
topology: v6e:2x2x1
jax: 0.10.0
libtpu: 0.0.40
codegen_flags: <defaults>
</compile_context>

<pallas_src>
import jax
import jax.numpy as jnp
from jax import lax
from jax.experimental import pallas as pl
from jax.experimental.pallas import tpu as pltpu

BF16 = jnp.bfloat16
F32 = jnp.float32


# ---------------------------------------------------------------------------
# In-kernel helpers
# ---------------------------------------------------------------------------
def _pool_sel_lhs(wo):
    """(Wp, Wo) 0/1 matrices selecting even / odd sublane rows of a (Wo, C) block."""
    wp = wo // 2
    j = lax.broadcasted_iota(jnp.int32, (wp, wo), 0)
    i = lax.broadcasted_iota(jnp.int32, (wp, wo), 1)
    return ((i == 2 * j).astype(F32), (i == 2 * j + 1).astype(F32))


def _pool_sel_rhs(wo):
    """(Wo, Wp) 0/1 matrices selecting even / odd lanes of a (C, Wo) block."""
    wp = wo // 2
    i = lax.broadcasted_iota(jnp.int32, (wo, wp), 0)
    j = lax.broadcasted_iota(jnp.int32, (wo, wp), 1)
    return ((i == 2 * j).astype(F32), (i == 2 * j + 1).astype(F32))


def _conv_row_lhs(rows, kw_sz, wo):
    """im2col block (wo, KW*KH*Cin) for one conv output row, kw folded into K.

    rows : python list of KH (W_in, Cin) values (input rows r .. r+KH-1).
    K ordering: k = kw*(KH*Cin) + kh*Cin + ci  (matches host-side weight packing).
    """
    R = jnp.concatenate(rows, axis=1)                     # (W_in, KH*Cin)
    return jnp.concatenate([R[kw:kw + wo, :] for kw in range(kw_sz)], axis=1)


# ---------------------------------------------------------------------------
# Fused forward kernel (one grid step == one batch element)
# ---------------------------------------------------------------------------
def _a_convnet_kernel(x_ref, w1_ref, b1_ref, w2_ref, b2_ref, w3_ref, b3_ref,
                      w4_ref, b4_ref, w5_ref, b5_ref, o_ref, a1, a2, a3):
    # ---- layer 1: conv 5x5 (1->16) + ReLU + 2x2 pool -> a1 (62, 62, 16) ------
    # Cin == 1, so the conv runs channel-major with W on lanes; two pooled rows
    # (= 4 conv rows) are fused per iteration into one (16,25)@(25,496) matmul.
    w1b = w1_ref[...]                       # (16, 25) bf16,  [co, kw*5 + kh]
    b1c = b1_ref[...]                       # (16, 1)  f32
    e1, o1 = _pool_sel_rhs(124)             # (124, 62) f32

    def l1_body(rp, carry):
        base = 4 * rp
        slab = x_ref[0, pl.ds(base, 8), :].astype(BF16)   # (8, 128)

        def patches(d):                                   # conv row base + d
            sub = slab[d:d + 5, :]                        # (5, 128)
            return jnp.concatenate(
                [sub[:, kw:kw + 124] for kw in range(5)], axis=0)   # (25, 124)

        pat = jnp.concatenate([patches(d) for d in range(4)], axis=1)   # (25, 496)
        y = jnp.dot(w1b, pat, preferred_element_type=F32) + b1c         # (16, 496)
        y = jnp.maximum(y, 0.0)
        v0 = jnp.maximum(y[:, 0:124], y[:, 124:248])      # pooled row 2*rp
        v1 = jnp.maximum(y[:, 248:372], y[:, 372:496])    # pooled row 2*rp + 1
        V = jnp.concatenate([v0, v1], axis=0)             # (32, 124)
        P = jnp.maximum(jnp.dot(V, e1, preferred_element_type=F32),
                        jnp.dot(V, o1, preferred_element_type=F32))     # (32, 62)
        T = jnp.transpose(P)                              # (62, 32) channel-last
        a1[2 * rp] = T[:, 0:16]
        a1[2 * rp + 1] = T[:, 16:32]
        return carry

    lax.fori_loop(0, 31, l1_body, 0)

    # ---- layer 2: conv 5x5 (16->32) + ReLU + 2x2 pool -> a2 (29, 29, 32) -----
    b2r = b2_ref[...]                       # (1, 32)
    e2, o2 = _pool_sel_lhs(58)              # (29, 58)

    def l2_body(rp, carry):
        r = 2 * rp
        rows = [a1[r + j] for j in range(6)]              # 6 x (62, 16)
        lhs = jnp.concatenate(
            [_conv_row_lhs(rows[d:d + 5], 5, 58) for d in range(2)],
            axis=0)                                       # (116, 400)
        y = jnp.dot(lhs.astype(BF16), w2_ref[...],
                    preferred_element_type=F32) + b2r     # (116, 32)
        y = jnp.maximum(y, 0.0)
        v = jnp.maximum(y[0:58], y[58:116])               # vertical max (58, 32)
        a2[rp] = jnp.maximum(jnp.dot(e2, v, preferred_element_type=F32),
                             jnp.dot(o2, v, preferred_element_type=F32))
        return carry

    lax.fori_loop(0, 29, l2_body, 0)

    # ---- layer 3: conv 6x6 (32->64) + ReLU + 2x2 pool -> a3 (12, 12, 64) -----
    # Two pooled rows (4 conv rows) per iteration -> one (96,1152)@(1152,64) dot.
    b3r = b3_ref[...]                       # (1, 64)
    e3, o3 = _pool_sel_lhs(24)              # (12, 24)

    def l3_body(i, carry):
        r = 4 * i
        rows = [a2[r + j] for j in range(9)]              # 9 x (29, 32)
        lhs = jnp.concatenate(
            [_conv_row_lhs(rows[d:d + 6], 6, 24) for d in range(4)],
            axis=0)                                       # (96, 1152)
        y = jnp.dot(lhs.astype(BF16), w3_ref[...],
                    preferred_element_type=F32) + b3r     # (96, 64)
        y = jnp.maximum(y, 0.0)
        v0 = jnp.maximum(y[0:24], y[24:48])               # pooled row 2*i
        v1 = jnp.maximum(y[48:72], y[72:96])              # pooled row 2*i + 1
        a3[2 * i] = jnp.maximum(jnp.dot(e3, v0, preferred_element_type=F32),
                                jnp.dot(o3, v0, preferred_element_type=F32))
        a3[2 * i + 1] = jnp.maximum(jnp.dot(e3, v1, preferred_element_type=F32),
                                    jnp.dot(o3, v1, preferred_element_type=F32))
        return carry

    lax.fori_loop(0, 6, l3_body, 0)

    # ---- layer 4: conv 5x5 (64->128) + ReLU (no pool), fully unrolled --------
    b4r = b4_ref[...]                       # (1, 128)
    rows4 = [a3[j] for j in range(12)]      # 12 x (12, 64), static indices
    lhs4 = jnp.concatenate(
        [_conv_row_lhs(rows4[d:d + 5], 5, 8) for d in range(8)],
        axis=0)                                           # (64, 1600)
    y4 = jnp.dot(lhs4.astype(BF16), w4_ref[...],
                 preferred_element_type=F32) + b4r        # (64, 128), row = ho*8+wo
    y4 = jnp.maximum(y4, 0.0)

    # TODO(synk): Dropout2d(p=0.5) applied as identity (eval-mode semantics);
    # training-mode whole-channel dropout + 1/(1-p) rescale is not implemented.

    # ---- layer 5: conv 8x8 (128->10) == per-class multiply-reduce over y4 ----
    outs = []
    for c in range(10):
        prod = w5_ref[c] * y4                             # (64, 128) f32
        s = jnp.sum(prod, axis=1, keepdims=True)          # (64, 1)
        outs.append(jnp.sum(s, axis=0, keepdims=True))    # (1, 1)
    logits = jnp.concatenate(outs, axis=0) + b5_ref[...]  # (10, 1)
    o_ref[0] = logits


# ---------------------------------------------------------------------------
# Host wrapper
# ---------------------------------------------------------------------------
def a_convnet_forward(x_nchw, params):
    """Forward pass matching a_convnet (eval mode).  x_nchw: (N, 1, 128, 128)."""
    (w1, b1), (w2, b2), (w3, b3), (w4, b4), (w5, b5) = params
    x = x_nchw[:, 0, :, :].astype(F32)                    # (N, 128, 128); Cin = 1
    N = x.shape[0]

    # Host-side weight packing (pure layout work, done once under jit).
    # Layers 2-4 K ordering: k = kw*(KH*Cin) + kh*Cin + ci  (kw folded into K).
    w1p = jnp.transpose(w1[:, :, 0, :], (2, 1, 0)).reshape(16, 25).astype(BF16)
    w2p = jnp.transpose(w2, (1, 0, 2, 3)).reshape(5 * 5 * 16, 32).astype(BF16)
    w3p = jnp.transpose(w3, (1, 0, 2, 3)).reshape(6 * 6 * 32, 64).astype(BF16)
    w4p = jnp.transpose(w4, (1, 0, 2, 3)).reshape(5 * 5 * 64, 128).astype(BF16)
    w5p = jnp.transpose(w5, (3, 0, 1, 2)).reshape(10, 64, 128)   # f32, [c, kh*8+kw, ci]
    b1c = b1.reshape(16, 1)
    b2r = b2.reshape(1, 32)
    b3r = b3.reshape(1, 64)
    b4r = b4.reshape(1, 128)
    b5c = b5.reshape(10, 1)

    const2 = lambda n: (0, 0)
    const3 = lambda n: (0, 0, 0)

    out = pl.pallas_call(
        _a_convnet_kernel,
        out_shape=jax.ShapeDtypeStruct((N, 10, 1), F32),
        grid=(N,),
        in_specs=[
            pl.BlockSpec((1, 128, 128), lambda n: (n, 0, 0)),   # input image
            pl.BlockSpec((16, 25), const2),                     # w1 packed (bf16)
            pl.BlockSpec((16, 1), const2),                      # b1
            pl.BlockSpec((400, 32), const2),                    # w2 packed (bf16)
            pl.BlockSpec((1, 32), const2),                      # b2
            pl.BlockSpec((1152, 64), const2),                   # w3 packed (bf16)
            pl.BlockSpec((1, 64), const2),                      # b3
            pl.BlockSpec((1600, 128), const2),                  # w4 packed (bf16)
            pl.BlockSpec((1, 128), const2),                     # b4
            pl.BlockSpec((10, 64, 128), const3),                # w5 packed (f32)
            pl.BlockSpec((10, 1), const2),                      # b5
        ],
        out_specs=pl.BlockSpec((1, 10, 1), lambda n: (n, 0, 0)),
        scratch_shapes=[
            pltpu.VMEM((62, 62, 16), F32),   # pooled layer-1 activations
            pltpu.VMEM((29, 29, 32), F32),   # pooled layer-2 activations
            pltpu.VMEM((12, 12, 64), F32),   # pooled layer-3 activations
        ],
        compiler_params=pltpu.CompilerParams(
            dimension_semantics=("parallel",)),
    )(x, w1p, b1c, w2p, b2r, w3p, b3r, w4p, b4r, w5p, b5c)
    return out.reshape(N, 10)


# ---------------------------------------------------------------------------
# Parameters (deterministic, in-script; shapes from a_convnet.__init__)
# Weight layout here is (kh, kw, ci, co); semantics match nn.Conv2d with
# w_torch[co, ci, kh, kw] = w[kh, kw, ci, co].
# ---------------------------------------------------------------------------
_LAYER_SPECS = [
    (5, 5, 1, 16),     # Conv2d(1, 16, 5)
    (5, 5, 16, 32),    # Conv2d(16, 32, 5)
    (6, 6, 32, 64),    # Conv2d(32, 64, 6)
    (5, 5, 64, 128),   # Conv2d(64, 128, 5)
    (8, 8, 128, 10),   # Conv2d(128, num_classes=10, 8)
]


def init_params(key):
    params = []
    for i, (kh, kw, ci, co) in enumerate(_LAYER_SPECS):
        kkey = jax.random.fold_in(key, i)
        wkey, bkey = jax.random.split(kkey)
        fan_in = kh * kw * ci
        w = jax.random.normal(wkey, (kh, kw, ci, co), F32) * (fan_in ** -0.5)
        b = jax.random.normal(bkey, (co,), F32) * 0.01
        params.append((w, b))
    return params


if __name__ == "__main__":
    key = jax.random.PRNGKey(0)
    params = init_params(jax.random.fold_in(key, 1))
    # Batch=2, 1 input channel, 128x128 (required by the fixed conv/pool stack).
    x = jax.random.normal(jax.random.fold_in(key, 2), (2, 1, 128, 128), F32)

    fwd = jax.jit(a_convnet_forward)
    out = jax.block_until_ready(fwd(x, params))

    assert out.shape == (2, 10), out.shape
    assert bool(jnp.all(jnp.isfinite(out)))
    print("KERNEL_OK")
</pallas_src>

<mosaic_0001>
module attributes {stable_mosaic.version = 11 : i64} {
  func.func @_a_convnet_kernel(%arg0: i32, %arg1: memref<1x128x128xf32, #tpu.memory_space<vmem>>, %arg2: memref<16x25xbf16, #tpu.memory_space<vmem>>, %arg3: memref<16x1xf32, #tpu.memory_space<vmem>>, %arg4: memref<400x32xbf16, #tpu.memory_space<vmem>>, %arg5: memref<1x32xf32, #tpu.memory_space<vmem>>, %arg6: memref<1152x64xbf16, #tpu.memory_space<vmem>>, %arg7: memref<1x64xf32, #tpu.memory_space<vmem>>, %arg8: memref<1600x128xbf16, #tpu.memory_space<vmem>>, %arg9: memref<1x128xf32, #tpu.memory_space<vmem>>, %arg10: memref<10x64x128xf32, #tpu.memory_space<vmem>>, %arg11: memref<10x1xf32, #tpu.memory_space<vmem>>, %arg12: memref<1x10x1xf32, #tpu.memory_space<vmem>>, %arg13: memref<62x62x16xf32, #tpu.memory_space<vmem>>, %arg14: memref<29x29x32xf32, #tpu.memory_space<vmem>>, %arg15: memref<12x12x64xf32, #tpu.memory_space<vmem>>) attributes {dimension_semantics = [#tpu.dimension_semantics<parallel>], iteration_bounds = array<i64: 2>, scalar_prefetch = 0 : i64, scratch_operands = 3 : i64, tpu.core_type = #tpu.core_type<tc>, window_params = [{transform_indices = @transform_0, window_bounds = array<i64: 1, 128, 128>}, {pipeline_mode = #tpu.pipeline_mode<synchronous>, transform_indices = @transform_1, window_bounds = array<i64: 16, 25>}, {pipeline_mode = #tpu.pipeline_mode<synchronous>, transform_indices = @transform_2, window_bounds = array<i64: 16, 1>}, {pipeline_mode = #tpu.pipeline_mode<synchronous>, transform_indices = @transform_3, window_bounds = array<i64: 400, 32>}, {pipeline_mode = #tpu.pipeline_mode<synchronous>, transform_indices = @transform_4, window_bounds = array<i64: 1, 32>}, {pipeline_mode = #tpu.pipeline_mode<synchronous>, transform_indices = @transform_5, window_bounds = array<i64: 1152, 64>}, {pipeline_mode = #tpu.pipeline_mode<synchronous>, transform_indices = @transform_6, window_bounds = array<i64: 1, 64>}, {pipeline_mode = #tpu.pipeline_mode<synchronous>, transform_indices = @transform_7, window_bounds = array<i64: 1600, 128>}, {pipeline_mode = #tpu.pipeline_mode<synchronous>, transform_indices = @transform_8, window_bounds = array<i64: 1, 128>}, {pipeline_mode = #tpu.pipeline_mode<synchronous>, transform_indices = @transform_9, window_bounds = array<i64: 10, 64, 128>}, {pipeline_mode = #tpu.pipeline_mode<synchronous>, transform_indices = @transform_10, window_bounds = array<i64: 10, 1>}, {transform_indices = @transform_11, window_bounds = array<i64: 1, 10, 1>}]} {
    %c0 = arith.constant 0 : index
    %c0_0 = arith.constant 0 : index
    %0 = vector.load %arg2[%c0, %c0_0] : memref<16x25xbf16, #tpu.memory_space<vmem>>, vector<16x25xbf16>
    %c0_1 = arith.constant 0 : index
    %c0_2 = arith.constant 0 : index
    %1 = vector.load %arg3[%c0_1, %c0_2] : memref<16x1xf32, #tpu.memory_space<vmem>>, vector<16x1xf32>
    %2 = tpu.iota {dimensions = array<i32: 0>} : vector<124x62xi32>
    %3 = tpu.iota {dimensions = array<i32: 1>} : vector<124x62xi32>
    %c2_i32 = arith.constant 2 : i32
    %4 = vector.broadcast %c2_i32 : i32 to vector<124x62xi32>
    %5 = arith.muli %4, %3 : vector<124x62xi32>
    %6 = arith.cmpi eq, %2, %5 : vector<124x62xi32>
    %7 = arith.extui %6 : vector<124x62xi1> to vector<124x62xi32>
    %8 = arith.sitofp %7 : vector<124x62xi32> to vector<124x62xf32>
    %c2_i32_3 = arith.constant 2 : i32
    %9 = vector.broadcast %c2_i32_3 : i32 to vector<124x62xi32>
    %10 = arith.muli %9, %3 : vector<124x62xi32>
    %c1_i32 = arith.constant 1 : i32
    %11 = vector.broadcast %c1_i32 : i32 to vector<124x62xi32>
    %12 = arith.addi %10, %11 : vector<124x62xi32>
    %13 = arith.cmpi eq, %2, %12 : vector<124x62xi32>
    %14 = arith.extui %13 : vector<124x62xi1> to vector<124x62xi32>
    %15 = arith.sitofp %14 : vector<124x62xi32> to vector<124x62xf32>
    %c0_i32 = arith.constant 0 : i32
    %c31_i32 = arith.constant 31 : i32
    %16 = arith.addi %c0_i32, %c31_i32 : i32
    %c1_i32_4 = arith.constant 1 : i32
    scf.for %arg16 = %c0_i32 to %16 step %c1_i32_4  : i32 {
      %c4_i32 = arith.constant 4 : i32
      %214 = arith.muli %c4_i32, %arg16 : i32
      %c0_107 = arith.constant 0 : index
      %215 = arith.index_cast %214 : i32 to index
      %c0_108 = arith.constant 0 : index
      %216 = vector.load %arg1[%c0_107, %215, %c0_108] : memref<1x128x128xf32, #tpu.memory_space<vmem>>, vector<1x8x128xf32>
      %217 = vector.shape_cast %216 : vector<1x8x128xf32> to vector<8x128xf32>
      %218 = arith.truncf %217 : vector<8x128xf32> to vector<8x128xbf16>
      %219 = vector.extract_strided_slice %218 {offsets = [0, 0], sizes = [5, 128], strides = [1, 1]} : vector<8x128xbf16> to vector<5x128xbf16>
      %220 = vector.extract_strided_slice %219 {offsets = [0, 0], sizes = [5, 124], strides = [1, 1]} : vector<5x128xbf16> to vector<5x124xbf16>
      %221 = vector.extract_strided_slice %219 {offsets = [0, 1], sizes = [5, 124], strides = [1, 1]} : vector<5x128xbf16> to vector<5x124xbf16>
      %222 = vector.extract_strided_slice %219 {offsets = [0, 2], sizes = [5, 124], strides = [1, 1]} : vector<5x128xbf16> to vector<5x124xbf16>
      %223 = vector.extract_strided_slice %219 {offsets = [0, 3], sizes = [5, 124], strides = [1, 1]} : vector<5x128xbf16> to vector<5x124xbf16>
      %224 = vector.extract_strided_slice %219 {offsets = [0, 4], sizes = [5, 124], strides = [1, 1]} : vector<5x128xbf16> to vector<5x124xbf16>
      %225 = tpu.concatenate %220, %221, %222, %223, %224 in 0 : vector<5x124xbf16>, vector<5x124xbf16>, vector<5x124xbf16>, vector<5x124xbf16>, vector<5x124xbf16> -> vector<25x124xbf16>
      %226 = vector.extract_strided_slice %218 {offsets = [1, 0], sizes = [5, 128], strides = [1, 1]} : vector<8x128xbf16> to vector<5x128xbf16>
      %227 = vector.extract_strided_slice %226 {offsets = [0, 0], sizes = [5, 124], strides = [1, 1]} : vector<5x128xbf16> to vector<5x124xbf16>
      %228 = vector.extract_strided_slice %226 {offsets = [0, 1], sizes = [5, 124], strides = [1, 1]} : vector<5x128xbf16> to vector<5x124xbf16>
      %229 = vector.extract_strided_slice %226 {offsets = [0, 2], sizes = [5, 124], strides = [1, 1]} : vector<5x128xbf16> to vector<5x124xbf16>
      %230 = vector.extract_strided_slice %226 {offsets = [0, 3], sizes = [5, 124], strides = [1, 1]} : vector<5x128xbf16> to vector<5x124xbf16>
      %231 = vector.extract_strided_slice %226 {offsets = [0, 4], sizes = [5, 124], strides = [1, 1]} : vector<5x128xbf16> to vector<5x124xbf16>
      %232 = tpu.concatenate %227, %228, %229, %230, %231 in 0 : vector<5x124xbf16>, vector<5x124xbf16>, vector<5x124xbf16>, vector<5x124xbf16>, vector<5x124xbf16> -> vector<25x124xbf16>
      %233 = vector.extract_strided_slice %218 {offsets = [2, 0], sizes = [5, 128], strides = [1, 1]} : vector<8x128xbf16> to vector<5x128xbf16>
      %234 = vector.extract_strided_slice %233 {offsets = [0, 0], sizes = [5, 124], strides = [1, 1]} : vector<5x128xbf16> to vector<5x124xbf16>
      %235 = vector.extract_strided_slice %233 {offsets = [0, 1], sizes = [5, 124], strides = [1, 1]} : vector<5x128xbf16> to vector<5x124xbf16>
      %236 = vector.extract_strided_slice %233 {offsets = [0, 2], sizes = [5, 124], strides = [1, 1]} : vector<5x128xbf16> to vector<5x124xbf16>
      %237 = vector.extract_strided_slice %233 {offsets = [0, 3], sizes = [5, 124], strides = [1, 1]} : vector<5x128xbf16> to vector<5x124xbf16>
      %238 = vector.extract_strided_slice %233 {offsets = [0, 4], sizes = [5, 124], strides = [1, 1]} : vector<5x128xbf16> to vector<5x124xbf16>
      %239 = tpu.concatenate %234, %235, %236, %237, %238 in 0 : vector<5x124xbf16>, vector<5x124xbf16>, vector<5x124xbf16>, vector<5x124xbf16>, vector<5x124xbf16> -> vector<25x124xbf16>
      %240 = vector.extract_strided_slice %218 {offsets = [3, 0], sizes = [5, 128], strides = [1, 1]} : vector<8x128xbf16> to vector<5x128xbf16>
      %241 = vector.extract_strided_slice %240 {offsets = [0, 0], sizes = [5, 124], strides = [1, 1]} : vector<5x128xbf16> to vector<5x124xbf16>
      %242 = vector.extract_strided_slice %240 {offsets = [0, 1], sizes = [5, 124], strides = [1, 1]} : vector<5x128xbf16> to vector<5x124xbf16>
      %243 = vector.extract_strided_slice %240 {offsets = [0, 2], sizes = [5, 124], strides = [1, 1]} : vector<5x128xbf16> to vector<5x124xbf16>
      %244 = vector.extract_strided_slice %240 {offsets = [0, 3], sizes = [5, 124], strides = [1, 1]} : vector<5x128xbf16> to vector<5x124xbf16>
      %245 = vector.extract_strided_slice %240 {offsets = [0, 4], sizes = [5, 124], strides = [1, 1]} : vector<5x128xbf16> to vector<5x124xbf16>
      %246 = tpu.concatenate %241, %242, %243, %244, %245 in 0 : vector<5x124xbf16>, vector<5x124xbf16>, vector<5x124xbf16>, vector<5x124xbf16>, vector<5x124xbf16> -> vector<25x124xbf16>
      %247 = tpu.concatenate %225, %232, %239, %246 in 1 : vector<25x124xbf16>, vector<25x124xbf16>, vector<25x124xbf16>, vector<25x124xbf16> -> vector<25x496xbf16>
      %cst_109 = arith.constant dense<0.000000e+00> : vector<16x496xf32>
      %248 = tpu.matmul %0, %247, %cst_109 {dimension_numbers = #tpu.dot_dimension_numbers<[1], [0], [0], [1], [0, 0, 1, 1], [], []>} : vector<16x25xbf16>, vector<25x496xbf16>, vector<16x496xf32> -> vector<16x496xf32>
      %249 = vector.broadcast %1 : vector<16x1xf32> to vector<16x496xf32>
      %250 = arith.addf %248, %249 : vector<16x496xf32>
      %cst_110 = arith.constant 0.000000e+00 : f32
      %251 = vector.broadcast %cst_110 : f32 to vector<16x496xf32>
      %252 = arith.maximumf %250, %251 : vector<16x496xf32>
      %253 = vector.extract_strided_slice %252 {offsets = [0, 0], sizes = [16, 124], strides = [1, 1]} : vector<16x496xf32> to vector<16x124xf32>
      %254 = vector.extract_strided_slice %252 {offsets = [0, 124], sizes = [16, 124], strides = [1, 1]} : vector<16x496xf32> to vector<16x124xf32>
      %255 = arith.maximumf %253, %254 : vector<16x124xf32>
      %256 = vector.extract_strided_slice %252 {offsets = [0, 248], sizes = [16, 124], strides = [1, 1]} : vector<16x496xf32> to vector<16x124xf32>
      %257 = vector.extract_strided_slice %252 {offsets = [0, 372], sizes = [16, 124], strides = [1, 1]} : vector<16x496xf32> to vector<16x124xf32>
      %258 = arith.maximumf %256, %257 : vector<16x124xf32>
      %259 = tpu.concatenate %255, %258 in 0 : vector<16x124xf32>, vector<16x124xf32> -> vector<32x124xf32>
      %cst_111 = arith.constant dense<0.000000e+00> : vector<32x62xf32>
      %260 = tpu.matmul %259, %8, %cst_111 {dimension_numbers = #tpu.dot_dimension_numbers<[1], [0], [0], [1], [0, 0, 1, 1], [], []>} : vector<32x124xf32>, vector<124x62xf32>, vector<32x62xf32> -> vector<32x62xf32>
      %cst_112 = arith.constant dense<0.000000e+00> : vector<32x62xf32>
      %261 = tpu.matmul %259, %15, %cst_112 {dimension_numbers = #tpu.dot_dimension_numbers<[1], [0], [0], [1], [0, 0, 1, 1], [], []>} : vector<32x124xf32>, vector<124x62xf32>, vector<32x62xf32> -> vector<32x62xf32>
      %262 = arith.maximumf %260, %261 : vector<32x62xf32>
      %263 = tpu.transpose %262, [1, 0] : vector<32x62xf32> -> vector<62x32xf32>
      %264 = vector.extract_strided_slice %263 {offsets = [0, 0], sizes = [62, 16], strides = [1, 1]} : vector<62x32xf32> to vector<62x16xf32>
      %c2_i32_113 = arith.constant 2 : i32
      %265 = arith.muli %c2_i32_113, %arg16 : i32
      %266 = arith.index_cast %265 : i32 to index
      %c0_114 = arith.constant 0 : index
      %c0_115 = arith.constant 0 : index
      %267 = vector.load %arg13[%266, %c0_114, %c0_115] : memref<62x62x16xf32, #tpu.memory_space<vmem>>, vector<1x62x16xf32>
      %268 = vector.shape_cast %267 : vector<1x62x16xf32> to vector<62x16xf32>
      %269 = vector.shape_cast %264 : vector<62x16xf32> to vector<1x62x16xf32>
      tpu.vector_store %arg13[%266, %c0_114, %c0_115], %269 {strides = array<i32>} : memref<62x62x16xf32, #tpu.memory_space<vmem>>, vector<1x62x16xf32>,
      %270 = vector.extract_strided_slice %263 {offsets = [0, 16], sizes = [62, 16], strides = [1, 1]} : vector<62x32xf32> to vector<62x16xf32>
      %c2_i32_116 = arith.constant 2 : i32
      %271 = arith.muli %c2_i32_116, %arg16 : i32
      %c1_i32_117 = arith.constant 1 : i32
      %272 = arith.addi %271, %c1_i32_117 : i32
      %273 = arith.index_cast %272 : i32 to index
      %c0_118 = arith.constant 0 : index
      %c0_119 = arith.constant 0 : index
      %274 = vector.load %arg13[%273, %c0_118, %c0_119] : memref<62x62x16xf32, #tpu.memory_space<vmem>>, vector<1x62x16xf32>
      %275 = vector.shape_cast %274 : vector<1x62x16xf32> to vector<62x16xf32>
      %276 = vector.shape_cast %270 : vector<62x16xf32> to vector<1x62x16xf32>
      tpu.vector_store %arg13[%273, %c0_118, %c0_119], %276 {strides = array<i32>} : memref<62x62x16xf32, #tpu.memory_space<vmem>>, vector<1x62x16xf32>,
    }
    %c31_i32_5 = arith.constant 31 : i32
    %c0_6 = arith.constant 0 : index
    %c0_7 = arith.constant 0 : index
    %17 = vector.load %arg5[%c0_6, %c0_7] : memref<1x32xf32, #tpu.memory_space<vmem>>, vector<1x32xf32>
    %18 = tpu.iota {dimensions = array<i32: 0>} : vector<29x58xi32>
    %19 = tpu.iota {dimensions = array<i32: 1>} : vector<29x58xi32>
    %c2_i32_8 = arith.constant 2 : i32
    %20 = vector.broadcast %c2_i32_8 : i32 to vector<29x58xi32>
    %21 = arith.muli %20, %18 : vector<29x58xi32>
    %22 = arith.cmpi eq, %19, %21 : vector<29x58xi32>
    %23 = arith.extui %22 : vector<29x58xi1> to vector<29x58xi32>
    %24 = arith.sitofp %23 : vector<29x58xi32> to vector<29x58xf32>
    %c2_i32_9 = arith.constant 2 : i32
    %25 = vector.broadcast %c2_i32_9 : i32 to vector<29x58xi32>
    %26 = arith.muli %25, %18 : vector<29x58xi32>
    %c1_i32_10 = arith.constant 1 : i32
    %27 = vector.broadcast %c1_i32_10 : i32 to vector<29x58xi32>
    %28 = arith.addi %26, %27 : vector<29x58xi32>
    %29 = arith.cmpi eq, %19, %28 : vector<29x58xi32>
    %30 = arith.extui %29 : vector<29x58xi1> to vector<29x58xi32>
    %31 = arith.sitofp %30 : vector<29x58xi32> to vector<29x58xf32>
    %c0_i32_11 = arith.constant 0 : i32
    %c29_i32 = arith.constant 29 : i32
    %32 = arith.addi %c0_i32_11, %c29_i32 : i32
    %c1_i32_12 = arith.constant 1 : i32
    scf.for %arg16 = %c0_i32_11 to %32 step %c1_i32_12  : i32 {
      %c2_i32_107 = arith.constant 2 : i32
      %214 = arith.muli %c2_i32_107, %arg16 : i32
      %c0_i32_108 = arith.constant 0 : i32
      %215 = arith.addi %214, %c0_i32_108 : i32
      %216 = arith.index_cast %215 : i32 to index
      %c0_109 = arith.constant 0 : index
      %c0_110 = arith.constant 0 : index
      %217 = vector.load %arg13[%216, %c0_109, %c0_110] : memref<62x62x16xf32, #tpu.memory_space<vmem>>, vector<1x62x16xf32>
      %218 = vector.shape_cast %217 : vector<1x62x16xf32> to vector<62x16xf32>
      %c1_i32_111 = arith.constant 1 : i32
      %219 = arith.addi %214, %c1_i32_111 : i32
      %220 = arith.index_cast %219 : i32 to index
      %c0_112 = arith.constant 0 : index
      %c0_113 = arith.constant 0 : index
      %221 = vector.load %arg13[%220, %c0_112, %c0_113] : memref<62x62x16xf32, #tpu.memory_space<vmem>>, vector<1x62x16xf32>
      %222 = vector.shape_cast %221 : vector<1x62x16xf32> to vector<62x16xf32>
      %c2_i32_114 = arith.constant 2 : i32
      %223 = arith.addi %214, %c2_i32_114 : i32
      %224 = arith.index_cast %223 : i32 to index
      %c0_115 = arith.constant 0 : index
      %c0_116 = arith.constant 0 : index
      %225 = vector.load %arg13[%224, %c0_115, %c0_116] : memref<62x62x16xf32, #tpu.memory_space<vmem>>, vector<1x62x16xf32>
      %226 = vector.shape_cast %225 : vector<1x62x16xf32> to vector<62x16xf32>
      %c3_i32 = arith.constant 3 : i32
      %227 = arith.addi %214, %c3_i32 : i32
      %228 = arith.index_cast %227 : i32 to index
      %c0_117 = arith.constant 0 : index
      %c0_118 = arith.constant 0 : index
      %229 = vector.load %arg13[%228, %c0_117, %c0_118] : memref<62x62x16xf32, #tpu.memory_space<vmem>>, vector<1x62x16xf32>
      %230 = vector.shape_cast %229 : vector<1x62x16xf32> to vector<62x16xf32>
      %c4_i32 = arith.constant 4 : i32
      %231 = arith.addi %214, %c4_i32 : i32
      %232 = arith.index_cast %231 : i32 to index
      %c0_119 = arith.constant 0 : index
      %c0_120 = arith.constant 0 : index
      %233 = vector.load %arg13[%232, %c0_119, %c0_120] : memref<62x62x16xf32, #tpu.memory_space<vmem>>, vector<1x62x16xf32>
      %234 = vector.shape_cast %233 : vector<1x62x16xf32> to vector<62x16xf32>
      %c5_i32 = arith.constant 5 : i32
      %235 = arith.addi %214, %c5_i32 : i32
      %236 = arith.index_cast %235 : i32 to index
      %c0_121 = arith.constant 0 : index
      %c0_122 = arith.constant 0 : index
      %237 = vector.load %arg13[%236, %c0_121, %c0_122] : memref<62x62x16xf32, #tpu.memory_space<vmem>>, vector<1x62x16xf32>
      %238 = vector.shape_cast %237 : vector<1x62x16xf32> to vector<62x16xf32>
      %239 = tpu.concatenate %218, %222, %226, %230, %234 in 1 : vector<62x16xf32>, vector<62x16xf32>, vector<62x16xf32>, vector<62x16xf32>, vector<62x16xf32> -> vector<62x80xf32>
      %240 = vector.extract_strided_slice %239 {offsets = [0, 0], sizes = [58, 80], strides = [1, 1]} : vector<62x80xf32> to vector<58x80xf32>
      %241 = vector.extract_strided_slice %239 {offsets = [1, 0], sizes = [58, 80], strides = [1, 1]} : vector<62x80xf32> to vector<58x80xf32>
      %242 = vector.extract_strided_slice %239 {offsets = [2, 0], sizes = [58, 80], strides = [1, 1]} : vector<62x80xf32> to vector<58x80xf32>
      %243 = vector.extract_strided_slice %239 {offsets = [3, 0], sizes = [58, 80], strides = [1, 1]} : vector<62x80xf32> to vector<58x80xf32>
      %244 = vector.extract_strided_slice %239 {offsets = [4, 0], sizes = [58, 80], strides = [1, 1]} : vector<62x80xf32> to vector<58x80xf32>
      %245 = tpu.concatenate %240, %241, %242, %243, %244 in 1 : vector<58x80xf32>, vector<58x80xf32>, vector<58x80xf32>, vector<58x80xf32>, vector<58x80xf32> -> vector<58x400xf32>
      %246 = tpu.concatenate %222, %226, %230, %234, %238 in 1 : vector<62x16xf32>, vector<62x16xf32>, vector<62x16xf32>, vector<62x16xf32>, vector<62x16xf32> -> vector<62x80xf32>
      %247 = vector.extract_strided_slice %246 {offsets = [0, 0], sizes = [58, 80], strides = [1, 1]} : vector<62x80xf32> to vector<58x80xf32>
      %248 = vector.extract_strided_slice %246 {offsets = [1, 0], sizes = [58, 80], strides = [1, 1]} : vector<62x80xf32> to vector<58x80xf32>
      %249 = vector.extract_strided_slice %246 {offsets = [2, 0], sizes = [58, 80], strides = [1, 1]} : vector<62x80xf32> to vector<58x80xf32>
      %250 = vector.extract_strided_slice %246 {offsets = [3, 0], sizes = [58, 80], strides = [1, 1]} : vector<62x80xf32> to vector<58x80xf32>
      %251 = vector.extract_strided_slice %246 {offsets = [4, 0], sizes = [58, 80], strides = [1, 1]} : vector<62x80xf32> to vector<58x80xf32>
      %252 = tpu.concatenate %247, %248, %249, %250, %251 in 1 : vector<58x80xf32>, vector<58x80xf32>, vector<58x80xf32>, vector<58x80xf32>, vector<58x80xf32> -> vector<58x400xf32>
      %253 = tpu.concatenate %245, %252 in 0 : vector<58x400xf32>, vector<58x400xf32> -> vector<116x400xf32>
      %254 = arith.truncf %253 : vector<116x400xf32> to vector<116x400xbf16>
      %c0_123 = arith.constant 0 : index
      %c0_124 = arith.constant 0 : index
      %255 = vector.load %arg4[%c0_123, %c0_124] : memref<400x32xbf16, #tpu.memory_space<vmem>>, vector<400x32xbf16>
      %cst_125 = arith.constant dense<0.000000e+00> : vector<116x32xf32>
      %256 = tpu.matmul %254, %255, %cst_125 {dimension_numbers = #tpu.dot_dimension_numbers<[1], [0], [0], [1], [0, 0, 1, 1], [], []>} : vector<116x400xbf16>, vector<400x32xbf16>, vector<116x32xf32> -> vector<116x32xf32>
      %257 = vector.broadcast %17 : vector<1x32xf32> to vector<116x32xf32>
      %258 = arith.addf %256, %257 : vector<116x32xf32>
      %cst_126 = arith.constant 0.000000e+00 : f32
      %259 = vector.broadcast %cst_126 : f32 to vector<116x32xf32>
      %260 = arith.maximumf %258, %259 : vector<116x32xf32>
      %261 = vector.extract_strided_slice %260 {offsets = [0, 0], sizes = [58, 32], strides = [1, 1]} : vector<116x32xf32> to vector<58x32xf32>
      %262 = vector.extract_strided_slice %260 {offsets = [58, 0], sizes = [58, 32], strides = [1, 1]} : vector<116x32xf32> to vector<58x32xf32>
      %263 = arith.maximumf %261, %262 : vector<58x32xf32>
      %cst_127 = arith.constant dense<0.000000e+00> : vector<29x32xf32>
      %264 = tpu.matmul %24, %263, %cst_127 {dimension_numbers = #tpu.dot_dimension_numbers<[1], [0], [0], [1], [0, 0, 1, 1], [], []>} : vector<29x58xf32>, vector<58x32xf32>, vector<29x32xf32> -> vector<29x32xf32>
      %cst_128 = arith.constant dense<0.000000e+00> : vector<29x32xf32>
      %265 = tpu.matmul %31, %263, %cst_128 {dimension_numbers = #tpu.dot_dimension_numbers<[1], [0], [0], [1], [0, 0, 1, 1], [], []>} : vector<29x58xf32>, vector<58x32xf32>, vector<29x32xf32> -> vector<29x32xf32>
      %266 = arith.maximumf %264, %265 : vector<29x32xf32>
      %267 = arith.index_cast %arg16 : i32 to index
      %c0_129 = arith.constant 0 : index
      %c0_130 = arith.constant 0 : index
      %268 = vector.load %arg14[%267, %c0_129, %c0_130] : memref<29x29x32xf32, #tpu.memory_space<vmem>>, vector<1x29x32xf32>
      %269 = vector.shape_cast %268 : vector<1x29x32xf32> to vector<29x32xf32>
      %270 = vector.shape_cast %266 : vector<29x32xf32> to vector<1x29x32xf32>
      tpu.vector_store %arg14[%267, %c0_129, %c0_130], %270 {strides = array<i32>} : memref<29x29x32xf32, #tpu.memory_space<vmem>>, vector<1x29x32xf32>,
    }
    %c29_i32_13 = arith.constant 29 : i32
    %c0_14 = arith.constant 0 : index
    %c0_15 = arith.constant 0 : index
    %33 = vector.load %arg7[%c0_14, %c0_15] : memref<1x64xf32, #tpu.memory_space<vmem>>, vector<1x64xf32>
    %34 = tpu.iota {dimensions = array<i32: 0>} : vector<12x24xi32>
    %35 = tpu.iota {dimensions = array<i32: 1>} : vector<12x24xi32>
    %c2_i32_16 = arith.constant 2 : i32
    %36 = vector.broadcast %c2_i32_16 : i32 to vector<12x24xi32>
    %37 = arith.muli %36, %34 : vector<12x24xi32>
    %38 = arith.cmpi eq, %35, %37 : vector<12x24xi32>
    %39 = arith.extui %38 : vector<12x24xi1> to vector<12x24xi32>
    %40 = arith.sitofp %39 : vector<12x24xi32> to vector<12x24xf32>
    %c2_i32_17 = arith.constant 2 : i32
    %41 = vector.broadcast %c2_i32_17 : i32 to vector<12x24xi32>
    %42 = arith.muli %41, %34 : vector<12x24xi32>
    %c1_i32_18 = arith.constant 1 : i32
    %43 = vector.broadcast %c1_i32_18 : i32 to vector<12x24xi32>
    %44 = arith.addi %42, %43 : vector<12x24xi32>
    %45 = arith.cmpi eq, %35, %44 : vector<12x24xi32>
    %46 = arith.extui %45 : vector<12x24xi1> to vector<12x24xi32>
    %47 = arith.sitofp %46 : vector<12x24xi32> to vector<12x24xf32>
    %c0_i32_19 = arith.constant 0 : i32
    %c6_i32 = arith.constant 6 : i32
    %48 = arith.addi %c0_i32_19, %c6_i32 : i32
    %c1_i32_20 = arith.constant 1 : i32
    scf.for %arg16 = %c0_i32_19 to %48 step %c1_i32_20  : i32 {
      %c4_i32 = arith.constant 4 : i32
      %214 = arith.muli %c4_i32, %arg16 : i32
      %c0_i32_107 = arith.constant 0 : i32
      %215 = arith.addi %214, %c0_i32_107 : i32
      %216 = arith.index_cast %215 : i32 to index
      %c0_108 = arith.constant 0 : index
      %c0_109 = arith.constant 0 : index
      %217 = vector.load %arg14[%216, %c0_108, %c0_109] : memref<29x29x32xf32, #tpu.memory_space<vmem>>, vector<1x29x32xf32>
      %218 = vector.shape_cast %217 : vector<1x29x32xf32> to vector<29x32xf32>
      %c1_i32_110 = arith.constant 1 : i32
      %219 = arith.addi %214, %c1_i32_110 : i32
      %220 = arith.index_cast %219 : i32 to index
      %c0_111 = arith.constant 0 : index
      %c0_112 = arith.constant 0 : index
      %221 = vector.load %arg14[%220, %c0_111, %c0_112] : memref<29x29x32xf32, #tpu.memory_space<vmem>>, vector<1x29x32xf32>
      %222 = vector.shape_cast %221 : vector<1x29x32xf32> to vector<29x32xf32>
      %c2_i32_113 = arith.constant 2 : i32
      %223 = arith.addi %214, %c2_i32_113 : i32
      %224 = arith.index_cast %223 : i32 to index
      %c0_114 = arith.constant 0 : index
      %c0_115 = arith.constant 0 : index
      %225 = vector.load %arg14[%224, %c0_114, %c0_115] : memref<29x29x32xf32, #tpu.memory_space<vmem>>, vector<1x29x32xf32>
      %226 = vector.shape_cast %225 : vector<1x29x32xf32> to vector<29x32xf32>
      %c3_i32 = arith.constant 3 : i32
      %227 = arith.addi %214, %c3_i32 : i32
      %228 = arith.index_cast %227 : i32 to index
      %c0_116 = arith.constant 0 : index
      %c0_117 = arith.constant 0 : index
      %229 = vector.load %arg14[%228, %c0_116, %c0_117] : memref<29x29x32xf32, #tpu.memory_space<vmem>>, vector<1x29x32xf32>
      %230 = vector.shape_cast %229 : vector<1x29x32xf32> to vector<29x32xf32>
      %c4_i32_118 = arith.constant 4 : i32
      %231 = arith.addi %214, %c4_i32_118 : i32
      %232 = arith.index_cast %231 : i32 to index
      %c0_119 = arith.constant 0 : index
      %c0_120 = arith.constant 0 : index
      %233 = vector.load %arg14[%232, %c0_119, %c0_120] : memref<29x29x32xf32, #tpu.memory_space<vmem>>, vector<1x29x32xf32>
      %234 = vector.shape_cast %233 : vector<1x29x32xf32> to vector<29x32xf32>
      %c5_i32 = arith.constant 5 : i32
      %235 = arith.addi %214, %c5_i32 : i32
      %236 = arith.index_cast %235 : i32 to index
      %c0_121 = arith.constant 0 : index
      %c0_122 = arith.constant 0 : index
      %237 = vector.load %arg14[%236, %c0_121, %c0_122] : memref<29x29x32xf32, #tpu.memory_space<vmem>>, vector<1x29x32xf32>
      %238 = vector.shape_cast %237 : vector<1x29x32xf32> to vector<29x32xf32>
      %c6_i32_123 = arith.constant 6 : i32
      %239 = arith.addi %214, %c6_i32_123 : i32
      %240 = arith.index_cast %239 : i32 to index
      %c0_124 = arith.constant 0 : index
      %c0_125 = arith.constant 0 : index
      %241 = vector.load %arg14[%240, %c0_124, %c0_125] : memref<29x29x32xf32, #tpu.memory_space<vmem>>, vector<1x29x32xf32>
      %242 = vector.shape_cast %241 : vector<1x29x32xf32> to vector<29x32xf32>
      %c7_i32 = arith.constant 7 : i32
      %243 = arith.addi %214, %c7_i32 : i32
      %244 = arith.index_cast %243 : i32 to index
      %c0_126 = arith.constant 0 : index
      %c0_127 = arith.constant 0 : index
      %245 = vector.load %arg14[%244, %c0_126, %c0_127] : memref<29x29x32xf32, #tpu.memory_space<vmem>>, vector<1x29x32xf32>
      %246 = vector.shape_cast %245 : vector<1x29x32xf32> to vector<29x32xf32>
      %c8_i32 = arith.constant 8 : i32
      %247 = arith.addi %214, %c8_i32 : i32
      %248 = arith.index_cast %247 : i32 to index
      %c0_128 = arith.constant 0 : index
      %c0_129 = arith.constant 0 : index
      %249 = vector.load %arg14[%248, %c0_128, %c0_129] : memref<29x29x32xf32, #tpu.memory_space<vmem>>, vector<1x29x32xf32>
      %250 = vector.shape_cast %249 : vector<1x29x32xf32> to vector<29x32xf32>
      %251 = tpu.concatenate %218, %222, %226, %230, %234, %238 in 1 : vector<29x32xf32>, vector<29x32xf32>, vector<29x32xf32>, vector<29x32xf32>, vector<29x32xf32>, vector<29x32xf32> -> vector<29x192xf32>
      %252 = vector.extract_strided_slice %251 {offsets = [0, 0], sizes = [24, 192], strides = [1, 1]} : vector<29x192xf32> to vector<24x192xf32>
      %253 = vector.extract_strided_slice %251 {offsets = [1, 0], sizes = [24, 192], strides = [1, 1]} : vector<29x192xf32> to vector<24x192xf32>
      %254 = vector.extract_strided_slice %251 {offsets = [2, 0], sizes = [24, 192], strides = [1, 1]} : vector<29x192xf32> to vector<24x192xf32>
      %255 = vector.extract_strided_slice %251 {offsets = [3, 0], sizes = [24, 192], strides = [1, 1]} : vector<29x192xf32> to vector<24x192xf32>
      %256 = vector.extract_strided_slice %251 {offsets = [4, 0], sizes = [24, 192], strides = [1, 1]} : vector<29x192xf32> to vector<24x192xf32>
      %257 = vector.extract_strided_slice %251 {offsets = [5, 0], sizes = [24, 192], strides = [1, 1]} : vector<29x192xf32> to vector<24x192xf32>
      %258 = tpu.concatenate %252, %253, %254, %255, %256, %257 in 1 : vector<24x192xf32>, vector<24x192xf32>, vector<24x192xf32>, vector<24x192xf32>, vector<24x192xf32>, vector<24x192xf32> -> vector<24x1152xf32>
      %259 = tpu.concatenate %222, %226, %230, %234, %238, %242 in 1 : vector<29x32xf32>, vector<29x32xf32>, vector<29x32xf32>, vector<29x32xf32>, vector<29x32xf32>, vector<29x32xf32> -> vector<29x192xf32>
      %260 = vector.extract_strided_slice %259 {offsets = [0, 0], sizes = [24, 192], strides = [1, 1]} : vector<29x192xf32> to vector<24x192xf32>
      %261 = vector.extract_strided_slice %259 {offsets = [1, 0], sizes = [24, 192], strides = [1, 1]} : vector<29x192xf32> to vector<24x192xf32>
      %262 = vector.extract_strided_slice %259 {offsets = [2, 0], sizes = [24, 192], strides = [1, 1]} : vector<29x192xf32> to vector<24x192xf32>
      %263 = vector.extract_strided_slice %259 {offsets = [3, 0], sizes = [24, 192], strides = [1, 1]} : vector<29x192xf32> to vector<24x192xf32>
      %264 = vector.extract_strided_slice %259 {offsets = [4, 0], sizes = [24, 192], strides = [1, 1]} : vector<29x192xf32> to vector<24x192xf32>
      %265 = vector.extract_strided_slice %259 {offsets = [5, 0], sizes = [24, 192], strides = [1, 1]} : vector<29x192xf32> to vector<24x192xf32>
      %266 = tpu.concatenate %260, %261, %262, %263, %264, %265 in 1 : vector<24x192xf32>, vector<24x192xf32>, vector<24x192xf32>, vector<24x192xf32>, vector<24x192xf32>, vector<24x192xf32> -> vector<24x1152xf32>
      %267 = tpu.concatenate %226, %230, %234, %238, %242, %246 in 1 : vector<29x32xf32>, vector<29x32xf32>, vector<29x32xf32>, vector<29x32xf32>, vector<29x32xf32>, vector<29x32xf32> -> vector<29x192xf32>
      %268 = vector.extract_strided_slice %267 {offsets = [0, 0], sizes = [24, 192], strides = [1, 1]} : vector<29x192xf32> to vector<24x192xf32>
      %269 = vector.extract_strided_slice %267 {offsets = [1, 0], sizes = [24, 192], strides = [1, 1]} : vector<29x192xf32> to vector<24x192xf32>
      %270 = vector.extract_strided_slice %267 {offsets = [2, 0], sizes = [24, 192], strides = [1, 1]} : vector<29x192xf32> to vector<24x192xf32>
      %271 = vector.extract_strided_slice %267 {offsets = [3, 0], sizes = [24, 192], strides = [1, 1]} : vector<29x192xf32> to vector<24x192xf32>
      %272 = vector.extract_strided_slice %267 {offsets = [4, 0], sizes = [24, 192], strides = [1, 1]} : vector<29x192xf32> to vector<24x192xf32>
      %273 = vector.extract_strided_slice %267 {offsets = [5, 0], sizes = [24, 192], strides = [1, 1]} : vector<29x192xf32> to vector<24x192xf32>
      %274 = tpu.concatenate %268, %269, %270, %271, %272, %273 in 1 : vector<24x192xf32>, vector<24x192xf32>, vector<24x192xf32>, vector<24x192xf32>, vector<24x192xf32>, vector<24x192xf32> -> vector<24x1152xf32>
      %275 = tpu.concatenate %230, %234, %238, %242, %246, %250 in 1 : vector<29x32xf32>, vector<29x32xf32>, vector<29x32xf32>, vector<29x32xf32>, vector<29x32xf32>, vector<29x32xf32> -> vector<29x192xf32>
      %276 = vector.extract_strided_slice %275 {offsets = [0, 0], sizes = [24, 192], strides = [1, 1]} : vector<29x192xf32> to vector<24x192xf32>
      %277 = vector.extract_strided_slice %275 {offsets = [1, 0], sizes = [24, 192], strides = [1, 1]} : vector<29x192xf32> to vector<24x192xf32>
      %278 = vector.extract_strided_slice %275 {offsets = [2, 0], sizes = [24, 192], strides = [1, 1]} : vector<29x192xf32> to vector<24x192xf32>
      %279 = vector.extract_strided_slice %275 {offsets = [3, 0], sizes = [24, 192], strides = [1, 1]} : vector<29x192xf32> to vector<24x192xf32>
      %280 = vector.extract_strided_slice %275 {offsets = [4, 0], sizes = [24, 192], strides = [1, 1]} : vector<29x192xf32> to vector<24x192xf32>
      %281 = vector.extract_strided_slice %275 {offsets = [5, 0], sizes = [24, 192], strides = [1, 1]} : vector<29x192xf32> to vector<24x192xf32>
      %282 = tpu.concatenate %276, %277, %278, %279, %280, %281 in 1 : vector<24x192xf32>, vector<24x192xf32>, vector<24x192xf32>, vector<24x192xf32>, vector<24x192xf32>, vector<24x192xf32> -> vector<24x1152xf32>
      %283 = tpu.concatenate %258, %266, %274, %282 in 0 : vector<24x1152xf32>, vector<24x1152xf32>, vector<24x1152xf32>, vector<24x1152xf32> -> vector<96x1152xf32>
      %284 = arith.truncf %283 : vector<96x1152xf32> to vector<96x1152xbf16>
      %c0_130 = arith.constant 0 : index
      %c0_131 = arith.constant 0 : index
      %285 = vector.load %arg6[%c0_130, %c0_131] : memref<1152x64xbf16, #tpu.memory_space<vmem>>, vector<1152x64xbf16>
      %cst_132 = arith.constant dense<0.000000e+00> : vector<96x64xf32>
      %286 = tpu.matmul %284, %285, %cst_132 {dimension_numbers = #tpu.dot_dimension_numbers<[1], [0], [0], [1], [0, 0, 1, 1], [], []>} : vector<96x1152xbf16>, vector<1152x64xbf16>, vector<96x64xf32> -> vector<96x64xf32>
      %287 = vector.broadcast %33 : vector<1x64xf32> to vector<96x64xf32>
      %288 = arith.addf %286, %287 : vector<96x64xf32>
      %cst_133 = arith.constant 0.000000e+00 : f32
      %289 = vector.broadcast %cst_133 : f32 to vector<96x64xf32>
      %290 = arith.maximumf %288, %289 : vector<96x64xf32>
      %291 = vector.extract_strided_slice %290 {offsets = [0, 0], sizes = [24, 64], strides = [1, 1]} : vector<96x64xf32> to vector<24x64xf32>
      %292 = vector.extract_strided_slice %290 {offsets = [24, 0], sizes = [24, 64], strides = [1, 1]} : vector<96x64xf32> to vector<24x64xf32>
      %293 = arith.maximumf %291, %292 : vector<24x64xf32>
      %294 = vector.extract_strided_slice %290 {offsets = [48, 0], sizes = [24, 64], strides = [1, 1]} : vector<96x64xf32> to vector<24x64xf32>
      %295 = vector.extract_strided_slice %290 {offsets = [72, 0], sizes = [24, 64], strides = [1, 1]} : vector<96x64xf32> to vector<24x64xf32>
      %296 = arith.maximumf %294, %295 : vector<24x64xf32>
      %cst_134 = arith.constant dense<0.000000e+00> : vector<12x64xf32>
      %297 = tpu.matmul %40, %293, %cst_134 {dimension_numbers = #tpu.dot_dimension_numbers<[1], [0], [0], [1], [0, 0, 1, 1], [], []>} : vector<12x24xf32>, vector<24x64xf32>, vector<12x64xf32> -> vector<12x64xf32>
      %cst_135 = arith.constant dense<0.000000e+00> : vector<12x64xf32>
      %298 = tpu.matmul %47, %293, %cst_135 {dimension_numbers = #tpu.dot_dimension_numbers<[1], [0], [0], [1], [0, 0, 1, 1], [], []>} : vector<12x24xf32>, vector<24x64xf32>, vector<12x64xf32> -> vector<12x64xf32>
      %299 = arith.maximumf %297, %298 : vector<12x64xf32>
      %c2_i32_136 = arith.constant 2 : i32
      %300 = arith.muli %c2_i32_136, %arg16 : i32
      %301 = arith.index_cast %300 : i32 to index
      %c0_137 = arith.constant 0 : index
      %c0_138 = arith.constant 0 : index
      %302 = vector.load %arg15[%301, %c0_137, %c0_138] : memref<12x12x64xf32, #tpu.memory_space<vmem>>, vector<1x12x64xf32>
      %303 = vector.shape_cast %302 : vector<1x12x64xf32> to vector<12x64xf32>
      %304 = vector.shape_cast %299 : vector<12x64xf32> to vector<1x12x64xf32>
      tpu.vector_store %arg15[%301, %c0_137, %c0_138], %304 {strides = array<i32>} : memref<12x12x64xf32, #tpu.memory_space<vmem>>, vector<1x12x64xf32>,
      %cst_139 = arith.constant dense<0.000000e+00> : vector<12x64xf32>
      %305 = tpu.matmul %40, %296, %cst_139 {dimension_numbers = #tpu.dot_dimension_numbers<[1], [0], [0], [1], [0, 0, 1, 1], [], []>} : vector<12x24xf32>, vector<24x64xf32>, vector<12x64xf32> -> vector<12x64xf32>
      %cst_140 = arith.constant dense<0.000000e+00> : vector<12x64xf32>
      %306 = tpu.matmul %47, %296, %cst_140 {dimension_numbers = #tpu.dot_dimension_numbers<[1], [0], [0], [1], [0, 0, 1, 1], [], []>} : vector<12x24xf32>, vector<24x64xf32>, vector<12x64xf32> -> vector<12x64xf32>
      %307 = arith.maximumf %305, %306 : vector<12x64xf32>
      %c2_i32_141 = arith.constant 2 : i32
      %308 = arith.muli %c2_i32_141, %arg16 : i32
      %c1_i32_142 = arith.constant 1 : i32
      %309 = arith.addi %308, %c1_i32_142 : i32
      %310 = arith.index_cast %309 : i32 to index
      %c0_143 = arith.constant 0 : index
      %c0_144 = arith.constant 0 : index
      %311 = vector.load %arg15[%310, %c0_143, %c0_144] : memref<12x12x64xf32, #tpu.memory_space<vmem>>, vector<1x12x64xf32>
      %312 = vector.shape_cast %311 : vector<1x12x64xf32> to vector<12x64xf32>
      %313 = vector.shape_cast %307 : vector<12x64xf32> to vector<1x12x64xf32>
      tpu.vector_store %arg15[%310, %c0_143, %c0_144], %313 {strides = array<i32>} : memref<12x12x64xf32, #tpu.memory_space<vmem>>, vector<1x12x64xf32>,
    }
    %c6_i32_21 = arith.constant 6 : i32
    %c0_22 = arith.constant 0 : index
    %c0_23 = arith.constant 0 : index
    %49 = vector.load %arg9[%c0_22, %c0_23] : memref<1x128xf32, #tpu.memory_space<vmem>>, vector<1x128xf32>
    %c0_24 = arith.constant 0 : index
    %c0_25 = arith.constant 0 : index
    %c0_26 = arith.constant 0 : index
    %50 = vector.load %arg15[%c0_24, %c0_25, %c0_26] : memref<12x12x64xf32, #tpu.memory_space<vmem>>, vector<1x12x64xf32>
    %51 = vector.shape_cast %50 : vector<1x12x64xf32> to vector<12x64xf32>
    %c1 = arith.constant 1 : index
    %c0_27 = arith.constant 0 : index
    %c0_28 = arith.constant 0 : index
    %52 = vector.load %arg15[%c1, %c0_27, %c0_28] : memref<12x12x64xf32, #tpu.memory_space<vmem>>, vector<1x12x64xf32>
    %53 = vector.shape_cast %52 : vector<1x12x64xf32> to vector<12x64xf32>
    %c2 = arith.constant 2 : index
    %c0_29 = arith.constant 0 : index
    %c0_30 = arith.constant 0 : index
    %54 = vector.load %arg15[%c2, %c0_29, %c0_30] : memref<12x12x64xf32, #tpu.memory_space<vmem>>, vector<1x12x64xf32>
    %55 = vector.shape_cast %54 : vector<1x12x64xf32> to vector<12x64xf32>
    %c3 = arith.constant 3 : index
    %c0_31 = arith.constant 0 : index
    %c0_32 = arith.constant 0 : index
    %56 = vector.load %arg15[%c3, %c0_31, %c0_32] : memref<12x12x64xf32, #tpu.memory_space<vmem>>, vector<1x12x64xf32>
    %57 = vector.shape_cast %56 : vector<1x12x64xf32> to vector<12x64xf32>
    %c4 = arith.constant 4 : index
    %c0_33 = arith.constant 0 : index
    %c0_34 = arith.constant 0 : index
    %58 = vector.load %arg15[%c4, %c0_33, %c0_34] : memref<12x12x64xf32, #tpu.memory_space<vmem>>, vector<1x12x64xf32>
    %59 = vector.shape_cast %58 : vector<1x12x64xf32> to vector<12x64xf32>
    %c5 = arith.constant 5 : index
    %c0_35 = arith.constant 0 : index
    %c0_36 = arith.constant 0 : index
    %60 = vector.load %arg15[%c5, %c0_35, %c0_36] : memref<12x12x64xf32, #tpu.memory_space<vmem>>, vector<1x12x64xf32>
    %61 = vector.shape_cast %60 : vector<1x12x64xf32> to vector<12x64xf32>
    %c6 = arith.constant 6 : index
    %c0_37 = arith.constant 0 : index
    %c0_38 = arith.constant 0 : index
    %62 = vector.load %arg15[%c6, %c0_37, %c0_38] : memref<12x12x64xf32, #tpu.memory_space<vmem>>, vector<1x12x64xf32>
    %63 = vector.shape_cast %62 : vector<1x12x64xf32> to vector<12x64xf32>
    %c7 = arith.constant 7 : index
    %c0_39 = arith.constant 0 : index
    %c0_40 = arith.constant 0 : index
    %64 = vector.load %arg15[%c7, %c0_39, %c0_40] : memref<12x12x64xf32, #tpu.memory_space<vmem>>, vector<1x12x64xf32>
    %65 = vector.shape_cast %64 : vector<1x12x64xf32> to vector<12x64xf32>
    %c8 = arith.constant 8 : index
    %c0_41 = arith.constant 0 : index
    %c0_42 = arith.constant 0 : index
    %66 = vector.load %arg15[%c8, %c0_41, %c0_42] : memref<12x12x64xf32, #tpu.memory_space<vmem>>, vector<1x12x64xf32>
    %67 = vector.shape_cast %66 : vector<1x12x64xf32> to vector<12x64xf32>
    %c9 = arith.constant 9 : index
    %c0_43 = arith.constant 0 : index
    %c0_44 = arith.constant 0 : index
    %68 = vector.load %arg15[%c9, %c0_43, %c0_44] : memref<12x12x64xf32, #tpu.memory_space<vmem>>, vector<1x12x64xf32>
    %69 = vector.shape_cast %68 : vector<1x12x64xf32> to vector<12x64xf32>
    %c10 = arith.constant 10 : index
    %c0_45 = arith.constant 0 : index
    %c0_46 = arith.constant 0 : index
    %70 = vector.load %arg15[%c10, %c0_45, %c0_46] : memref<12x12x64xf32, #tpu.memory_space<vmem>>, vector<1x12x64xf32>
    %71 = vector.shape_cast %70 : vector<1x12x64xf32> to vector<12x64xf32>
    %c11 = arith.constant 11 : index
    %c0_47 = arith.constant 0 : index
    %c0_48 = arith.constant 0 : index
    %72 = vector.load %arg15[%c11, %c0_47, %c0_48] : memref<12x12x64xf32, #tpu.memory_space<vmem>>, vector<1x12x64xf32>
    %73 = vector.shape_cast %72 : vector<1x12x64xf32> to vector<12x64xf32>
    %74 = tpu.concatenate %51, %53, %55, %57, %59 in 1 : vector<12x64xf32>, vector<12x64xf32>, vector<12x64xf32>, vector<12x64xf32>, vector<12x64xf32> -> vector<12x320xf32>
    %75 = vector.extract_strided_slice %74 {offsets = [0, 0], sizes = [8, 320], strides = [1, 1]} : vector<12x320xf32> to vector<8x320xf32>
    %76 = vector.extract_strided_slice %74 {offsets = [1, 0], sizes = [8, 320], strides = [1, 1]} : vector<12x320xf32> to vector<8x320xf32>
    %77 = vector.extract_strided_slice %74 {offsets = [2, 0], sizes = [8, 320], strides = [1, 1]} : vector<12x320xf32> to vector<8x320xf32>
    %78 = vector.extract_strided_slice %74 {offsets = [3, 0], sizes = [8, 320], strides = [1, 1]} : vector<12x320xf32> to vector<8x320xf32>
    %79 = vector.extract_strided_slice %74 {offsets = [4, 0], sizes = [8, 320], strides = [1, 1]} : vector<12x320xf32> to vector<8x320xf32>
    %80 = tpu.concatenate %75, %76, %77, %78, %79 in 1 : vector<8x320xf32>, vector<8x320xf32>, vector<8x320xf32>, vector<8x320xf32>, vector<8x320xf32> -> vector<8x1600xf32>
    %81 = tpu.concatenate %53, %55, %57, %59, %61 in 1 : vector<12x64xf32>, vector<12x64xf32>, vector<12x64xf32>, vector<12x64xf32>, vector<12x64xf32> -> vector<12x320xf32>
    %82 = vector.extract_strided_slice %81 {offsets = [0, 0], sizes = [8, 320], strides = [1, 1]} : vector<12x320xf32> to vector<8x320xf32>
    %83 = vector.extract_strided_slice %81 {offsets = [1, 0], sizes = [8, 320], strides = [1, 1]} : vector<12x320xf32> to vector<8x320xf32>
    %84 = vector.extract_strided_slice %81 {offsets = [2, 0], sizes = [8, 320], strides = [1, 1]} : vector<12x320xf32> to vector<8x320xf32>
    %85 = vector.extract_strided_slice %81 {offsets = [3, 0], sizes = [8, 320], strides = [1, 1]} : vector<12x320xf32> to vector<8x320xf32>
    %86 = vector.extract_strided_slice %81 {offsets = [4, 0], sizes = [8, 320], strides = [1, 1]} : vector<12x320xf32> to vector<8x320xf32>
    %87 = tpu.concatenate %82, %83, %84, %85, %86 in 1 : vector<8x320xf32>, vector<8x320xf32>, vector<8x320xf32>, vector<8x320xf32>, vector<8x320xf32> -> vector<8x1600xf32>
    %88 = tpu.concatenate %55, %57, %59, %61, %63 in 1 : vector<12x64xf32>, vector<12x64xf32>, vector<12x64xf32>, vector<12x64xf32>, vector<12x64xf32> -> vector<12x320xf32>
    %89 = vector.extract_strided_slice %88 {offsets = [0, 0], sizes = [8, 320], strides = [1, 1]} : vector<12x320xf32> to vector<8x320xf32>
    %90 = vector.extract_strided_slice %88 {offsets = [1, 0], sizes = [8, 320], strides = [1, 1]} : vector<12x320xf32> to vector<8x320xf32>
    %91 = vector.extract_strided_slice %88 {offsets = [2, 0], sizes = [8, 320], strides = [1, 1]} : vector<12x320xf32> to vector<8x320xf32>
    %92 = vector.extract_strided_slice %88 {offsets = [3, 0], sizes = [8, 320], strides = [1, 1]} : vector<12x320xf32> to vector<8x320xf32>
    %93 = vector.extract_strided_slice %88 {offsets = [4, 0], sizes = [8, 320], strides = [1, 1]} : vector<12x320xf32> to vector<8x320xf32>
    %94 = tpu.concatenate %89, %90, %91, %92, %93 in 1 : vector<8x320xf32>, vector<8x320xf32>, vector<8x320xf32>, vector<8x320xf32>, vector<8x320xf32> -> vector<8x1600xf32>
    %95 = tpu.concatenate %57, %59, %61, %63, %65 in 1 : vector<12x64xf32>, vector<12x64xf32>, vector<12x64xf32>, vector<12x64xf32>, vector<12x64xf32> -> vector<12x320xf32>
    %96 = vector.extract_strided_slice %95 {offsets = [0, 0], sizes = [8, 320], strides = [1, 1]} : vector<12x320xf32> to vector<8x320xf32>
    %97 = vector.extract_strided_slice %95 {offsets = [1, 0], sizes = [8, 320], strides = [1, 1]} : vector<12x320xf32> to vector<8x320xf32>
    %98 = vector.extract_strided_slice %95 {offsets = [2, 0], sizes = [8, 320], strides = [1, 1]} : vector<12x320xf32> to vector<8x320xf32>
    %99 = vector.extract_strided_slice %95 {offsets = [3, 0], sizes = [8, 320], strides = [1, 1]} : vector<12x320xf32> to vector<8x320xf32>
    %100 = vector.extract_strided_slice %95 {offsets = [4, 0], sizes = [8, 320], strides = [1, 1]} : vector<12x320xf32> to vector<8x320xf32>
    %101 = tpu.concatenate %96, %97, %98, %99, %100 in 1 : vector<8x320xf32>, vector<8x320xf32>, vector<8x320xf32>, vector<8x320xf32>, vector<8x320xf32> -> vector<8x1600xf32>
    %102 = tpu.concatenate %59, %61, %63, %65, %67 in 1 : vector<12x64xf32>, vector<12x64xf32>, vector<12x64xf32>, vector<12x64xf32>, vector<12x64xf32> -> vector<12x320xf32>
    %103 = vector.extract_strided_slice %102 {offsets = [0, 0], sizes = [8, 320], strides = [1, 1]} : vector<12x320xf32> to vector<8x320xf32>
    %104 = vector.extract_strided_slice %102 {offsets = [1, 0], sizes = [8, 320], strides = [1, 1]} : vector<12x320xf32> to vector<8x320xf32>
    %105 = vector.extract_strided_slice %102 {offsets = [2, 0], sizes = [8, 320], strides = [1, 1]} : vector<12x320xf32> to vector<8x320xf32>
    %106 = vector.extract_strided_slice %102 {offsets = [3, 0], sizes = [8, 320], strides = [1, 1]} : vector<12x320xf32> to vector<8x320xf32>
    %107 = vector.extract_strided_slice %102 {offsets = [4, 0], sizes = [8, 320], strides = [1, 1]} : vector<12x320xf32> to vector<8x320xf32>
    %108 = tpu.concatenate %103, %104, %105, %106, %107 in 1 : vector<8x320xf32>, vector<8x320xf32>, vector<8x320xf32>, vector<8x320xf32>, vector<8x320xf32> -> vector<8x1600xf32>
    %109 = tpu.concatenate %61, %63, %65, %67, %69 in 1 : vector<12x64xf32>, vector<12x64xf32>, vector<12x64xf32>, vector<12x64xf32>, vector<12x64xf32> -> vector<12x320xf32>
    %110 = vector.extract_strided_slice %109 {offsets = [0, 0], sizes = [8, 320], strides = [1, 1]} : vector<12x320xf32> to vector<8x320xf32>
    %111 = vector.extract_strided_slice %109 {offsets = [1, 0], sizes = [8, 320], strides = [1, 1]} : vector<12x320xf32> to vector<8x320xf32>
    %112 = vector.extract_strided_slice %109 {offsets = [2, 0], sizes = [8, 320], strides = [1, 1]} : vector<12x320xf32> to vector<8x320xf32>
    %113 = vector.extract_strided_slice %109 {offsets = [3, 0], sizes = [8, 320], strides = [1, 1]} : vector<12x320xf32> to vector<8x320xf32>
    %114 = vector.extract_strided_slice %109 {offsets = [4, 0], sizes = [8, 320], strides = [1, 1]} : vector<12x320xf32> to vector<8x320xf32>
    %115 = tpu.concatenate %110, %111, %112, %113, %114 in 1 : vector<8x320xf32>, vector<8x320xf32>, vector<8x320xf32>, vector<8x320xf32>, vector<8x320xf32> -> vector<8x1600xf32>
    %116 = tpu.concatenate %63, %65, %67, %69, %71 in 1 : vector<12x64xf32>, vector<12x64xf32>, vector<12x64xf32>, vector<12x64xf32>, vector<12x64xf32> -> vector<12x320xf32>
    %117 = vector.extract_strided_slice %116 {offsets = [0, 0], sizes = [8, 320], strides = [1, 1]} : vector<12x320xf32> to vector<8x320xf32>
    %118 = vector.extract_strided_slice %116 {offsets = [1, 0], sizes = [8, 320], strides = [1, 1]} : vector<12x320xf32> to vector<8x320xf32>
    %119 = vector.extract_strided_slice %116 {offsets = [2, 0], sizes = [8, 320], strides = [1, 1]} : vector<12x320xf32> to vector<8x320xf32>
    %120 = vector.extract_strided_slice %116 {offsets = [3, 0], sizes = [8, 320], strides = [1, 1]} : vector<12x320xf32> to vector<8x320xf32>
    %121 = vector.extract_strided_slice %116 {offsets = [4, 0], sizes = [8, 320], strides = [1, 1]} : vector<12x320xf32> to vector<8x320xf32>
    %122 = tpu.concatenate %117, %118, %119, %120, %121 in 1 : vector<8x320xf32>, vector<8x320xf32>, vector<8x320xf32>, vector<8x320xf32>, vector<8x320xf32> -> vector<8x1600xf32>
    %123 = tpu.concatenate %65, %67, %69, %71, %73 in 1 : vector<12x64xf32>, vector<12x64xf32>, vector<12x64xf32>, vector<12x64xf32>, vector<12x64xf32> -> vector<12x320xf32>
    %124 = vector.extract_strided_slice %123 {offsets = [0, 0], sizes = [8, 320], strides = [1, 1]} : vector<12x320xf32> to vector<8x320xf32>
    %125 = vector.extract_strided_slice %123 {offsets = [1, 0], sizes = [8, 320], strides = [1, 1]} : vector<12x320xf32> to vector<8x320xf32>
    %126 = vector.extract_strided_slice %123 {offsets = [2, 0], sizes = [8, 320], strides = [1, 1]} : vector<12x320xf32> to vector<8x320xf32>
    %127 = vector.extract_strided_slice %123 {offsets = [3, 0], sizes = [8, 320], strides = [1, 1]} : vector<12x320xf32> to vector<8x320xf32>
    %128 = vector.extract_strided_slice %123 {offsets = [4, 0], sizes = [8, 320], strides = [1, 1]} : vector<12x320xf32> to vector<8x320xf32>
    %129 = tpu.concatenate %124, %125, %126, %127, %128 in 1 : vector<8x320xf32>, vector<8x320xf32>, vector<8x320xf32>, vector<8x320xf32>, vector<8x320xf32> -> vector<8x1600xf32>
    %130 = tpu.concatenate %80, %87, %94, %101, %108, %115, %122, %129 in 0 : vector<8x1600xf32>, vector<8x1600xf32>, vector<8x1600xf32>, vector<8x1600xf32>, vector<8x1600xf32>, vector<8x1600xf32>, vector<8x1600xf32>, vector<8x1600xf32> -> vector<64x1600xf32>
    %131 = arith.truncf %130 : vector<64x1600xf32> to vector<64x1600xbf16>
    %c0_49 = arith.constant 0 : index
    %c0_50 = arith.constant 0 : index
    %132 = vector.load %arg8[%c0_49, %c0_50] : memref<1600x128xbf16, #tpu.memory_space<vmem>>, vector<1600x128xbf16>
    %cst = arith.constant dense<0.000000e+00> : vector<64x128xf32>
    %133 = tpu.matmul %131, %132, %cst {dimension_numbers = #tpu.dot_dimension_numbers<[1], [0], [0], [1], [0, 0, 1, 1], [], []>} : vector<64x1600xbf16>, vector<1600x128xbf16>, vector<64x128xf32> -> vector<64x128xf32>
    %134 = vector.broadcast %49 : vector<1x128xf32> to vector<64x128xf32>
    %135 = arith.addf %133, %134 : vector<64x128xf32>
    %cst_51 = arith.constant 0.000000e+00 : f32
    %136 = vector.broadcast %cst_51 : f32 to vector<64x128xf32>
    %137 = arith.maximumf %135, %136 : vector<64x128xf32>
    %c0_52 = arith.constant 0 : index
    %c0_53 = arith.constant 0 : index
    %c0_54 = arith.constant 0 : index
    %138 = vector.load %arg10[%c0_52, %c0_53, %c0_54] : memref<10x64x128xf32, #tpu.memory_space<vmem>>, vector<1x64x128xf32>
    %139 = vector.shape_cast %138 : vector<1x64x128xf32> to vector<64x128xf32>
    %140 = arith.mulf %139, %137 : vector<64x128xf32>
    %cst_55 = arith.constant dense<0.000000e+00> : vector<64xf32>
    %141 = vector.multi_reduction <add>, %140, %cst_55 [1] : vector<64x128xf32> to vector<64xf32>
    %142 = vector.shape_cast %141 : vector<64xf32> to vector<64x1xf32>
    %cst_56 = arith.constant dense<0.000000e+00> : vector<1xf32>
    %143 = vector.multi_reduction <add>, %142, %cst_56 [0] : vector<64x1xf32> to vector<1xf32>
    %144 = vector.shape_cast %143 : vector<1xf32> to vector<1x1xf32>
    %c1_57 = arith.constant 1 : index
    %c0_58 = arith.constant 0 : index
    %c0_59 = arith.constant 0 : index
    %145 = vector.load %arg10[%c1_57, %c0_58, %c0_59] : memref<10x64x128xf32, #tpu.memory_space<vmem>>, vector<1x64x128xf32>
    %146 = vector.shape_cast %145 : vector<1x64x128xf32> to vector<64x128xf32>
    %147 = arith.mulf %146, %137 : vector<64x128xf32>
    %cst_60 = arith.constant dense<0.000000e+00> : vector<64xf32>
    %148 = vector.multi_reduction <add>, %147, %cst_60 [1] : vector<64x128xf32> to vector<64xf32>
    %149 = vector.shape_cast %148 : vector<64xf32> to vector<64x1xf32>
    %cst_61 = arith.constant dense<0.000000e+00> : vector<1xf32>
    %150 = vector.multi_reduction <add>, %149, %cst_61 [0] : vector<64x1xf32> to vector<1xf32>
    %151 = vector.shape_cast %150 : vector<1xf32> to vector<1x1xf32>
    %c2_62 = arith.constant 2 : index
    %c0_63 = arith.constant 0 : index
    %c0_64 = arith.constant 0 : index
    %152 = vector.load %arg10[%c2_62, %c0_63, %c0_64] : memref<10x64x128xf32, #tpu.memory_space<vmem>>, vector<1x64x128xf32>
    %153 = vector.shape_cast %152 : vector<1x64x128xf32> to vector<64x128xf32>
    %154 = arith.mulf %153, %137 : vector<64x128xf32>
    %cst_65 = arith.constant dense<0.000000e+00> : vector<64xf32>
    %155 = vector.multi_reduction <add>, %154, %cst_65 [1] : vector<64x128xf32> to vector<64xf32>
    %156 = vector.shape_cast %155 : vector<64xf32> to vector<64x1xf32>
    %cst_66 = arith.constant dense<0.000000e+00> : vector<1xf32>
    %157 = vector.multi_reduction <add>, %156, %cst_66 [0] : vector<64x1xf32> to vector<1xf32>
    %158 = vector.shape_cast %157 : vector<1xf32> to vector<1x1xf32>
    %c3_67 = arith.constant 3 : index
    %c0_68 = arith.constant 0 : index
    %c0_69 = arith.constant 0 : index
    %159 = vector.load %arg10[%c3_67, %c0_68, %c0_69] : memref<10x64x128xf32, #tpu.memory_space<vmem>>, vector<1x64x128xf32>
    %160 = vector.shape_cast %159 : vector<1x64x128xf32> to vector<64x128xf32>
    %161 = arith.mulf %160, %137 : vector<64x128xf32>
    %cst_70 = arith.constant dense<0.000000e+00> : vector<64xf32>
    %162 = vector.multi_reduction <add>, %161, %cst_70 [1] : vector<64x128xf32> to vector<64xf32>
    %163 = vector.shape_cast %162 : vector<64xf32> to vector<64x1xf32>
    %cst_71 = arith.constant dense<0.000000e+00> : vector<1xf32>
    %164 = vector.multi_reduction <add>, %163, %cst_71 [0] : vector<64x1xf32> to vector<1xf32>
    %165 = vector.shape_cast %164 : vector<1xf32> to vector<1x1xf32>
    %c4_72 = arith.constant 4 : index
    %c0_73 = arith.constant 0 : index
    %c0_74 = arith.constant 0 : index
    %166 = vector.load %arg10[%c4_72, %c0_73, %c0_74] : memref<10x64x128xf32, #tpu.memory_space<vmem>>, vector<1x64x128xf32>
    %167 = vector.shape_cast %166 : vector<1x64x128xf32> to vector<64x128xf32>
    %168 = arith.mulf %167, %137 : vector<64x128xf32>
    %cst_75 = arith.constant dense<0.000000e+00> : vector<64xf32>
    %169 = vector.multi_reduction <add>, %168, %cst_75 [1] : vector<64x128xf32> to vector<64xf32>
    %170 = vector.shape_cast %169 : vector<64xf32> to vector<64x1xf32>
    %cst_76 = arith.constant dense<0.000000e+00> : vector<1xf32>
    %171 = vector.multi_reduction <add>, %170, %cst_76 [0] : vector<64x1xf32> to vector<1xf32>
    %172 = vector.shape_cast %171 : vector<1xf32> to vector<1x1xf32>
    %c5_77 = arith.constant 5 : index
    %c0_78 = arith.constant 0 : index
    %c0_79 = arith.constant 0 : index
    %173 = vector.load %arg10[%c5_77, %c0_78, %c0_79] : memref<10x64x128xf32, #tpu.memory_space<vmem>>, vector<1x64x128xf32>
    %174 = vector.shape_cast %173 : vector<1x64x128xf32> to vector<64x128xf32>
    %175 = arith.mulf %174, %137 : vector<64x128xf32>
    %cst_80 = arith.constant dense<0.000000e+00> : vector<64xf32>
    %176 = vector.multi_reduction <add>, %175, %cst_80 [1] : vector<64x128xf32> to vector<64xf32>
    %177 = vector.shape_cast %176 : vector<64xf32> to vector<64x1xf32>
    %cst_81 = arith.constant dense<0.000000e+00> : vector<1xf32>
    %178 = vector.multi_reduction <add>, %177, %cst_81 [0] : vector<64x1xf32> to vector<1xf32>
    %179 = vector.shape_cast %178 : vector<1xf32> to vector<1x1xf32>
    %c6_82 = arith.constant 6 : index
    %c0_83 = arith.constant 0 : index
    %c0_84 = arith.constant 0 : index
    %180 = vector.load %arg10[%c6_82, %c0_83, %c0_84] : memref<10x64x128xf32, #tpu.memory_space<vmem>>, vector<1x64x128xf32>
    %181 = vector.shape_cast %180 : vector<1x64x128xf32> to vector<64x128xf32>
    %182 = arith.mulf %181, %137 : vector<64x128xf32>
    %cst_85 = arith.constant dense<0.000000e+00> : vector<64xf32>
    %183 = vector.multi_reduction <add>, %182, %cst_85 [1] : vector<64x128xf32> to vector<64xf32>
    %184 = vector.shape_cast %183 : vector<64xf32> to vector<64x1xf32>
    %cst_86 = arith.constant dense<0.000000e+00> : vector<1xf32>
    %185 = vector.multi_reduction <add>, %184, %cst_86 [0] : vector<64x1xf32> to vector<1xf32>
    %186 = vector.shape_cast %185 : vector<1xf32> to vector<1x1xf32>
    %c7_87 = arith.constant 7 : index
    %c0_88 = arith.constant 0 : index
    %c0_89 = arith.constant 0 : index
    %187 = vector.load %arg10[%c7_87, %c0_88, %c0_89] : memref<10x64x128xf32, #tpu.memory_space<vmem>>, vector<1x64x128xf32>
    %188 = vector.shape_cast %187 : vector<1x64x128xf32> to vector<64x128xf32>
    %189 = arith.mulf %188, %137 : vector<64x128xf32>
    %cst_90 = arith.constant dense<0.000000e+00> : vector<64xf32>
    %190 = vector.multi_reduction <add>, %189, %cst_90 [1] : vector<64x128xf32> to vector<64xf32>
    %191 = vector.shape_cast %190 : vector<64xf32> to vector<64x1xf32>
    %cst_91 = arith.constant dense<0.000000e+00> : vector<1xf32>
    %192 = vector.multi_reduction <add>, %191, %cst_91 [0] : vector<64x1xf32> to vector<1xf32>
    %193 = vector.shape_cast %192 : vector<1xf32> to vector<1x1xf32>
    %c8_92 = arith.constant 8 : index
    %c0_93 = arith.constant 0 : index
    %c0_94 = arith.constant 0 : index
    %194 = vector.load %arg10[%c8_92, %c0_93, %c0_94] : memref<10x64x128xf32, #tpu.memory_space<vmem>>, vector<1x64x128xf32>
    %195 = vector.shape_cast %194 : vector<1x64x128xf32> to vector<64x128xf32>
    %196 = arith.mulf %195, %137 : vector<64x128xf32>
    %cst_95 = arith.constant dense<0.000000e+00> : vector<64xf32>
    %197 = vector.multi_reduction <add>, %196, %cst_95 [1] : vector<64x128xf32> to vector<64xf32>
    %198 = vector.shape_cast %197 : vector<64xf32> to vector<64x1xf32>
    %cst_96 = arith.constant dense<0.000000e+00> : vector<1xf32>
    %199 = vector.multi_reduction <add>, %198, %cst_96 [0] : vector<64x1xf32> to vector<1xf32>
    %200 = vector.shape_cast %199 : vector<1xf32> to vector<1x1xf32>
    %c9_97 = arith.constant 9 : index
    %c0_98 = arith.constant 0 : index
    %c0_99 = arith.constant 0 : index
    %201 = vector.load %arg10[%c9_97, %c0_98, %c0_99] : memref<10x64x128xf32, #tpu.memory_space<vmem>>, vector<1x64x128xf32>
    %202 = vector.shape_cast %201 : vector<1x64x128xf32> to vector<64x128xf32>
    %203 = arith.mulf %202, %137 : vector<64x128xf32>
    %cst_100 = arith.constant dense<0.000000e+00> : vector<64xf32>
    %204 = vector.multi_reduction <add>, %203, %cst_100 [1] : vector<64x128xf32> to vector<64xf32>
    %205 = vector.shape_cast %204 : vector<64xf32> to vector<64x1xf32>
    %cst_101 = arith.constant dense<0.000000e+00> : vector<1xf32>
    %206 = vector.multi_reduction <add>, %205, %cst_101 [0] : vector<64x1xf32> to vector<1xf32>
    %207 = vector.shape_cast %206 : vector<1xf32> to vector<1x1xf32>
    %208 = tpu.concatenate %144, %151, %158, %165, %172, %179, %186, %193, %200, %207 in 0 : vector<1x1xf32>, vector<1x1xf32>, vector<1x1xf32>, vector<1x1xf32>, vector<1x1xf32>, vector<1x1xf32>, vector<1x1xf32>, vector<1x1xf32>, vector<1x1xf32>, vector<1x1xf32> -> vector<10x1xf32>
    %c0_102 = arith.constant 0 : index
    %c0_103 = arith.constant 0 : index
    %209 = vector.load %arg11[%c0_102, %c0_103] : memref<10x1xf32, #tpu.memory_space<vmem>>, vector<10x1xf32>
    %210 = arith.addf %208, %209 : vector<10x1xf32>
    %c0_104 = arith.constant 0 : index
    %c0_105 = arith.constant 0 : index
    %c0_106 = arith.constant 0 : index
    %211 = vector.load %arg12[%c0_104, %c0_105, %c0_106] : memref<1x10x1xf32, #tpu.memory_space<vmem>>, vector<1x10x1xf32>
    %212 = vector.shape_cast %211 : vector<1x10x1xf32> to vector<10x1xf32>
    %213 = vector.shape_cast %210 : vector<10x1xf32> to vector<1x10x1xf32>
    tpu.vector_store %arg12[%c0_104, %c0_105, %c0_106], %213 {strides = array<i32>} : memref<1x10x1xf32, #tpu.memory_space<vmem>>, vector<1x10x1xf32>,
    return
  }
  func.func @transform_0(%arg0: i32) -> (i32, i32, i32) {
    %c0_i32 = arith.constant 0 : i32
    %c0_i32_0 = arith.constant 0 : i32
    %c0_i32_1 = arith.constant 0 : i32
    return %arg0, %c0_i32, %c0_i32_0 : i32, i32, i32
  }
  func.func @transform_1(%arg0: i32) -> (i32, i32) {
    %c0_i32 = arith.constant 0 : i32
    %c0_i32_0 = arith.constant 0 : i32
    %c0_i32_1 = arith.constant 0 : i32
    return %c0_i32, %c0_i32_0 : i32, i32
  }
  func.func @transform_2(%arg0: i32) -> (i32, i32) {
    %c0_i32 = arith.constant 0 : i32
    %c0_i32_0 = arith.constant 0 : i32
    %c0_i32_1 = arith.constant 0 : i32
    return %c0_i32, %c0_i32_0 : i32, i32
  }
  func.func @transform_3(%arg0: i32) -> (i32, i32) {
    %c0_i32 = arith.constant 0 : i32
    %c0_i32_0 = arith.constant 0 : i32
    %c0_i32_1 = arith.constant 0 : i32
    return %c0_i32, %c0_i32_0 : i32, i32
  }
  func.func @transform_4(%arg0: i32) -> (i32, i32) {
    %c0_i32 = arith.constant 0 : i32
    %c0_i32_0 = arith.constant 0 : i32
    %c0_i32_1 = arith.constant 0 : i32
    return %c0_i32, %c0_i32_0 : i32, i32
  }
  func.func @transform_5(%arg0: i32) -> (i32, i32) {
    %c0_i32 = arith.constant 0 : i32
    %c0_i32_0 = arith.constant 0 : i32
    %c0_i32_1 = arith.constant 0 : i32
    return %c0_i32, %c0_i32_0 : i32, i32
  }
  func.func @transform_6(%arg0: i32) -> (i32, i32) {
    %c0_i32 = arith.constant 0 : i32
    %c0_i32_0 = arith.constant 0 : i32
    %c0_i32_1 = arith.constant 0 : i32
    return %c0_i32, %c0_i32_0 : i32, i32
  }
  func.func @transform_7(%arg0: i32) -> (i32, i32) {
    %c0_i32 = arith.constant 0 : i32
    %c0_i32_0 = arith.constant 0 : i32
    %c0_i32_1 = arith.constant 0 : i32
    return %c0_i32, %c0_i32_0 : i32, i32
  }
  func.func @transform_8(%arg0: i32) -> (i32, i32) {
    %c0_i32 = arith.constant 0 : i32
    %c0_i32_0 = arith.constant 0 : i32
    %c0_i32_1 = arith.constant 0 : i32
    return %c0_i32, %c0_i32_0 : i32, i32
  }
  func.func @transform_9(%arg0: i32) -> (i32, i32, i32) {
    %c0_i32 = arith.constant 0 : i32
    %c0_i32_0 = arith.constant 0 : i32
    %c0_i32_1 = arith.constant 0 : i32
    %c0_i32_2 = arith.constant 0 : i32
    return %c0_i32, %c0_i32_0, %c0_i32_1 : i32, i32, i32
  }
  func.func @transform_10(%arg0: i32) -> (i32, i32) {
    %c0_i32 = arith.constant 0 : i32
    %c0_i32_0 = arith.constant 0 : i32
    %c0_i32_1 = arith.constant 0 : i32
    return %c0_i32, %c0_i32_0 : i32, i32
  }
  func.func @transform_11(%arg0: i32) -> (i32, i32, i32) {
    %c0_i32 = arith.constant 0 : i32
    %c0_i32_0 = arith.constant 0 : i32
    %c0_i32_1 = arith.constant 0 : i32
    return %arg0, %c0_i32, %c0_i32_0 : i32, i32, i32
  }
}

</mosaic_0001>

<llo_original>
// kernel: a_convnet_forward.1
$region0: #{a_convnet_forward.1}
  #allocation0 [shape = 'u32[]', space=smem, size = 0x4, offset = 0x4, fixed_abs, tag = 'smem constant byte address 0x4 - core index']
  #allocation1 [shape = 'u32[144,128]{1,0:T(1,128)}', space=vmem, size = 0x12000, scoped, tag = 'internal scratch']
  #allocation2 [shape = 'f32[62,62,16]{2,1,0:T(8,128)}', space=vmem, size = 0x1f0000, scoped, tag = 'scratch operand']
  #allocation3 [shape = 'f32[29,29,32]{2,1,0:T(8,128)}', space=vmem, size = 0x74000, scoped, tag = 'scratch operand']
  #allocation4 [shape = 'f32[12,12,64]{2,1,0:T(8,128)}', space=vmem, size = 0x18000, scoped, tag = 'scratch operand']
  %s0 = inlined_call_operand.vmem [shape: f32[2,128,128], index: 0, kind: input, shape index: {}]
  %s1 = inlined_call_operand.vmem [shape: bf16[16,25], index: 1, kind: input, shape index: {}]
  %s2 = inlined_call_operand.vmem [shape: f32[16,1], index: 2, kind: input, shape index: {}]
  %s3 = inlined_call_operand.vmem [shape: bf16[400,32], index: 3, kind: input, shape index: {}]
  %s4 = inlined_call_operand.vmem [shape: f32[1,32], index: 4, kind: input, shape index: {}]
  %s5 = inlined_call_operand.vmem [shape: bf16[1152,64], index: 5, kind: input, shape index: {}]
  %s6 = inlined_call_operand.vmem [shape: f32[1,64], index: 6, kind: input, shape index: {}]
  %s7 = inlined_call_operand.vmem [shape: bf16[1600,128], index: 7, kind: input, shape index: {}]
  %s8 = inlined_call_operand.vmem [shape: f32[1,128], index: 8, kind: input, shape index: {}]
  %s9 = inlined_call_operand.vmem [shape: f32[10,64,128], index: 9, kind: input, shape index: {}]
  %s10 = inlined_call_operand.vmem [shape: f32[10,1], index: 10, kind: input, shape index: {}]
  %s11 = inlined_call_operand.vmem [shape: f32[2,10,1], index: 11, kind: output, shape index: {}]
  %s12 = sld [smem:[#allocation0]]
  $region98: #{a_convnet_forward.1} parent=0
    _
  %s14 = ssub.s32 1, %s12
  %s15 = scalar_select 0, %s14, %s12
  loop: start=0, step=1, limit=4
  $region2: #{a_convnet_forward.1} parent=0 // loop_pre_header
    _
  $region3: #{a_convnet_forward.1} parent=0 // loop_header
    %s17 = sphi 0, %s21
    %p18 = scmp.ge.s32.totalorder %s17, 4
    %s27 = sphi 0, %s29
    %s30 = sphi 0, %s27
    %s31 = sphi 0, %s30
    %s47 = sphi 0, %s31
    %s51 = sphi 0, %s51
    %s53 = sphi 0, %s51
    %s54 = sphi 0, %s53
    %s68 = sphi 0, %s54
    %s72 = sphi 0, %s72
    %s74 = sphi 0, %s72
    %s75 = sphi 0, %s74
    %s89 = sphi 0, %s75
    %s93 = sphi 0, %s93
    %s95 = sphi 0, %s93
    %s96 = sphi 0, %s95
    %s110 = sphi 0, %s96
    %s114 = sphi 0, %s114
    %s116 = sphi 0, %s114
    %s117 = sphi 0, %s116
    %s131 = sphi 0, %s117
    %s135 = sphi 0, %s135
    %s137 = sphi 0, %s135
    %s138 = sphi 0, %s137
    %s152 = sphi 0, %s138
    %s156 = sphi 0, %s156
    %s158 = sphi 0, %s156
    %s159 = sphi 0, %s158
    %s173 = sphi 0, %s159
    %s177 = sphi 0, %s177
    %s179 = sphi 0, %s177
    %s180 = sphi 0, %s179
    %s194 = sphi 0, %s180
    %s198 = sphi 0, %s198
    %s200 = sphi 0, %s198
    %s201 = sphi 0, %s200
    %s215 = sphi 0, %s201
    %s219 = sphi 0, %s219
    %s221 = sphi 0, %s219
    %s222 = sphi 0, %s221
    %s236 = sphi 0, %s222
    %s240 = sphi 0, %s240
    %s242 = sphi 0, %s240
    %s243 = sphi 0, %s242
    %s257 = sphi 0, %s243
    %s263 = sphi 0, %s265
    %s266 = sphi 0, %s263
    %s267 = sphi 0, %s266
    %s283 = sphi 0, %s267
  $region4: #{a_convnet_forward.1} parent=0 // loop_header_branch
    %20 = sbr.rel (%p18) target = $region8
  $region5: #{a_convnet_forward.1} parent=0 // loop_body
    %s22 = ssub.s32 %s17, 1
    %s23 = ssub.s32 %s17, 2
    %s24 = sadd.s32 %s17, 1
    %s25 = ssub.s32 %s17, %s24
    %p26 = scmp.eq.s32.totalorder %s25, 0
    %s28 = sadd.s32 %s27, 1
    %s29 = scalar_select %p26, %s27, %s28
    %p32 = pneg %p26
    %p33 = scmp.eq.s32.totalorder %s17, 1
    %p34 = por %p32, %p33
    %p35 = scmp.ne.s32.totalorder %s27, %s30
    %p36 = scmp.eq.s32.totalorder %s17, 0
    %p37 = por %p35, %p36
    %p38 = scmp.ne.s32.totalorder %s27, %s30
    %p39 = scmp.eq.s32.totalorder %s22, 1
    %p40 = por %p38, %p39
    %p41 = scmp.ne.s32.totalorder %s30, %s31
    %p42 = scmp.eq.s32.totalorder %s22, 0
    %p43 = por %p41, %p42
    %p44 = scmp.ne.s32.totalorder %s30, %s31
    %p45 = scmp.eq.s32.totalorder %s23, 1
    %p46 = por %p44, %p45
    %p48 = scmp.ne.s32.totalorder %s31, %s47
    %p49 = scmp.eq.s32.totalorder %s23, 0
    %p50 = por %p48, %p49
    %s52 = sadd.s32 %s51, 1
    %p55 = scmp.eq.s32.totalorder %s17, 1
    %p56 = scmp.ne.s32.totalorder %s51, %s53
    %p57 = scmp.eq.s32.totalorder %s17, 0
    %p58 = por %p56, %p57
    %p59 = scmp.ne.s32.totalorder %s51, %s53
    %p60 = scmp.eq.s32.totalorder %s22, 1
    %p61 = por %p59, %p60
    %p62 = scmp.ne.s32.totalorder %s53, %s54
    %p63 = scmp.eq.s32.totalorder %s22, 0
    %p64 = por %p62, %p63
    %p65 = scmp.ne.s32.totalorder %s53, %s54
    %p66 = scmp.eq.s32.totalorder %s23, 1
    %p67 = por %p65, %p66
    %p69 = scmp.ne.s32.totalorder %s54, %s68
    %p70 = scmp.eq.s32.totalorder %s23, 0
    %p71 = por %p69, %p70
    %s73 = sadd.s32 %s72, 1
    %p76 = scmp.eq.s32.totalorder %s17, 1
    %p77 = scmp.ne.s32.totalorder %s72, %s74
    %p78 = scmp.eq.s32.totalorder %s17, 0
    %p79 = por %p77, %p78
    %p80 = scmp.ne.s32.totalorder %s72, %s74
    %p81 = scmp.eq.s32.totalorder %s22, 1
    %p82 = por %p80, %p81
    %p83 = scmp.ne.s32.totalorder %s74, %s75
    %p84 = scmp.eq.s32.totalorder %s22, 0
    %p85 = por %p83, %p84
    %p86 = scmp.ne.s32.totalorder %s74, %s75
    %p87 = scmp.eq.s32.totalorder %s23, 1
    %p88 = por %p86, %p87
    %p90 = scmp.ne.s32.totalorder %s75, %s89
    %p91 = scmp.eq.s32.totalorder %s23, 0
    %p92 = por %p90, %p91
    %s94 = sadd.s32 %s93, 1
    %p97 = scmp.eq.s32.totalorder %s17, 1
    %p98 = scmp.ne.s32.totalorder %s93, %s95
    %p99 = scmp.eq.s32.totalorder %s17, 0
    %p100 = por %p98, %p99
    %p101 = scmp.ne.s32.totalorder %s93, %s95
    %p102 = scmp.eq.s32.totalorder %s22, 1
    %p103 = por %p101, %p102
    %p104 = scmp.ne.s32.totalorder %s95, %s96
    %p105 = scmp.eq.s32.totalorder %s22, 0
    %p106 = por %p104, %p105
    %p107 = scmp.ne.s32.totalorder %s95, %s96
    %p108 = scmp.eq.s32.totalorder %s23, 1
    %p109 = por %p107, %p108
    %p111 = scmp.ne.s32.totalorder %s96, %s110
    %p112 = scmp.eq.s32.totalorder %s23, 0
    %p113 = por %p111, %p112
    %s115 = sadd.s32 %s114, 1
    %p118 = scmp.eq.s32.totalorder %s17, 1
    %p119 = scmp.ne.s32.totalorder %s114, %s116
    %p120 = scmp.eq.s32.totalorder %s17, 0
    %p121 = por %p119, %p120
    %p122 = scmp.ne.s32.totalorder %s114, %s116
    %p123 = scmp.eq.s32.totalorder %s22, 1
    %p124 = por %p122, %p123
    %p125 = scmp.ne.s32.totalorder %s116, %s117
    %p126 = scmp.eq.s32.totalorder %s22, 0
    %p127 = por %p125, %p126
    %p128 = scmp.ne.s32.totalorder %s116, %s117
    %p129 = scmp.eq.s32.totalorder %s23, 1
    %p130 = por %p128, %p129
    %p132 = scmp.ne.s32.totalorder %s117, %s131
    %p133 = scmp.eq.s32.totalorder %s23, 0
    %p134 = por %p132, %p133
    %s136 = sadd.s32 %s135, 1
    %p139 = scmp.eq.s32.totalorder %s17, 1
    %p140 = scmp.ne.s32.totalorder %s135, %s137
    %p141 = scmp.eq.s32.totalorder %s17, 0
    %p142 = por %p140, %p141
    %p143 = scmp.ne.s32.totalorder %s135, %s137
    %p144 = scmp.eq.s32.totalorder %s22, 1
    %p145 = por %p143, %p144
    %p146 = scmp.ne.s32.totalorder %s137, %s138
    %p147 = scmp.eq.s32.totalorder %s22, 0
    %p148 = por %p146, %p147
    %p149 = scmp.ne.s32.totalorder %s137, %s138
    %p150 = scmp.eq.s32.totalorder %s23, 1
    %p151 = por %p149, %p150
    %p153 = scmp.ne.s32.totalorder %s138, %s152
    %p154 = scmp.eq.s32.totalorder %s23, 0
    %p155 = por %p153, %p154
    %s157 = sadd.s32 %s156, 1
    %p160 = scmp.eq.s32.totalorder %s17, 1
    %p161 = scmp.ne.s32.totalorder %s156, %s158
    %p162 = scmp.eq.s32.totalorder %s17, 0
    %p163 = por %p161, %p162
    %p164 = scmp.ne.s32.totalorder %s156, %s158
    %p165 = scmp.eq.s32.totalorder %s22, 1
    %p166 = por %p164, %p165
    %p167 = scmp.ne.s32.totalorder %s158, %s159
    %p168 = scmp.eq.s32.totalorder %s22, 0
    %p169 = por %p167, %p168
    %p170 = scmp.ne.s32.totalorder %s158, %s159
    %p171 = scmp.eq.s32.totalorder %s23, 1
    %p172 = por %p170, %p171
    %p174 = scmp.ne.s32.totalorder %s159, %s173
    %p175 = scmp.eq.s32.totalorder %s23, 0
    %p176 = por %p174, %p175
    %s178 = sadd.s32 %s177, 1
    %p181 = scmp.eq.s32.totalorder %s17, 1
    %p182 = scmp.ne.s32.totalorder %s177, %s179
    %p183 = scmp.eq.s32.totalorder %s17, 0
    %p184 = por %p182, %p183
    %p185 = scmp.ne.s32.totalorder %s177, %s179
    %p186 = scmp.eq.s32.totalorder %s22, 1
    %p187 = por %p185, %p186
    %p188 = scmp.ne.s32.totalorder %s179, %s180
    %p189 = scmp.eq.s32.totalorder %s22, 0
    %p190 = por %p188, %p189
    %p191 = scmp.ne.s32.totalorder %s179, %s180
    %p192 = scmp.eq.s32.totalorder %s23, 1
    %p193 = por %p191, %p192
    %p195 = scmp.ne.s32.totalorder %s180, %s194
    %p196 = scmp.eq.s32.totalorder %s23, 0
    %p197 = por %p195, %p196
    %s199 = sadd.s32 %s198, 1
    %p202 = scmp.eq.s32.totalorder %s17, 1
    %p203 = scmp.ne.s32.totalorder %s198, %s200
    %p204 = scmp.eq.s32.totalorder %s17, 0
    %p205 = por %p203, %p204
    %p206 = scmp.ne.s32.totalorder %s198, %s200
    %p207 = scmp.eq.s32.totalorder %s22, 1
    %p208 = por %p206, %p207
    %p209 = scmp.ne.s32.totalorder %s200, %s201
    %p210 = scmp.eq.s32.totalorder %s22, 0
    %p211 = por %p209, %p210
    %p212 = scmp.ne.s32.totalorder %s200, %s201
    %p213 = scmp.eq.s32.totalorder %s23, 1
    %p214 = por %p212, %p213
    %p216 = scmp.ne.s32.totalorder %s201, %s215
    %p217 = scmp.eq.s32.totalorder %s23, 0
    %p218 = por %p216, %p217
    %s220 = sadd.s32 %s219, 1
    %p223 = scmp.eq.s32.totalorder %s17, 1
    %p224 = scmp.ne.s32.totalorder %s219, %s221
    %p225 = scmp.eq.s32.totalorder %s17, 0
    %p226 = por %p224, %p225
    %p227 = scmp.ne.s32.totalorder %s219, %s221
    %p228 = scmp.eq.s32.totalorder %s22, 1
    %p229 = por %p227, %p228
    %p230 = scmp.ne.s32.totalorder %s221, %s222
    %p231 = scmp.eq.s32.totalorder %s22, 0
    %p232 = por %p230, %p231
    %p233 = scmp.ne.s32.totalorder %s221, %s222
    %p234 = scmp.eq.s32.totalorder %s23, 1
    %p235 = por %p233, %p234
    %p237 = scmp.ne.s32.totalorder %s222, %s236
    %p238 = scmp.eq.s32.totalorder %s23, 0
    %p239 = por %p237, %p238
    %s241 = sadd.s32 %s240, 1
    %p244 = scmp.eq.s32.totalorder %s17, 1
    %p245 = scmp.ne.s32.totalorder %s240, %s242
    %p246 = scmp.eq.s32.totalorder %s17, 0
    %p247 = por %p245, %p246
    %p248 = scmp.ne.s32.totalorder %s240, %s242
    %p249 = scmp.eq.s32.totalorder %s22, 1
    %p250 = por %p248, %p249
    %p251 = scmp.ne.s32.totalorder %s242, %s243
    %p252 = scmp.eq.s32.totalorder %s22, 0
    %p253 = por %p251, %p252
    %p254 = scmp.ne.s32.totalorder %s242, %s243
    %p255 = scmp.eq.s32.totalorder %s23, 1
    %p256 = por %p254, %p255
    %p258 = scmp.ne.s32.totalorder %s243, %s257
    %p259 = scmp.eq.s32.totalorder %s23, 0
    %p260 = por %p258, %p259
    %s261 = ssub.s32 %s17, %s24
    %p262 = scmp.eq.s32.totalorder %s261, 0
    %s264 = sadd.s32 %s263, 1
    %s265 = scalar_select %p262, %s263, %s264
    %p268 = pneg %p262
    %p269 = scmp.eq.s32.totalorder %s17, 1
    %p270 = por %p268, %p269
    %p271 = scmp.ne.s32.totalorder %s263, %s266
    %p272 = scmp.eq.s32.totalorder %s17, 0
    %p273 = por %p271, %p272
    %p274 = scmp.ne.s32.totalorder %s263, %s266
    %p275 = scmp.eq.s32.totalorder %s22, 1
    %p276 = por %p274, %p275
    %p277 = scmp.ne.s32.totalorder %s266, %s267
    %p278 = scmp.eq.s32.totalorder %s22, 0
    %p279 = por %p277, %p278
    %p280 = scmp.ne.s32.totalorder %s266, %s267
    %p281 = scmp.eq.s32.totalorder %s23, 1
    %p282 = por %p280, %p281
    %p284 = scmp.ne.s32.totalorder %s267, %s283
    %p285 = scmp.eq.s32.totalorder %s23, 0
    %p286 = por %p284, %p285
    %p287 = scmp.le.s32.totalorder 1, %s17
    %p288 = scmp.lt.s32.totalorder %s17, 3
    %p289 = pnand %p287, %p288
    %p290 = pneg %p289
    // Predicated region
    $region9: #{a_convnet_forward.1} parent=5 // pred_check
      _
    $region10: #{a_convnet_forward.1} parent=5 // pred_check_branch
      %292 = sbr.rel (%p289) target = $region12
    $region11: #{a_convnet_forward.1} parent=5 // pred_region
      %s293 = ssub.s32 %s17, 1
      // Predicated region
      $region13: #{a_convnet_forward.1} parent=11 // pred_check
        %p294 = pneg %p64
      $region14: #{a_convnet_forward.1} parent=11 // pred_check_branch
        %296 = sbr.rel (%p294) target = $region16
      $region15: #{a_convnet_forward.1} parent=11 // pred_region
        _
      $region16: #{a_convnet_forward.1} parent=11 // pred_fallthru
        _
      // Predicated region
      $region17: #{a_convnet_forward.1} parent=11 // pred_check
        %p297 = pneg %p85
      $region18: #{a_convnet_forward.1} parent=11 // pred_check_branch
        %299 = sbr.rel (%p297) target = $region20
      $region19: #{a_convnet_forward.1} parent=11 // pred_region
        _
      $region20: #{a_convnet_forward.1} parent=11 // pred_fallthru
        _
      // Predicated region
      $region21: #{a_convnet_forward.1} parent=11 // pred_check
        %p300 = pneg %p106
      $region22: #{a_convnet_forward.1} parent=11 // pred_check_branch
        %302 = sbr.rel (%p300) target = $region24
      $region23: #{a_convnet_forward.1} parent=11 // pred_region
        _
      $region24: #{a_convnet_forward.1} parent=11 // pred_fallthru
        _
      // Predicated region
      $region25: #{a_convnet_forward.1} parent=11 // pred_check
        %p303 = pneg %p127
      $region26: #{a_convnet_forward.1} parent=11 // pred_check_branch
        %305 = sbr.rel (%p303) target = $region28
      $region27: #{a_convnet_forward.1} parent=11 // pred_region
        _
      $region28: #{a_convnet_forward.1} parent=11 // pred_fallthru
        _
      // Predicated region
      $region29: #{a_convnet_forward.1} parent=11 // pred_check
        %p306 = pneg %p148
      $region30: #{a_convnet_forward.1} parent=11 // pred_check_branch
        %308 = sbr.rel (%p306) target = $region32
      $region31: #{a_convnet_forward.1} parent=11 // pred_region
        _
      $region32: #{a_convnet_forward.1} parent=11 // pred_fallthru
        _
      // Predicated region
      $region33: #{a_convnet_forward.1} parent=11 // pred_check
        %p309 = pneg %p169
      $region34: #{a_convnet_forward.1} parent=11 // pred_check_branch
        %311 = sbr.rel (%p309) target = $region36
      $region35: #{a_convnet_forward.1} parent=11 // pred_region
        _
      $region36: #{a_convnet_forward.1} parent=11 // pred_fallthru
        _
      // Predicated region
      $region37: #{a_convnet_forward.1} parent=11 // pred_check
        %p312 = pneg %p190
      $region38: #{a_convnet_forward.1} parent=11 // pred_check_branch
        %314 = sbr.rel (%p312) target = $region40
      $region39: #{a_convnet_forward.1} parent=11 // pred_region
        _
      $region40: #{a_convnet_forward.1} parent=11 // pred_fallthru
        _
      // Predicated region
      $region41: #{a_convnet_forward.1} parent=11 // pred_check
        %p315 = pneg %p211
      $region42: #{a_convnet_forward.1} parent=11 // pred_check_branch
        %317 = sbr.rel (%p315) target = $region44
      $region43: #{a_convnet_forward.1} parent=11 // pred_region
        _
      $region44: #{a_convnet_forward.1} parent=11 // pred_fallthru
        _
      // Predicated region
      $region45: #{a_convnet_forward.1} parent=11 // pred_check
        %p318 = pneg %p232
      $region46: #{a_convnet_forward.1} parent=11 // pred_check_branch
        %320 = sbr.rel (%p318) target = $region48
      $region47: #{a_convnet_forward.1} parent=11 // pred_region
        _
      $region48: #{a_convnet_forward.1} parent=11 // pred_fallthru
        _
      // Predicated region
      $region49: #{a_convnet_forward.1} parent=11 // pred_check
        %p321 = pneg %p253
      $region50: #{a_convnet_forward.1} parent=11 // pred_check_branch
        %323 = sbr.rel (%p321) target = $region52
      $region51: #{a_convnet_forward.1} parent=11 // pred_region
        _
      $region52: #{a_convnet_forward.1} parent=11 // pred_fallthru
        _
    $region12: #{a_convnet_forward.1} parent=5 // pred_fallthru
      _
    %p324 = scmp.lt.s32.totalorder %s17, 2
    // Predicated region
    $region53: #{a_convnet_forward.1} parent=5 // pred_check
      %p325 = pneg %p324
    $region54: #{a_convnet_forward.1} parent=5 // pred_check_branch
      %327 = sbr.rel (%p325) target = $region56
    $region55: #{a_convnet_forward.1} parent=5 // pred_region
      // Predicated region
      $region57: #{a_convnet_forward.1} parent=55 // pred_check
        %p328 = pneg %p37
      $region58: #{a_convnet_forward.1} parent=55 // pred_check_branch
        %330 = sbr.rel (%p328) target = $region60
      $region59: #{a_convnet_forward.1} parent=55 // pred_region
        %p331 = scmp.lt.s32.totalorder %s17, 1
        %s332 = scalar_select %p331, %s17, 1
        %s333 = smul.addr %s332, 16
        %s334 = smul.addr %s333, 8
        %s335 = scalar_lea.vmem %s0, %s334
      $region60: #{a_convnet_forward.1} parent=55 // pred_fallthru
        _
    $region56: #{a_convnet_forward.1} parent=5 // pred_fallthru
      _
    %p336 = scmp.le.s32.totalorder 1, %s17
    %p337 = scmp.lt.s32.totalorder %s17, 3
    %p338 = pnand %p336, %p337
    %p339 = pneg %p338
    // Predicated region
    $region61: #{a_convnet_forward.1} parent=5 // pred_check
      _
    $region62: #{a_convnet_forward.1} parent=5 // pred_check_branch
      %341 = sbr.rel (%p338) target = $region64
    $region63: #{a_convnet_forward.1} parent=5 // pred_region
      %s342 = ssub.s32 %s17, 1
      %p343 = scmp.lt.s32.totalorder %s22, 1
      %s344 = scalar_select %p343, %s22, 1
      %s345 = smul.addr %s344, 16
      %s346 = smul.addr %s345, 8
      %s347 = scalar_lea.vmem %s0, %s346
      %p348 = pneg %p43
      %p349 = pneg %p40
      %p350 = pneg %p64
      %p351 = pneg %p61
      %p352 = pneg %p85
      %p353 = pneg %p82
      %p354 = pneg %p106
      %p355 = pneg %p103
      %p356 = pneg %p127
      %p357 = pneg %p124
      %p358 = pneg %p148
      %p359 = pneg %p145
      %p360 = pneg %p169
      %p361 = pneg %p166
      %p362 = pneg %p190
      %p363 = pneg %p187
      %p364 = pneg %p211
      %p365 = pneg %p208
      %p366 = pneg %p232
      %p367 = pneg %p229
      %p368 = pneg %p253
      %p369 = pneg %p250
      %p370 = pneg %p279
      %p371 = pneg %p276
      %p372 = scmp.lt.s32.totalorder %s22, 1
      %s373 = scalar_select %p372, %s22, 1
      %s374 = smul.addr %s373, 2
      %s375 = smul.addr %s374, 8
      %s376 = scalar_lea.vmem %s11, %s375
      %p377 = scmp.lt.s32.totalorder %s22, 1
      %s378 = scalar_select %p377, %s22, 1
      %s379 = smul.addr %s378, 16
      %s380 = smul.addr %s379, 8
      %s381 = scalar_lea.vmem %s0, %s380
      %p382 = scmp.lt.s32.totalorder %s22, 1
      %s383 = scalar_select %p382, %s22, 1
      %s384 = smul.addr %s383, 2
      %s385 = smul.addr %s384, 8
      %s386 = scalar_lea.vmem %s11, %s385
      %v388 = vld [vmem:[%s1] sm:$0xf]
      %v389 = vld [vmem:[%s1 + $0x4] sm:$0xf]
      %v390 = vld [vmem:[%s2] sm:$0xff]
      %v391 = vld [vmem:[%s2 + $0x8] sm:$0xff]
      %v392 = vlaneseq
      %v393 = vshrl.u32 %v392, 7
      %v394 = vadd.s32 %v393, 8
      %v395 = vadd.s32 %v393, 16
      %v396 = vadd.s32 %v393, 24
      %v397 = vadd.s32 %v393, 32
      %v398 = vadd.s32 %v393, 40
      %v399 = vadd.s32 %v393, 48
      %v400 = vadd.s32 %v393, 56
      %v401 = vadd.s32 %v393, 64
      %v402 = vadd.s32 %v393, 72
      %v403 = vadd.s32 %v393, 80
      %v404 = vadd.s32 %v393, 88
      %v405 = vadd.s32 %v393, 96
      %v406 = vadd.s32 %v393, 104
      %v407 = vadd.s32 %v393, 112
      %v408 = vadd.s32 %v393, 120
      %v409 = vlaneseq
      %v410 = vand.u32 %v409, 127
      %v411 = vmul.u32 %v410, 2
      %vm412 = vcmp.eq.s32.totalorder %v393, %v411
      %vm413 = vcmp.eq.s32.totalorder %v394, %v411
      %vm414 = vcmp.eq.s32.totalorder %v395, %v411
      %vm415 = vcmp.eq.s32.totalorder %v396, %v411
      %vm416 = vcmp.eq.s32.totalorder %v397, %v411
      %vm417 = vcmp.eq.s32.totalorder %v398, %v411
      %vm418 = vcmp.eq.s32.totalorder %v399, %v411
      %vm419 = vcmp.eq.s32.totalorder %v400, %v411
      %vm420 = vcmp.eq.s32.totalorder %v401, %v411
      %vm421 = vcmp.eq.s32.totalorder %v402, %v411
      %vm422 = vcmp.eq.s32.totalorder %v403, %v411
      %vm423 = vcmp.eq.s32.totalorder %v404, %v411
      %vm424 = vcmp.eq.s32.totalorder %v405, %v411
      %vm425 = vcmp.eq.s32.totalorder %v406, %v411
      %vm426 = vcmp.eq.s32.totalorder %v407, %v411
      %vm427 = vcmp.eq.s32.totalorder %v408, %v411
      %v428 = vsel %vm412, 1, 0
      %v429 = vsel %vm413, 1, 0
      %v430 = vsel %vm414, 1, 0
      %v431 = vsel %vm415, 1, 0
      %v432 = vsel %vm416, 1, 0
      %v433 = vsel %vm417, 1, 0
      %v434 = vsel %vm418, 1, 0
      %v435 = vsel %vm419, 1, 0
      %v436 = vsel %vm420, 1, 0
      %v437 = vsel %vm421, 1, 0
      %v438 = vsel %vm422, 1, 0
      %v439 = vsel %vm423, 1, 0
      %v440 = vsel %vm424, 1, 0
      %v441 = vsel %vm425, 1, 0
      %v442 = vsel %vm426, 1, 0
      %v443 = vsel %vm427, 1, 0
      %v444 = vcvt.s32.f32 %v428
      %v445 = vcvt.s32.f32 %v429
      %v446 = vcvt.s32.f32 %v430
      %v447 = vcvt.s32.f32 %v431
      %v448 = vcvt.s32.f32 %v432
      %v449 = vcvt.s32.f32 %v433
      %v450 = vcvt.s32.f32 %v434
      %v451 = vcvt.s32.f32 %v435
      %v452 = vcvt.s32.f32 %v436
      %v453 = vcvt.s32.f32 %v437
      %v454 = vcvt.s32.f32 %v438
      %v455 = vcvt.s32.f32 %v439
      %v456 = vcvt.s32.f32 %v440
      %v457 = vcvt.s32.f32 %v441
      %v458 = vcvt.s32.f32 %v442
      %v459 = vcvt.s32.f32 %v443
      %v460 = vadd.s32 %v411, 1
      %vm461 = vcmp.eq.s32.totalorder %v393, %v460
      %vm462 = vcmp.eq.s32.totalorder %v394, %v460
      %vm463 = vcmp.eq.s32.totalorder %v395, %v460
      %vm464 = vcmp.eq.s32.totalorder %v396, %v460
      %vm465 = vcmp.eq.s32.totalorder %v397, %v460
      %vm466 = vcmp.eq.s32.totalorder %v398, %v460
      %vm467 = vcmp.eq.s32.totalorder %v399, %v460
      %vm468 = vcmp.eq.s32.totalorder %v400, %v460
      %vm469 = vcmp.eq.s32.totalorder %v401, %v460
      %vm470 = vcmp.eq.s32.totalorder %v402, %v460
      %vm471 = vcmp.eq.s32.totalorder %v403, %v460
      %vm472 = vcmp.eq.s32.totalorder %v404, %v460
      %vm473 = vcmp.eq.s32.totalorder %v405, %v460
      %vm474 = vcmp.eq.s32.totalorder %v406, %v460
      %vm475 = vcmp.eq.s32.totalorder %v407, %v460
      %vm476 = vcmp.eq.s32.totalorder %v408, %v460
      %v477 = vsel %vm461, 1, 0
      %v478 = vsel %vm462, 1, 0
      %v479 = vsel %vm463, 1, 0
      %v480 = vsel %vm464, 1, 0
      %v481 = vsel %vm465, 1, 0
      %v482 = vsel %vm466, 1, 0
      %v483 = vsel %vm467, 1, 0
      %v484 = vsel %vm468, 1, 0
      %v485 = vsel %vm469, 1, 0
      %v486 = vsel %vm470, 1, 0
      %v487 = vsel %vm471, 1, 0
      %v488 = vsel %vm472, 1, 0
      %v489 = vsel %vm473, 1, 0
      %v490 = vsel %vm474, 1, 0
      %v491 = vsel %vm475, 1, 0
      %v492 = vsel %vm476, 1, 0
      %v493 = vcvt.s32.f32 %v477
      %v494 = vcvt.s32.f32 %v478
      %v495 = vcvt.s32.f32 %v479
      %v496 = vcvt.s32.f32 %v480
      %v497 = vcvt.s32.f32 %v481
      %v498 = vcvt.s32.f32 %v482
      %v499 = vcvt.s32.f32 %v483
      %v500 = vcvt.s32.f32 %v484
      %v501 = vcvt.s32.f32 %v485
      %v502 = vcvt.s32.f32 %v486
      %v503 = vcvt.s32.f32 %v487
      %v504 = vcvt.s32.f32 %v488
      %v505 = vcvt.s32.f32 %v489
      %v506 = vcvt.s32.f32 %v490
      %v507 = vcvt.s32.f32 %v491
      %v508 = vcvt.s32.f32 %v492
      loop: start=0, step=1, limit=31
      $region65: #{a_convnet_forward.1} parent=63 // loop_pre_header
        _
      $region66: #{a_convnet_forward.1} parent=63 // loop_header
        %s510 = sphi 0, %s514
        %p511 = scmp.ge.s32.totalorder %s510, 31
      $region67: #{a_convnet_forward.1} parent=63 // loop_header_branch
        %513 = sbr.rel (%p511) target = $region71
      $region68: #{a_convnet_forward.1} parent=63 // loop_body
        %s515 = smul.u32 %s510, 4
        %s516 = scalar_lea.vmem %s381, %s515
        %v517 = vld [vmem:[%s516] sm:$0xff]
        %v518 = vpack.c.bf16 %v517, %v517
        %v520 = vshrl.u32 %v518, 16
        %v522 = vrot.slane %v520, 5
        %v523 = vshll.u32 %v518, 16
        %v525 = vrot.slane %v523, 6
        %v526 = vor.u32 %v522, %v525
        %527 = vrot.lane.b32.xlu0 %v526, 127
        %v528 = vpop.permute.xlu0 %527
        %v531 = vrot.slane %v518, 3
        %532 = vrot.lane.b32.xlu0 %v531, 126
        %v533 = vpop.permute.xlu0 %532
        %v534 = vrot.slane %v523, 1
        %v535 = vor.u32 %v520, %v534
        %536 = vrot.lane.b32.xlu0 %v534, 125
        %v537 = vpop.permute.xlu0 %536
        %538 = vrot.lane.b32.xlu0 %v535, 125
        %v539 = vpop.permute.xlu0 %538
        %v541 = vrot.slane %v518, 6
        %542 = vrot.lane.b32.xlu0 %v541, 124
        %v543 = vpop.permute.xlu0 %542
        %vm544 = vcmask 1042432
        %vm545 = vsmask.f32 2304
        %vm546 = vmand %vm544, %vm545
        %v547 = vsel %vm546, %v518, %v528
        %vm548 = vcmask 1044480
        %v551 = vsel %vm548, %v547, %v533
        %vm553 = vcmask 1047552
        %vm554 = vsmask.f32 7424
        %vm555 = vmand %vm553, %vm554
        %v556 = vsel %vm555, %v551, %v537
        %vm557 = vcmask 1041408
        %v560 = vsel %vm557, %v539, %v543
        %562 = vrot.lane.b32.xlu0 %v541, 127
        %v563 = vpop.permute.xlu0 %562
        %v565 = vrot.slane %v520, 3
        %v566 = vrot.slane %v523, 4
        %v567 = vor.u32 %v565, %v566
        %568 = vrot.lane.b32.xlu0 %v567, 126
        %v569 = vpop.permute.xlu0 %568
        %v570 = vrot.slane %v518, 1
        %571 = vrot.lane.b32.xlu0 %v570, 125
        %v572 = vpop.permute.xlu0 %571
        %v574 = vrot.slane %v520, 6
        %v575 = vrot.slane %v523, 7
        %v576 = vor.u32 %v574, %v575
        %577 = vrot.lane.b32.xlu0 %v576, 124
        %v578 = vpop.permute.xlu0 %577
        %v579 = vsel %vm546, %v535, %v563
        %v582 = vsel %vm548, %v579, %v569
        %v584 = vsel %vm555, %v582, %v572
        %v587 = vsel %vm557, %v572, %v578
        %589 = vrot.lane.b32.xlu0 %v576, 127
        %v590 = vpop.permute.xlu0 %589
        %v592 = vrot.slane %v518, 4
        %593 = vrot.lane.b32.xlu0 %v592, 126
        %v594 = vpop.permute.xlu0 %593
        %v595 = vrot.slane %v523, 2
        %v596 = vrot.slane %v520, 1
        %v597 = vor.u32 %v596, %v595
        %598 = vrot.lane.b32.xlu0 %v595, 125
        %v599 = vpop.permute.xlu0 %598
        %600 = vrot.lane.b32.xlu0 %v597, 125
        %v601 = vpop.permute.xlu0 %600
        %v603 = vrot.slane %v518, 7
        %604 = vrot.lane.b32.xlu0 %v603, 124
        %v605 = vpop.permute.xlu0 %604
        %v606 = vsel %vm546, %v570, %v590
        %v609 = vsel %vm548, %v606, %v594
        %v611 = vsel %vm555, %v609, %v599
        %v614 = vsel %vm557, %v601, %v605
        %616 = vrot.lane.b32.xlu0 %v603, 127
        %v617 = vpop.permute.xlu0 %616
        %v619 = vrot.slane %v520, 4
        %v620 = vrot.slane %v523, 5
        %v621 = vor.u32 %v619, %v620
        %622 = vrot.lane.b32.xlu0 %v621, 126
        %v623 = vpop.permute.xlu0 %622
        %v624 = vrot.slane %v518, 2
        %625 = vrot.lane.b32.xlu0 %v624, 125
        %v626 = vpop.permute.xlu0 %625
        %v628 = vrot.slane %v520, 7
        %v629 = vor.u32 %v628, %v523
        %630 = vrot.lane.b32.xlu0 %v629, 124
        %v631 = vpop.permute.xlu0 %630
        %v632 = vsel %vm546, %v597, %v617
        %v635 = vsel %vm548, %v632, %v623
        %v637 = vsel %vm555, %v635, %v626
        %v640 = vsel %vm557, %v626, %v631
        %643 = vrot.lane.b32.xlu0 %v584, 124
        %v644 = vpop.permute.xlu0 %643
        %645 = vrot.lane.b32.xlu0 %v587, 124
        %v646 = vpop.permute.xlu0 %645
        %649 = vrot.lane.b32.xlu0 %v611, 120
        %v650 = vpop.permute.xlu0 %649
        %651 = vrot.lane.b32.xlu0 %v614, 120
        %v652 = vpop.permute.xlu0 %651
        %655 = vrot.lane.b32.xlu0 %v637, 116
        %v656 = vpop.permute.xlu0 %655
        %657 = vrot.lane.b32.xlu0 %v640, 116
        %v658 = vpop.permute.xlu0 %657
        %vm660 = vcmask 1014784
        %v663 = vsel %vm660, %v556, %v644
        %v666 = vsel %vm660, %v560, %v646
        %vm667 = vcmask 982016
        %v669 = vsel %vm667, %v644, %v650
        %v672 = vsel %vm667, %v646, %v652
        %vm673 = vcmask 949248
        %v675 = vsel %vm673, %v650, %v656
        %v678 = vsel %vm673, %v652, %v658
        %680 = vset.pattern.permute.xlu0 0
        %681 = vperm.xlu0 %680, %v390
        %v682 = vpop.permute.xlu0 %681
        %685 = vset.pattern.permute.xlu0 0
        %686 = vperm.xlu0 %685, %v391
        %v687 = vpop.permute.xlu0 %686
        %v691 = vunpack.c.l.b16 %v388
        %v692 = vunpack.c.l.b16 %v389
        %v693 = vpack.c.b16 %v692, %v691
        %vm694 = vcmask 203776
        %v696 = vsel %vm694, %v693, 0
        %vm698 = vcmask 1043456
        %v699 = vsel %vm698, 4294967295, 65535
        %v700 = vsel %vm548, %v699, 0
        %v701 = vand.u32 %v666, %v700
        %v703 = vand.u32 %v672, %v700
        %v705 = vand.u32 %v678, %v700
        %v707 = vand.u32 %v658, %v700
        %709 = vmatprep.subr.bf16.mxu0 0
        %710 = vmatpush1.bf16.msra.mxu0 0
        %711 = vmatprep.subr.bf16.mxu0 0
        %712 = vmatpush1.bf16.msra.mxu0 0
        %713 = vmatprep.subr.bf16.mxu0 0
        %714 = vmatpush1.bf16.msra.mxu0 0
        %715 = vmatprep.subr.bf16.mxu0 0
        %716 = vmatpush1.bf16.msra.mxu0 0
        %717 = vmatprep.subr.bf16.mxu0 0
        %718 = vmatpush1.bf16.msra.mxu0 0
        %719 = vmatprep.subr.bf16.mxu0 0
        %720 = vmatpush1.bf16.msra.mxu0 0
        %721 = vmatprep.subr.bf16.mxu0 %v703
        %722 = vmatpush1.bf16.msra.mxu0 %v701
        %723 = vmatprep.subr.bf16.mxu0 %v669
        %724 = vmatpush1.bf16.msra.mxu0 %v663
        %725 = vmatprep.subr.bf16.mxu0 0
        %726 = vmatpush2.bf16.msra.mxu0 0
        %727 = vmatprep.subr.bf16.mxu0 0
        %728 = vmatpush2.bf16.msra.mxu0 0
        %729 = vmatprep.subr.bf16.mxu0 0
        %730 = vmatpush2.bf16.msra.mxu0 0
        %731 = vmatprep.subr.bf16.mxu0 0
        %732 = vmatpush2.bf16.msra.mxu0 0
        %733 = vmatprep.subr.bf16.mxu0 0
        %734 = vmatpush2.bf16.msra.mxu0 0
        %735 = vmatprep.subr.bf16.mxu0 0
        %736 = vmatpush2.bf16.msra.mxu0 0
        %737 = vmatprep.subr.bf16.mxu0 0
        %738 = vmatpush2.bf16.msra.mxu0 0
        %739 = vmatprep.subr.bf16.mxu0 0
        %740 = vmatpush2.bf16.msra.mxu0 0
        %741 = vmatprep.mubr.bf16.mxu0 0
        %742 = vmatmul.mubr.bf16.gmra.mxu0 %v696
        %v743 = vpop.f32.mrf.mxu0
        %v744 = vadd.f32 %v682, %v743
        %v745 = vpop.f32.mrf.mxu0
        %v746 = vadd.f32 %v682, %v745
        %v747 = vpop.f32.mrf.mxu0
        %v748 = vadd.f32 %v687, %v747
        %v749 = vpop.f32.mrf.mxu0
        %v750 = vadd.f32 %v687, %v749
        %751 = vdwg.mxu0
        %752 = vmatprep.subr.bf16.mxu0 0
        %753 = vmatpush1.bf16.msra.mxu0 0
        %754 = vmatprep.subr.bf16.mxu0 0
        %755 = vmatpush1.bf16.msra.mxu0 0
        %756 = vmatprep.subr.bf16.mxu0 0
        %757 = vmatpush1.bf16.msra.mxu0 0
        %758 = vmatprep.subr.bf16.mxu0 0
        %759 = vmatpush1.bf16.msra.mxu0 0
        %760 = vmatprep.subr.bf16.mxu0 0
        %761 = vmatpush1.bf16.msra.mxu0 0
        %762 = vmatprep.subr.bf16.mxu0 0
        %763 = vmatpush1.bf16.msra.mxu0 0
        %764 = vmatprep.subr.bf16.mxu0 %v707
        %765 = vmatpush1.bf16.msra.mxu0 %v705
        %766 = vmatprep.subr.bf16.mxu0 %v656
        %767 = vmatpush1.bf16.msra.mxu0 %v675
        %768 = vmatprep.subr.bf16.mxu0 0
        %769 = vmatpush2.bf16.msra.mxu0 0
        %770 = vmatprep.subr.bf16.mxu0 0
        %771 = vmatpush2.bf16.msra.mxu0 0
        %772 = vmatprep.subr.bf16.mxu0 0
        %773 = vmatpush2.bf16.msra.mxu0 0
        %774 = vmatprep.subr.bf16.mxu0 0
        %775 = vmatpush2.bf16.msra.mxu0 0
        %776 = vmatprep.subr.bf16.mxu0 0
        %777 = vmatpush2.bf16.msra.mxu0 0
        %778 = vmatprep.subr.bf16.mxu0 0
        %779 = vmatpush2.bf16.msra.mxu0 0
        %780 = vmatprep.subr.bf16.mxu0 0
        %781 = vmatpush2.bf16.msra.mxu0 0
        %782 = vmatprep.subr.bf16.mxu0 0
        %783 = vmatpush2.bf16.msra.mxu0 0
        %784 = vmatprep.mubr.bf16.mxu0 0
        %785 = vmatmul.mubr.bf16.gmra.mxu0 %v696
        %v786 = vpop.f32.mrf.mxu0
        %v787 = vadd.f32 %v682, %v786
        %v788 = vpop.f32.mrf.mxu0
        %v789 = vadd.f32 %v682, %v788
        %v790 = vpop.f32.mrf.mxu0
        %v791 = vadd.f32 %v687, %v790
        %v792 = vpop.f32.mrf.mxu0
        %v793 = vadd.f32 %v687, %v792
        %794 = vdwg.mxu0
        %v795 = vmax.f32 %v744, 0.0
        %v796 = vmax.f32 %v746, 0.0
        %v797 = vmax.f32 %v787, 0.0
        %v798 = vmax.f32 %v789, 0.0
        %v799 = vmax.f32 %v748, 0.0
        %v800 = vmax.f32 %v750, 0.0
        %v801 = vmax.f32 %v791, 0.0
        %v802 = vmax.f32 %v793, 0.0
        %807 = vrot.lane.b32.xlu0 %v795, 4
        %v808 = vpop.permute.xlu0 %807
        %809 = vrot.lane.b32.xlu0 %v796, 4
        %v810 = vpop.permute.xlu0 %809
        %811 = vrot.lane.b32.xlu0 %v799, 4
        %v812 = vpop.permute.xlu0 %811
        %813 = vrot.lane.b32.xlu0 %v800, 4
        %v814 = vpop.permute.xlu0 %813
        %vm815 = vcmask 31744
        %v816 = vsel %vm815, %v808, %v810
        %v817 = vsel %vm815, %v812, %v814
        %v820 = vmax.f32 %v795, %v816
        %v821 = vmax.f32 %v799, %v817
        %826 = vrot.lane.b32.xlu0 %v797, 4
        %v827 = vpop.permute.xlu0 %826
        %828 = vrot.lane.b32.xlu0 %v798, 4
        %v829 = vpop.permute.xlu0 %828
        %830 = vrot.lane.b32.xlu0 %v801, 4
        %v831 = vpop.permute.xlu0 %830
        %832 = vrot.lane.b32.xlu0 %v802, 4
        %v833 = vpop.permute.xlu0 %832
        %v834 = vsel %vm815, %v827, %v829
        %v835 = vsel %vm815, %v831, %v833
        %v840 = vmax.f32 %v796, %v827
        %v841 = vmax.f32 %v797, %v834
        %v842 = vmax.f32 %v800, %v831
        %v843 = vmax.f32 %v801, %v835
        %848 = vrot.lane.b32.xlu0 %v840, 8
        %v849 = vpop.permute.xlu0 %848
        %850 = vrot.lane.b32.xlu0 %v841, 8
        %v851 = vpop.permute.xlu0 %850
        %852 = vrot.lane.b32.xlu0 %v842, 8
        %v853 = vpop.permute.xlu0 %852
        %854 = vrot.lane.b32.xlu0 %v843, 8
        %v855 = vpop.permute.xlu0 %854
        %vm856 = vcmask 64512
        %v857 = vsel %vm856, %v849, %v851
        %v858 = vsel %vm856, %v853, %v855
        %v860 = vsel %vm660, %v820, 0
        %v863 = vsel %vm660, %v821, 0
        %v865 = vsel %vm660, %v857, 0
        %v867 = vsel %vm660, %v858, 0
        %v870 = vsel %vm698, %v459, 0
        %872 = vmatprep.subr.mxu0 0.0
        %873 = vmatpush1.msra.mxu0 %v870
        %874 = vmatprep.subr.mxu0 0.0
        %875 = vmatpush1.msra.mxu0 %v458
        %876 = vmatprep.subr.mxu0 0.0
        %877 = vmatpush1.msra.mxu0 %v457
        %878 = vmatprep.subr.mxu0 0.0
        %879 = vmatpush1.msra.mxu0 %v456
        %880 = vmatprep.subr.mxu0 0.0
        %881 = vmatpush1.msra.mxu0 %v455
        %882 = vmatprep.subr.mxu0 0.0
        %883 = vmatpush1.msra.mxu0 %v454
        %884 = vmatprep.subr.mxu0 0.0
        %885 = vmatpush1.msra.mxu0 %v453
        %886 = vmatprep.subr.mxu0 0.0
        %887 = vmatpush1.msra.mxu0 %v452
        %888 = vmatprep.subr.mxu0 0.0
        %889 = vmatpush1.msra.mxu0 %v451
        %890 = vmatprep.subr.mxu0 0.0
        %891 = vmatpush1.msra.mxu0 %v450
        %892 = vmatprep.subr.mxu0 0.0
        %893 = vmatpush1.msra.mxu0 %v449
        %894 = vmatprep.subr.mxu0 0.0
        %895 = vmatpush1.msra.mxu0 %v448
        %896 = vmatprep.subr.mxu0 0.0
        %897 = vmatpush1.msra.mxu0 %v447
        %898 = vmatprep.subr.mxu0 0.0
        %899 = vmatpush1.msra.mxu0 %v446
        %900 = vmatprep.subr.mxu0 0.0
        %901 = vmatpush1.msra.mxu0 %v445
        %902 = vmatprep.subr.mxu0 0.0
        %903 = vmatpush1.msra.mxu0 %v444
        %904 = vmatprep.subr.mxu0 0.0
        %905 = vmatpush2.msra.mxu0 0.0
        %906 = vmatprep.subr.mxu0 0.0
        %907 = vmatpush2.msra.mxu0 0.0
        %908 = vmatprep.subr.mxu0 0.0
        %909 = vmatpush2.msra.mxu0 0.0
        %910 = vmatprep.subr.mxu0 0.0
        %911 = vmatpush2.msra.mxu0 0.0
        %912 = vmatprep.subr.mxu0 0.0
        %913 = vmatpush2.msra.mxu0 0.0
        %914 = vmatprep.subr.mxu0 0.0
        %915 = vmatpush2.msra.mxu0 0.0
        %916 = vmatprep.subr.mxu0 0.0
        %917 = vmatpush2.msra.mxu0 0.0
        %918 = vmatprep.subr.mxu0 0.0
        %919 = vmatpush2.msra.mxu0 0.0
        %920 = vmatprep.subr.mxu0 0.0
        %921 = vmatpush2.msra.mxu0 0.0
        %922 = vmatprep.subr.mxu0 0.0
        %923 = vmatpush2.msra.mxu0 0.0
        %924 = vmatprep.subr.mxu0 0.0
        %925 = vmatpush2.msra.mxu0 0.0
        %926 = vmatprep.subr.mxu0 0.0
        %927 = vmatpush2.msra.mxu0 0.0
        %928 = vmatprep.subr.mxu0 0.0
        %929 = vmatpush2.msra.mxu0 0.0
        %930 = vmatprep.subr.mxu0 0.0
        %931 = vmatpush2.msra.mxu0 0.0
        %932 = vmatprep.subr.mxu0 0.0
        %933 = vmatpush2.msra.mxu0 0.0
        %934 = vmatprep.subr.mxu0 0.0
        %935 = vmatpush2.msra.mxu0 0.0
        %936 = vmatprep.mubr.f32.mxu0 0.0
        %937 = vmatmul.mubr.f32.gmra.mxu0 %v860
        %v938 = vpop.f32.mrf.mxu0
        %v939 = vadd.f32 0.0, %v938
        %v940 = vpop.f32.mrf.mxu0
        %941 = vmatprep.mubr.f32.mxu0 0.0
        %942 = vmatmul.mubr.f32.gmra.mxu0 %v863
        %v943 = vpop.f32.mrf.mxu0
        %v944 = vadd.f32 0.0, %v943
        %v945 = vpop.f32.mrf.mxu0
        %946 = vmatprep.mubr.f32.mxu0 0.0
        %947 = vmatmul.mubr.f32.gmra.mxu0 %v865
        %v948 = vpop.f32.mrf.mxu0
        %v949 = vadd.f32 0.0, %v948
        %v950 = vpop.f32.mrf.mxu0
        %951 = vmatprep.mubr.f32.mxu0 0.0
        %952 = vmatmul.mubr.f32.gmra.mxu0 %v867
        %v953 = vpop.f32.mrf.mxu0
        %v954 = vadd.f32 0.0, %v953
        %v955 = vpop.f32.mrf.mxu0
        %956 = vdwg.mxu0
        %v958 = vsel %vm698, %v508, 0
        %960 = vmatprep.subr.mxu0 0.0
        %961 = vmatpush1.msra.mxu0 %v958
        %962 = vmatprep.subr.mxu0 0.0
        %963 = vmatpush1.msra.mxu0 %v507
        %964 = vmatprep.subr.mxu0 0.0
        %965 = vmatpush1.msra.mxu0 %v506
        %966 = vmatprep.subr.mxu0 0.0
        %967 = vmatpush1.msra.mxu0 %v505
        %968 = vmatprep.subr.mxu0 0.0
        %969 = vmatpush1.msra.mxu0 %v504
        %970 = vmatprep.subr.mxu0 0.0
        %971 = vmatpush1.msra.mxu0 %v503
        %972 = vmatprep.subr.mxu0 0.0
        %973 = vmatpush1.msra.mxu0 %v502
        %974 = vmatprep.subr.mxu0 0.0
        %975 = vmatpush1.msra.mxu0 %v501
        %976 = vmatprep.subr.mxu0 0.0
        %977 = vmatpush1.msra.mxu0 %v500
        %978 = vmatprep.subr.mxu0 0.0
        %979 = vmatpush1.msra.mxu0 %v499
        %980 = vmatprep.subr.mxu0 0.0
        %981 = vmatpush1.msra.mxu0 %v498
        %982 = vmatprep.subr.mxu0 0.0
        %983 = vmatpush1.msra.mxu0 %v497
        %984 = vmatprep.subr.mxu0 0.0
        %985 = vmatpush1.msra.mxu0 %v496
        %986 = vmatprep.subr.mxu0 0.0
        %987 = vmatpush1.msra.mxu0 %v495
        %988 = vmatprep.subr.mxu0 0.0
        %989 = vmatpush1.msra.mxu0 %v494
        %990 = vmatprep.subr.mxu0 0.0
        %991 = vmatpush1.msra.mxu0 %v493
        %992 = vmatprep.subr.mxu0 0.0
        %993 = vmatpush2.msra.mxu0 0.0
        %994 = vmatprep.subr.mxu0 0.0
        %995 = vmatpush2.msra.mxu0 0.0
        %996 = vmatprep.subr.mxu0 0.0
        %997 = vmatpush2.msra.mxu0 0.0
        %998 = vmatprep.subr.mxu0 0.0
        %999 = vmatpush2.msra.mxu0 0.0
        %1000 = vmatprep.subr.mxu0 0.0
        %1001 = vmatpush2.msra.mxu0 0.0
        %1002 = vmatprep.subr.mxu0 0.0
        %1003 = vmatpush2.msra.mxu0 0.0
        %1004 = vmatprep.subr.mxu0 0.0
        %1005 = vmatpush2.msra.mxu0 0.0
        %1006 = vmatprep.subr.mxu0 0.0
        %1007 = vmatpush2.msra.mxu0 0.0
        %1008 = vmatprep.subr.mxu0 0.0
        %1009 = vmatpush2.msra.mxu0 0.0
        %1010 = vmatprep.subr.mxu0 0.0
        %1011 = vmatpush2.msra.mxu0 0.0
        %1012 = vmatprep.subr.mxu0 0.0
        %1013 = vmatpush2.msra.mxu0 0.0
        %1014 = vmatprep.subr.mxu0 0.0
        %1015 = vmatpush2.msra.mxu0 0.0
        %1016 = vmatprep.subr.mxu0 0.0
        %1017 = vmatpush2.msra.mxu0 0.0
        %1018 = vmatprep.subr.mxu0 0.0
        %1019 = vmatpush2.msra.mxu0 0.0
        %1020 = vmatprep.subr.mxu0 0.0
        %1021 = vmatpush2.msra.mxu0 0.0
        %1022 = vmatprep.subr.mxu0 0.0
        %1023 = vmatpush2.msra.mxu0 0.0
        %1024 = vmatprep.mubr.f32.mxu0 0.0
        %1025 = vmatmul.mubr.f32.gmra.mxu0 %v860
        %v1026 = vpop.f32.mrf.mxu0
        %v1027 = vadd.f32 0.0, %v1026
        %v1028 = vpop.f32.mrf.mxu0
        %1029 = vmatprep.mubr.f32.mxu0 0.0
        %1030 = vmatmul.mubr.f32.gmra.mxu0 %v863
        %v1031 = vpop.f32.mrf.mxu0
        %v1032 = vadd.f32 0.0, %v1031
        %v1033 = vpop.f32.mrf.mxu0
        %1034 = vmatprep.mubr.f32.mxu0 0.0
        %1035 = vmatmul.mubr.f32.gmra.mxu0 %v865
        %v1036 = vpop.f32.mrf.mxu0
        %v1037 = vadd.f32 0.0, %v1036
        %v1038 = vpop.f32.mrf.mxu0
        %1039 = vmatprep.mubr.f32.mxu0 0.0
        %1040 = vmatmul.mubr.f32.gmra.mxu0 %v867
        %v1041 = vpop.f32.mrf.mxu0
        %v1042 = vadd.f32 0.0, %v1041
        %v1043 = vpop.f32.mrf.mxu0
        %1044 = vdwg.mxu0
        %v1045 = vmax.f32 %v939, %v1027
        %v1046 = vmax.f32 %v944, %v1032
        %v1047 = vmax.f32 %v949, %v1037
        %v1048 = vmax.f32 %v954, %v1042
        %1049 = vxpose.xlu0.b32.start [1/16] %v1045, 128
        %1050 = vxpose.xlu0.b32.cont [2/16] %v1046, 128
        %1051 = vxpose.xlu0.b32.cont [3/16] %v1047, 128
        %1052 = vxpose.xlu0.b32.cont [4/16] %v1048, 128
        %1053 = vxpose.xlu0.b32.cont [5/16] 0.0, 128
        %1054 = vxpose.xlu0.b32.cont [6/16] 0.0, 128
        %1055 = vxpose.xlu0.b32.cont [7/16] 0.0, 128
        %1056 = vxpose.xlu0.b32.cont [8/16] 0.0, 128
        %1057 = vxpose.xlu0.b32.cont [9/16] 0.0, 128
        %1058 = vxpose.xlu0.b32.cont [10/16] 0.0, 128
        %1059 = vxpose.xlu0.b32.cont [11/16] 0.0, 128
        %1060 = vxpose.xlu0.b32.cont [12/16] 0.0, 128
        %1061 = vxpose.xlu0.b32.cont [13/16] 0.0, 128
        %1062 = vxpose.xlu0.b32.cont [14/16] 0.0, 128
        %1063 = vxpose.xlu0.b32.cont [15/16] 0.0, 128
        %1064 = vxpose.xlu0.b32.end [16/16] 0.0, 128
        %v1065 = vpop.trf.xlu0
        %v1066 = vpop.trf.xlu0
        %v1067 = vpop.trf.xlu0
        %v1068 = vpop.trf.xlu0
        %v1069 = vpop.trf.xlu0
        %v1070 = vpop.trf.xlu0
        %v1071 = vpop.trf.xlu0
        %v1072 = vpop.trf.xlu0
        %v1073 = vpop.trf.xlu0
        %v1074 = vpop.trf.xlu0
        %v1075 = vpop.trf.xlu0
        %v1076 = vpop.trf.xlu0
        %v1077 = vpop.trf.xlu0
        %v1078 = vpop.trf.xlu0
        %v1079 = vpop.trf.xlu0
        %v1080 = vpop.trf.xlu0
        %s1081 = smul.u32 %s510, 2
        %s1082 = smul.u32 %s1081, 64
        %s1083 = scalar_lea.vmem [#allocation2], %s1082
        %vm1084 = vcmask 130048
        %1085 = vst.msk [vmem:[%s1083] sm:$0xff] %vm1084, %v1065
        %1086 = vst.msk [vmem:[%s1083 + $0x8] sm:$0xff] %vm1084, %v1066
        %1087 = vst.msk [vmem:[%s1083 + $0x10] sm:$0xff] %vm1084, %v1067
        %1088 = vst.msk [vmem:[%s1083 + $0x18] sm:$0xff] %vm1084, %v1068
        %1089 = vst.msk [vmem:[%s1083 + $0x20] sm:$0xff] %vm1084, %v1069
        %1090 = vst.msk [vmem:[%s1083 + $0x28] sm:$0xff] %vm1084, %v1070
        %1091 = vst.msk [vmem:[%s1083 + $0x30] sm:$0xff] %vm1084, %v1071
        %vm1092 = vcmask 128000
        %1093 = vst.msk [vmem:[%s1083 + $0x38] sm:$0x3f] %vm1092, %v1072
        %s1094 = sadd.s32 %s1081, 1
        %1103 = vrot.lane.b32.xlu0 %v1065, 112
        %v1104 = vpop.permute.xlu0 %1103
        %1105 = vrot.lane.b32.xlu0 %v1066, 112
        %v1106 = vpop.permute.xlu0 %1105
        %1107 = vrot.lane.b32.xlu0 %v1067, 112
        %v1108 = vpop.permute.xlu0 %1107
        %1109 = vrot.lane.b32.xlu0 %v1068, 112
        %v1110 = vpop.permute.xlu0 %1109
        %1111 = vrot.lane.b32.xlu0 %v1069, 112
        %v1112 = vpop.permute.xlu0 %1111
        %1113 = vrot.lane.b32.xlu0 %v1070, 112
        %v1114 = vpop.permute.xlu0 %1113
        %1115 = vrot.lane.b32.xlu0 %v1071, 112
        %v1116 = vpop.permute.xlu0 %1115
        %1117 = vrot.lane.b32.xlu0 %v1072, 112
        %v1118 = vpop.permute.xlu0 %1117
        %s1127 = smul.u32 %s1094, 64
        %s1128 = scalar_lea.vmem [#allocation2], %s1127
        %1129 = vst.msk [vmem:[%s1128] sm:$0xff] %vm1084, %v1104
        %1130 = vst.msk [vmem:[%s1128 + $0x8] sm:$0xff] %vm1084, %v1106
        %1131 = vst.msk [vmem:[%s1128 + $0x10] sm:$0xff] %vm1084, %v1108
        %1132 = vst.msk [vmem:[%s1128 + $0x18] sm:$0xff] %vm1084, %v1110
        %1133 = vst.msk [vmem:[%s1128 + $0x20] sm:$0xff] %vm1084, %v1112
        %1134 = vst.msk [vmem:[%s1128 + $0x28] sm:$0xff] %vm1084, %v1114
        %1135 = vst.msk [vmem:[%s1128 + $0x30] sm:$0xff] %vm1084, %v1116
        %1136 = vst.msk [vmem:[%s1128 + $0x38] sm:$0x3f] %vm1092, %v1118
      $region69: #{a_convnet_forward.1} parent=63 // loop_footer
        %s514 = sadd.s32 1, %s510
      $region70: #{a_convnet_forward.1} parent=63 // loop_footer_branch
        %509 = sbr.rel target = $region66
      $region71: #{a_convnet_forward.1} parent=63 // loop_exit
        _
      %v1137 = vld [vmem:[%s4] sm:$0x1]
      %v1138 = vmul.u32 %v393, 2
      %v1139 = vmul.u32 %v394, 2
      %v1140 = vmul.u32 %v395, 2
      %v1141 = vmul.u32 %v396, 2
      %vm1142 = vcmp.eq.s32.totalorder %v410, %v1138
      %vm1143 = vcmp.eq.s32.totalorder %v410, %v1139
      %vm1144 = vcmp.eq.s32.totalorder %v410, %v1140
      %vm1145 = vcmp.eq.s32.totalorder %v410, %v1141
      %v1146 = vsel %vm1142, 1, 0
      %v1147 = vsel %vm1143, 1, 0
      %v1148 = vsel %vm1144, 1, 0
      %v1149 = vsel %vm1145, 1, 0
      %v1150 = vcvt.s32.f32 %v1146
      %v1151 = vcvt.s32.f32 %v1147
      %v1152 = vcvt.s32.f32 %v1148
      %v1153 = vcvt.s32.f32 %v1149
      %v1154 = vadd.s32 %v1138, 1
      %v1155 = vadd.s32 %v1139, 1
      %v1156 = vadd.s32 %v1140, 1
      %v1157 = vadd.s32 %v1141, 1
      %vm1158 = vcmp.eq.s32.totalorder %v410, %v1154
      %vm1159 = vcmp.eq.s32.totalorder %v410, %v1155
      %vm1160 = vcmp.eq.s32.totalorder %v410, %v1156
      %vm1161 = vcmp.eq.s32.totalorder %v410, %v1157
      %v1162 = vsel %vm1158, 1, 0
      %v1163 = vsel %vm1159, 1, 0
      %v1164 = vsel %vm1160, 1, 0
      %v1165 = vsel %vm1161, 1, 0
      %v1166 = vcvt.s32.f32 %v1162
      %v1167 = vcvt.s32.f32 %v1163
      %v1168 = vcvt.s32.f32 %v1164
      %v1169 = vcvt.s32.f32 %v1165
      loop: start=0, step=1, limit=29
      $region72: #{a_convnet_forward.1} parent=63 // loop_pre_header
        _
      $region73: #{a_convnet_forward.1} parent=63 // loop_header
        %s1171 = sphi 0, %s1175
        %p1172 = scmp.ge.s32.totalorder %s1171, 29
      $region74: #{a_convnet_forward.1} parent=63 // loop_header_branch
        %1174 = sbr.rel (%p1172) target = $region78
      $region75: #{a_convnet_forward.1} parent=63 // loop_body
        %s1176 = smul.u32 %s1171, 2
        %s1177 = smul.u32 %s1176, 64
        %s1178 = scalar_lea.vmem [#allocation2], %s1177
        %v1179 = vld [vmem:[%s1178] sm:$0xff]
        %v1180 = vld [vmem:[%s1178 + $0x8] sm:$0xff]
        %v1181 = vld [vmem:[%s1178 + $0x10] sm:$0xff]
        %v1182 = vld [vmem:[%s1178 + $0x18] sm:$0xff]
        %v1183 = vld [vmem:[%s1178 + $0x20] sm:$0xff]
        %v1184 = vld [vmem:[%s1178 + $0x28] sm:$0xff]
        %v1185 = vld [vmem:[%s1178 + $0x30] sm:$0xff]
        %v1186 = vld [vmem:[%s1178 + $0x38] sm:$0x3f]
        %s1187 = sadd.s32 %s1176, 1
        %s1188 = smul.u32 %s1187, 64
        %s1189 = scalar_lea.vmem [#allocation2], %s1188
        %v1190 = vld [vmem:[%s1189] sm:$0xff]
        %v1191 = vld [vmem:[%s1189 + $0x8] sm:$0xff]
        %v1192 = vld [vmem:[%s1189 + $0x10] sm:$0xff]
        %v1193 = vld [vmem:[%s1189 + $0x18] sm:$0xff]
        %v1194 = vld [vmem:[%s1189 + $0x20] sm:$0xff]
        %v1195 = vld [vmem:[%s1189 + $0x28] sm:$0xff]
        %v1196 = vld [vmem:[%s1189 + $0x30] sm:$0xff]
        %v1197 = vld [vmem:[%s1189 + $0x38] sm:$0x3f]
        %s1198 = sadd.s32 %s1176, 2
        %s1199 = smul.u32 %s1198, 64
        %s1200 = scalar_lea.vmem [#allocation2], %s1199
        %v1201 = vld [vmem:[%s1200] sm:$0xff]
        %v1202 = vld [vmem:[%s1200 + $0x8] sm:$0xff]
        %v1203 = vld [vmem:[%s1200 + $0x10] sm:$0xff]
        %v1204 = vld [vmem:[%s1200 + $0x18] sm:$0xff]
        %v1205 = vld [vmem:[%s1200 + $0x20] sm:$0xff]
        %v1206 = vld [vmem:[%s1200 + $0x28] sm:$0xff]
        %v1207 = vld [vmem:[%s1200 + $0x30] sm:$0xff]
        %v1208 = vld [vmem:[%s1200 + $0x38] sm:$0x3f]
        %s1209 = sadd.s32 %s1176, 3
        %s1210 = smul.u32 %s1209, 64
        %s1211 = scalar_lea.vmem [#allocation2], %s1210
        %v1212 = vld [vmem:[%s1211] sm:$0xff]
        %v1213 = vld [vmem:[%s1211 + $0x8] sm:$0xff]
        %v1214 = vld [vmem:[%s1211 + $0x10] sm:$0xff]
        %v1215 = vld [vmem:[%s1211 + $0x18] sm:$0xff]
        %v1216 = vld [vmem:[%s1211 + $0x20] sm:$0xff]
        %v1217 = vld [vmem:[%s1211 + $0x28] sm:$0xff]
        %v1218 = vld [vmem:[%s1211 + $0x30] sm:$0xff]
        %v1219 = vld [vmem:[%s1211 + $0x38] sm:$0x3f]
        %s1220 = sadd.s32 %s1176, 4
        %s1221 = smul.u32 %s1220, 64
        %s1222 = scalar_lea.vmem [#allocation2], %s1221
        %v1223 = vld [vmem:[%s1222] sm:$0xff]
        %v1224 = vld [vmem:[%s1222 + $0x8] sm:$0xff]
        %v1225 = vld [vmem:[%s1222 + $0x10] sm:$0xff]
        %v1226 = vld [vmem:[%s1222 + $0x18] sm:$0xff]
        %v1227 = vld [vmem:[%s1222 + $0x20] sm:$0xff]
        %v1228 = vld [vmem:[%s1222 + $0x28] sm:$0xff]
        %v1229 = vld [vmem:[%s1222 + $0x30] sm:$0xff]
        %v1230 = vld [vmem:[%s1222 + $0x38] sm:$0x3f]
        %s1231 = sadd.s32 %s1176, 5
        %s1232 = smul.u32 %s1231, 64
        %s1233 = scalar_lea.vmem [#allocation2], %s1232
        %v1234 = vld [vmem:[%s1233] sm:$0xff]
        %v1235 = vld [vmem:[%s1233 + $0x8] sm:$0xff]
        %v1236 = vld [vmem:[%s1233 + $0x10] sm:$0xff]
        %v1237 = vld [vmem:[%s1233 + $0x18] sm:$0xff]
        %v1238 = vld [vmem:[%s1233 + $0x20] sm:$0xff]
        %v1239 = vld [vmem:[%s1233 + $0x28] sm:$0xff]
        %v1240 = vld [vmem:[%s1233 + $0x30] sm:$0xff]
        %v1241 = vld [vmem:[%s1233 + $0x38] sm:$0x3f]
        %1250 = vrot.lane.b32.xlu0 %v1190, 16
        %v1251 = vpop.permute.xlu0 %1250
        %1252 = vrot.lane.b32.xlu0 %v1191, 16
        %v1253 = vpop.permute.xlu0 %1252
        %1254 = vrot.lane.b32.xlu0 %v1192, 16
        %v1255 = vpop.permute.xlu0 %1254
        %1256 = vrot.lane.b32.xlu0 %v1193, 16
        %v1257 = vpop.permute.xlu0 %1256
        %1258 = vrot.lane.b32.xlu0 %v1194, 16
        %v1259 = vpop.permute.xlu0 %1258
        %1260 = vrot.lane.b32.xlu0 %v1195, 16
        %v1261 = vpop.permute.xlu0 %1260
        %1262 = vrot.lane.b32.xlu0 %v1196, 16
        %v1263 = vpop.permute.xlu0 %1262
        %1264 = vrot.lane.b32.xlu0 %v1197, 16
        %v1265 = vpop.permute.xlu0 %1264
        %1282 = vrot.lane.b32.xlu0 %v1201, 32
        %v1283 = vpop.permute.xlu0 %1282
        %1284 = vrot.lane.b32.xlu0 %v1202, 32
        %v1285 = vpop.permute.xlu0 %1284
        %1286 = vrot.lane.b32.xlu0 %v1203, 32
        %v1287 = vpop.permute.xlu0 %1286
        %1288 = vrot.lane.b32.xlu0 %v1204, 32
        %v1289 = vpop.permute.xlu0 %1288
        %1290 = vrot.lane.b32.xlu0 %v1205, 32
        %v1291 = vpop.permute.xlu0 %1290
        %1292 = vrot.lane.b32.xlu0 %v1206, 32
        %v1293 = vpop.permute.xlu0 %1292
        %1294 = vrot.lane.b32.xlu0 %v1207, 32
        %v1295 = vpop.permute.xlu0 %1294
        %1296 = vrot.lane.b32.xlu0 %v1208, 32
        %v1297 = vpop.permute.xlu0 %1296
        %1314 = vrot.lane.b32.xlu0 %v1212, 48
        %v1315 = vpop.permute.xlu0 %1314
        %1316 = vrot.lane.b32.xlu0 %v1213, 48
        %v1317 = vpop.permute.xlu0 %1316
        %1318 = vrot.lane.b32.xlu0 %v1214, 48
        %v1319 = vpop.permute.xlu0 %1318
        %1320 = vrot.lane.b32.xlu0 %v1215, 48
        %v1321 = vpop.permute.xlu0 %1320
        %1322 = vrot.lane.b32.xlu0 %v1216, 48
        %v1323 = vpop.permute.xlu0 %1322
        %1324 = vrot.lane.b32.xlu0 %v1217, 48
        %v1325 = vpop.permute.xlu0 %1324
        %1326 = vrot.lane.b32.xlu0 %v1218, 48
        %v1327 = vpop.permute.xlu0 %1326
        %1328 = vrot.lane.b32.xlu0 %v1219, 48
        %v1329 = vpop.permute.xlu0 %1328
        %1346 = vrot.lane.b32.xlu0 %v1223, 64
        %v1347 = vpop.permute.xlu0 %1346
        %1348 = vrot.lane.b32.xlu0 %v1224, 64
        %v1349 = vpop.permute.xlu0 %1348
        %1350 = vrot.lane.b32.xlu0 %v1225, 64
        %v1351 = vpop.permute.xlu0 %1350
        %1352 = vrot.lane.b32.xlu0 %v1226, 64
        %v1353 = vpop.permute.xlu0 %1352
        %1354 = vrot.lane.b32.xlu0 %v1227, 64
        %v1355 = vpop.permute.xlu0 %1354
        %1356 = vrot.lane.b32.xlu0 %v1228, 64
        %v1357 = vpop.permute.xlu0 %1356
        %1358 = vrot.lane.b32.xlu0 %v1229, 64
        %v1359 = vpop.permute.xlu0 %1358
        %1360 = vrot.lane.b32.xlu0 %v1230, 64
        %v1361 = vpop.permute.xlu0 %1360
        %vm1370 = vcmask 130048
        %v1371 = vsel %vm1370, %v1179, %v1251
        %v1372 = vsel %vm1370, %v1180, %v1253
        %v1373 = vsel %vm1370, %v1181, %v1255
        %v1374 = vsel %vm1370, %v1182, %v1257
        %v1375 = vsel %vm1370, %v1183, %v1259
        %v1376 = vsel %vm1370, %v1184, %v1261
        %v1377 = vsel %vm1370, %v1185, %v1263
        %v1378 = vsel %vm1370, %v1186, %v1265
        %vm1379 = vcmask 261120
        %v1380 = vsel %vm1379, %v1371, %v1283
        %v1381 = vsel %vm1379, %v1372, %v1285
        %v1382 = vsel %vm1379, %v1373, %v1287
        %v1383 = vsel %vm1379, %v1374, %v1289
        %v1384 = vsel %vm1379, %v1375, %v1291
        %v1385 = vsel %vm1379, %v1376, %v1293
        %v1386 = vsel %vm1379, %v1377, %v1295
        %v1387 = vsel %vm1379, %v1378, %v1297
        %vm1388 = vcmask 392192
        %v1389 = vsel %vm1388, %v1380, %v1315
        %v1390 = vsel %vm1388, %v1381, %v1317
        %v1391 = vsel %vm1388, %v1382, %v1319
        %v1392 = vsel %vm1388, %v1383, %v1321
        %v1393 = vsel %vm1388, %v1384, %v1323
        %v1394 = vsel %vm1388, %v1385, %v1325
        %v1395 = vsel %vm1388, %v1386, %v1327
        %v1396 = vsel %vm1388, %v1387, %v1329
        %vm1397 = vcmask 523264
        %v1398 = vsel %vm1397, %v1389, %v1347
        %v1399 = vsel %vm1397, %v1390, %v1349
        %v1400 = vsel %vm1397, %v1391, %v1351
        %v1401 = vsel %vm1397, %v1392, %v1353
        %v1402 = vsel %vm1397, %v1393, %v1355
        %v1403 = vsel %vm1397, %v1394, %v1357
        %v1404 = vsel %vm1397, %v1395, %v1359
        %v1405 = vsel %vm1397, %v1396, %v1361
        %vm1414 = vcmask 1046528
        %v1415 = vrot.slane %v1398, 1
        %v1416 = vrot.slane %v1399, 1
        %v1417 = vsel %vm1414, %v1415, %v1416
        %v1418 = vrot.slane %v1400, 1
        %v1419 = vsel %vm1414, %v1416, %v1418
        %v1420 = vrot.slane %v1401, 1
        %v1421 = vsel %vm1414, %v1418, %v1420
        %v1422 = vrot.slane %v1402, 1
        %v1423 = vsel %vm1414, %v1420, %v1422
        %v1424 = vrot.slane %v1403, 1
        %v1425 = vsel %vm1414, %v1422, %v1424
        %v1426 = vrot.slane %v1404, 1
        %v1427 = vsel %vm1414, %v1424, %v1426
        %v1428 = vrot.slane %v1405, 1
        %v1429 = vsel %vm1414, %v1426, %v1428
        %1430 = vrot.lane.b32.xlu0 %v1417, 80
        %v1431 = vpop.permute.xlu0 %1430
        %1432 = vrot.lane.b32.xlu0 %v1419, 80
        %v1433 = vpop.permute.xlu0 %1432
        %1434 = vrot.lane.b32.xlu0 %v1421, 80
        %v1435 = vpop.permute.xlu0 %1434
        %1436 = vrot.lane.b32.xlu0 %v1423, 80
        %v1437 = vpop.permute.xlu0 %1436
        %1438 = vrot.lane.b32.xlu0 %v1425, 80
        %v1439 = vpop.permute.xlu0 %1438
        %1440 = vrot.lane.b32.xlu0 %v1427, 80
        %v1441 = vpop.permute.xlu0 %1440
        %1442 = vrot.lane.b32.xlu0 %v1429, 80
        %v1443 = vpop.permute.xlu0 %1442
        %1444 = vrot.lane.b32.xlu0 %v1428, 80
        %v1445 = vpop.permute.xlu0 %1444
        %vm1454 = vcmask 1045504
        %v1455 = vrot.slane %v1398, 2
        %v1456 = vrot.slane %v1399, 2
        %v1457 = vsel %vm1454, %v1455, %v1456
        %v1458 = vrot.slane %v1400, 2
        %v1459 = vsel %vm1454, %v1456, %v1458
        %v1460 = vrot.slane %v1401, 2
        %v1461 = vsel %vm1454, %v1458, %v1460
        %v1462 = vrot.slane %v1402, 2
        %v1463 = vsel %vm1454, %v1460, %v1462
        %v1464 = vrot.slane %v1403, 2
        %v1465 = vsel %vm1454, %v1462, %v1464
        %v1466 = vrot.slane %v1404, 2
        %v1467 = vsel %vm1454, %v1464, %v1466
        %v1468 = vrot.slane %v1405, 2
        %v1469 = vsel %vm1454, %v1466, %v1468
        %1470 = vrot.lane.b32.xlu0 %v1457, 32
        %v1471 = vpop.permute.xlu0 %1470
        %1472 = vrot.lane.b32.xlu0 %v1459, 32
        %v1473 = vpop.permute.xlu0 %1472
        %1474 = vrot.lane.b32.xlu0 %v1461, 32
        %v1475 = vpop.permute.xlu0 %1474
        %1476 = vrot.lane.b32.xlu0 %v1463, 32
        %v1477 = vpop.permute.xlu0 %1476
        %1478 = vrot.lane.b32.xlu0 %v1465, 32
        %v1479 = vpop.permute.xlu0 %1478
        %1480 = vrot.lane.b32.xlu0 %v1467, 32
        %v1481 = vpop.permute.xlu0 %1480
        %1482 = vrot.lane.b32.xlu0 %v1469, 32
        %v1483 = vpop.permute.xlu0 %1482
        %1484 = vrot.lane.b32.xlu0 %v1468, 32
        %v1485 = vpop.permute.xlu0 %1484
        %vm1494 = vcmask 1044480
        %v1495 = vrot.slane %v1398, 3
        %v1496 = vrot.slane %v1399, 3
        %v1497 = vsel %vm1494, %v1495, %v1496
        %v1498 = vrot.slane %v1400, 3
        %v1499 = vsel %vm1494, %v1496, %v1498
        %v1500 = vrot.slane %v1401, 3
        %v1501 = vsel %vm1494, %v1498, %v1500
        %v1502 = vrot.slane %v1402, 3
        %v1503 = vsel %vm1494, %v1500, %v1502
        %v1504 = vrot.slane %v1403, 3
        %v1505 = vsel %vm1494, %v1502, %v1504
        %v1506 = vrot.slane %v1404, 3
        %v1507 = vsel %vm1494, %v1504, %v1506
        %v1508 = vrot.slane %v1405, 3
        %v1509 = vsel %vm1494, %v1506, %v1508
        %1510 = vrot.lane.b32.xlu0 %v1497, 112
        %v1511 = vpop.permute.xlu0 %1510
        %1512 = vrot.lane.b32.xlu0 %v1499, 112
        %v1513 = vpop.permute.xlu0 %1512
        %1514 = vrot.lane.b32.xlu0 %v1501, 112
        %v1515 = vpop.permute.xlu0 %1514
        %1516 = vrot.lane.b32.xlu0 %v1503, 112
        %v1517 = vpop.permute.xlu0 %1516
        %1518 = vrot.lane.b32.xlu0 %v1505, 112
        %v1519 = vpop.permute.xlu0 %1518
        %1520 = vrot.lane.b32.xlu0 %v1507, 112
        %v1521 = vpop.permute.xlu0 %1520
        %1522 = vrot.lane.b32.xlu0 %v1509, 112
        %v1523 = vpop.permute.xlu0 %1522
        %1524 = vrot.lane.b32.xlu0 %v1508, 112
        %v1525 = vpop.permute.xlu0 %1524
        %vm1534 = vcmask 1043456
        %v1535 = vrot.slane %v1398, 4
        %v1536 = vrot.slane %v1399, 4
        %v1537 = vsel %vm1534, %v1535, %v1536
        %v1538 = vrot.slane %v1400, 4
        %v1539 = vsel %vm1534, %v1536, %v1538
        %v1540 = vrot.slane %v1401, 4
        %v1541 = vsel %vm1534, %v1538, %v1540
        %v1542 = vrot.slane %v1402, 4
        %v1543 = vsel %vm1534, %v1540, %v1542
        %v1544 = vrot.slane %v1403, 4
        %v1545 = vsel %vm1534, %v1542, %v1544
        %v1546 = vrot.slane %v1404, 4
        %v1547 = vsel %vm1534, %v1544, %v1546
        %v1548 = vrot.slane %v1405, 4
        %v1549 = vsel %vm1534, %v1546, %v1548
        %1550 = vrot.lane.b32.xlu0 %v1537, 64
        %v1551 = vpop.permute.xlu0 %1550
        %1552 = vrot.lane.b32.xlu0 %v1539, 64
        %v1553 = vpop.permute.xlu0 %1552
        %1554 = vrot.lane.b32.xlu0 %v1541, 64
        %v1555 = vpop.permute.xlu0 %1554
        %1556 = vrot.lane.b32.xlu0 %v1543, 64
        %v1557 = vpop.permute.xlu0 %1556
        %1558 = vrot.lane.b32.xlu0 %v1545, 64
        %v1559 = vpop.permute.xlu0 %1558
        %1560 = vrot.lane.b32.xlu0 %v1547, 64
        %v1561 = vpop.permute.xlu0 %1560
        %1562 = vrot.lane.b32.xlu0 %v1549, 64
        %v1563 = vpop.permute.xlu0 %1562
        %1564 = vrot.lane.b32.xlu0 %v1548, 64
        %v1565 = vpop.permute.xlu0 %1564
        %vm1574 = vcmask 654336
        %v1575 = vsel %vm1574, %v1398, %v1431
        %v1576 = vsel %vm1574, %v1399, %v1433
        %v1577 = vsel %vm1574, %v1400, %v1435
        %v1578 = vsel %vm1574, %v1401, %v1437
        %v1579 = vsel %vm1574, %v1402, %v1439
        %v1580 = vsel %vm1574, %v1403, %v1441
        %v1581 = vsel %vm1574, %v1404, %v1443
        %v1582 = vsel %vm1574, %v1405, %v1445
        %v1583 = vsel %vm1379, %v1431, %v1471
        %v1584 = vsel %vm1379, %v1433, %v1473
        %v1585 = vsel %vm1379, %v1435, %v1475
        %v1586 = vsel %vm1379, %v1437, %v1477
        %v1587 = vsel %vm1379, %v1439, %v1479
        %v1588 = vsel %vm1379, %v1441, %v1481
        %v1589 = vsel %vm1379, %v1443, %v1483
        %v1590 = vsel %vm1379, %v1445, %v1485
        %vm1591 = vcmask 916480
        %v1592 = vsel %vm1591, %v1583, %v1511
        %v1593 = vsel %vm1591, %v1584, %v1513
        %v1594 = vsel %vm1591, %v1585, %v1515
        %v1595 = vsel %vm1591, %v1586, %v1517
        %v1596 = vsel %vm1591, %v1587, %v1519
        %v1597 = vsel %vm1591, %v1588, %v1521
        %v1598 = vsel %vm1591, %v1589, %v1523
        %v1599 = vsel %vm1591, %v1590, %v1525
        %v1600 = vsel %vm1397, %v1511, %v1551
        %v1601 = vsel %vm1397, %v1513, %v1553
        %v1602 = vsel %vm1397, %v1515, %v1555
        %v1603 = vsel %vm1397, %v1517, %v1557
        %v1604 = vsel %vm1397, %v1519, %v1559
        %v1605 = vsel %vm1397, %v1521, %v1561
        %v1606 = vsel %vm1397, %v1523, %v1563
        %v1607 = vsel %vm1397, %v1525, %v1565
        %1608 = vrot.lane.b32.xlu0 %v1201, 16
        %v1609 = vpop.permute.xlu0 %1608
        %1610 = vrot.lane.b32.xlu0 %v1202, 16
        %v1611 = vpop.permute.xlu0 %1610
        %1612 = vrot.lane.b32.xlu0 %v1203, 16
        %v1613 = vpop.permute.xlu0 %1612
        %1614 = vrot.lane.b32.xlu0 %v1204, 16
        %v1615 = vpop.permute.xlu0 %1614
        %1616 = vrot.lane.b32.xlu0 %v1205, 16
        %v1617 = vpop.permute.xlu0 %1616
        %1618 = vrot.lane.b32.xlu0 %v1206, 16
        %v1619 = vpop.permute.xlu0 %1618
        %1620 = vrot.lane.b32.xlu0 %v1207, 16
        %v1621 = vpop.permute.xlu0 %1620
        %1622 = vrot.lane.b32.xlu0 %v1208, 16
        %v1623 = vpop.permute.xlu0 %1622
        %1632 = vrot.lane.b32.xlu0 %v1212, 32
        %v1633 = vpop.permute.xlu0 %1632
        %1634 = vrot.lane.b32.xlu0 %v1213, 32
        %v1635 = vpop.permute.xlu0 %1634
        %1636 = vrot.lane.b32.xlu0 %v1214, 32
        %v1637 = vpop.permute.xlu0 %1636
        %1638 = vrot.lane.b32.xlu0 %v1215, 32
        %v1639 = vpop.permute.xlu0 %1638
        %1640 = vrot.lane.b32.xlu0 %v1216, 32
        %v1641 = vpop.permute.xlu0 %1640
        %1642 = vrot.lane.b32.xlu0 %v1217, 32
        %v1643 = vpop.permute.xlu0 %1642
        %1644 = vrot.lane.b32.xlu0 %v1218, 32
        %v1645 = vpop.permute.xlu0 %1644
        %1646 = vrot.lane.b32.xlu0 %v1219, 32
        %v1647 = vpop.permute.xlu0 %1646
        %1656 = vrot.lane.b32.xlu0 %v1223, 48
        %v1657 = vpop.permute.xlu0 %1656
        %1658 = vrot.lane.b32.xlu0 %v1224, 48
        %v1659 = vpop.permute.xlu0 %1658
        %1660 = vrot.lane.b32.xlu0 %v1225, 48
        %v1661 = vpop.permute.xlu0 %1660
        %1662 = vrot.lane.b32.xlu0 %v1226, 48
        %v1663 = vpop.permute.xlu0 %1662
        %1664 = vrot.lane.b32.xlu0 %v1227, 48
        %v1665 = vpop.permute.xlu0 %1664
        %1666 = vrot.lane.b32.xlu0 %v1228, 48
        %v1667 = vpop.permute.xlu0 %1666
        %1668 = vrot.lane.b32.xlu0 %v1229, 48
        %v1669 = vpop.permute.xlu0 %1668
        %1670 = vrot.lane.b32.xlu0 %v1230, 48
        %v1671 = vpop.permute.xlu0 %1670
        %1688 = vrot.lane.b32.xlu0 %v1234, 64
        %v1689 = vpop.permute.xlu0 %1688
        %1690 = vrot.lane.b32.xlu0 %v1235, 64
        %v1691 = vpop.permute.xlu0 %1690
        %1692 = vrot.lane.b32.xlu0 %v1236, 64
        %v1693 = vpop.permute.xlu0 %1692
        %1694 = vrot.lane.b32.xlu0 %v1237, 64
        %v1695 = vpop.permute.xlu0 %1694
        %1696 = vrot.lane.b32.xlu0 %v1238, 64
        %v1697 = vpop.permute.xlu0 %1696
        %1698 = vrot.lane.b32.xlu0 %v1239, 64
        %v1699 = vpop.permute.xlu0 %1698
        %1700 = vrot.lane.b32.xlu0 %v1240, 64
        %v1701 = vpop.permute.xlu0 %1700
        %1702 = vrot.lane.b32.xlu0 %v1241, 64
        %v1703 = vpop.permute.xlu0 %1702
        %v1712 = vsel %vm1370, %v1190, %v1609
        %v1713 = vsel %vm1370, %v1191, %v1611
        %v1714 = vsel %vm1370, %v1192, %v1613
        %v1715 = vsel %vm1370, %v1193, %v1615
        %v1716 = vsel %vm1370, %v1194, %v1617
        %v1717 = vsel %vm1370, %v1195, %v1619
        %v1718 = vsel %vm1370, %v1196, %v1621
        %v1719 = vsel %vm1370, %v1197, %v1623
        %v1720 = vsel %vm1379, %v1712, %v1633
        %v1721 = vsel %vm1379, %v1713, %v1635
        %v1722 = vsel %vm1379, %v1714, %v1637
        %v1723 = vsel %vm1379, %v1715, %v1639
        %v1724 = vsel %vm1379, %v1716, %v1641
        %v1725 = vsel %vm1379, %v1717, %v1643
        %v1726 = vsel %vm1379, %v1718, %v1645
        %v1727 = vsel %vm1379, %v1719, %v1647
        %v1728 = vsel %vm1388, %v1720, %v1657
        %v1729 = vsel %vm1388, %v1721, %v1659
        %v1730 = vsel %vm1388, %v1722, %v1661
        %v1731 = vsel %vm1388, %v1723, %v1663
        %v1732 = vsel %vm1388, %v1724, %v1665
        %v1733 = vsel %vm1388, %v1725, %v1667
        %v1734 = vsel %vm1388, %v1726, %v1669
        %v1735 = vsel %vm1388, %v1727, %v1671
        %v1736 = vsel %vm1397, %v1728, %v1689
        %v1737 = vsel %vm1397, %v1729, %v1691
        %v1738 = vsel %vm1397, %v1730, %v1693
        %v1739 = vsel %vm1397, %v1731, %v1695
        %v1740 = vsel %vm1397, %v1732, %v1697
        %v1741 = vsel %vm1397, %v1733, %v1699
        %v1742 = vsel %vm1397, %v1734, %v1701
        %v1743 = vsel %vm1397, %v1735, %v1703
        %v1752 = vrot.slane %v1736, 1
        %v1753 = vrot.slane %v1737, 1
        %v1754 = vsel %vm1414, %v1752, %v1753
        %v1755 = vrot.slane %v1738, 1
        %v1756 = vsel %vm1414, %v1753, %v1755
        %v1757 = vrot.slane %v1739, 1
        %v1758 = vsel %vm1414, %v1755, %v1757
        %v1759 = vrot.slane %v1740, 1
        %v1760 = vsel %vm1414, %v1757, %v1759
        %v1761 = vrot.slane %v1741, 1
        %v1762 = vsel %vm1414, %v1759, %v1761
        %v1763 = vrot.slane %v1742, 1
        %v1764 = vsel %vm1414, %v1761, %v1763
        %v1765 = vrot.slane %v1743, 1
        %v1766 = vsel %vm1414, %v1763, %v1765
        %1767 = vrot.lane.b32.xlu0 %v1754, 80
        %v1768 = vpop.permute.xlu0 %1767
        %1769 = vrot.lane.b32.xlu0 %v1756, 80
        %v1770 = vpop.permute.xlu0 %1769
        %1771 = vrot.lane.b32.xlu0 %v1758, 80
        %v1772 = vpop.permute.xlu0 %1771
        %1773 = vrot.lane.b32.xlu0 %v1760, 80
        %v1774 = vpop.permute.xlu0 %1773
        %1775 = vrot.lane.b32.xlu0 %v1762, 80
        %v1776 = vpop.permute.xlu0 %1775
        %1777 = vrot.lane.b32.xlu0 %v1764, 80
        %v1778 = vpop.permute.xlu0 %1777
        %1779 = vrot.lane.b32.xlu0 %v1766, 80
        %v1780 = vpop.permute.xlu0 %1779
        %1781 = vrot.lane.b32.xlu0 %v1765, 80
        %v1782 = vpop.permute.xlu0 %1781
        %v1791 = vrot.slane %v1736, 2
        %v1792 = vrot.slane %v1737, 2
        %v1793 = vsel %vm1454, %v1791, %v1792
        %v1794 = vrot.slane %v1738, 2
        %v1795 = vsel %vm1454, %v1792, %v1794
        %v1796 = vrot.slane %v1739, 2
        %v1797 = vsel %vm1454, %v1794, %v1796
        %v1798 = vrot.slane %v1740, 2
        %v1799 = vsel %vm1454, %v1796, %v1798
        %v1800 = vrot.slane %v1741, 2
        %v1801 = vsel %vm1454, %v1798, %v1800
        %v1802 = vrot.slane %v1742, 2
        %v1803 = vsel %vm1454, %v1800, %v1802
        %v1804 = vrot.slane %v1743, 2
        %v1805 = vsel %vm1454, %v1802, %v1804
        %1806 = vrot.lane.b32.xlu0 %v1793, 32
        %v1807 = vpop.permute.xlu0 %1806
        %1808 = vrot.lane.b32.xlu0 %v1795, 32
        %v1809 = vpop.permute.xlu0 %1808
        %1810 = vrot.lane.b32.xlu0 %v1797, 32
        %v1811 = vpop.permute.xlu0 %1810
        %1812 = vrot.lane.b32.xlu0 %v1799, 32
        %v1813 = vpop.permute.xlu0 %1812
        %1814 = vrot.lane.b32.xlu0 %v1801, 32
        %v1815 = vpop.permute.xlu0 %1814
        %1816 = vrot.lane.b32.xlu0 %v1803, 32
        %v1817 = vpop.permute.xlu0 %1816
        %1818 = vrot.lane.b32.xlu0 %v1805, 32
        %v1819 = vpop.permute.xlu0 %1818
        %1820 = vrot.lane.b32.xlu0 %v1804, 32
        %v1821 = vpop.permute.xlu0 %1820
        %v1830 = vrot.slane %v1736, 3
        %v1831 = vrot.slane %v1737, 3
        %v1832 = vsel %vm1494, %v1830, %v1831
        %v1833 = vrot.slane %v1738, 3
        %v1834 = vsel %vm1494, %v1831, %v1833
        %v1835 = vrot.slane %v1739, 3
        %v1836 = vsel %vm1494, %v1833, %v1835
        %v1837 = vrot.slane %v1740, 3
        %v1838 = vsel %vm1494, %v1835, %v1837
        %v1839 = vrot.slane %v1741, 3
        %v1840 = vsel %vm1494, %v1837, %v1839
        %v1841 = vrot.slane %v1742, 3
        %v1842 = vsel %vm1494, %v1839, %v1841
        %v1843 = vrot.slane %v1743, 3
        %v1844 = vsel %vm1494, %v1841, %v1843
        %1845 = vrot.lane.b32.xlu0 %v1832, 112
        %v1846 = vpop.permute.xlu0 %1845
        %1847 = vrot.lane.b32.xlu0 %v1834, 112
        %v1848 = vpop.permute.xlu0 %1847
        %1849 = vrot.lane.b32.xlu0 %v1836, 112
        %v1850 = vpop.permute.xlu0 %1849
        %1851 = vrot.lane.b32.xlu0 %v1838, 112
        %v1852 = vpop.permute.xlu0 %1851
        %1853 = vrot.lane.b32.xlu0 %v1840, 112
        %v1854 = vpop.permute.xlu0 %1853
        %1855 = vrot.lane.b32.xlu0 %v1842, 112
        %v1856 = vpop.permute.xlu0 %1855
        %1857 = vrot.lane.b32.xlu0 %v1844, 112
        %v1858 = vpop.permute.xlu0 %1857
        %1859 = vrot.lane.b32.xlu0 %v1843, 112
        %v1860 = vpop.permute.xlu0 %1859
        %v1869 = vrot.slane %v1736, 4
        %v1870 = vrot.slane %v1737, 4
        %v1871 = vsel %vm1534, %v1869, %v1870
        %v1872 = vrot.slane %v1738, 4
        %v1873 = vsel %vm1534, %v1870, %v1872
        %v1874 = vrot.slane %v1739, 4
        %v1875 = vsel %vm1534, %v1872, %v1874
        %v1876 = vrot.slane %v1740, 4
        %v1877 = vsel %vm1534, %v1874, %v1876
        %v1878 = vrot.slane %v1741, 4
        %v1879 = vsel %vm1534, %v1876, %v1878
        %v1880 = vrot.slane %v1742, 4
        %v1881 = vsel %vm1534, %v1878, %v1880
        %v1882 = vrot.slane %v1743, 4
        %v1883 = vsel %vm1534, %v1880, %v1882
        %1884 = vrot.lane.b32.xlu0 %v1871, 64
        %v1885 = vpop.permute.xlu0 %1884
        %1886 = vrot.lane.b32.xlu0 %v1873, 64
        %v1887 = vpop.permute.xlu0 %1886
        %1888 = vrot.lane.b32.xlu0 %v1875, 64
        %v1889 = vpop.permute.xlu0 %1888
        %1890 = vrot.lane.b32.xlu0 %v1877, 64
        %v1891 = vpop.permute.xlu0 %1890
        %1892 = vrot.lane.b32.xlu0 %v1879, 64
        %v1893 = vpop.permute.xlu0 %1892
        %1894 = vrot.lane.b32.xlu0 %v1881, 64
        %v1895 = vpop.permute.xlu0 %1894
        %1896 = vrot.lane.b32.xlu0 %v1883, 64
        %v1897 = vpop.permute.xlu0 %1896
        %1898 = vrot.lane.b32.xlu0 %v1882, 64
        %v1899 = vpop.permute.xlu0 %1898
        %v1908 = vsel %vm1574, %v1736, %v1768
        %v1909 = vsel %vm1574, %v1737, %v1770
        %v1910 = vsel %vm1574, %v1738, %v1772
        %v1911 = vsel %vm1574, %v1739, %v1774
        %v1912 = vsel %vm1574, %v1740, %v1776
        %v1913 = vsel %vm1574, %v1741, %v1778
        %v1914 = vsel %vm1574, %v1742, %v1780
        %v1915 = vsel %vm1574, %v1743, %v1782
        %v1916 = vsel %vm1379, %v1768, %v1807
        %v1917 = vsel %vm1379, %v1770, %v1809
        %v1918 = vsel %vm1379, %v1772, %v1811
        %v1919 = vsel %vm1379, %v1774, %v1813
        %v1920 = vsel %vm1379, %v1776, %v1815
        %v1921 = vsel %vm1379, %v1778, %v1817
        %v1922 = vsel %vm1379, %v1780, %v1819
        %v1923 = vsel %vm1379, %v1782, %v1821
        %v1924 = vsel %vm1591, %v1916, %v1846
        %v1925 = vsel %vm1591, %v1917, %v1848
        %v1926 = vsel %vm1591, %v1918, %v1850
        %v1927 = vsel %vm1591, %v1919, %v1852
        %v1928 = vsel %vm1591, %v1920, %v1854
        %v1929 = vsel %vm1591, %v1921, %v1856
        %v1930 = vsel %vm1591, %v1922, %v1858
        %v1931 = vsel %vm1591, %v1923, %v1860
        %v1932 = vsel %vm1397, %v1846, %v1885
        %v1933 = vsel %vm1397, %v1848, %v1887
        %v1934 = vsel %vm1397, %v1850, %v1889
        %v1935 = vsel %vm1397, %v1852, %v1891
        %v1936 = vsel %vm1397, %v1854, %v1893
        %v1937 = vsel %vm1397, %v1856, %v1895
        %v1938 = vsel %vm1397, %v1858, %v1897
        %v1939 = vsel %vm1397, %v1860, %v1899
        %vm1964 = vcmask 1041408
        %v1965 = vrot.slane %v1908, 6
        %v1966 = vrot.slane %v1924, 6
        %v1967 = vrot.slane %v1932, 6
        %v1968 = vrot.slane %v1885, 6
        %v1969 = vrot.slane %v1909, 6
        %v1970 = vsel %vm1964, %v1965, %v1969
        %v1971 = vrot.slane %v1925, 6
        %v1972 = vsel %vm1964, %v1966, %v1971
        %v1973 = vrot.slane %v1933, 6
        %v1974 = vsel %vm1964, %v1967, %v1973
        %v1975 = vrot.slane %v1887, 6
        %v1976 = vsel %vm1964, %v1968, %v1975
        %v1977 = vrot.slane %v1910, 6
        %v1978 = vsel %vm1964, %v1969, %v1977
        %v1979 = vrot.slane %v1926, 6
        %v1980 = vsel %vm1964, %v1971, %v1979
        %v1981 = vrot.slane %v1934, 6
        %v1982 = vsel %vm1964, %v1973, %v1981
        %v1983 = vrot.slane %v1889, 6
        %v1984 = vsel %vm1964, %v1975, %v1983
        %v1985 = vrot.slane %v1911, 6
        %v1986 = vsel %vm1964, %v1977, %v1985
        %v1987 = vrot.slane %v1927, 6
        %v1988 = vsel %vm1964, %v1979, %v1987
        %v1989 = vrot.slane %v1935, 6
        %v1990 = vsel %vm1964, %v1981, %v1989
        %v1991 = vrot.slane %v1891, 6
        %v1992 = vsel %vm1964, %v1983, %v1991
        %v1993 = vrot.slane %v1912, 6
        %v1994 = vsel %vm1964, %v1985, %v1993
        %v1995 = vrot.slane %v1928, 6
        %v1996 = vsel %vm1964, %v1987, %v1995
        %v1997 = vrot.slane %v1936, 6
        %v1998 = vsel %vm1964, %v1989, %v1997
        %v1999 = vrot.slane %v1893, 6
        %v2000 = vsel %vm1964, %v1991, %v1999
        %v2001 = vrot.slane %v1913, 6
        %v2002 = vsel %vm1964, %v1993, %v2001
        %v2003 = vrot.slane %v1929, 6
        %v2004 = vsel %vm1964, %v1995, %v2003
        %v2005 = vrot.slane %v1937, 6
        %v2006 = vsel %vm1964, %v1997, %v2005
        %v2007 = vrot.slane %v1895, 6
        %v2008 = vsel %vm1964, %v1999, %v2007
        %v2009 = vrot.slane %v1914, 6
        %v2010 = vsel %vm1964, %v2001, %v2009
        %v2011 = vrot.slane %v1930, 6
        %v2012 = vsel %vm1964, %v2003, %v2011
        %v2013 = vrot.slane %v1938, 6
        %v2014 = vsel %vm1964, %v2005, %v2013
        %v2015 = vrot.slane %v1897, 6
        %v2016 = vsel %vm1964, %v2007, %v2015
        %v2017 = vrot.slane %v1915, 6
        %v2018 = vsel %vm1964, %v2009, %v2017
        %v2019 = vrot.slane %v1931, 6
        %v2020 = vsel %vm1964, %v2011, %v2019
        %v2021 = vrot.slane %v1939, 6
        %v2022 = vsel %vm1964, %v2013, %v2021
        %v2023 = vrot.slane %v1899, 6
        %v2024 = vsel %vm1964, %v2015, %v2023
        %v2057 = vsel %vm1964, %v1582, %v1965
        %v2058 = vsel %vm1964, %v1599, %v1966
        %v2059 = vsel %vm1964, %v1607, %v1967
        %v2060 = vsel %vm1964, %v1565, %v1968
        %v2061 = vpack.c.bf16 %v1576, %v1575
        %v2062 = vpack.c.bf16 %v1593, %v1592
        %v2063 = vpack.c.bf16 %v1601, %v1600
        %v2064 = vpack.c.bf16 %v1553, %v1551
        %v2065 = vpack.c.bf16 %v1578, %v1577
        %v2066 = vpack.c.bf16 %v1595, %v1594
        %v2067 = vpack.c.bf16 %v1603, %v1602
        %v2068 = vpack.c.bf16 %v1557, %v1555
        %v2069 = vpack.c.bf16 %v1580, %v1579
        %v2070 = vpack.c.bf16 %v1597, %v1596
        %v2071 = vpack.c.bf16 %v1605, %v1604
        %v2072 = vpack.c.bf16 %v1561, %v1559
        %v2073 = vpack.c.bf16 %v2057, %v1581
        %v2074 = vpack.c.bf16 %v2058, %v1598
        %v2075 = vpack.c.bf16 %v2059, %v1606
        %v2076 = vpack.c.bf16 %v2060, %v1563
        %v2077 = vpack.c.bf16 %v1978, %v1970
        %v2078 = vpack.c.bf16 %v1980, %v1972
        %v2079 = vpack.c.bf16 %v1982, %v1974
        %v2080 = vpack.c.bf16 %v1984, %v1976
        %v2081 = vpack.c.bf16 %v1994, %v1986
        %v2082 = vpack.c.bf16 %v1996, %v1988
        %v2083 = vpack.c.bf16 %v1998, %v1990
        %v2084 = vpack.c.bf16 %v2000, %v1992
        %v2085 = vpack.c.bf16 %v2010, %v2002
        %v2086 = vpack.c.bf16 %v2012, %v2004
        %v2087 = vpack.c.bf16 %v2014, %v2006
        %v2088 = vpack.c.bf16 %v2016, %v2008
        %v2089 = vpack.c.bf16 %v2018, %v2018
        %v2090 = vpack.c.bf16 %v2020, %v2020
        %v2091 = vpack.c.bf16 %v2022, %v2022
        %v2092 = vpack.c.bf16 %v2024, %v2024
        %v2093 = vld [vmem:[%s3] sm:$0xf]
        %v2094 = vld [vmem:[%s3 + $0x4] sm:$0xf]
        %v2095 = vld [vmem:[%s3 + $0x8] sm:$0xf]
        %v2096 = vld [vmem:[%s3 + $0xc] sm:$0xf]
        %v2097 = vld [vmem:[%s3 + $0x10] sm:$0xf]
        %v2098 = vld [vmem:[%s3 + $0x14] sm:$0xf]
        %v2099 = vld [vmem:[%s3 + $0x18] sm:$0xf]
        %v2100 = vld [vmem:[%s3 + $0x1c] sm:$0xf]
        %v2101 = vld [vmem:[%s3 + $0x20] sm:$0xf]
        %v2102 = vld [vmem:[%s3 + $0x24] sm:$0xf]
        %v2103 = vld [vmem:[%s3 + $0x28] sm:$0xf]
        %v2104 = vld [vmem:[%s3 + $0x2c] sm:$0xf]
        %v2105 = vld [vmem:[%s3 + $0x30] sm:$0xf]
        %v2106 = vld [vmem:[%s3 + $0x34] sm:$0xf]
        %v2107 = vld [vmem:[%s3 + $0x38] sm:$0xf]
        %v2108 = vld [vmem:[%s3 + $0x3c] sm:$0xf]
        %v2109 = vld [vmem:[%s3 + $0x40] sm:$0xf]
        %v2110 = vld [vmem:[%s3 + $0x44] sm:$0xf]
        %v2111 = vld [vmem:[%s3 + $0x48] sm:$0xf]
        %v2112 = vld [vmem:[%s3 + $0x4c] sm:$0xf]
        %v2113 = vld [vmem:[%s3 + $0x50] sm:$0xf]
        %v2114 = vld [vmem:[%s3 + $0x54] sm:$0xf]
        %v2115 = vld [vmem:[%s3 + $0x58] sm:$0xf]
        %v2116 = vld [vmem:[%s3 + $0x5c] sm:$0xf]
        %v2117 = vld [vmem:[%s3 + $0x60] sm:$0xf]
        %v2118 = vld [vmem:[%s3 + $0x64] sm:$0xf]
        %v2119 = vld [vmem:[%s3 + $0x68] sm:$0xf]
        %v2120 = vld [vmem:[%s3 + $0x6c] sm:$0xf]
        %v2121 = vld [vmem:[%s3 + $0x70] sm:$0xf]
        %v2122 = vld [vmem:[%s3 + $0x74] sm:$0xf]
        %v2123 = vld [vmem:[%s3 + $0x78] sm:$0xf]
        %v2124 = vld [vmem:[%s3 + $0x7c] sm:$0xf]
        %v2125 = vld [vmem:[%s3 + $0x80] sm:$0xf]
        %v2126 = vld [vmem:[%s3 + $0x84] sm:$0xf]
        %v2127 = vld [vmem:[%s3 + $0x88] sm:$0xf]
        %v2128 = vld [vmem:[%s3 + $0x8c] sm:$0xf]
        %v2129 = vld [vmem:[%s3 + $0x90] sm:$0xf]
        %v2130 = vld [vmem:[%s3 + $0x94] sm:$0xf]
        %v2131 = vld [vmem:[%s3 + $0x98] sm:$0xf]
        %v2132 = vld [vmem:[%s3 + $0x9c] sm:$0xf]
        %v2133 = vld [vmem:[%s3 + $0xa0] sm:$0xf]
        %v2134 = vld [vmem:[%s3 + $0xa4] sm:$0xf]
        %v2135 = vld [vmem:[%s3 + $0xa8] sm:$0xf]
        %v2136 = vld [vmem:[%s3 + $0xac] sm:$0xf]
        %v2137 = vld [vmem:[%s3 + $0xb0] sm:$0xf]
        %v2138 = vld [vmem:[%s3 + $0xb4] sm:$0xf]
        %v2139 = vld [vmem:[%s3 + $0xb8] sm:$0xf]
        %v2140 = vld [vmem:[%s3 + $0xbc] sm:$0xf]
        %v2141 = vld [vmem:[%s3 + $0xc0] sm:$0xf]
        %v2142 = vld [vmem:[%s3 + $0xc4] sm:$0xf]
        %v2144 = vlaneseq
        %v2145 = vshrl.u32 %v2144, 7
        %v2146 = vsub.s32 0, %v2145
        %v2147 = vrot.slane %v1137, %v2146
        %v2199 = vunpack.c.l.b16 %v2093
        %v2200 = vunpack.c.l.b16 %v2094
        %v2201 = vunpack.c.l.b16 %v2095
        %v2202 = vunpack.c.l.b16 %v2096
        %v2203 = vunpack.c.l.b16 %v2097
        %v2204 = vunpack.c.l.b16 %v2098
        %v2205 = vunpack.c.l.b16 %v2099
        %v2206 = vunpack.c.l.b16 %v2100
        %v2207 = vunpack.c.l.b16 %v2101
        %v2208 = vunpack.c.l.b16 %v2102
        %v2209 = vunpack.c.l.b16 %v2103
        %v2210 = vunpack.c.l.b16 %v2104
        %v2211 = vunpack.c.l.b16 %v2105
        %v2212 = vunpack.c.l.b16 %v2106
        %v2213 = vunpack.c.l.b16 %v2107
        %v2214 = vunpack.c.l.b16 %v2108
        %v2215 = vunpack.c.l.b16 %v2109
        %v2216 = vunpack.c.l.b16 %v2110
        %v2217 = vunpack.c.l.b16 %v2111
        %v2218 = vunpack.c.l.b16 %v2112
        %v2219 = vunpack.c.l.b16 %v2113
        %v2220 = vunpack.c.l.b16 %v2114
        %v2221 = vunpack.c.l.b16 %v2115
        %v2222 = vunpack.c.l.b16 %v2116
        %v2223 = vunpack.c.l.b16 %v2117
        %v2224 = vunpack.c.l.b16 %v2118
        %v2225 = vunpack.c.l.b16 %v2119
        %v2226 = vunpack.c.l.b16 %v2120
        %v2227 = vunpack.c.l.b16 %v2121
        %v2228 = vunpack.c.l.b16 %v2122
        %v2229 = vunpack.c.l.b16 %v2123
        %v2230 = vunpack.c.l.b16 %v2124
        %v2231 = vunpack.c.l.b16 %v2125
        %v2232 = vunpack.c.l.b16 %v2126
        %v2233 = vunpack.c.l.b16 %v2127
        %v2234 = vunpack.c.l.b16 %v2128
        %v2235 = vunpack.c.l.b16 %v2129
        %v2236 = vunpack.c.l.b16 %v2130
        %v2237 = vunpack.c.l.b16 %v2131
        %v2238 = vunpack.c.l.b16 %v2132
        %v2239 = vunpack.c.l.b16 %v2133
        %v2240 = vunpack.c.l.b16 %v2134
        %v2241 = vunpack.c.l.b16 %v2135
        %v2242 = vunpack.c.l.b16 %v2136
        %v2243 = vunpack.c.l.b16 %v2137
        %v2244 = vunpack.c.l.b16 %v2138
        %v2245 = vunpack.c.l.b16 %v2139
        %v2246 = vunpack.c.l.b16 %v2140
        %v2247 = vunpack.c.l.b16 %v2141
        %v2248 = vunpack.c.l.b16 %v2142
        %v2249 = vpack.c.b16 %v2200, %v2199
        %v2250 = vpack.c.b16 %v2202, %v2201
        %v2251 = vpack.c.b16 %v2204, %v2203
        %v2252 = vpack.c.b16 %v2206, %v2205
        %v2253 = vpack.c.b16 %v2208, %v2207
        %v2254 = vpack.c.b16 %v2210, %v2209
        %v2255 = vpack.c.b16 %v2212, %v2211
        %v2256 = vpack.c.b16 %v2214, %v2213
        %v2257 = vpack.c.b16 %v2216, %v2215
        %v2258 = vpack.c.b16 %v2218, %v2217
        %v2259 = vpack.c.b16 %v2220, %v2219
        %v2260 = vpack.c.b16 %v2222, %v2221
        %v2261 = vpack.c.b16 %v2224, %v2223
        %v2262 = vpack.c.b16 %v2226, %v2225
        %v2263 = vpack.c.b16 %v2228, %v2227
        %v2264 = vpack.c.b16 %v2230, %v2229
        %v2265 = vpack.c.b16 %v2232, %v2231
        %v2266 = vpack.c.b16 %v2234, %v2233
        %v2267 = vpack.c.b16 %v2236, %v2235
        %v2268 = vpack.c.b16 %v2238, %v2237
        %v2269 = vpack.c.b16 %v2240, %v2239
        %v2270 = vpack.c.b16 %v2242, %v2241
        %v2271 = vpack.c.b16 %v2244, %v2243
        %v2272 = vpack.c.b16 %v2246, %v2245
        %v2273 = vpack.c.b16 %v2248, %v2247
        %v2300 = vsel %vm1370, %v2064, 0
        %v2303 = vsel %vm1370, %v2068, 0
        %v2306 = vsel %vm1370, %v2072, 0
        %v2309 = vsel %vm1370, %v2076, 0
        %v2312 = vsel %vm1370, %v2080, 0
        %v2315 = vsel %vm1370, %v2084, 0
        %v2318 = vsel %vm1370, %v2088, 0
        %v2321 = vsel %vm1370, %v2092, 0
        %2323 = vmatprep.subr.bf16.mxu0 0
        %2324 = vmatpush1.bf16.msra.mxu0 %v2256
        %2325 = vmatprep.subr.bf16.mxu0 0
        %2326 = vmatpush1.bf16.msra.mxu0 %v2255
        %2327 = vmatprep.subr.bf16.mxu0 0
        %2328 = vmatpush1.bf16.msra.mxu0 %v2254
        %2329 = vmatprep.subr.bf16.mxu0 0
        %2330 = vmatpush1.bf16.msra.mxu0 %v2253
        %2331 = vmatprep.subr.bf16.mxu0 0
        %2332 = vmatpush1.bf16.msra.mxu0 %v2252
        %2333 = vmatprep.subr.bf16.mxu0 0
        %2334 = vmatpush1.bf16.msra.mxu0 %v2251
        %2335 = vmatprep.subr.bf16.mxu0 0
        %2336 = vmatpush1.bf16.msra.mxu0 %v2250
        %2337 = vmatprep.subr.bf16.mxu0 0
        %2338 = vmatpush1.bf16.msra.mxu0 %v2249
        %2339 = vmatprep.subr.bf16.mxu0 0
        %2340 = vmatpush2.bf16.msra.mxu0 %v2264
        %2341 = vmatprep.subr.bf16.mxu0 0
        %2342 = vmatpush2.bf16.msra.mxu0 %v2263
        %2343 = vmatprep.subr.bf16.mxu0 0
        %2344 = vmatpush2.bf16.msra.mxu0 %v2262
        %2345 = vmatprep.subr.bf16.mxu0 0
        %2346 = vmatpush2.bf16.msra.mxu0 %v2261
        %2347 = vmatprep.subr.bf16.mxu0 0
        %2348 = vmatpush2.bf16.msra.mxu0 %v2260
        %2349 = vmatprep.subr.bf16.mxu0 0
        %2350 = vmatpush2.bf16.msra.mxu0 %v2259
        %2351 = vmatprep.subr.bf16.mxu0 0
        %2352 = vmatpush2.bf16.msra.mxu0 %v2258
        %2353 = vmatprep.subr.bf16.mxu0 0
        %2354 = vmatpush2.bf16.msra.mxu0 %v2257
        %2355 = vmatprep.mubr.bf16.mxu0 %v2062
        %2356 = vmatmul.mubr.bf16.gmra.mxu0 %v2061
        %v2357 = vpop.f32.mrf.mxu0
        %v2358 = vadd.f32 %v2147, %v2357
        %v2359 = vpop.f32.mrf.mxu0
        %v2360 = vpop.f32.mrf.mxu0
        %v2361 = vadd.f32 %v2147, %v2360
        %v2362 = vpop.f32.mrf.mxu0
        %2363 = vmatprep.mubr.bf16.mxu0 %v2066
        %2364 = vmatmul.mubr.bf16.gmra.mxu0 %v2065
        %v2365 = vpop.f32.mrf.mxu0
        %v2366 = vadd.f32 %v2147, %v2365
        %v2367 = vpop.f32.mrf.mxu0
        %v2368 = vpop.f32.mrf.mxu0
        %v2369 = vadd.f32 %v2147, %v2368
        %v2370 = vpop.f32.mrf.mxu0
        %2371 = vmatprep.mubr.bf16.mxu0 %v2070
        %2372 = vmatmul.mubr.bf16.gmra.mxu0 %v2069
        %v2373 = vpop.f32.mrf.mxu0
        %v2374 = vadd.f32 %v2147, %v2373
        %v2375 = vpop.f32.mrf.mxu0
        %v2376 = vpop.f32.mrf.mxu0
        %v2377 = vadd.f32 %v2147, %v2376
        %v2378 = vpop.f32.mrf.mxu0
        %2379 = vmatprep.mubr.bf16.mxu0 %v2074
        %2380 = vmatmul.mubr.bf16.gmra.mxu0 %v2073
        %v2381 = vpop.f32.mrf.mxu0
        %v2382 = vadd.f32 %v2147, %v2381
        %v2383 = vpop.f32.mrf.mxu0
        %v2384 = vpop.f32.mrf.mxu0
        %v2385 = vadd.f32 %v2147, %v2384
        %v2386 = vpop.f32.mrf.mxu0
        %2387 = vmatprep.mubr.bf16.mxu0 %v2078
        %2388 = vmatmul.mubr.bf16.gmra.mxu0 %v2077
        %v2389 = vpop.f32.mrf.mxu0
        %v2390 = vadd.f32 %v2147, %v2389
        %v2391 = vpop.f32.mrf.mxu0
        %v2392 = vpop.f32.mrf.mxu0
        %v2393 = vadd.f32 %v2147, %v2392
        %v2394 = vpop.f32.mrf.mxu0
        %2395 = vmatprep.mubr.bf16.mxu0 %v2082
        %2396 = vmatmul.mubr.bf16.gmra.mxu0 %v2081
        %v2397 = vpop.f32.mrf.mxu0
        %v2398 = vadd.f32 %v2147, %v2397
        %v2399 = vpop.f32.mrf.mxu0
        %v2400 = vpop.f32.mrf.mxu0
        %v2401 = vadd.f32 %v2147, %v2400
        %v2402 = vpop.f32.mrf.mxu0
        %2403 = vmatprep.mubr.bf16.mxu0 %v2086
        %2404 = vmatmul.mubr.bf16.gmra.mxu0 %v2085
        %v2405 = vpop.f32.mrf.mxu0
        %v2406 = vadd.f32 %v2147, %v2405
        %v2407 = vpop.f32.mrf.mxu0
        %v2408 = vpop.f32.mrf.mxu0
        %v2409 = vadd.f32 %v2147, %v2408
        %v2410 = vpop.f32.mrf.mxu0
        %2411 = vmatprep.mubr.bf16.mxu0 %v2090
        %2412 = vmatmul.mubr.bf16.gmra.mxu0 %v2089
        %v2413 = vpop.f32.mrf.mxu0
        %v2414 = vadd.f32 %v2147, %v2413
        %v2415 = vpop.f32.mrf.mxu0
        %v2416 = vpop.f32.mrf.mxu0
        %v2417 = vpop.f32.mrf.mxu0
        %2418 = vdwg.mxu0
        %2419 = vmatprep.subr.bf16.mxu0 0
        %2420 = vmatpush1.bf16.msra.mxu0 %v2272
        %2421 = vmatprep.subr.bf16.mxu0 0
        %2422 = vmatpush1.bf16.msra.mxu0 %v2271
        %2423 = vmatprep.subr.bf16.mxu0 0
        %2424 = vmatpush1.bf16.msra.mxu0 %v2270
        %2425 = vmatprep.subr.bf16.mxu0 0
        %2426 = vmatpush1.bf16.msra.mxu0 %v2269
        %2427 = vmatprep.subr.bf16.mxu0 0
        %2428 = vmatpush1.bf16.msra.mxu0 %v2268
        %2429 = vmatprep.subr.bf16.mxu0 0
        %2430 = vmatpush1.bf16.msra.mxu0 %v2267
        %2431 = vmatprep.subr.bf16.mxu0 0
        %2432 = vmatpush1.bf16.msra.mxu0 %v2266
        %2433 = vmatprep.subr.bf16.mxu0 0
        %2434 = vmatpush1.bf16.msra.mxu0 %v2265
        %2435 = vmatprep.subr.bf16.mxu0 0
        %2436 = vmatpush2.bf16.msra.mxu0 0
        %2437 = vmatprep.subr.bf16.mxu0 0
        %2438 = vmatpush2.bf16.msra.mxu0 0
        %2439 = vmatprep.subr.bf16.mxu0 0
        %2440 = vmatpush2.bf16.msra.mxu0 0
        %2441 = vmatprep.subr.bf16.mxu0 0
        %2442 = vmatpush2.bf16.msra.mxu0 0
        %2443 = vmatprep.subr.bf16.mxu0 0
        %2444 = vmatpush2.bf16.msra.mxu0 0
        %2445 = vmatprep.subr.bf16.mxu0 0
        %2446 = vmatpush2.bf16.msra.mxu0 0
        %2447 = vmatprep.subr.bf16.mxu0 0
        %2448 = vmatpush2.bf16.msra.mxu0 0
        %2449 = vmatprep.subr.bf16.mxu0 0
        %2450 = vmatpush2.bf16.msra.mxu0 %v2273
        %2451 = vmatprep.mubr.bf16.mxu0 %v2300
        %2452 = vmatmul.mubr.bf16.gmra.mxu0 %v2063
        %v2453 = vpop.f32.mrf.mxu0
        %v2454 = vadd.f32 %v2358, %v2453
        %v2455 = vpop.f32.mrf.mxu0
        %v2456 = vpop.f32.mrf.mxu0
        %v2457 = vadd.f32 %v2361, %v2456
        %v2458 = vpop.f32.mrf.mxu0
        %2459 = vmatprep.mubr.bf16.mxu0 %v2303
        %2460 = vmatmul.mubr.bf16.gmra.mxu0 %v2067
        %v2461 = vpop.f32.mrf.mxu0
        %v2462 = vadd.f32 %v2366, %v2461
        %v2463 = vpop.f32.mrf.mxu0
        %v2464 = vpop.f32.mrf.mxu0
        %v2465 = vadd.f32 %v2369, %v2464
        %v2466 = vpop.f32.mrf.mxu0
        %2467 = vmatprep.mubr.bf16.mxu0 %v2306
        %2468 = vmatmul.mubr.bf16.gmra.mxu0 %v2071
        %v2469 = vpop.f32.mrf.mxu0
        %v2470 = vadd.f32 %v2374, %v2469
        %v2471 = vpop.f32.mrf.mxu0
        %v2472 = vpop.f32.mrf.mxu0
        %v2473 = vadd.f32 %v2377, %v2472
        %v2474 = vpop.f32.mrf.mxu0
        %2475 = vmatprep.mubr.bf16.mxu0 %v2309
        %2476 = vmatmul.mubr.bf16.gmra.mxu0 %v2075
        %v2477 = vpop.f32.mrf.mxu0
        %v2478 = vadd.f32 %v2382, %v2477
        %v2479 = vpop.f32.mrf.mxu0
        %v2480 = vpop.f32.mrf.mxu0
        %v2481 = vadd.f32 %v2385, %v2480
        %v2482 = vpop.f32.mrf.mxu0
        %2483 = vmatprep.mubr.bf16.mxu0 %v2312
        %2484 = vmatmul.mubr.bf16.gmra.mxu0 %v2079
        %v2485 = vpop.f32.mrf.mxu0
        %v2486 = vadd.f32 %v2390, %v2485
        %v2487 = vpop.f32.mrf.mxu0
        %v2488 = vpop.f32.mrf.mxu0
        %v2489 = vadd.f32 %v2393, %v2488
        %v2490 = vpop.f32.mrf.mxu0
        %2491 = vmatprep.mubr.bf16.mxu0 %v2315
        %2492 = vmatmul.mubr.bf16.gmra.mxu0 %v2083
        %v2493 = vpop.f32.mrf.mxu0
        %v2494 = vadd.f32 %v2398, %v2493
        %v2495 = vpop.f32.mrf.mxu0
        %v2496 = vpop.f32.mrf.mxu0
        %v2497 = vadd.f32 %v2401, %v2496
        %v2498 = vpop.f32.mrf.mxu0
        %2499 = vmatprep.mubr.bf16.mxu0 %v2318
        %2500 = vmatmul.mubr.bf16.gmra.mxu0 %v2087
        %v2501 = vpop.f32.mrf.mxu0
        %v2502 = vadd.f32 %v2406, %v2501
        %v2503 = vpop.f32.mrf.mxu0
        %v2504 = vpop.f32.mrf.mxu0
        %v2505 = vadd.f32 %v2409, %v2504
        %v2506 = vpop.f32.mrf.mxu0
        %2507 = vmatprep.mubr.bf16.mxu0 %v2321
        %2508 = vmatmul.mubr.bf16.gmra.mxu0 %v2091
        %v2509 = vpop.f32.mrf.mxu0
        %v2510 = vadd.f32 %v2414, %v2509
        %v2511 = vpop.f32.mrf.mxu0
        %v2512 = vpop.f32.mrf.mxu0
        %v2513 = vpop.f32.mrf.mxu0
        %2514 = vdwg.mxu0
        %v2515 = vmax.f32 %v2454, 0.0
        %v2516 = vmax.f32 %v2457, 0.0
        %v2517 = vmax.f32 %v2462, 0.0
        %v2518 = vmax.f32 %v2465, 0.0
        %v2519 = vmax.f32 %v2470, 0.0
        %v2520 = vmax.f32 %v2473, 0.0
        %v2521 = vmax.f32 %v2478, 0.0
        %v2522 = vmax.f32 %v2481, 0.0
        %v2523 = vmax.f32 %v2486, 0.0
        %v2524 = vmax.f32 %v2489, 0.0
        %v2525 = vmax.f32 %v2494, 0.0
        %v2526 = vmax.f32 %v2497, 0.0
        %v2527 = vmax.f32 %v2502, 0.0
        %v2528 = vmax.f32 %v2505, 0.0
        %v2529 = vmax.f32 %v2510, 0.0
        %v2538 = vrot.slane %v2522, 2
        %v2539 = vrot.slane %v2523, 2
        %v2540 = vsel %vm1454, %v2538, %v2539
        %v2541 = vrot.slane %v2524, 2
        %v2542 = vsel %vm1454, %v2539, %v2541
        %v2543 = vrot.slane %v2525, 2
        %v2544 = vsel %vm1454, %v2541, %v2543
        %v2545 = vrot.slane %v2526, 2
        %v2546 = vsel %vm1454, %v2543, %v2545
        %v2547 = vrot.slane %v2527, 2
        %v2548 = vsel %vm1454, %v2545, %v2547
        %v2549 = vrot.slane %v2528, 2
        %v2550 = vsel %vm1454, %v2547, %v2549
        %v2551 = vrot.slane %v2529, 2
        %v2552 = vsel %vm1454, %v2549, %v2551
        %v2561 = vmax.f32 %v2515, %v2540
        %v2562 = vmax.f32 %v2516, %v2542
        %v2563 = vmax.f32 %v2517, %v2544
        %v2564 = vmax.f32 %v2518, %v2546
        %v2565 = vmax.f32 %v2519, %v2548
        %v2566 = vmax.f32 %v2520, %v2550
        %v2567 = vmax.f32 %v2521, %v2552
        %v2568 = vmax.f32 %v2522, %v2551
        %vm2569 = vcmask 474112
        %v2571 = vsel %vm2569, %v1150, 0
        %v2574 = vsel %vm2569, %v1151, 0
        %v2577 = vsel %vm2569, %v1152, 0
        %v2580 = vsel %vm2569, %v1153, 0
        %v2583 = vsel %vm1964, %v2568, 0
        %2585 = vmatprep.subr.mxu0 0.0
        %2586 = vmatpush1.msra.mxu0 0.0
        %2587 = vmatprep.subr.mxu0 0.0
        %2588 = vmatpush1.msra.mxu0 0.0
        %2589 = vmatprep.subr.mxu0 0.0
        %2590 = vmatpush1.msra.mxu0 0.0
        %2591 = vmatprep.subr.mxu0 0.0
        %2592 = vmatpush1.msra.mxu0 0.0
        %2593 = vmatprep.subr.mxu0 0.0
        %2594 = vmatpush1.msra.mxu0 0.0
        %2595 = vmatprep.subr.mxu0 0.0
        %2596 = vmatpush1.msra.mxu0 0.0
        %2597 = vmatprep.subr.mxu0 0.0
        %2598 = vmatpush1.msra.mxu0 0.0
        %2599 = vmatprep.subr.mxu0 0.0
        %2600 = vmatpush1.msra.mxu0 0.0
        %2601 = vmatprep.subr.mxu0 0.0
        %2602 = vmatpush1.msra.mxu0 %v2583
        %2603 = vmatprep.subr.mxu0 0.0
        %2604 = vmatpush1.msra.mxu0 %v2567
        %2605 = vmatprep.subr.mxu0 0.0
        %2606 = vmatpush1.msra.mxu0 %v2566
        %2607 = vmatprep.subr.mxu0 0.0
        %2608 = vmatpush1.msra.mxu0 %v2565
        %2609 = vmatprep.subr.mxu0 0.0
        %2610 = vmatpush1.msra.mxu0 %v2564
        %2611 = vmatprep.subr.mxu0 0.0
        %2612 = vmatpush1.msra.mxu0 %v2563
        %2613 = vmatprep.subr.mxu0 0.0
        %2614 = vmatpush1.msra.mxu0 %v2562
        %2615 = vmatprep.subr.mxu0 0.0
        %2616 = vmatpush1.msra.mxu0 %v2561
        %2617 = vmatprep.subr.mxu0 0.0
        %2618 = vmatpush2.msra.mxu0 0.0
        %2619 = vmatprep.subr.mxu0 0.0
        %2620 = vmatpush2.msra.mxu0 0.0
        %2621 = vmatprep.subr.mxu0 0.0
        %2622 = vmatpush2.msra.mxu0 0.0
        %2623 = vmatprep.subr.mxu0 0.0
        %2624 = vmatpush2.msra.mxu0 0.0
        %2625 = vmatprep.subr.mxu0 0.0
        %2626 = vmatpush2.msra.mxu0 0.0
        %2627 = vmatprep.subr.mxu0 0.0
        %2628 = vmatpush2.msra.mxu0 0.0
        %2629 = vmatprep.subr.mxu0 0.0
        %2630 = vmatpush2.msra.mxu0 0.0
        %2631 = vmatprep.subr.mxu0 0.0
        %2632 = vmatpush2.msra.mxu0 0.0
        %2633 = vmatprep.subr.mxu0 0.0
        %2634 = vmatpush2.msra.mxu0 0.0
        %2635 = vmatprep.subr.mxu0 0.0
        %2636 = vmatpush2.msra.mxu0 0.0
        %2637 = vmatprep.subr.mxu0 0.0
        %2638 = vmatpush2.msra.mxu0 0.0
        %2639 = vmatprep.subr.mxu0 0.0
        %2640 = vmatpush2.msra.mxu0 0.0
        %2641 = vmatprep.subr.mxu0 0.0
        %2642 = vmatpush2.msra.mxu0 0.0
        %2643 = vmatprep.subr.mxu0 0.0
        %2644 = vmatpush2.msra.mxu0 0.0
        %2645 = vmatprep.subr.mxu0 0.0
        %2646 = vmatpush2.msra.mxu0 0.0
        %2647 = vmatprep.subr.mxu0 0.0
        %2648 = vmatpush2.msra.mxu0 0.0
        %2649 = vmatprep.mubr.f32.mxu0 0.0
        %2650 = vmatmul.mubr.f32.gmra.mxu0 %v2571
        %v2651 = vpop.f32.mrf.mxu0
        %v2652 = vadd.f32 0.0, %v2651
        %v2653 = vpop.f32.mrf.mxu0
        %2654 = vmatprep.mubr.f32.mxu0 0.0
        %2655 = vmatmul.mubr.f32.gmra.mxu0 %v2574
        %v2656 = vpop.f32.mrf.mxu0
        %v2657 = vadd.f32 0.0, %v2656
        %v2658 = vpop.f32.mrf.mxu0
        %2659 = vmatprep.mubr.f32.mxu0 0.0
        %2660 = vmatmul.mubr.f32.gmra.mxu0 %v2577
        %v2661 = vpop.f32.mrf.mxu0
        %v2662 = vadd.f32 0.0, %v2661
        %v2663 = vpop.f32.mrf.mxu0
        %2664 = vmatprep.mubr.f32.mxu0 0.0
        %2665 = vmatmul.mubr.f32.gmra.mxu0 %v2580
        %v2666 = vpop.f32.mrf.mxu0
        %v2667 = vadd.f32 0.0, %v2666
        %v2668 = vpop.f32.mrf.mxu0
        %2669 = vdwg.mxu0
        %v2671 = vsel %vm2569, %v1166, 0
        %v2674 = vsel %vm2569, %v1167, 0
        %v2677 = vsel %vm2569, %v1168, 0
        %v2680 = vsel %vm2569, %v1169, 0
        %2682 = vmatprep.subr.mxu0 0.0
        %2683 = vmatpush1.msra.mxu0 0.0
        %2684 = vmatprep.subr.mxu0 0.0
        %2685 = vmatpush1.msra.mxu0 0.0
        %2686 = vmatprep.subr.mxu0 0.0
        %2687 = vmatpush1.msra.mxu0 0.0
        %2688 = vmatprep.subr.mxu0 0.0
        %2689 = vmatpush1.msra.mxu0 0.0
        %2690 = vmatprep.subr.mxu0 0.0
        %2691 = vmatpush1.msra.mxu0 0.0
        %2692 = vmatprep.subr.mxu0 0.0
        %2693 = vmatpush1.msra.mxu0 0.0
        %2694 = vmatprep.subr.mxu0 0.0
        %2695 = vmatpush1.msra.mxu0 0.0
        %2696 = vmatprep.subr.mxu0 0.0
        %2697 = vmatpush1.msra.mxu0 0.0
        %2698 = vmatprep.subr.mxu0 0.0
        %2699 = vmatpush1.msra.mxu0 %v2583
        %2700 = vmatprep.subr.mxu0 0.0
        %2701 = vmatpush1.msra.mxu0 %v2567
        %2702 = vmatprep.subr.mxu0 0.0
        %2703 = vmatpush1.msra.mxu0 %v2566
        %2704 = vmatprep.subr.mxu0 0.0
        %2705 = vmatpush1.msra.mxu0 %v2565
        %2706 = vmatprep.subr.mxu0 0.0
        %2707 = vmatpush1.msra.mxu0 %v2564
        %2708 = vmatprep.subr.mxu0 0.0
        %2709 = vmatpush1.msra.mxu0 %v2563
        %2710 = vmatprep.subr.mxu0 0.0
        %2711 = vmatpush1.msra.mxu0 %v2562
        %2712 = vmatprep.subr.mxu0 0.0
        %2713 = vmatpush1.msra.mxu0 %v2561
        %2714 = vmatprep.subr.mxu0 0.0
        %2715 = vmatpush2.msra.mxu0 0.0
        %2716 = vmatprep.subr.mxu0 0.0
        %2717 = vmatpush2.msra.mxu0 0.0
        %2718 = vmatprep.subr.mxu0 0.0
        %2719 = vmatpush2.msra.mxu0 0.0
        %2720 = vmatprep.subr.mxu0 0.0
        %2721 = vmatpush2.msra.mxu0 0.0
        %2722 = vmatprep.subr.mxu0 0.0
        %2723 = vmatpush2.msra.mxu0 0.0
        %2724 = vmatprep.subr.mxu0 0.0
        %2725 = vmatpush2.msra.mxu0 0.0
        %2726 = vmatprep.subr.mxu0 0.0
        %2727 = vmatpush2.msra.mxu0 0.0
        %2728 = vmatprep.subr.mxu0 0.0
        %2729 = vmatpush2.msra.mxu0 0.0
        %2730 = vmatprep.subr.mxu0 0.0
        %2731 = vmatpush2.msra.mxu0 0.0
        %2732 = vmatprep.subr.mxu0 0.0
        %2733 = vmatpush2.msra.mxu0 0.0
        %2734 = vmatprep.subr.mxu0 0.0
        %2735 = vmatpush2.msra.mxu0 0.0
        %2736 = vmatprep.subr.mxu0 0.0
        %2737 = vmatpush2.msra.mxu0 0.0
        %2738 = vmatprep.subr.mxu0 0.0
        %2739 = vmatpush2.msra.mxu0 0.0
        %2740 = vmatprep.subr.mxu0 0.0
        %2741 = vmatpush2.msra.mxu0 0.0
        %2742 = vmatprep.subr.mxu0 0.0
        %2743 = vmatpush2.msra.mxu0 0.0
        %2744 = vmatprep.subr.mxu0 0.0
        %2745 = vmatpush2.msra.mxu0 0.0
        %2746 = vmatprep.mubr.f32.mxu0 0.0
        %2747 = vmatmul.mubr.f32.gmra.mxu0 %v2671
        %v2748 = vpop.f32.mrf.mxu0
        %v2749 = vadd.f32 0.0, %v2748
        %v2750 = vpop.f32.mrf.mxu0
        %2751 = vmatprep.mubr.f32.mxu0 0.0
        %2752 = vmatmul.mubr.f32.gmra.mxu0 %v2674
        %v2753 = vpop.f32.mrf.mxu0
        %v2754 = vadd.f32 0.0, %v2753
        %v2755 = vpop.f32.mrf.mxu0
        %2756 = vmatprep.mubr.f32.mxu0 0.0
        %2757 = vmatmul.mubr.f32.gmra.mxu0 %v2677
        %v2758 = vpop.f32.mrf.mxu0
        %v2759 = vadd.f32 0.0, %v2758
        %v2760 = vpop.f32.mrf.mxu0
        %2761 = vmatprep.mubr.f32.mxu0 0.0
        %2762 = vmatmul.mubr.f32.gmra.mxu0 %v2680
        %v2763 = vpop.f32.mrf.mxu0
        %v2764 = vadd.f32 0.0, %v2763
        %v2765 = vpop.f32.mrf.mxu0
        %2766 = vdwg.mxu0
        %v2767 = vmax.f32 %v2652, %v2749
        %v2768 = vmax.f32 %v2657, %v2754
        %v2769 = vmax.f32 %v2662, %v2759
        %v2770 = vmax.f32 %v2667, %v2764
        %s2771 = smul.u32 %s1171, 32
        %s2772 = scalar_lea.vmem [#allocation3], %s2771
        %2773 = vst.msk [vmem:[%s2772] sm:$0xff] %vm1379, %v2767
        %2774 = vst.msk [vmem:[%s2772 + $0x8] sm:$0xff] %vm1379, %v2768
        %2775 = vst.msk [vmem:[%s2772 + $0x10] sm:$0xff] %vm1379, %v2769
        %vm2776 = vcmask 258048
        %2777 = vst.msk [vmem:[%s2772 + $0x18] sm:$0x1f] %vm2776, %v2770
      $region76: #{a_convnet_forward.1} parent=63 // loop_footer
        %s1175 = sadd.s32 1, %s1171
      $region77: #{a_convnet_forward.1} parent=63 // loop_footer_branch
        %1170 = sbr.rel target = $region73
      $region78: #{a_convnet_forward.1} parent=63 // loop_exit
        _
      %v2778 = vld [vmem:[%s6] sm:$0x1]
      loop: start=0, step=1, limit=6
      $region79: #{a_convnet_forward.1} parent=63 // loop_pre_header
        _
      $region80: #{a_convnet_forward.1} parent=63 // loop_header
        %s2780 = sphi 0, %s2784
        %p2781 = scmp.ge.s32.totalorder %s2780, 6
      $region81: #{a_convnet_forward.1} parent=63 // loop_header_branch
        %2783 = sbr.rel (%p2781) target = $region85
      $region82: #{a_convnet_forward.1} parent=63 // loop_body
        %s2785 = smul.u32 %s2780, 4
        %s2786 = smul.u32 %s2785, 32
        %s2787 = scalar_lea.vmem [#allocation3], %s2786
        %v2788 = vld [vmem:[%s2787] sm:$0xff]
        %v2789 = vld [vmem:[%s2787 + $0x8] sm:$0xff]
        %v2790 = vld [vmem:[%s2787 + $0x10] sm:$0xff]
        %v2791 = vld [vmem:[%s2787 + $0x18] sm:$0x1f]
        %s2792 = sadd.s32 %s2785, 1
        %s2793 = smul.u32 %s2792, 32
        %s2794 = scalar_lea.vmem [#allocation3], %s2793
        %v2795 = vld [vmem:[%s2794] sm:$0xff]
        %v2796 = vld [vmem:[%s2794 + $0x8] sm:$0xff]
        %v2797 = vld [vmem:[%s2794 + $0x10] sm:$0xff]
        %v2798 = vld [vmem:[%s2794 + $0x18] sm:$0x1f]
        %s2799 = sadd.s32 %s2785, 2
        %s2800 = smul.u32 %s2799, 32
        %s2801 = scalar_lea.vmem [#allocation3], %s2800
        %v2802 = vld [vmem:[%s2801] sm:$0xff]
        %v2803 = vld [vmem:[%s2801 + $0x8] sm:$0xff]
        %v2804 = vld [vmem:[%s2801 + $0x10] sm:$0xff]
        %v2805 = vld [vmem:[%s2801 + $0x18] sm:$0x1f]
        %s2806 = sadd.s32 %s2785, 3
        %s2807 = smul.u32 %s2806, 32
        %s2808 = scalar_lea.vmem [#allocation3], %s2807
        %v2809 = vld [vmem:[%s2808] sm:$0xff]
        %v2810 = vld [vmem:[%s2808 + $0x8] sm:$0xff]
        %v2811 = vld [vmem:[%s2808 + $0x10] sm:$0xff]
        %v2812 = vld [vmem:[%s2808 + $0x18] sm:$0x1f]
        %s2813 = sadd.s32 %s2785, 4
        %s2814 = smul.u32 %s2813, 32
        %s2815 = scalar_lea.vmem [#allocation3], %s2814
        %v2816 = vld [vmem:[%s2815] sm:$0xff]
        %v2817 = vld [vmem:[%s2815 + $0x8] sm:$0xff]
        %v2818 = vld [vmem:[%s2815 + $0x10] sm:$0xff]
        %v2819 = vld [vmem:[%s2815 + $0x18] sm:$0x1f]
        %s2820 = sadd.s32 %s2785, 5
        %s2821 = smul.u32 %s2820, 32
        %s2822 = scalar_lea.vmem [#allocation3], %s2821
        %v2823 = vld [vmem:[%s2822] sm:$0xff]
        %v2824 = vld [vmem:[%s2822 + $0x8] sm:$0xff]
        %v2825 = vld [vmem:[%s2822 + $0x10] sm:$0xff]
        %v2826 = vld [vmem:[%s2822 + $0x18] sm:$0x1f]
        %s2827 = sadd.s32 %s2785, 6
        %s2828 = smul.u32 %s2827, 32
        %s2829 = scalar_lea.vmem [#allocation3], %s2828
        %v2830 = vld [vmem:[%s2829] sm:$0xff]
        %v2831 = vld [vmem:[%s2829 + $0x8] sm:$0xff]
        %v2832 = vld [vmem:[%s2829 + $0x10] sm:$0xff]
        %v2833 = vld [vmem:[%s2829 + $0x18] sm:$0x1f]
        %s2834 = sadd.s32 %s2785, 7
        %s2835 = smul.u32 %s2834, 32
        %s2836 = scalar_lea.vmem [#allocation3], %s2835
        %v2837 = vld [vmem:[%s2836] sm:$0xff]
        %v2838 = vld [vmem:[%s2836 + $0x8] sm:$0xff]
        %v2839 = vld [vmem:[%s2836 + $0x10] sm:$0xff]
        %v2840 = vld [vmem:[%s2836 + $0x18] sm:$0x1f]
        %s2841 = sadd.s32 %s2785, 8
        %s2842 = smul.u32 %s2841, 32
        %s2843 = scalar_lea.vmem [#allocation3], %s2842
        %v2844 = vld [vmem:[%s2843] sm:$0xff]
        %v2845 = vld [vmem:[%s2843 + $0x8] sm:$0xff]
        %v2846 = vld [vmem:[%s2843 + $0x10] sm:$0xff]
        %v2847 = vld [vmem:[%s2843 + $0x18] sm:$0x1f]
        %2852 = vrot.lane.b32.xlu0 %v2795, 32
        %v2853 = vpop.permute.xlu0 %2852
        %2854 = vrot.lane.b32.xlu0 %v2796, 32
        %v2855 = vpop.permute.xlu0 %2854
        %2856 = vrot.lane.b32.xlu0 %v2797, 32
        %v2857 = vpop.permute.xlu0 %2856
        %2858 = vrot.lane.b32.xlu0 %v2798, 32
        %v2859 = vpop.permute.xlu0 %2858
        %2868 = vrot.lane.b32.xlu0 %v2802, 64
        %v2869 = vpop.permute.xlu0 %2868
        %2870 = vrot.lane.b32.xlu0 %v2803, 64
        %v2871 = vpop.permute.xlu0 %2870
        %2872 = vrot.lane.b32.xlu0 %v2804, 64
        %v2873 = vpop.permute.xlu0 %2872
        %2874 = vrot.lane.b32.xlu0 %v2805, 64
        %v2875 = vpop.permute.xlu0 %2874
        %2884 = vrot.lane.b32.xlu0 %v2809, 96
        %v2885 = vpop.permute.xlu0 %2884
        %2886 = vrot.lane.b32.xlu0 %v2810, 96
        %v2887 = vpop.permute.xlu0 %2886
        %2888 = vrot.lane.b32.xlu0 %v2811, 96
        %v2889 = vpop.permute.xlu0 %2888
        %2890 = vrot.lane.b32.xlu0 %v2812, 96
        %v2891 = vpop.permute.xlu0 %2890
        %2900 = vrot.lane.b32.xlu0 %v2823, 32
        %v2901 = vpop.permute.xlu0 %2900
        %2902 = vrot.lane.b32.xlu0 %v2824, 32
        %v2903 = vpop.permute.xlu0 %2902
        %2904 = vrot.lane.b32.xlu0 %v2825, 32
        %v2905 = vpop.permute.xlu0 %2904
        %2906 = vrot.lane.b32.xlu0 %v2826, 32
        %v2907 = vpop.permute.xlu0 %2906
        %vm2912 = vcmask 261120
        %v2913 = vsel %vm2912, %v2788, %v2853
        %v2914 = vsel %vm2912, %v2789, %v2855
        %v2915 = vsel %vm2912, %v2790, %v2857
        %v2916 = vsel %vm2912, %v2791, %v2859
        %vm2917 = vcmask 523264
        %v2918 = vsel %vm2917, %v2913, %v2869
        %v2919 = vsel %vm2917, %v2914, %v2871
        %v2920 = vsel %vm2917, %v2915, %v2873
        %v2921 = vsel %vm2917, %v2916, %v2875
        %vm2922 = vcmask 785408
        %v2923 = vsel %vm2922, %v2918, %v2885
        %v2924 = vsel %vm2922, %v2919, %v2887
        %v2925 = vsel %vm2922, %v2920, %v2889
        %v2926 = vsel %vm2922, %v2921, %v2891
        %v2927 = vsel %vm2912, %v2816, %v2901
        %v2928 = vsel %vm2912, %v2817, %v2903
        %v2929 = vsel %vm2912, %v2818, %v2905
        %v2930 = vsel %vm2912, %v2819, %v2907
        %vm2939 = vcmask 1046528
        %v2940 = vrot.slane %v2923, 1
        %v2941 = vrot.slane %v2924, 1
        %v2942 = vsel %vm2939, %v2940, %v2941
        %v2943 = vrot.slane %v2927, 1
        %v2944 = vrot.slane %v2928, 1
        %v2945 = vsel %vm2939, %v2943, %v2944
        %v2946 = vrot.slane %v2925, 1
        %v2947 = vsel %vm2939, %v2941, %v2946
        %v2948 = vrot.slane %v2929, 1
        %v2949 = vsel %vm2939, %v2944, %v2948
        %v2950 = vrot.slane %v2926, 1
        %v2951 = vsel %vm2939, %v2946, %v2950
        %v2952 = vrot.slane %v2930, 1
        %v2953 = vsel %vm2939, %v2948, %v2952
        %2954 = vrot.lane.b32.xlu0 %v2942, 64
        %v2955 = vpop.permute.xlu0 %2954
        %2956 = vrot.lane.b32.xlu0 %v2945, 64
        %v2957 = vpop.permute.xlu0 %2956
        %2958 = vrot.lane.b32.xlu0 %v2947, 64
        %v2959 = vpop.permute.xlu0 %2958
        %2960 = vrot.lane.b32.xlu0 %v2949, 64
        %v2961 = vpop.permute.xlu0 %2960
        %2962 = vrot.lane.b32.xlu0 %v2951, 64
        %v2963 = vpop.permute.xlu0 %2962
        %2964 = vrot.lane.b32.xlu0 %v2953, 64
        %v2965 = vpop.permute.xlu0 %2964
        %v2966 = vsel %vm2917, %v2955, %v2957
        %v2967 = vsel %vm2917, %v2959, %v2961
        %v2968 = vsel %vm2917, %v2963, %v2965
        %vm2975 = vcmask 1045504
        %v2976 = vrot.slane %v2923, 2
        %v2977 = vrot.slane %v2924, 2
        %v2978 = vsel %vm2975, %v2976, %v2977
        %v2979 = vrot.slane %v2927, 2
        %v2980 = vrot.slane %v2928, 2
        %v2981 = vsel %vm2975, %v2979, %v2980
        %v2982 = vrot.slane %v2925, 2
        %v2983 = vsel %vm2975, %v2977, %v2982
        %v2984 = vrot.slane %v2929, 2
        %v2985 = vsel %vm2975, %v2980, %v2984
        %v2986 = vrot.slane %v2926, 2
        %v2987 = vsel %vm2975, %v2982, %v2986
        %v2988 = vrot.slane %v2930, 2
        %v2989 = vsel %vm2975, %v2984, %v2988
        %vm2996 = vcmask 1044480
        %v2997 = vrot.slane %v2923, 3
        %v2998 = vrot.slane %v2924, 3
        %v2999 = vsel %vm2996, %v2997, %v2998
        %v3000 = vrot.slane %v2927, 3
        %v3001 = vrot.slane %v2928, 3
        %v3002 = vsel %vm2996, %v3000, %v3001
        %v3003 = vrot.slane %v2925, 3
        %v3004 = vsel %vm2996, %v2998, %v3003
        %v3005 = vrot.slane %v2929, 3
        %v3006 = vsel %vm2996, %v3001, %v3005
        %v3007 = vrot.slane %v2926, 3
        %v3008 = vsel %vm2996, %v3003, %v3007
        %v3009 = vrot.slane %v2930, 3
        %v3010 = vsel %vm2996, %v3005, %v3009
        %3011 = vrot.lane.b32.xlu0 %v2999, 64
        %v3012 = vpop.permute.xlu0 %3011
        %3013 = vrot.lane.b32.xlu0 %v3002, 64
        %v3014 = vpop.permute.xlu0 %3013
        %3015 = vrot.lane.b32.xlu0 %v3004, 64
        %v3016 = vpop.permute.xlu0 %3015
        %3017 = vrot.lane.b32.xlu0 %v3006, 64
        %v3018 = vpop.permute.xlu0 %3017
        %3019 = vrot.lane.b32.xlu0 %v3008, 64
        %v3020 = vpop.permute.xlu0 %3019
        %3021 = vrot.lane.b32.xlu0 %v3010, 64
        %v3022 = vpop.permute.xlu0 %3021
        %v3023 = vsel %vm2917, %v3012, %v3014
        %v3024 = vsel %vm2917, %v3016, %v3018
        %v3025 = vsel %vm2917, %v3020, %v3022
        %vm3032 = vcmask 1043456
        %v3033 = vrot.slane %v2923, 4
        %v3034 = vrot.slane %v2924, 4
        %v3035 = vsel %vm3032, %v3033, %v3034
        %v3036 = vrot.slane %v2927, 4
        %v3037 = vrot.slane %v2928, 4
        %v3038 = vsel %vm3032, %v3036, %v3037
        %v3039 = vrot.slane %v2925, 4
        %v3040 = vsel %vm3032, %v3034, %v3039
        %v3041 = vrot.slane %v2929, 4
        %v3042 = vsel %vm3032, %v3037, %v3041
        %v3043 = vrot.slane %v2926, 4
        %v3044 = vsel %vm3032, %v3039, %v3043
        %v3045 = vrot.slane %v2930, 4
        %v3046 = vsel %vm3032, %v3041, %v3045
        %vm3053 = vcmask 1042432
        %v3054 = vrot.slane %v2923, 5
        %v3055 = vrot.slane %v2924, 5
        %v3056 = vsel %vm3053, %v3054, %v3055
        %v3057 = vrot.slane %v2927, 5
        %v3058 = vrot.slane %v2928, 5
        %v3059 = vsel %vm3053, %v3057, %v3058
        %v3060 = vrot.slane %v2925, 5
        %v3061 = vsel %vm3053, %v3055, %v3060
        %v3062 = vrot.slane %v2929, 5
        %v3063 = vsel %vm3053, %v3058, %v3062
        %v3064 = vrot.slane %v2926, 5
        %v3065 = vsel %vm3053, %v3060, %v3064
        %v3066 = vrot.slane %v2930, 5
        %v3067 = vsel %vm3053, %v3062, %v3066
        %3068 = vrot.lane.b32.xlu0 %v3056, 64
        %v3069 = vpop.permute.xlu0 %3068
        %3070 = vrot.lane.b32.xlu0 %v3059, 64
        %v3071 = vpop.permute.xlu0 %3070
        %3072 = vrot.lane.b32.xlu0 %v3061, 64
        %v3073 = vpop.permute.xlu0 %3072
        %3074 = vrot.lane.b32.xlu0 %v3063, 64
        %v3075 = vpop.permute.xlu0 %3074
        %3076 = vrot.lane.b32.xlu0 %v3065, 64
        %v3077 = vpop.permute.xlu0 %3076
        %3078 = vrot.lane.b32.xlu0 %v3067, 64
        %v3079 = vpop.permute.xlu0 %3078
        %v3080 = vsel %vm2917, %v3069, %v3071
        %v3081 = vsel %vm2917, %v3073, %v3075
        %v3082 = vsel %vm2917, %v3077, %v3079
        %v3089 = vsel %vm2917, %v2927, %v2955
        %v3090 = vsel %vm2917, %v2928, %v2959
        %v3091 = vsel %vm2917, %v2929, %v2963
        %v3092 = vsel %vm2917, %v2981, %v3012
        %v3093 = vsel %vm2917, %v2985, %v3016
        %v3094 = vsel %vm2917, %v2989, %v3020
        %v3095 = vsel %vm2917, %v3038, %v3069
        %v3096 = vsel %vm2917, %v3042, %v3073
        %v3097 = vsel %vm2917, %v3046, %v3077
        %3098 = vrot.lane.b32.xlu0 %v2802, 32
        %v3099 = vpop.permute.xlu0 %3098
        %3100 = vrot.lane.b32.xlu0 %v2803, 32
        %v3101 = vpop.permute.xlu0 %3100
        %3102 = vrot.lane.b32.xlu0 %v2804, 32
        %v3103 = vpop.permute.xlu0 %3102
        %3104 = vrot.lane.b32.xlu0 %v2805, 32
        %v3105 = vpop.permute.xlu0 %3104
        %3110 = vrot.lane.b32.xlu0 %v2809, 64
        %v3111 = vpop.permute.xlu0 %3110
        %3112 = vrot.lane.b32.xlu0 %v2810, 64
        %v3113 = vpop.permute.xlu0 %3112
        %3114 = vrot.lane.b32.xlu0 %v2811, 64
        %v3115 = vpop.permute.xlu0 %3114
        %3116 = vrot.lane.b32.xlu0 %v2812, 64
        %v3117 = vpop.permute.xlu0 %3116
        %3126 = vrot.lane.b32.xlu0 %v2816, 96
        %v3127 = vpop.permute.xlu0 %3126
        %3128 = vrot.lane.b32.xlu0 %v2817, 96
        %v3129 = vpop.permute.xlu0 %3128
        %3130 = vrot.lane.b32.xlu0 %v2818, 96
        %v3131 = vpop.permute.xlu0 %3130
        %3132 = vrot.lane.b32.xlu0 %v2819, 96
        %v3133 = vpop.permute.xlu0 %3132
        %3142 = vrot.lane.b32.xlu0 %v2830, 32
        %v3143 = vpop.permute.xlu0 %3142
        %3144 = vrot.lane.b32.xlu0 %v2831, 32
        %v3145 = vpop.permute.xlu0 %3144
        %3146 = vrot.lane.b32.xlu0 %v2832, 32
        %v3147 = vpop.permute.xlu0 %3146
        %3148 = vrot.lane.b32.xlu0 %v2833, 32
        %v3149 = vpop.permute.xlu0 %3148
        %v3154 = vsel %vm2912, %v2795, %v3099
        %v3155 = vsel %vm2912, %v2796, %v3101
        %v3156 = vsel %vm2912, %v2797, %v3103
        %v3157 = vsel %vm2912, %v2798, %v3105
        %v3158 = vsel %vm2917, %v3154, %v3111
        %v3159 = vsel %vm2917, %v3155, %v3113
        %v3160 = vsel %vm2917, %v3156, %v3115
        %v3161 = vsel %vm2917, %v3157, %v3117
        %v3162 = vsel %vm2922, %v3158, %v3127
        %v3163 = vsel %vm2922, %v3159, %v3129
        %v3164 = vsel %vm2922, %v3160, %v3131
        %v3165 = vsel %vm2922, %v3161, %v3133
        %v3166 = vsel %vm2912, %v2823, %v3143
        %v3167 = vsel %vm2912, %v2824, %v3145
        %v3168 = vsel %vm2912, %v2825, %v3147
        %v3169 = vsel %vm2912, %v2826, %v3149
        %v3178 = vrot.slane %v3162, 1
        %v3179 = vrot.slane %v3163, 1
        %v3180 = vsel %vm2939, %v3178, %v3179
        %v3181 = vrot.slane %v3166, 1
        %v3182 = vrot.slane %v3167, 1
        %v3183 = vsel %vm2939, %v3181, %v3182
        %v3184 = vrot.slane %v3164, 1
        %v3185 = vsel %vm2939, %v3179, %v3184
        %v3186 = vrot.slane %v3168, 1
        %v3187 = vsel %vm2939, %v3182, %v3186
        %v3188 = vrot.slane %v3165, 1
        %v3189 = vsel %vm2939, %v3184, %v3188
        %v3190 = vrot.slane %v3169, 1
        %v3191 = vsel %vm2939, %v3186, %v3190
        %3192 = vrot.lane.b32.xlu0 %v3180, 64
        %v3193 = vpop.permute.xlu0 %3192
        %3194 = vrot.lane.b32.xlu0 %v3183, 64
        %v3195 = vpop.permute.xlu0 %3194
        %3196 = vrot.lane.b32.xlu0 %v3185, 64
        %v3197 = vpop.permute.xlu0 %3196
        %3198 = vrot.lane.b32.xlu0 %v3187, 64
        %v3199 = vpop.permute.xlu0 %3198
        %3200 = vrot.lane.b32.xlu0 %v3189, 64
        %v3201 = vpop.permute.xlu0 %3200
        %3202 = vrot.lane.b32.xlu0 %v3191, 64
        %v3203 = vpop.permute.xlu0 %3202
        %v3204 = vsel %vm2917, %v3193, %v3195
        %v3205 = vsel %vm2917, %v3197, %v3199
        %v3206 = vsel %vm2917, %v3201, %v3203
        %v3213 = vrot.slane %v3162, 2
        %v3214 = vrot.slane %v3163, 2
        %v3215 = vsel %vm2975, %v3213, %v3214
        %v3216 = vrot.slane %v3166, 2
        %v3217 = vrot.slane %v3167, 2
        %v3218 = vsel %vm2975, %v3216, %v3217
        %v3219 = vrot.slane %v3164, 2
        %v3220 = vsel %vm2975, %v3214, %v3219
        %v3221 = vrot.slane %v3168, 2
        %v3222 = vsel %vm2975, %v3217, %v3221
        %v3223 = vrot.slane %v3165, 2
        %v3224 = vsel %vm2975, %v3219, %v3223
        %v3225 = vrot.slane %v3169, 2
        %v3226 = vsel %vm2975, %v3221, %v3225
        %v3233 = vrot.slane %v3162, 3
        %v3234 = vrot.slane %v3163, 3
        %v3235 = vsel %vm2996, %v3233, %v3234
        %v3236 = vrot.slane %v3166, 3
        %v3237 = vrot.slane %v3167, 3
        %v3238 = vsel %vm2996, %v3236, %v3237
        %v3239 = vrot.slane %v3164, 3
        %v3240 = vsel %vm2996, %v3234, %v3239
        %v3241 = vrot.slane %v3168, 3
        %v3242 = vsel %vm2996, %v3237, %v3241
        %v3243 = vrot.slane %v3165, 3
        %v3244 = vsel %vm2996, %v3239, %v3243
        %v3245 = vrot.slane %v3169, 3
        %v3246 = vsel %vm2996, %v3241, %v3245
        %3247 = vrot.lane.b32.xlu0 %v3235, 64
        %v3248 = vpop.permute.xlu0 %3247
        %3249 = vrot.lane.b32.xlu0 %v3238, 64
        %v3250 = vpop.permute.xlu0 %3249
        %3251 = vrot.lane.b32.xlu0 %v3240, 64
        %v3252 = vpop.permute.xlu0 %3251
        %3253 = vrot.lane.b32.xlu0 %v3242, 64
        %v3254 = vpop.permute.xlu0 %3253
        %3255 = vrot.lane.b32.xlu0 %v3244, 64
        %v3256 = vpop.permute.xlu0 %3255
        %3257 = vrot.lane.b32.xlu0 %v3246, 64
        %v3258 = vpop.permute.xlu0 %3257
        %v3259 = vsel %vm2917, %v3248, %v3250
        %v3260 = vsel %vm2917, %v3252, %v3254
        %v3261 = vsel %vm2917, %v3256, %v3258
        %v3268 = vrot.slane %v3162, 4
        %v3269 = vrot.slane %v3163, 4
        %v3270 = vsel %vm3032, %v3268, %v3269
        %v3271 = vrot.slane %v3166, 4
        %v3272 = vrot.slane %v3167, 4
        %v3273 = vsel %vm3032, %v3271, %v3272
        %v3274 = vrot.slane %v3164, 4
        %v3275 = vsel %vm3032, %v3269, %v3274
        %v3276 = vrot.slane %v3168, 4
        %v3277 = vsel %vm3032, %v3272, %v3276
        %v3278 = vrot.slane %v3165, 4
        %v3279 = vsel %vm3032, %v3274, %v3278
        %v3280 = vrot.slane %v3169, 4
        %v3281 = vsel %vm3032, %v3276, %v3280
        %v3288 = vrot.slane %v3162, 5
        %v3289 = vrot.slane %v3163, 5
        %v3290 = vsel %vm3053, %v3288, %v3289
        %v3291 = vrot.slane %v3166, 5
        %v3292 = vrot.slane %v3167, 5
        %v3293 = vsel %vm3053, %v3291, %v3292
        %v3294 = vrot.slane %v3164, 5
        %v3295 = vsel %vm3053, %v3289, %v3294
        %v3296 = vrot.slane %v3168, 5
        %v3297 = vsel %vm3053, %v3292, %v3296
        %v3298 = vrot.slane %v3165, 5
        %v3299 = vsel %vm3053, %v3294, %v3298
        %v3300 = vrot.slane %v3169, 5
        %v3301 = vsel %vm3053, %v3296, %v3300
        %3302 = vrot.lane.b32.xlu0 %v3290, 64
        %v3303 = vpop.permute.xlu0 %3302
        %3304 = vrot.lane.b32.xlu0 %v3293, 64
        %v3305 = vpop.permute.xlu0 %3304
        %3306 = vrot.lane.b32.xlu0 %v3295, 64
        %v3307 = vpop.permute.xlu0 %3306
        %3308 = vrot.lane.b32.xlu0 %v3297, 64
        %v3309 = vpop.permute.xlu0 %3308
        %3310 = vrot.lane.b32.xlu0 %v3299, 64
        %v3311 = vpop.permute.xlu0 %3310
        %3312 = vrot.lane.b32.xlu0 %v3301, 64
        %v3313 = vpop.permute.xlu0 %3312
        %v3314 = vsel %vm2917, %v3303, %v3305
        %v3315 = vsel %vm2917, %v3307, %v3309
        %v3316 = vsel %vm2917, %v3311, %v3313
        %v3323 = vsel %vm2917, %v3166, %v3193
        %v3324 = vsel %vm2917, %v3167, %v3197
        %v3325 = vsel %vm2917, %v3168, %v3201
        %v3326 = vsel %vm2917, %v3218, %v3248
        %v3327 = vsel %vm2917, %v3222, %v3252
        %v3328 = vsel %vm2917, %v3226, %v3256
        %v3329 = vsel %vm2917, %v3273, %v3303
        %v3330 = vsel %vm2917, %v3277, %v3307
        %v3331 = vsel %vm2917, %v3281, %v3311
        %3332 = vrot.lane.b32.xlu0 %v2809, 32
        %v3333 = vpop.permute.xlu0 %3332
        %3334 = vrot.lane.b32.xlu0 %v2810, 32
        %v3335 = vpop.permute.xlu0 %3334
        %3336 = vrot.lane.b32.xlu0 %v2811, 32
        %v3337 = vpop.permute.xlu0 %3336
        %3338 = vrot.lane.b32.xlu0 %v2812, 32
        %v3339 = vpop.permute.xlu0 %3338
        %3344 = vrot.lane.b32.xlu0 %v2816, 64
        %v3345 = vpop.permute.xlu0 %3344
        %3346 = vrot.lane.b32.xlu0 %v2817, 64
        %v3347 = vpop.permute.xlu0 %3346
        %3348 = vrot.lane.b32.xlu0 %v2818, 64
        %v3349 = vpop.permute.xlu0 %3348
        %3350 = vrot.lane.b32.xlu0 %v2819, 64
        %v3351 = vpop.permute.xlu0 %3350
        %3356 = vrot.lane.b32.xlu0 %v2823, 96
        %v3357 = vpop.permute.xlu0 %3356
        %3358 = vrot.lane.b32.xlu0 %v2824, 96
        %v3359 = vpop.permute.xlu0 %3358
        %3360 = vrot.lane.b32.xlu0 %v2825, 96
        %v3361 = vpop.permute.xlu0 %3360
        %3362 = vrot.lane.b32.xlu0 %v2826, 96
        %v3363 = vpop.permute.xlu0 %3362
        %3372 = vrot.lane.b32.xlu0 %v2837, 32
        %v3373 = vpop.permute.xlu0 %3372
        %3374 = vrot.lane.b32.xlu0 %v2838, 32
        %v3375 = vpop.permute.xlu0 %3374
        %3376 = vrot.lane.b32.xlu0 %v2839, 32
        %v3377 = vpop.permute.xlu0 %3376
        %3378 = vrot.lane.b32.xlu0 %v2840, 32
        %v3379 = vpop.permute.xlu0 %3378
        %v3384 = vsel %vm2912, %v2802, %v3333
        %v3385 = vsel %vm2912, %v2803, %v3335
        %v3386 = vsel %vm2912, %v2804, %v3337
        %v3387 = vsel %vm2912, %v2805, %v3339
        %v3388 = vsel %vm2917, %v3384, %v3345
        %v3389 = vsel %vm2917, %v3385, %v3347
        %v3390 = vsel %vm2917, %v3386, %v3349
        %v3391 = vsel %vm2917, %v3387, %v3351
        %v3392 = vsel %vm2922, %v3388, %v3357
        %v3393 = vsel %vm2922, %v3389, %v3359
        %v3394 = vsel %vm2922, %v3390, %v3361
        %v3395 = vsel %vm2922, %v3391, %v3363
        %v3396 = vsel %vm2912, %v2830, %v3373
        %v3397 = vsel %vm2912, %v2831, %v3375
        %v3398 = vsel %vm2912, %v2832, %v3377
        %v3399 = vsel %vm2912, %v2833, %v3379
        %v3408 = vrot.slane %v3392, 1
        %v3409 = vrot.slane %v3393, 1
        %v3410 = vsel %vm2939, %v3408, %v3409
        %v3411 = vrot.slane %v3396, 1
        %v3412 = vrot.slane %v3397, 1
        %v3413 = vsel %vm2939, %v3411, %v3412
        %v3414 = vrot.slane %v3394, 1
        %v3415 = vsel %vm2939, %v3409, %v3414
        %v3416 = vrot.slane %v3398, 1
        %v3417 = vsel %vm2939, %v3412, %v3416
        %v3418 = vrot.slane %v3395, 1
        %v3419 = vsel %vm2939, %v3414, %v3418
        %v3420 = vrot.slane %v3399, 1
        %v3421 = vsel %vm2939, %v3416, %v3420
        %3422 = vrot.lane.b32.xlu0 %v3410, 64
        %v3423 = vpop.permute.xlu0 %3422
        %3424 = vrot.lane.b32.xlu0 %v3413, 64
        %v3425 = vpop.permute.xlu0 %3424
        %3426 = vrot.lane.b32.xlu0 %v3415, 64
        %v3427 = vpop.permute.xlu0 %3426
        %3428 = vrot.lane.b32.xlu0 %v3417, 64
        %v3429 = vpop.permute.xlu0 %3428
        %3430 = vrot.lane.b32.xlu0 %v3419, 64
        %v3431 = vpop.permute.xlu0 %3430
        %3432 = vrot.lane.b32.xlu0 %v3421, 64
        %v3433 = vpop.permute.xlu0 %3432
        %v3434 = vsel %vm2917, %v3423, %v3425
        %v3435 = vsel %vm2917, %v3427, %v3429
        %v3436 = vsel %vm2917, %v3431, %v3433
        %v3443 = vrot.slane %v3392, 2
        %v3444 = vrot.slane %v3393, 2
        %v3445 = vsel %vm2975, %v3443, %v3444
        %v3446 = vrot.slane %v3396, 2
        %v3447 = vrot.slane %v3397, 2
        %v3448 = vsel %vm2975, %v3446, %v3447
        %v3449 = vrot.slane %v3394, 2
        %v3450 = vsel %vm2975, %v3444, %v3449
        %v3451 = vrot.slane %v3398, 2
        %v3452 = vsel %vm2975, %v3447, %v3451
        %v3453 = vrot.slane %v3395, 2
        %v3454 = vsel %vm2975, %v3449, %v3453
        %v3455 = vrot.slane %v3399, 2
        %v3456 = vsel %vm2975, %v3451, %v3455
        %v3463 = vrot.slane %v3392, 3
        %v3464 = vrot.slane %v3393, 3
        %v3465 = vsel %vm2996, %v3463, %v3464
        %v3466 = vrot.slane %v3396, 3
        %v3467 = vrot.slane %v3397, 3
        %v3468 = vsel %vm2996, %v3466, %v3467
        %v3469 = vrot.slane %v3394, 3
        %v3470 = vsel %vm2996, %v3464, %v3469
        %v3471 = vrot.slane %v3398, 3
        %v3472 = vsel %vm2996, %v3467, %v3471
        %v3473 = vrot.slane %v3395, 3
        %v3474 = vsel %vm2996, %v3469, %v3473
        %v3475 = vrot.slane %v3399, 3
        %v3476 = vsel %vm2996, %v3471, %v3475
        %3477 = vrot.lane.b32.xlu0 %v3465, 64
        %v3478 = vpop.permute.xlu0 %3477
        %3479 = vrot.lane.b32.xlu0 %v3468, 64
        %v3480 = vpop.permute.xlu0 %3479
        %3481 = vrot.lane.b32.xlu0 %v3470, 64
        %v3482 = vpop.permute.xlu0 %3481
        %3483 = vrot.lane.b32.xlu0 %v3472, 64
        %v3484 = vpop.permute.xlu0 %3483
        %3485 = vrot.lane.b32.xlu0 %v3474, 64
        %v3486 = vpop.permute.xlu0 %3485
        %3487 = vrot.lane.b32.xlu0 %v3476, 64
        %v3488 = vpop.permute.xlu0 %3487
        %v3489 = vsel %vm2917, %v3478, %v3480
        %v3490 = vsel %vm2917, %v3482, %v3484
        %v3491 = vsel %vm2917, %v3486, %v3488
        %v3498 = vrot.slane %v3392, 4
        %v3499 = vrot.slane %v3393, 4
        %v3500 = vsel %vm3032, %v3498, %v3499
        %v3501 = vrot.slane %v3396, 4
        %v3502 = vrot.slane %v3397, 4
        %v3503 = vsel %vm3032, %v3501, %v3502
        %v3504 = vrot.slane %v3394, 4
        %v3505 = vsel %vm3032, %v3499, %v3504
        %v3506 = vrot.slane %v3398, 4
        %v3507 = vsel %vm3032, %v3502, %v3506
        %v3508 = vrot.slane %v3395, 4
        %v3509 = vsel %vm3032, %v3504, %v3508
        %v3510 = vrot.slane %v3399, 4
        %v3511 = vsel %vm3032, %v3506, %v3510
        %v3518 = vrot.slane %v3392, 5
        %v3519 = vrot.slane %v3393, 5
        %v3520 = vsel %vm3053, %v3518, %v3519
        %v3521 = vrot.slane %v3396, 5
        %v3522 = vrot.slane %v3397, 5
        %v3523 = vsel %vm3053, %v3521, %v3522
        %v3524 = vrot.slane %v3394, 5
        %v3525 = vsel %vm3053, %v3519, %v3524
        %v3526 = vrot.slane %v3398, 5
        %v3527 = vsel %vm3053, %v3522, %v3526
        %v3528 = vrot.slane %v3395, 5
        %v3529 = vsel %vm3053, %v3524, %v3528
        %v3530 = vrot.slane %v3399, 5
        %v3531 = vsel %vm3053, %v3526, %v3530
        %3532 = vrot.lane.b32.xlu0 %v3520, 64
        %v3533 = vpop.permute.xlu0 %3532
        %3534 = vrot.lane.b32.xlu0 %v3523, 64
        %v3535 = vpop.permute.xlu0 %3534
        %3536 = vrot.lane.b32.xlu0 %v3525, 64
        %v3537 = vpop.permute.xlu0 %3536
        %3538 = vrot.lane.b32.xlu0 %v3527, 64
        %v3539 = vpop.permute.xlu0 %3538
        %3540 = vrot.lane.b32.xlu0 %v3529, 64
        %v3541 = vpop.permute.xlu0 %3540
        %3542 = vrot.lane.b32.xlu0 %v3531, 64
        %v3543 = vpop.permute.xlu0 %3542
        %v3544 = vsel %vm2917, %v3533, %v3535
        %v3545 = vsel %vm2917, %v3537, %v3539
        %v3546 = vsel %vm2917, %v3541, %v3543
        %v3553 = vsel %vm2917, %v3396, %v3423
        %v3554 = vsel %vm2917, %v3397, %v3427
        %v3555 = vsel %vm2917, %v3398, %v3431
        %v3556 = vsel %vm2917, %v3448, %v3478
        %v3557 = vsel %vm2917, %v3452, %v3482
        %v3558 = vsel %vm2917, %v3456, %v3486
        %v3559 = vsel %vm2917, %v3503, %v3533
        %v3560 = vsel %vm2917, %v3507, %v3537
        %v3561 = vsel %vm2917, %v3511, %v3541
        %3562 = vrot.lane.b32.xlu0 %v2816, 32
        %v3563 = vpop.permute.xlu0 %3562
        %3564 = vrot.lane.b32.xlu0 %v2817, 32
        %v3565 = vpop.permute.xlu0 %3564
        %3566 = vrot.lane.b32.xlu0 %v2818, 32
        %v3567 = vpop.permute.xlu0 %3566
        %3568 = vrot.lane.b32.xlu0 %v2819, 32
        %v3569 = vpop.permute.xlu0 %3568
        %3574 = vrot.lane.b32.xlu0 %v2823, 64
        %v3575 = vpop.permute.xlu0 %3574
        %3576 = vrot.lane.b32.xlu0 %v2824, 64
        %v3577 = vpop.permute.xlu0 %3576
        %3578 = vrot.lane.b32.xlu0 %v2825, 64
        %v3579 = vpop.permute.xlu0 %3578
        %3580 = vrot.lane.b32.xlu0 %v2826, 64
        %v3581 = vpop.permute.xlu0 %3580
        %3586 = vrot.lane.b32.xlu0 %v2830, 96
        %v3587 = vpop.permute.xlu0 %3586
        %3588 = vrot.lane.b32.xlu0 %v2831, 96
        %v3589 = vpop.permute.xlu0 %3588
        %3590 = vrot.lane.b32.xlu0 %v2832, 96
        %v3591 = vpop.permute.xlu0 %3590
        %3592 = vrot.lane.b32.xlu0 %v2833, 96
        %v3593 = vpop.permute.xlu0 %3592
        %3602 = vrot.lane.b32.xlu0 %v2844, 32
        %v3603 = vpop.permute.xlu0 %3602
        %3604 = vrot.lane.b32.xlu0 %v2845, 32
        %v3605 = vpop.permute.xlu0 %3604
        %3606 = vrot.lane.b32.xlu0 %v2846, 32
        %v3607 = vpop.permute.xlu0 %3606
        %3608 = vrot.lane.b32.xlu0 %v2847, 32
        %v3609 = vpop.permute.xlu0 %3608
        %v3614 = vsel %vm2912, %v2809, %v3563
        %v3615 = vsel %vm2912, %v2810, %v3565
        %v3616 = vsel %vm2912, %v2811, %v3567
        %v3617 = vsel %vm2912, %v2812, %v3569
        %v3618 = vsel %vm2917, %v3614, %v3575
        %v3619 = vsel %vm2917, %v3615, %v3577
        %v3620 = vsel %vm2917, %v3616, %v3579
        %v3621 = vsel %vm2917, %v3617, %v3581
        %v3622 = vsel %vm2922, %v3618, %v3587
        %v3623 = vsel %vm2922, %v3619, %v3589
        %v3624 = vsel %vm2922, %v3620, %v3591
        %v3625 = vsel %vm2922, %v3621, %v3593
        %v3626 = vsel %vm2912, %v2837, %v3603
        %v3627 = vsel %vm2912, %v2838, %v3605
        %v3628 = vsel %vm2912, %v2839, %v3607
        %v3629 = vsel %vm2912, %v2840, %v3609
        %v3638 = vrot.slane %v3622, 1
        %v3639 = vrot.slane %v3623, 1
        %v3640 = vsel %vm2939, %v3638, %v3639
        %v3641 = vrot.slane %v3626, 1
        %v3642 = vrot.slane %v3627, 1
        %v3643 = vsel %vm2939, %v3641, %v3642
        %v3644 = vrot.slane %v3624, 1
        %v3645 = vsel %vm2939, %v3639, %v3644
        %v3646 = vrot.slane %v3628, 1
        %v3647 = vsel %vm2939, %v3642, %v3646
        %v3648 = vrot.slane %v3625, 1
        %v3649 = vsel %vm2939, %v3644, %v3648
        %v3650 = vrot.slane %v3629, 1
        %v3651 = vsel %vm2939, %v3646, %v3650
        %3652 = vrot.lane.b32.xlu0 %v3640, 64
        %v3653 = vpop.permute.xlu0 %3652
        %3654 = vrot.lane.b32.xlu0 %v3643, 64
        %v3655 = vpop.permute.xlu0 %3654
        %3656 = vrot.lane.b32.xlu0 %v3645, 64
        %v3657 = vpop.permute.xlu0 %3656
        %3658 = vrot.lane.b32.xlu0 %v3647, 64
        %v3659 = vpop.permute.xlu0 %3658
        %3660 = vrot.lane.b32.xlu0 %v3649, 64
        %v3661 = vpop.permute.xlu0 %3660
        %3662 = vrot.lane.b32.xlu0 %v3651, 64
        %v3663 = vpop.permute.xlu0 %3662
        %v3664 = vsel %vm2917, %v3653, %v3655
        %v3665 = vsel %vm2917, %v3657, %v3659
        %v3666 = vsel %vm2917, %v3661, %v3663
        %v3673 = vrot.slane %v3622, 2
        %v3674 = vrot.slane %v3623, 2
        %v3675 = vsel %vm2975, %v3673, %v3674
        %v3676 = vrot.slane %v3626, 2
        %v3677 = vrot.slane %v3627, 2
        %v3678 = vsel %vm2975, %v3676, %v3677
        %v3679 = vrot.slane %v3624, 2
        %v3680 = vsel %vm2975, %v3674, %v3679
        %v3681 = vrot.slane %v3628, 2
        %v3682 = vsel %vm2975, %v3677, %v3681
        %v3683 = vrot.slane %v3625, 2
        %v3684 = vsel %vm2975, %v3679, %v3683
        %v3685 = vrot.slane %v3629, 2
        %v3686 = vsel %vm2975, %v3681, %v3685
        %v3693 = vrot.slane %v3622, 3
        %v3694 = vrot.slane %v3623, 3
        %v3695 = vsel %vm2996, %v3693, %v3694
        %v3696 = vrot.slane %v3626, 3
        %v3697 = vrot.slane %v3627, 3
        %v3698 = vsel %vm2996, %v3696, %v3697
        %v3699 = vrot.slane %v3624, 3
        %v3700 = vsel %vm2996, %v3694, %v3699
        %v3701 = vrot.slane %v3628, 3
        %v3702 = vsel %vm2996, %v3697, %v3701
        %v3703 = vrot.slane %v3625, 3
        %v3704 = vsel %vm2996, %v3699, %v3703
        %v3705 = vrot.slane %v3629, 3
        %v3706 = vsel %vm2996, %v3701, %v3705
        %3707 = vrot.lane.b32.xlu0 %v3695, 64
        %v3708 = vpop.permute.xlu0 %3707
        %3709 = vrot.lane.b32.xlu0 %v3698, 64
        %v3710 = vpop.permute.xlu0 %3709
        %3711 = vrot.lane.b32.xlu0 %v3700, 64
        %v3712 = vpop.permute.xlu0 %3711
        %3713 = vrot.lane.b32.xlu0 %v3702, 64
        %v3714 = vpop.permute.xlu0 %3713
        %3715 = vrot.lane.b32.xlu0 %v3704, 64
        %v3716 = vpop.permute.xlu0 %3715
        %3717 = vrot.lane.b32.xlu0 %v3706, 64
        %v3718 = vpop.permute.xlu0 %3717
        %v3719 = vsel %vm2917, %v3708, %v3710
        %v3720 = vsel %vm2917, %v3712, %v3714
        %v3721 = vsel %vm2917, %v3716, %v3718
        %v3728 = vrot.slane %v3622, 4
        %v3729 = vrot.slane %v3623, 4
        %v3730 = vsel %vm3032, %v3728, %v3729
        %v3731 = vrot.slane %v3626, 4
        %v3732 = vrot.slane %v3627, 4
        %v3733 = vsel %vm3032, %v3731, %v3732
        %v3734 = vrot.slane %v3624, 4
        %v3735 = vsel %vm3032, %v3729, %v3734
        %v3736 = vrot.slane %v3628, 4
        %v3737 = vsel %vm3032, %v3732, %v3736
        %v3738 = vrot.slane %v3625, 4
        %v3739 = vsel %vm3032, %v3734, %v3738
        %v3740 = vrot.slane %v3629, 4
        %v3741 = vsel %vm3032, %v3736, %v3740
        %v3748 = vrot.slane %v3622, 5
        %v3749 = vrot.slane %v3623, 5
        %v3750 = vsel %vm3053, %v3748, %v3749
        %v3751 = vrot.slane %v3626, 5
        %v3752 = vrot.slane %v3627, 5
        %v3753 = vsel %vm3053, %v3751, %v3752
        %v3754 = vrot.slane %v3624, 5
        %v3755 = vsel %vm3053, %v3749, %v3754
        %v3756 = vrot.slane %v3628, 5
        %v3757 = vsel %vm3053, %v3752, %v3756
        %v3758 = vrot.slane %v3625, 5
        %v3759 = vsel %vm3053, %v3754, %v3758
        %v3760 = vrot.slane %v3629, 5
        %v3761 = vsel %vm3053, %v3756, %v3760
        %3762 = vrot.lane.b32.xlu0 %v3750, 64
        %v3763 = vpop.permute.xlu0 %3762
        %3764 = vrot.lane.b32.xlu0 %v3753, 64
        %v3765 = vpop.permute.xlu0 %3764
        %3766 = vrot.lane.b32.xlu0 %v3755, 64
        %v3767 = vpop.permute.xlu0 %3766
        %3768 = vrot.lane.b32.xlu0 %v3757, 64
        %v3769 = vpop.permute.xlu0 %3768
        %3770 = vrot.lane.b32.xlu0 %v3759, 64
        %v3771 = vpop.permute.xlu0 %3770
        %3772 = vrot.lane.b32.xlu0 %v3761, 64
        %v3773 = vpop.permute.xlu0 %3772
        %v3774 = vsel %vm2917, %v3763, %v3765
        %v3775 = vsel %vm2917, %v3767, %v3769
        %v3776 = vsel %vm2917, %v3771, %v3773
        %v3783 = vsel %vm2917, %v3626, %v3653
        %v3784 = vsel %vm2917, %v3627, %v3657
        %v3785 = vsel %vm2917, %v3628, %v3661
        %v3786 = vsel %vm2917, %v3678, %v3708
        %v3787 = vsel %vm2917, %v3682, %v3712
        %v3788 = vsel %vm2917, %v3686, %v3716
        %v3789 = vsel %vm2917, %v3733, %v3763
        %v3790 = vsel %vm2917, %v3737, %v3767
        %v3791 = vsel %vm2917, %v3741, %v3771
        %v3792 = vpack.c.bf16 %v2924, %v2923
        %v3793 = vpack.c.bf16 %v3090, %v3089
        %v3794 = vpack.c.bf16 %v2967, %v2966
        %v3795 = vpack.c.bf16 %v2983, %v2978
        %v3796 = vpack.c.bf16 %v3093, %v3092
        %v3797 = vpack.c.bf16 %v3024, %v3023
        %v3798 = vpack.c.bf16 %v3040, %v3035
        %v3799 = vpack.c.bf16 %v3096, %v3095
        %v3800 = vpack.c.bf16 %v3081, %v3080
        %v3801 = vpack.c.bf16 %v3162, %v2925
        %v3802 = vpack.c.bf16 %v3323, %v3091
        %v3803 = vpack.c.bf16 %v3204, %v2968
        %v3804 = vpack.c.bf16 %v3215, %v2987
        %v3805 = vpack.c.bf16 %v3326, %v3094
        %v3806 = vpack.c.bf16 %v3259, %v3025
        %v3807 = vpack.c.bf16 %v3270, %v3044
        %v3808 = vpack.c.bf16 %v3329, %v3097
        %v3809 = vpack.c.bf16 %v3314, %v3082
        %v3810 = vpack.c.bf16 %v3164, %v3163
        %v3811 = vpack.c.bf16 %v3325, %v3324
        %v3812 = vpack.c.bf16 %v3206, %v3205
        %v3813 = vpack.c.bf16 %v3224, %v3220
        %v3814 = vpack.c.bf16 %v3328, %v3327
        %v3815 = vpack.c.bf16 %v3261, %v3260
        %v3816 = vpack.c.bf16 %v3279, %v3275
        %v3817 = vpack.c.bf16 %v3331, %v3330
        %v3818 = vpack.c.bf16 %v3316, %v3315
        %v3819 = vpack.c.bf16 %v3393, %v3392
        %v3820 = vpack.c.bf16 %v3554, %v3553
        %v3821 = vpack.c.bf16 %v3435, %v3434
        %v3822 = vpack.c.bf16 %v3450, %v3445
        %v3823 = vpack.c.bf16 %v3557, %v3556
        %v3824 = vpack.c.bf16 %v3490, %v3489
        %v3825 = vpack.c.bf16 %v3505, %v3500
        %v3826 = vpack.c.bf16 %v3560, %v3559
        %v3827 = vpack.c.bf16 %v3545, %v3544
        %v3828 = vpack.c.bf16 %v3622, %v3394
        %v3829 = vpack.c.bf16 %v3783, %v3555
        %v3830 = vpack.c.bf16 %v3664, %v3436
        %v3831 = vpack.c.bf16 %v3675, %v3454
        %v3832 = vpack.c.bf16 %v3786, %v3558
        %v3833 = vpack.c.bf16 %v3719, %v3491
        %v3834 = vpack.c.bf16 %v3730, %v3509
        %v3835 = vpack.c.bf16 %v3789, %v3561
        %v3836 = vpack.c.bf16 %v3774, %v3546
        %v3837 = vpack.c.bf16 %v3624, %v3623
        %v3838 = vpack.c.bf16 %v3785, %v3784
        %v3839 = vpack.c.bf16 %v3666, %v3665
        %v3840 = vpack.c.bf16 %v3684, %v3680
        %v3841 = vpack.c.bf16 %v3788, %v3787
        %v3842 = vpack.c.bf16 %v3721, %v3720
        %v3843 = vpack.c.bf16 %v3739, %v3735
        %v3844 = vpack.c.bf16 %v3791, %v3790
        %v3845 = vpack.c.bf16 %v3776, %v3775
        %v3846 = vld [vmem:[%s5] sm:$0xf]
        %v3847 = vld [vmem:[%s5 + $0x4] sm:$0xf]
        %v3848 = vld [vmem:[%s5 + $0x8] sm:$0xf]
        %v3849 = vld [vmem:[%s5 + $0xc] sm:$0xf]
        %v3850 = vld [vmem:[%s5 + $0x10] sm:$0xf]
        %v3851 = vld [vmem:[%s5 + $0x14] sm:$0xf]
        %v3852 = vld [vmem:[%s5 + $0x18] sm:$0xf]
        %v3853 = vld [vmem:[%s5 + $0x1c] sm:$0xf]
        %v3854 = vld [vmem:[%s5 + $0x20] sm:$0xf]
        %v3855 = vld [vmem:[%s5 + $0x24] sm:$0xf]
        %v3856 = vld [vmem:[%s5 + $0x28] sm:$0xf]
        %v3857 = vld [vmem:[%s5 + $0x2c] sm:$0xf]
        %v3858 = vld [vmem:[%s5 + $0x30] sm:$0xf]
        %v3859 = vld [vmem:[%s5 + $0x34] sm:$0xf]
        %v3860 = vld [vmem:[%s5 + $0x38] sm:$0xf]
        %v3861 = vld [vmem:[%s5 + $0x3c] sm:$0xf]
        %v3862 = vld [vmem:[%s5 + $0x40] sm:$0xf]
        %v3863 = vld [vmem:[%s5 + $0x44] sm:$0xf]
        %v3864 = vld [vmem:[%s5 + $0x48] sm:$0xf]
        %v3865 = vld [vmem:[%s5 + $0x4c] sm:$0xf]
        %v3866 = vld [vmem:[%s5 + $0x50] sm:$0xf]
        %v3867 = vld [vmem:[%s5 + $0x54] sm:$0xf]
        %v3868 = vld [vmem:[%s5 + $0x58] sm:$0xf]
        %v3869 = vld [vmem:[%s5 + $0x5c] sm:$0xf]
        %v3870 = vld [vmem:[%s5 + $0x60] sm:$0xf]
        %v3871 = vld [vmem:[%s5 + $0x64] sm:$0xf]
        %v3872 = vld [vmem:[%s5 + $0x68] sm:$0xf]
        %v3873 = vld [vmem:[%s5 + $0x6c] sm:$0xf]
        %v3874 = vld [vmem:[%s5 + $0x70] sm:$0xf]
        %v3875 = vld [vmem:[%s5 + $0x74] sm:$0xf]
        %v3876 = vld [vmem:[%s5 + $0x78] sm:$0xf]
        %v3877 = vld [vmem:[%s5 + $0x7c] sm:$0xf]
        %v3878 = vld [vmem:[%s5 + $0x80] sm:$0xf]
        %v3879 = vld [vmem:[%s5 + $0x84] sm:$0xf]
        %v3880 = vld [vmem:[%s5 + $0x88] sm:$0xf]
        %v3881 = vld [vmem:[%s5 + $0x8c] sm:$0xf]
        %v3882 = vld [vmem:[%s5 + $0x90] sm:$0xf]
        %v3883 = vld [vmem:[%s5 + $0x94] sm:$0xf]
        %v3884 = vld [vmem:[%s5 + $0x98] sm:$0xf]
        %v3885 = vld [vmem:[%s5 + $0x9c] sm:$0xf]
        %v3886 = vld [vmem:[%s5 + $0xa0] sm:$0xf]
        %v3887 = vld [vmem:[%s5 + $0xa4] sm:$0xf]
        %v3888 = vld [vmem:[%s5 + $0xa8] sm:$0xf]
        %v3889 = vld [vmem:[%s5 + $0xac] sm:$0xf]
        %v3890 = vld [vmem:[%s5 + $0xb0] sm:$0xf]
        %v3891 = vld [vmem:[%s5 + $0xb4] sm:$0xf]
        %v3892 = vld [vmem:[%s5 + $0xb8] sm:$0xf]
        %v3893 = vld [vmem:[%s5 + $0xbc] sm:$0xf]
        %v3894 = vld [vmem:[%s5 + $0xc0] sm:$0xf]
        %v3895 = vld [vmem:[%s5 + $0xc4] sm:$0xf]
        %v3896 = vld [vmem:[%s5 + $0xc8] sm:$0xf]
        %v3897 = vld [vmem:[%s5 + $0xcc] sm:$0xf]
        %v3898 = vld [vmem:[%s5 + $0xd0] sm:$0xf]
        %v3899 = vld [vmem:[%s5 + $0xd4] sm:$0xf]
        %v3900 = vld [vmem:[%s5 + $0xd8] sm:$0xf]
        %v3901 = vld [vmem:[%s5 + $0xdc] sm:$0xf]
        %v3902 = vld [vmem:[%s5 + $0xe0] sm:$0xf]
        %v3903 = vld [vmem:[%s5 + $0xe4] sm:$0xf]
        %v3904 = vld [vmem:[%s5 + $0xe8] sm:$0xf]
        %v3905 = vld [vmem:[%s5 + $0xec] sm:$0xf]
        %v3906 = vld [vmem:[%s5 + $0xf0] sm:$0xf]
        %v3907 = vld [vmem:[%s5 + $0xf4] sm:$0xf]
        %v3908 = vld [vmem:[%s5 + $0xf8] sm:$0xf]
        %v3909 = vld [vmem:[%s5 + $0xfc] sm:$0xf]
        %v3910 = vld [vmem:[%s5 + $0x100] sm:$0xf]
        %v3911 = vld [vmem:[%s5 + $0x104] sm:$0xf]
        %v3912 = vld [vmem:[%s5 + $0x108] sm:$0xf]
        %v3913 = vld [vmem:[%s5 + $0x10c] sm:$0xf]
        %v3914 = vld [vmem:[%s5 + $0x110] sm:$0xf]
        %v3915 = vld [vmem:[%s5 + $0x114] sm:$0xf]
        %v3916 = vld [vmem:[%s5 + $0x118] sm:$0xf]
        %v3917 = vld [vmem:[%s5 + $0x11c] sm:$0xf]
        %v3918 = vld [vmem:[%s5 + $0x120] sm:$0xf]
        %v3919 = vld [vmem:[%s5 + $0x124] sm:$0xf]
        %v3920 = vld [vmem:[%s5 + $0x128] sm:$0xf]
        %v3921 = vld [vmem:[%s5 + $0x12c] sm:$0xf]
        %v3922 = vld [vmem:[%s5 + $0x130] sm:$0xf]
        %v3923 = vld [vmem:[%s5 + $0x134] sm:$0xf]
        %v3924 = vld [vmem:[%s5 + $0x138] sm:$0xf]
        %v3925 = vld [vmem:[%s5 + $0x13c] sm:$0xf]
        %v3926 = vld [vmem:[%s5 + $0x140] sm:$0xf]
        %v3927 = vld [vmem:[%s5 + $0x144] sm:$0xf]
        %v3928 = vld [vmem:[%s5 + $0x148] sm:$0xf]
        %v3929 = vld [vmem:[%s5 + $0x14c] sm:$0xf]
        %v3930 = vld [vmem:[%s5 + $0x150] sm:$0xf]
        %v3931 = vld [vmem:[%s5 + $0x154] sm:$0xf]
        %v3932 = vld [vmem:[%s5 + $0x158] sm:$0xf]
        %v3933 = vld [vmem:[%s5 + $0x15c] sm:$0xf]
        %v3934 = vld [vmem:[%s5 + $0x160] sm:$0xf]
        %v3935 = vld [vmem:[%s5 + $0x164] sm:$0xf]
        %v3936 = vld [vmem:[%s5 + $0x168] sm:$0xf]
        %v3937 = vld [vmem:[%s5 + $0x16c] sm:$0xf]
        %v3938 = vld [vmem:[%s5 + $0x170] sm:$0xf]
        %v3939 = vld [vmem:[%s5 + $0x174] sm:$0xf]
        %v3940 = vld [vmem:[%s5 + $0x178] sm:$0xf]
        %v3941 = vld [vmem:[%s5 + $0x17c] sm:$0xf]
        %v3942 = vld [vmem:[%s5 + $0x180] sm:$0xf]
        %v3943 = vld [vmem:[%s5 + $0x184] sm:$0xf]
        %v3944 = vld [vmem:[%s5 + $0x188] sm:$0xf]
        %v3945 = vld [vmem:[%s5 + $0x18c] sm:$0xf]
        %v3946 = vld [vmem:[%s5 + $0x190] sm:$0xf]
        %v3947 = vld [vmem:[%s5 + $0x194] sm:$0xf]
        %v3948 = vld [vmem:[%s5 + $0x198] sm:$0xf]
        %v3949 = vld [vmem:[%s5 + $0x19c] sm:$0xf]
        %v3950 = vld [vmem:[%s5 + $0x1a0] sm:$0xf]
        %v3951 = vld [vmem:[%s5 + $0x1a4] sm:$0xf]
        %v3952 = vld [vmem:[%s5 + $0x1a8] sm:$0xf]
        %v3953 = vld [vmem:[%s5 + $0x1ac] sm:$0xf]
        %v3954 = vld [vmem:[%s5 + $0x1b0] sm:$0xf]
        %v3955 = vld [vmem:[%s5 + $0x1b4] sm:$0xf]
        %v3956 = vld [vmem:[%s5 + $0x1b8] sm:$0xf]
        %v3957 = vld [vmem:[%s5 + $0x1bc] sm:$0xf]
        %v3958 = vld [vmem:[%s5 + $0x1c0] sm:$0xf]
        %v3959 = vld [vmem:[%s5 + $0x1c4] sm:$0xf]
        %v3960 = vld [vmem:[%s5 + $0x1c8] sm:$0xf]
        %v3961 = vld [vmem:[%s5 + $0x1cc] sm:$0xf]
        %v3962 = vld [vmem:[%s5 + $0x1d0] sm:$0xf]
        %v3963 = vld [vmem:[%s5 + $0x1d4] sm:$0xf]
        %v3964 = vld [vmem:[%s5 + $0x1d8] sm:$0xf]
        %v3965 = vld [vmem:[%s5 + $0x1dc] sm:$0xf]
        %v3966 = vld [vmem:[%s5 + $0x1e0] sm:$0xf]
        %v3967 = vld [vmem:[%s5 + $0x1e4] sm:$0xf]
        %v3968 = vld [vmem:[%s5 + $0x1e8] sm:$0xf]
        %v3969 = vld [vmem:[%s5 + $0x1ec] sm:$0xf]
        %v3970 = vld [vmem:[%s5 + $0x1f0] sm:$0xf]
        %v3971 = vld [vmem:[%s5 + $0x1f4] sm:$0xf]
        %v3972 = vld [vmem:[%s5 + $0x1f8] sm:$0xf]
        %v3973 = vld [vmem:[%s5 + $0x1fc] sm:$0xf]
        %v3974 = vld [vmem:[%s5 + $0x200] sm:$0xf]
        %v3975 = vld [vmem:[%s5 + $0x204] sm:$0xf]
        %v3976 = vld [vmem:[%s5 + $0x208] sm:$0xf]
        %v3977 = vld [vmem:[%s5 + $0x20c] sm:$0xf]
        %v3978 = vld [vmem:[%s5 + $0x210] sm:$0xf]
        %v3979 = vld [vmem:[%s5 + $0x214] sm:$0xf]
        %v3980 = vld [vmem:[%s5 + $0x218] sm:$0xf]
        %v3981 = vld [vmem:[%s5 + $0x21c] sm:$0xf]
        %v3982 = vld [vmem:[%s5 + $0x220] sm:$0xf]
        %v3983 = vld [vmem:[%s5 + $0x224] sm:$0xf]
        %v3984 = vld [vmem:[%s5 + $0x228] sm:$0xf]
        %v3985 = vld [vmem:[%s5 + $0x22c] sm:$0xf]
        %v3986 = vld [vmem:[%s5 + $0x230] sm:$0xf]
        %v3987 = vld [vmem:[%s5 + $0x234] sm:$0xf]
        %v3988 = vld [vmem:[%s5 + $0x238] sm:$0xf]
        %v3989 = vld [vmem:[%s5 + $0x23c] sm:$0xf]
        %v3991 = vlaneseq
        %v3992 = vshrl.u32 %v3991, 7
        %v3993 = vsub.s32 0, %v3992
        %v3994 = vrot.slane %v2778, %v3993
        %v4140 = vunpack.c.l.b16 %v3846
        %v4141 = vunpack.c.l.b16 %v3847
        %v4142 = vunpack.c.l.b16 %v3848
        %v4143 = vunpack.c.l.b16 %v3849
        %v4144 = vunpack.c.l.b16 %v3850
        %v4145 = vunpack.c.l.b16 %v3851
        %v4146 = vunpack.c.l.b16 %v3852
        %v4147 = vunpack.c.l.b16 %v3853
        %v4148 = vunpack.c.l.b16 %v3854
        %v4149 = vunpack.c.l.b16 %v3855
        %v4150 = vunpack.c.l.b16 %v3856
        %v4151 = vunpack.c.l.b16 %v3857
        %v4152 = vunpack.c.l.b16 %v3858
        %v4153 = vunpack.c.l.b16 %v3859
        %v4154 = vunpack.c.l.b16 %v3860
        %v4155 = vunpack.c.l.b16 %v3861
        %v4156 = vunpack.c.l.b16 %v3862
        %v4157 = vunpack.c.l.b16 %v3863
        %v4158 = vunpack.c.l.b16 %v3864
        %v4159 = vunpack.c.l.b16 %v3865
        %v4160 = vunpack.c.l.b16 %v3866
        %v4161 = vunpack.c.l.b16 %v3867
        %v4162 = vunpack.c.l.b16 %v3868
        %v4163 = vunpack.c.l.b16 %v3869
        %v4164 = vunpack.c.l.b16 %v3870
        %v4165 = vunpack.c.l.b16 %v3871
        %v4166 = vunpack.c.l.b16 %v3872
        %v4167 = vunpack.c.l.b16 %v3873
        %v4168 = vunpack.c.l.b16 %v3874
        %v4169 = vunpack.c.l.b16 %v3875
        %v4170 = vunpack.c.l.b16 %v3876
        %v4171 = vunpack.c.l.b16 %v3877
        %v4172 = vunpack.c.l.b16 %v3878
        %v4173 = vunpack.c.l.b16 %v3879
        %v4174 = vunpack.c.l.b16 %v3880
        %v4175 = vunpack.c.l.b16 %v3881
        %v4176 = vunpack.c.l.b16 %v3882
        %v4177 = vunpack.c.l.b16 %v3883
        %v4178 = vunpack.c.l.b16 %v3884
        %v4179 = vunpack.c.l.b16 %v3885
        %v4180 = vunpack.c.l.b16 %v3886
        %v4181 = vunpack.c.l.b16 %v3887
        %v4182 = vunpack.c.l.b16 %v3888
        %v4183 = vunpack.c.l.b16 %v3889
        %v4184 = vunpack.c.l.b16 %v3890
        %v4185 = vunpack.c.l.b16 %v3891
        %v4186 = vunpack.c.l.b16 %v3892
        %v4187 = vunpack.c.l.b16 %v3893
        %v4188 = vunpack.c.l.b16 %v3894
        %v4189 = vunpack.c.l.b16 %v3895
        %v4190 = vunpack.c.l.b16 %v3896
        %v4191 = vunpack.c.l.b16 %v3897
        %v4192 = vunpack.c.l.b16 %v3898
        %v4193 = vunpack.c.l.b16 %v3899
        %v4194 = vunpack.c.l.b16 %v3900
        %v4195 = vunpack.c.l.b16 %v3901
        %v4196 = vunpack.c.l.b16 %v3902
        %v4197 = vunpack.c.l.b16 %v3903
        %v4198 = vunpack.c.l.b16 %v3904
        %v4199 = vunpack.c.l.b16 %v3905
        %v4200 = vunpack.c.l.b16 %v3906
        %v4201 = vunpack.c.l.b16 %v3907
        %v4202 = vunpack.c.l.b16 %v3908
        %v4203 = vunpack.c.l.b16 %v3909
        %v4204 = vunpack.c.l.b16 %v3910
        %v4205 = vunpack.c.l.b16 %v3911
        %v4206 = vunpack.c.l.b16 %v3912
        %v4207 = vunpack.c.l.b16 %v3913
        %v4208 = vunpack.c.l.b16 %v3914
        %v4209 = vunpack.c.l.b16 %v3915
        %v4210 = vunpack.c.l.b16 %v3916
        %v4211 = vunpack.c.l.b16 %v3917
        %v4212 = vunpack.c.l.b16 %v3918
        %v4213 = vunpack.c.l.b16 %v3919
        %v4214 = vunpack.c.l.b16 %v3920
        %v4215 = vunpack.c.l.b16 %v3921
        %v4216 = vunpack.c.l.b16 %v3922
        %v4217 = vunpack.c.l.b16 %v3923
        %v4218 = vunpack.c.l.b16 %v3924
        %v4219 = vunpack.c.l.b16 %v3925
        %v4220 = vunpack.c.l.b16 %v3926
        %v4221 = vunpack.c.l.b16 %v3927
        %v4222 = vunpack.c.l.b16 %v3928
        %v4223 = vunpack.c.l.b16 %v3929
        %v4224 = vunpack.c.l.b16 %v3930
        %v4225 = vunpack.c.l.b16 %v3931
        %v4226 = vunpack.c.l.b16 %v3932
        %v4227 = vunpack.c.l.b16 %v3933
        %v4228 = vunpack.c.l.b16 %v3934
        %v4229 = vunpack.c.l.b16 %v3935
        %v4230 = vunpack.c.l.b16 %v3936
        %v4231 = vunpack.c.l.b16 %v3937
        %v4232 = vunpack.c.l.b16 %v3938
        %v4233 = vunpack.c.l.b16 %v3939
        %v4234 = vunpack.c.l.b16 %v3940
        %v4235 = vunpack.c.l.b16 %v3941
        %v4236 = vunpack.c.l.b16 %v3942
        %v4237 = vunpack.c.l.b16 %v3943
        %v4238 = vunpack.c.l.b16 %v3944
        %v4239 = vunpack.c.l.b16 %v3945
        %v4240 = vunpack.c.l.b16 %v3946
        %v4241 = vunpack.c.l.b16 %v3947
        %v4242 = vunpack.c.l.b16 %v3948
        %v4243 = vunpack.c.l.b16 %v3949
        %v4244 = vunpack.c.l.b16 %v3950
        %v4245 = vunpack.c.l.b16 %v3951
        %v4246 = vunpack.c.l.b16 %v3952
        %v4247 = vunpack.c.l.b16 %v3953
        %v4248 = vunpack.c.l.b16 %v3954
        %v4249 = vunpack.c.l.b16 %v3955
        %v4250 = vunpack.c.l.b16 %v3956
        %v4251 = vunpack.c.l.b16 %v3957
        %v4252 = vunpack.c.l.b16 %v3958
        %v4253 = vunpack.c.l.b16 %v3959
        %v4254 = vunpack.c.l.b16 %v3960
        %v4255 = vunpack.c.l.b16 %v3961
        %v4256 = vunpack.c.l.b16 %v3962
        %v4257 = vunpack.c.l.b16 %v3963
        %v4258 = vunpack.c.l.b16 %v3964
        %v4259 = vunpack.c.l.b16 %v3965
        %v4260 = vunpack.c.l.b16 %v3966
        %v4261 = vunpack.c.l.b16 %v3967
        %v4262 = vunpack.c.l.b16 %v3968
        %v4263 = vunpack.c.l.b16 %v3969
        %v4264 = vunpack.c.l.b16 %v3970
        %v4265 = vunpack.c.l.b16 %v3971
        %v4266 = vunpack.c.l.b16 %v3972
        %v4267 = vunpack.c.l.b16 %v3973
        %v4268 = vunpack.c.l.b16 %v3974
        %v4269 = vunpack.c.l.b16 %v3975
        %v4270 = vunpack.c.l.b16 %v3976
        %v4271 = vunpack.c.l.b16 %v3977
        %v4272 = vunpack.c.l.b16 %v3978
        %v4273 = vunpack.c.l.b16 %v3979
        %v4274 = vunpack.c.l.b16 %v3980
        %v4275 = vunpack.c.l.b16 %v3981
        %v4276 = vunpack.c.l.b16 %v3982
        %v4277 = vunpack.c.l.b16 %v3983
        %v4278 = vunpack.c.l.b16 %v3984
        %v4279 = vunpack.c.l.b16 %v3985
        %v4280 = vunpack.c.l.b16 %v3986
        %v4281 = vunpack.c.l.b16 %v3987
        %v4282 = vunpack.c.l.b16 %v3988
        %v4283 = vunpack.c.l.b16 %v3989
        %v4284 = vpack.c.b16 %v4141, %v4140
        %v4285 = vpack.c.b16 %v4143, %v4142
        %v4286 = vpack.c.b16 %v4145, %v4144
        %v4287 = vpack.c.b16 %v4147, %v4146
        %v4288 = vpack.c.b16 %v4149, %v4148
        %v4289 = vpack.c.b16 %v4151, %v4150
        %v4290 = vpack.c.b16 %v4153, %v4152
        %v4291 = vpack.c.b16 %v4155, %v4154
        %v4292 = vpack.c.b16 %v4157, %v4156
        %v4293 = vpack.c.b16 %v4159, %v4158
        %v4294 = vpack.c.b16 %v4161, %v4160
        %v4295 = vpack.c.b16 %v4163, %v4162
        %v4296 = vpack.c.b16 %v4165, %v4164
        %v4297 = vpack.c.b16 %v4167, %v4166
        %v4298 = vpack.c.b16 %v4169, %v4168
        %v4299 = vpack.c.b16 %v4171, %v4170
        %v4300 = vpack.c.b16 %v4173, %v4172
        %v4301 = vpack.c.b16 %v4175, %v4174
        %v4302 = vpack.c.b16 %v4177, %v4176
        %v4303 = vpack.c.b16 %v4179, %v4178
        %v4304 = vpack.c.b16 %v4181, %v4180
        %v4305 = vpack.c.b16 %v4183, %v4182
        %v4306 = vpack.c.b16 %v4185, %v4184
        %v4307 = vpack.c.b16 %v4187, %v4186
        %v4308 = vpack.c.b16 %v4189, %v4188
        %v4309 = vpack.c.b16 %v4191, %v4190
        %v4310 = vpack.c.b16 %v4193, %v4192
        %v4311 = vpack.c.b16 %v4195, %v4194
        %v4312 = vpack.c.b16 %v4197, %v4196
        %v4313 = vpack.c.b16 %v4199, %v4198
        %v4314 = vpack.c.b16 %v4201, %v4200
        %v4315 = vpack.c.b16 %v4203, %v4202
        %v4316 = vpack.c.b16 %v4205, %v4204
        %v4317 = vpack.c.b16 %v4207, %v4206
        %v4318 = vpack.c.b16 %v4209, %v4208
        %v4319 = vpack.c.b16 %v4211, %v4210
        %v4320 = vpack.c.b16 %v4213, %v4212
        %v4321 = vpack.c.b16 %v4215, %v4214
        %v4322 = vpack.c.b16 %v4217, %v4216
        %v4323 = vpack.c.b16 %v4219, %v4218
        %v4324 = vpack.c.b16 %v4221, %v4220
        %v4325 = vpack.c.b16 %v4223, %v4222
        %v4326 = vpack.c.b16 %v4225, %v4224
        %v4327 = vpack.c.b16 %v4227, %v4226
        %v4328 = vpack.c.b16 %v4229, %v4228
        %v4329 = vpack.c.b16 %v4231, %v4230
        %v4330 = vpack.c.b16 %v4233, %v4232
        %v4331 = vpack.c.b16 %v4235, %v4234
        %v4332 = vpack.c.b16 %v4237, %v4236
        %v4333 = vpack.c.b16 %v4239, %v4238
        %v4334 = vpack.c.b16 %v4241, %v4240
        %v4335 = vpack.c.b16 %v4243, %v4242
        %v4336 = vpack.c.b16 %v4245, %v4244
        %v4337 = vpack.c.b16 %v4247, %v4246
        %v4338 = vpack.c.b16 %v4249, %v4248
        %v4339 = vpack.c.b16 %v4251, %v4250
        %v4340 = vpack.c.b16 %v4253, %v4252
        %v4341 = vpack.c.b16 %v4255, %v4254
        %v4342 = vpack.c.b16 %v4257, %v4256
        %v4343 = vpack.c.b16 %v4259, %v4258
        %v4344 = vpack.c.b16 %v4261, %v4260
        %v4345 = vpack.c.b16 %v4263, %v4262
        %v4346 = vpack.c.b16 %v4265, %v4264
        %v4347 = vpack.c.b16 %v4267, %v4266
        %v4348 = vpack.c.b16 %v4269, %v4268
        %v4349 = vpack.c.b16 %v4271, %v4270
        %v4350 = vpack.c.b16 %v4273, %v4272
        %v4351 = vpack.c.b16 %v4275, %v4274
        %v4352 = vpack.c.b16 %v4277, %v4276
        %v4353 = vpack.c.b16 %v4279, %v4278
        %v4354 = vpack.c.b16 %v4281, %v4280
        %v4355 = vpack.c.b16 %v4283, %v4282
        %4428 = vmatprep.subr.bf16.mxu0 0
        %4429 = vmatpush1.bf16.msra.mxu0 %v4291
        %4430 = vmatprep.subr.bf16.mxu0 0
        %4431 = vmatpush1.bf16.msra.mxu0 %v4290
        %4432 = vmatprep.subr.bf16.mxu0 0
        %4433 = vmatpush1.bf16.msra.mxu0 %v4289
        %4434 = vmatprep.subr.bf16.mxu0 0
        %4435 = vmatpush1.bf16.msra.mxu0 %v4288
        %4436 = vmatprep.subr.bf16.mxu0 0
        %4437 = vmatpush1.bf16.msra.mxu0 %v4287
        %4438 = vmatprep.subr.bf16.mxu0 0
        %4439 = vmatpush1.bf16.msra.mxu0 %v4286
        %4440 = vmatprep.subr.bf16.mxu0 0
        %4441 = vmatpush1.bf16.msra.mxu0 %v4285
        %4442 = vmatprep.subr.bf16.mxu0 0
        %4443 = vmatpush1.bf16.msra.mxu0 %v4284
        %4444 = vmatprep.subr.bf16.mxu0 0
        %4445 = vmatpush2.bf16.msra.mxu0 %v4299
        %4446 = vmatprep.subr.bf16.mxu0 0
        %4447 = vmatpush2.bf16.msra.mxu0 %v4298
        %4448 = vmatprep.subr.bf16.mxu0 0
        %4449 = vmatpush2.bf16.msra.mxu0 %v4297
        %4450 = vmatprep.subr.bf16.mxu0 0
        %4451 = vmatpush2.bf16.msra.mxu0 %v4296
        %4452 = vmatprep.subr.bf16.mxu0 0
        %4453 = vmatpush2.bf16.msra.mxu0 %v4295
        %4454 = vmatprep.subr.bf16.mxu0 0
        %4455 = vmatpush2.bf16.msra.mxu0 %v4294
        %4456 = vmatprep.subr.bf16.mxu0 0
        %4457 = vmatpush2.bf16.msra.mxu0 %v4293
        %4458 = vmatprep.subr.bf16.mxu0 0
        %4459 = vmatpush2.bf16.msra.mxu0 %v4292
        %4460 = vmatprep.mubr.bf16.mxu0 %v3793
        %4461 = vmatmul.mubr.bf16.gmra.mxu0 %v3792
        %v4462 = vpop.f32.mrf.mxu0
        %v4463 = vadd.f32 %v3994, %v4462
        %v4464 = vpop.f32.mrf.mxu0
        %v4465 = vpop.f32.mrf.mxu0
        %v4466 = vadd.f32 %v3994, %v4465
        %v4467 = vpop.f32.mrf.mxu0
        %4468 = vmatprep.mubr.bf16.mxu0 %v3802
        %4469 = vmatmul.mubr.bf16.gmra.mxu0 %v3801
        %v4470 = vpop.f32.mrf.mxu0
        %v4471 = vadd.f32 %v3994, %v4470
        %v4472 = vpop.f32.mrf.mxu0
        %v4473 = vpop.f32.mrf.mxu0
        %v4474 = vadd.f32 %v3994, %v4473
        %v4475 = vpop.f32.mrf.mxu0
        %4476 = vmatprep.mubr.bf16.mxu0 %v3811
        %4477 = vmatmul.mubr.bf16.gmra.mxu0 %v3810
        %v4478 = vpop.f32.mrf.mxu0
        %v4479 = vadd.f32 %v3994, %v4478
        %v4480 = vpop.f32.mrf.mxu0
        %v4481 = vpop.f32.mrf.mxu0
        %v4482 = vadd.f32 %v3994, %v4481
        %v4483 = vpop.f32.mrf.mxu0
        %4484 = vmatprep.mubr.bf16.mxu0 %v3820
        %4485 = vmatmul.mubr.bf16.gmra.mxu0 %v3819
        %v4486 = vpop.f32.mrf.mxu0
        %v4487 = vadd.f32 %v3994, %v4486
        %v4488 = vpop.f32.mrf.mxu0
        %v4489 = vpop.f32.mrf.mxu0
        %v4490 = vadd.f32 %v3994, %v4489
        %v4491 = vpop.f32.mrf.mxu0
        %4492 = vmatprep.mubr.bf16.mxu0 %v3829
        %4493 = vmatmul.mubr.bf16.gmra.mxu0 %v3828
        %v4494 = vpop.f32.mrf.mxu0
        %v4495 = vadd.f32 %v3994, %v4494
        %v4496 = vpop.f32.mrf.mxu0
        %v4497 = vpop.f32.mrf.mxu0
        %v4498 = vadd.f32 %v3994, %v4497
        %v4499 = vpop.f32.mrf.mxu0
        %4500 = vmatprep.mubr.bf16.mxu0 %v3838
        %4501 = vmatmul.mubr.bf16.gmra.mxu0 %v3837
        %v4502 = vpop.f32.mrf.mxu0
        %v4503 = vadd.f32 %v3994, %v4502
        %v4504 = vpop.f32.mrf.mxu0
        %v4505 = vpop.f32.mrf.mxu0
        %v4506 = vadd.f32 %v3994, %v4505
        %v4507 = vpop.f32.mrf.mxu0
        %4508 = vdwg.mxu0
        %4509 = vmatprep.subr.bf16.mxu0 0
        %4510 = vmatpush1.bf16.msra.mxu0 %v4307
        %4511 = vmatprep.subr.bf16.mxu0 0
        %4512 = vmatpush1.bf16.msra.mxu0 %v4306
        %4513 = vmatprep.subr.bf16.mxu0 0
        %4514 = vmatpush1.bf16.msra.mxu0 %v4305
        %4515 = vmatprep.subr.bf16.mxu0 0
        %4516 = vmatpush1.bf16.msra.mxu0 %v4304
        %4517 = vmatprep.subr.bf16.mxu0 0
        %4518 = vmatpush1.bf16.msra.mxu0 %v4303
        %4519 = vmatprep.subr.bf16.mxu0 0
        %4520 = vmatpush1.bf16.msra.mxu0 %v4302
        %4521 = vmatprep.subr.bf16.mxu0 0
        %4522 = vmatpush1.bf16.msra.mxu0 %v4301
        %4523 = vmatprep.subr.bf16.mxu0 0
        %4524 = vmatpush1.bf16.msra.mxu0 %v4300
        %4525 = vmatprep.subr.bf16.mxu0 0
        %4526 = vmatpush2.bf16.msra.mxu0 %v4315
        %4527 = vmatprep.subr.bf16.mxu0 0
        %4528 = vmatpush2.bf16.msra.mxu0 %v4314
        %4529 = vmatprep.subr.bf16.mxu0 0
        %4530 = vmatpush2.bf16.msra.mxu0 %v4313
        %4531 = vmatprep.subr.bf16.mxu0 0
        %4532 = vmatpush2.bf16.msra.mxu0 %v4312
        %4533 = vmatprep.subr.bf16.mxu0 0
        %4534 = vmatpush2.bf16.msra.mxu0 %v4311
        %4535 = vmatprep.subr.bf16.mxu0 0
        %4536 = vmatpush2.bf16.msra.mxu0 %v4310
        %4537 = vmatprep.subr.bf16.mxu0 0
        %4538 = vmatpush2.bf16.msra.mxu0 %v4309
        %4539 = vmatprep.subr.bf16.mxu0 0
        %4540 = vmatpush2.bf16.msra.mxu0 %v4308
        %4541 = vmatprep.mubr.bf16.mxu0 %v3795
        %4542 = vmatmul.mubr.bf16.gmra.mxu0 %v3794
        %v4543 = vpop.f32.mrf.mxu0
        %v4544 = vadd.f32 %v4463, %v4543
        %v4545 = vpop.f32.mrf.mxu0
        %v4546 = vpop.f32.mrf.mxu0
        %v4547 = vadd.f32 %v4466, %v4546
        %v4548 = vpop.f32.mrf.mxu0
        %4549 = vmatprep.mubr.bf16.mxu0 %v3804
        %4550 = vmatmul.mubr.bf16.gmra.mxu0 %v3803
        %v4551 = vpop.f32.mrf.mxu0
        %v4552 = vadd.f32 %v4471, %v4551
        %v4553 = vpop.f32.mrf.mxu0
        %v4554 = vpop.f32.mrf.mxu0
        %v4555 = vadd.f32 %v4474, %v4554
        %v4556 = vpop.f32.mrf.mxu0
        %4557 = vmatprep.mubr.bf16.mxu0 %v3813
        %4558 = vmatmul.mubr.bf16.gmra.mxu0 %v3812
        %v4559 = vpop.f32.mrf.mxu0
        %v4560 = vadd.f32 %v4479, %v4559
        %v4561 = vpop.f32.mrf.mxu0
        %v4562 = vpop.f32.mrf.mxu0
        %v4563 = vadd.f32 %v4482, %v4562
        %v4564 = vpop.f32.mrf.mxu0
        %4565 = vmatprep.mubr.bf16.mxu0 %v3822
        %4566 = vmatmul.mubr.bf16.gmra.mxu0 %v3821
        %v4567 = vpop.f32.mrf.mxu0
        %v4568 = vadd.f32 %v4487, %v4567
        %v4569 = vpop.f32.mrf.mxu0
        %v4570 = vpop.f32.mrf.mxu0
        %v4571 = vadd.f32 %v4490, %v4570
        %v4572 = vpop.f32.mrf.mxu0
        %4573 = vmatprep.mubr.bf16.mxu0 %v3831
        %4574 = vmatmul.mubr.bf16.gmra.mxu0 %v3830
        %v4575 = vpop.f32.mrf.mxu0
        %v4576 = vadd.f32 %v4495, %v4575
        %v4577 = vpop.f32.mrf.mxu0
        %v4578 = vpop.f32.mrf.mxu0
        %v4579 = vadd.f32 %v4498, %v4578
        %v4580 = vpop.f32.mrf.mxu0
        %4581 = vmatprep.mubr.bf16.mxu0 %v3840
        %4582 = vmatmul.mubr.bf16.gmra.mxu0 %v3839
        %v4583 = vpop.f32.mrf.mxu0
        %v4584 = vadd.f32 %v4503, %v4583
        %v4585 = vpop.f32.mrf.mxu0
        %v4586 = vpop.f32.mrf.mxu0
        %v4587 = vadd.f32 %v4506, %v4586
        %v4588 = vpop.f32.mrf.mxu0
        %4589 = vdwg.mxu0
        %4590 = vmatprep.subr.bf16.mxu0 0
        %4591 = vmatpush1.bf16.msra.mxu0 %v4323
        %4592 = vmatprep.subr.bf16.mxu0 0
        %4593 = vmatpush1.bf16.msra.mxu0 %v4322
        %4594 = vmatprep.subr.bf16.mxu0 0
        %4595 = vmatpush1.bf16.msra.mxu0 %v4321
        %4596 = vmatprep.subr.bf16.mxu0 0
        %4597 = vmatpush1.bf16.msra.mxu0 %v4320
        %4598 = vmatprep.subr.bf16.mxu0 0
        %4599 = vmatpush1.bf16.msra.mxu0 %v4319
        %4600 = vmatprep.subr.bf16.mxu0 0
        %4601 = vmatpush1.bf16.msra.mxu0 %v4318
        %4602 = vmatprep.subr.bf16.mxu0 0
        %4603 = vmatpush1.bf16.msra.mxu0 %v4317
        %4604 = vmatprep.subr.bf16.mxu0 0
        %4605 = vmatpush1.bf16.msra.mxu0 %v4316
        %4606 = vmatprep.subr.bf16.mxu0 0
        %4607 = vmatpush2.bf16.msra.mxu0 %v4331
        %4608 = vmatprep.subr.bf16.mxu0 0
        %4609 = vmatpush2.bf16.msra.mxu0 %v4330
        %4610 = vmatprep.subr.bf16.mxu0 0
        %4611 = vmatpush2.bf16.msra.mxu0 %v4329
        %4612 = vmatprep.subr.bf16.mxu0 0
        %4613 = vmatpush2.bf16.msra.mxu0 %v4328
        %4614 = vmatprep.subr.bf16.mxu0 0
        %4615 = vmatpush2.bf16.msra.mxu0 %v4327
        %4616 = vmatprep.subr.bf16.mxu0 0
        %4617 = vmatpush2.bf16.msra.mxu0 %v4326
        %4618 = vmatprep.subr.bf16.mxu0 0
        %4619 = vmatpush2.bf16.msra.mxu0 %v4325
        %4620 = vmatprep.subr.bf16.mxu0 0
        %4621 = vmatpush2.bf16.msra.mxu0 %v4324
        %4622 = vmatprep.mubr.bf16.mxu0 %v3797
        %4623 = vmatmul.mubr.bf16.gmra.mxu0 %v3796
        %v4624 = vpop.f32.mrf.mxu0
        %v4625 = vadd.f32 %v4544, %v4624
        %v4626 = vpop.f32.mrf.mxu0
        %v4627 = vpop.f32.mrf.mxu0
        %v4628 = vadd.f32 %v4547, %v4627
        %v4629 = vpop.f32.mrf.mxu0
        %4630 = vmatprep.mubr.bf16.mxu0 %v3806
        %4631 = vmatmul.mubr.bf16.gmra.mxu0 %v3805
        %v4632 = vpop.f32.mrf.mxu0
        %v4633 = vadd.f32 %v4552, %v4632
        %v4634 = vpop.f32.mrf.mxu0
        %v4635 = vpop.f32.mrf.mxu0
        %v4636 = vadd.f32 %v4555, %v4635
        %v4637 = vpop.f32.mrf.mxu0
        %4638 = vmatprep.mubr.bf16.mxu0 %v3815
        %4639 = vmatmul.mubr.bf16.gmra.mxu0 %v3814
        %v4640 = vpop.f32.mrf.mxu0
        %v4641 = vadd.f32 %v4560, %v4640
        %v4642 = vpop.f32.mrf.mxu0
        %v4643 = vpop.f32.mrf.mxu0
        %v4644 = vadd.f32 %v4563, %v4643
        %v4645 = vpop.f32.mrf.mxu0
        %4646 = vmatprep.mubr.bf16.mxu0 %v3824
        %4647 = vmatmul.mubr.bf16.gmra.mxu0 %v3823
        %v4648 = vpop.f32.mrf.mxu0
        %v4649 = vadd.f32 %v4568, %v4648
        %v4650 = vpop.f32.mrf.mxu0
        %v4651 = vpop.f32.mrf.mxu0
        %v4652 = vadd.f32 %v4571, %v4651
        %v4653 = vpop.f32.mrf.mxu0
        %4654 = vmatprep.mubr.bf16.mxu0 %v3833
        %4655 = vmatmul.mubr.bf16.gmra.mxu0 %v3832
        %v4656 = vpop.f32.mrf.mxu0
        %v4657 = vadd.f32 %v4576, %v4656
        %v4658 = vpop.f32.mrf.mxu0
        %v4659 = vpop.f32.mrf.mxu0
        %v4660 = vadd.f32 %v4579, %v4659
        %v4661 = vpop.f32.mrf.mxu0
        %4662 = vmatprep.mubr.bf16.mxu0 %v3842
        %4663 = vmatmul.mubr.bf16.gmra.mxu0 %v3841
        %v4664 = vpop.f32.mrf.mxu0
        %v4665 = vadd.f32 %v4584, %v4664
        %v4666 = vpop.f32.mrf.mxu0
        %v4667 = vpop.f32.mrf.mxu0
        %v4668 = vadd.f32 %v4587, %v4667
        %v4669 = vpop.f32.mrf.mxu0
        %4670 = vdwg.mxu0
        %4671 = vmatprep.subr.bf16.mxu0 0
        %4672 = vmatpush1.bf16.msra.mxu0 %v4339
        %4673 = vmatprep.subr.bf16.mxu0 0
        %4674 = vmatpush1.bf16.msra.mxu0 %v4338
        %4675 = vmatprep.subr.bf16.mxu0 0
        %4676 = vmatpush1.bf16.msra.mxu0 %v4337
        %4677 = vmatprep.subr.bf16.mxu0 0
        %4678 = vmatpush1.bf16.msra.mxu0 %v4336
        %4679 = vmatprep.subr.bf16.mxu0 0
        %4680 = vmatpush1.bf16.msra.mxu0 %v4335
        %4681 = vmatprep.subr.bf16.mxu0 0
        %4682 = vmatpush1.bf16.msra.mxu0 %v4334
        %4683 = vmatprep.subr.bf16.mxu0 0
        %4684 = vmatpush1.bf16.msra.mxu0 %v4333
        %4685 = vmatprep.subr.bf16.mxu0 0
        %4686 = vmatpush1.bf16.msra.mxu0 %v4332
        %4687 = vmatprep.subr.bf16.mxu0 0
        %4688 = vmatpush2.bf16.msra.mxu0 %v4347
        %4689 = vmatprep.subr.bf16.mxu0 0
        %4690 = vmatpush2.bf16.msra.mxu0 %v4346
        %4691 = vmatprep.subr.bf16.mxu0 0
        %4692 = vmatpush2.bf16.msra.mxu0 %v4345
        %4693 = vmatprep.subr.bf16.mxu0 0
        %4694 = vmatpush2.bf16.msra.mxu0 %v4344
        %4695 = vmatprep.subr.bf16.mxu0 0
        %4696 = vmatpush2.bf16.msra.mxu0 %v4343
        %4697 = vmatprep.subr.bf16.mxu0 0
        %4698 = vmatpush2.bf16.msra.mxu0 %v4342
        %4699 = vmatprep.subr.bf16.mxu0 0
        %4700 = vmatpush2.bf16.msra.mxu0 %v4341
        %4701 = vmatprep.subr.bf16.mxu0 0
        %4702 = vmatpush2.bf16.msra.mxu0 %v4340
        %4703 = vmatprep.mubr.bf16.mxu0 %v3799
        %4704 = vmatmul.mubr.bf16.gmra.mxu0 %v3798
        %v4705 = vpop.f32.mrf.mxu0
        %v4706 = vadd.f32 %v4625, %v4705
        %v4707 = vpop.f32.mrf.mxu0
        %v4708 = vpop.f32.mrf.mxu0
        %v4709 = vadd.f32 %v4628, %v4708
        %v4710 = vpop.f32.mrf.mxu0
        %4711 = vmatprep.mubr.bf16.mxu0 %v3808
        %4712 = vmatmul.mubr.bf16.gmra.mxu0 %v3807
        %v4713 = vpop.f32.mrf.mxu0
        %v4714 = vadd.f32 %v4633, %v4713
        %v4715 = vpop.f32.mrf.mxu0
        %v4716 = vpop.f32.mrf.mxu0
        %v4717 = vadd.f32 %v4636, %v4716
        %v4718 = vpop.f32.mrf.mxu0
        %4719 = vmatprep.mubr.bf16.mxu0 %v3817
        %4720 = vmatmul.mubr.bf16.gmra.mxu0 %v3816
        %v4721 = vpop.f32.mrf.mxu0
        %v4722 = vadd.f32 %v4641, %v4721
        %v4723 = vpop.f32.mrf.mxu0
        %v4724 = vpop.f32.mrf.mxu0
        %v4725 = vadd.f32 %v4644, %v4724
        %v4726 = vpop.f32.mrf.mxu0
        %4727 = vmatprep.mubr.bf16.mxu0 %v3826
        %4728 = vmatmul.mubr.bf16.gmra.mxu0 %v3825
        %v4729 = vpop.f32.mrf.mxu0
        %v4730 = vadd.f32 %v4649, %v4729
        %v4731 = vpop.f32.mrf.mxu0
        %v4732 = vpop.f32.mrf.mxu0
        %v4733 = vadd.f32 %v4652, %v4732
        %v4734 = vpop.f32.mrf.mxu0
        %4735 = vmatprep.mubr.bf16.mxu0 %v3835
        %4736 = vmatmul.mubr.bf16.gmra.mxu0 %v3834
        %v4737 = vpop.f32.mrf.mxu0
        %v4738 = vadd.f32 %v4657, %v4737
        %v4739 = vpop.f32.mrf.mxu0
        %v4740 = vpop.f32.mrf.mxu0
        %v4741 = vadd.f32 %v4660, %v4740
        %v4742 = vpop.f32.mrf.mxu0
        %4743 = vmatprep.mubr.bf16.mxu0 %v3844
        %4744 = vmatmul.mubr.bf16.gmra.mxu0 %v3843
        %v4745 = vpop.f32.mrf.mxu0
        %v4746 = vadd.f32 %v4665, %v4745
        %v4747 = vpop.f32.mrf.mxu0
        %v4748 = vpop.f32.mrf.mxu0
        %v4749 = vadd.f32 %v4668, %v4748
        %v4750 = vpop.f32.mrf.mxu0
        %4751 = vdwg.mxu0
        %4752 = vmatprep.subr.bf16.mxu0 0
        %4753 = vmatpush1.bf16.msra.mxu0 %v4355
        %4754 = vmatprep.subr.bf16.mxu0 0
        %4755 = vmatpush1.bf16.msra.mxu0 %v4354
        %4756 = vmatprep.subr.bf16.mxu0 0
        %4757 = vmatpush1.bf16.msra.mxu0 %v4353
        %4758 = vmatprep.subr.bf16.mxu0 0
        %4759 = vmatpush1.bf16.msra.mxu0 %v4352
        %4760 = vmatprep.subr.bf16.mxu0 0
        %4761 = vmatpush1.bf16.msra.mxu0 %v4351
        %4762 = vmatprep.subr.bf16.mxu0 0
        %4763 = vmatpush1.bf16.msra.mxu0 %v4350
        %4764 = vmatprep.subr.bf16.mxu0 0
        %4765 = vmatpush1.bf16.msra.mxu0 %v4349
        %4766 = vmatprep.subr.bf16.mxu0 0
        %4767 = vmatpush1.bf16.msra.mxu0 %v4348
        %4768 = vmatprep.subr.bf16.mxu0 0
        %4769 = vmatpush2.bf16.msra.mxu0 0
        %4770 = vmatprep.subr.bf16.mxu0 0
        %4771 = vmatpush2.bf16.msra.mxu0 0
        %4772 = vmatprep.subr.bf16.mxu0 0
        %4773 = vmatpush2.bf16.msra.mxu0 0
        %4774 = vmatprep.subr.bf16.mxu0 0
        %4775 = vmatpush2.bf16.msra.mxu0 0
        %4776 = vmatprep.subr.bf16.mxu0 0
        %4777 = vmatpush2.bf16.msra.mxu0 0
        %4778 = vmatprep.subr.bf16.mxu0 0
        %4779 = vmatpush2.bf16.msra.mxu0 0
        %4780 = vmatprep.subr.bf16.mxu0 0
        %4781 = vmatpush2.bf16.msra.mxu0 0
        %4782 = vmatprep.subr.bf16.mxu0 0
        %4783 = vmatpush2.bf16.msra.mxu0 0
        %4784 = vmatprep.mubr.bf16.mxu0 0
        %4785 = vmatmul.mubr.bf16.gmra.mxu0 %v3800
        %v4786 = vpop.f32.mrf.mxu0
        %v4787 = vadd.f32 %v4706, %v4786
        %v4788 = vpop.f32.mrf.mxu0
        %v4789 = vpop.f32.mrf.mxu0
        %v4790 = vadd.f32 %v4709, %v4789
        %v4791 = vpop.f32.mrf.mxu0
        %4792 = vmatprep.mubr.bf16.mxu0 0
        %4793 = vmatmul.mubr.bf16.gmra.mxu0 %v3809
        %v4794 = vpop.f32.mrf.mxu0
        %v4795 = vadd.f32 %v4714, %v4794
        %v4796 = vpop.f32.mrf.mxu0
        %v4797 = vpop.f32.mrf.mxu0
        %v4798 = vadd.f32 %v4717, %v4797
        %v4799 = vpop.f32.mrf.mxu0
        %4800 = vmatprep.mubr.bf16.mxu0 0
        %4801 = vmatmul.mubr.bf16.gmra.mxu0 %v3818
        %v4802 = vpop.f32.mrf.mxu0
        %v4803 = vadd.f32 %v4722, %v4802
        %v4804 = vpop.f32.mrf.mxu0
        %v4805 = vpop.f32.mrf.mxu0
        %v4806 = vadd.f32 %v4725, %v4805
        %v4807 = vpop.f32.mrf.mxu0
        %4808 = vmatprep.mubr.bf16.mxu0 0
        %4809 = vmatmul.mubr.bf16.gmra.mxu0 %v3827
        %v4810 = vpop.f32.mrf.mxu0
        %v4811 = vadd.f32 %v4730, %v4810
        %v4812 = vpop.f32.mrf.mxu0
        %v4813 = vpop.f32.mrf.mxu0
        %v4814 = vadd.f32 %v4733, %v4813
        %v4815 = vpop.f32.mrf.mxu0
        %4816 = vmatprep.mubr.bf16.mxu0 0
        %4817 = vmatmul.mubr.bf16.gmra.mxu0 %v3836
        %v4818 = vpop.f32.mrf.mxu0
        %v4819 = vadd.f32 %v4738, %v4818
        %v4820 = vpop.f32.mrf.mxu0
        %v4821 = vpop.f32.mrf.mxu0
        %v4822 = vadd.f32 %v4741, %v4821
        %v4823 = vpop.f32.mrf.mxu0
        %4824 = vmatprep.mubr.bf16.mxu0 0
        %4825 = vmatmul.mubr.bf16.gmra.mxu0 %v3845
        %v4826 = vpop.f32.mrf.mxu0
        %v4827 = vadd.f32 %v4746, %v4826
        %v4828 = vpop.f32.mrf.mxu0
        %v4829 = vpop.f32.mrf.mxu0
        %v4830 = vadd.f32 %v4749, %v4829
        %v4831 = vpop.f32.mrf.mxu0
        %4832 = vdwg.mxu0
        %v4833 = vmax.f32 %v4787, 0.0
        %v4834 = vmax.f32 %v4790, 0.0
        %v4835 = vmax.f32 %v4795, 0.0
        %v4836 = vmax.f32 %v4798, 0.0
        %v4837 = vmax.f32 %v4803, 0.0
        %v4838 = vmax.f32 %v4806, 0.0
        %v4839 = vmax.f32 %v4811, 0.0
        %v4840 = vmax.f32 %v4814, 0.0
        %v4841 = vmax.f32 %v4819, 0.0
        %v4842 = vmax.f32 %v4822, 0.0
        %v4843 = vmax.f32 %v4827, 0.0
        %v4844 = vmax.f32 %v4830, 0.0
        %v4845 = vmax.f32 %v4833, %v4836
        %v4846 = vmax.f32 %v4834, %v4837
        %v4847 = vmax.f32 %v4835, %v4838
        %v4848 = vmax.f32 %v4839, %v4842
        %v4849 = vmax.f32 %v4840, %v4843
        %v4850 = vmax.f32 %v4841, %v4844
        %vm4851 = vcmask 195584
        %v4853 = vsel %vm4851, %v1150, 0
        %v4856 = vsel %vm4851, %v1151, 0
        %4858 = vmatprep.subr.mxu0 0.0
        %4859 = vmatpush1.msra.mxu0 0.0
        %4860 = vmatprep.subr.mxu0 0.0
        %4861 = vmatpush1.msra.mxu0 0.0
        %4862 = vmatprep.subr.mxu0 0.0
        %4863 = vmatpush1.msra.mxu0 0.0
        %4864 = vmatprep.subr.mxu0 0.0
        %4865 = vmatpush1.msra.mxu0 0.0
        %4866 = vmatprep.subr.mxu0 0.0
        %4867 = vmatpush1.msra.mxu0 0.0
        %4868 = vmatprep.subr.mxu0 0.0
        %4869 = vmatpush1.msra.mxu0 0.0
        %4870 = vmatprep.subr.mxu0 0.0
        %4871 = vmatpush1.msra.mxu0 0.0
        %4872 = vmatprep.subr.mxu0 0.0
        %4873 = vmatpush1.msra.mxu0 0.0
        %4874 = vmatprep.subr.mxu0 0.0
        %4875 = vmatpush1.msra.mxu0 0.0
        %4876 = vmatprep.subr.mxu0 0.0
        %4877 = vmatpush1.msra.mxu0 0.0
        %4878 = vmatprep.subr.mxu0 0.0
        %4879 = vmatpush1.msra.mxu0 0.0
        %4880 = vmatprep.subr.mxu0 0.0
        %4881 = vmatpush1.msra.mxu0 0.0
        %4882 = vmatprep.subr.mxu0 0.0
        %4883 = vmatpush1.msra.mxu0 0.0
        %4884 = vmatprep.subr.mxu0 0.0
        %4885 = vmatpush1.msra.mxu0 %v4847
        %4886 = vmatprep.subr.mxu0 0.0
        %4887 = vmatpush1.msra.mxu0 %v4846
        %4888 = vmatprep.subr.mxu0 0.0
        %4889 = vmatpush1.msra.mxu0 %v4845
        %4890 = vmatprep.subr.mxu0 0.0
        %4891 = vmatpush2.msra.mxu0 0.0
        %4892 = vmatprep.subr.mxu0 0.0
        %4893 = vmatpush2.msra.mxu0 0.0
        %4894 = vmatprep.subr.mxu0 0.0
        %4895 = vmatpush2.msra.mxu0 0.0
        %4896 = vmatprep.subr.mxu0 0.0
        %4897 = vmatpush2.msra.mxu0 0.0
        %4898 = vmatprep.subr.mxu0 0.0
        %4899 = vmatpush2.msra.mxu0 0.0
        %4900 = vmatprep.subr.mxu0 0.0
        %4901 = vmatpush2.msra.mxu0 0.0
        %4902 = vmatprep.subr.mxu0 0.0
        %4903 = vmatpush2.msra.mxu0 0.0
        %4904 = vmatprep.subr.mxu0 0.0
        %4905 = vmatpush2.msra.mxu0 0.0
        %4906 = vmatprep.subr.mxu0 0.0
        %4907 = vmatpush2.msra.mxu0 0.0
        %4908 = vmatprep.subr.mxu0 0.0
        %4909 = vmatpush2.msra.mxu0 0.0
        %4910 = vmatprep.subr.mxu0 0.0
        %4911 = vmatpush2.msra.mxu0 0.0
        %4912 = vmatprep.subr.mxu0 0.0
        %4913 = vmatpush2.msra.mxu0 0.0
        %4914 = vmatprep.subr.mxu0 0.0
        %4915 = vmatpush2.msra.mxu0 0.0
        %4916 = vmatprep.subr.mxu0 0.0
        %4917 = vmatpush2.msra.mxu0 0.0
        %4918 = vmatprep.subr.mxu0 0.0
        %4919 = vmatpush2.msra.mxu0 0.0
        %4920 = vmatprep.subr.mxu0 0.0
        %4921 = vmatpush2.msra.mxu0 0.0
        %4922 = vmatprep.mubr.f32.mxu0 0.0
        %4923 = vmatmul.mubr.f32.gmra.mxu0 %v4853
        %v4924 = vpop.f32.mrf.mxu0
        %v4925 = vadd.f32 0.0, %v4924
        %v4926 = vpop.f32.mrf.mxu0
        %4927 = vmatprep.mubr.f32.mxu0 0.0
        %4928 = vmatmul.mubr.f32.gmra.mxu0 %v4856
        %v4929 = vpop.f32.mrf.mxu0
        %v4930 = vadd.f32 0.0, %v4929
        %v4931 = vpop.f32.mrf.mxu0
        %4932 = vdwg.mxu0
        %v4934 = vsel %vm4851, %v1166, 0
        %v4937 = vsel %vm4851, %v1167, 0
        %4939 = vmatprep.subr.mxu0 0.0
        %4940 = vmatpush1.msra.mxu0 0.0
        %4941 = vmatprep.subr.mxu0 0.0
        %4942 = vmatpush1.msra.mxu0 0.0
        %4943 = vmatprep.subr.mxu0 0.0
        %4944 = vmatpush1.msra.mxu0 0.0
        %4945 = vmatprep.subr.mxu0 0.0
        %4946 = vmatpush1.msra.mxu0 0.0
        %4947 = vmatprep.subr.mxu0 0.0
        %4948 = vmatpush1.msra.mxu0 0.0
        %4949 = vmatprep.subr.mxu0 0.0
        %4950 = vmatpush1.msra.mxu0 0.0
        %4951 = vmatprep.subr.mxu0 0.0
        %4952 = vmatpush1.msra.mxu0 0.0
        %4953 = vmatprep.subr.mxu0 0.0
        %4954 = vmatpush1.msra.mxu0 0.0
        %4955 = vmatprep.subr.mxu0 0.0
        %4956 = vmatpush1.msra.mxu0 0.0
        %4957 = vmatprep.subr.mxu0 0.0
        %4958 = vmatpush1.msra.mxu0 0.0
        %4959 = vmatprep.subr.mxu0 0.0
        %4960 = vmatpush1.msra.mxu0 0.0
        %4961 = vmatprep.subr.mxu0 0.0
        %4962 = vmatpush1.msra.mxu0 0.0
        %4963 = vmatprep.subr.mxu0 0.0
        %4964 = vmatpush1.msra.mxu0 0.0
        %4965 = vmatprep.subr.mxu0 0.0
        %4966 = vmatpush1.msra.mxu0 %v4847
        %4967 = vmatprep.subr.mxu0 0.0
        %4968 = vmatpush1.msra.mxu0 %v4846
        %4969 = vmatprep.subr.mxu0 0.0
        %4970 = vmatpush1.msra.mxu0 %v4845
        %4971 = vmatprep.subr.mxu0 0.0
        %4972 = vmatpush2.msra.mxu0 0.0
        %4973 = vmatprep.subr.mxu0 0.0
        %4974 = vmatpush2.msra.mxu0 0.0
        %4975 = vmatprep.subr.mxu0 0.0
        %4976 = vmatpush2.msra.mxu0 0.0
        %4977 = vmatprep.subr.mxu0 0.0
        %4978 = vmatpush2.msra.mxu0 0.0
        %4979 = vmatprep.subr.mxu0 0.0
        %4980 = vmatpush2.msra.mxu0 0.0
        %4981 = vmatprep.subr.mxu0 0.0
        %4982 = vmatpush2.msra.mxu0 0.0
        %4983 = vmatprep.subr.mxu0 0.0
        %4984 = vmatpush2.msra.mxu0 0.0
        %4985 = vmatprep.subr.mxu0 0.0
        %4986 = vmatpush2.msra.mxu0 0.0
        %4987 = vmatprep.subr.mxu0 0.0
        %4988 = vmatpush2.msra.mxu0 0.0
        %4989 = vmatprep.subr.mxu0 0.0
        %4990 = vmatpush2.msra.mxu0 0.0
        %4991 = vmatprep.subr.mxu0 0.0
        %4992 = vmatpush2.msra.mxu0 0.0
        %4993 = vmatprep.subr.mxu0 0.0
        %4994 = vmatpush2.msra.mxu0 0.0
        %4995 = vmatprep.subr.mxu0 0.0
        %4996 = vmatpush2.msra.mxu0 0.0
        %4997 = vmatprep.subr.mxu0 0.0
        %4998 = vmatpush2.msra.mxu0 0.0
        %4999 = vmatprep.subr.mxu0 0.0
        %5000 = vmatpush2.msra.mxu0 0.0
        %5001 = vmatprep.subr.mxu0 0.0
        %5002 = vmatpush2.msra.mxu0 0.0
        %5003 = vmatprep.mubr.f32.mxu0 0.0
        %5004 = vmatmul.mubr.f32.gmra.mxu0 %v4934
        %v5005 = vpop.f32.mrf.mxu0
        %v5006 = vadd.f32 0.0, %v5005
        %v5007 = vpop.f32.mrf.mxu0
        %5008 = vmatprep.mubr.f32.mxu0 0.0
        %5009 = vmatmul.mubr.f32.gmra.mxu0 %v4937
        %v5010 = vpop.f32.mrf.mxu0
        %v5011 = vadd.f32 0.0, %v5010
        %v5012 = vpop.f32.mrf.mxu0
        %5013 = vdwg.mxu0
        %v5014 = vmax.f32 %v4925, %v5006
        %v5015 = vmax.f32 %v4930, %v5011
        %s5016 = smul.u32 %s2780, 2
        %s5017 = smul.u32 %s5016, 16
        %s5018 = scalar_lea.vmem [#allocation4], %s5017
        %5019 = vst.msk [vmem:[%s5018] sm:$0xff] %vm2917, %v5014
        %vm5020 = vcmask 519168
        %5021 = vst.msk [vmem:[%s5018 + $0x8] sm:$0xf] %vm5020, %v5015
        %5022 = vmatprep.subr.mxu0 0.0
        %5023 = vmatpush1.msra.mxu0 0.0
        %5024 = vmatprep.subr.mxu0 0.0
        %5025 = vmatpush1.msra.mxu0 0.0
        %5026 = vmatprep.subr.mxu0 0.0
        %5027 = vmatpush1.msra.mxu0 0.0
        %5028 = vmatprep.subr.mxu0 0.0
        %5029 = vmatpush1.msra.mxu0 0.0
        %5030 = vmatprep.subr.mxu0 0.0
        %5031 = vmatpush1.msra.mxu0 0.0
        %5032 = vmatprep.subr.mxu0 0.0
        %5033 = vmatpush1.msra.mxu0 0.0
        %5034 = vmatprep.subr.mxu0 0.0
        %5035 = vmatpush1.msra.mxu0 0.0
        %5036 = vmatprep.subr.mxu0 0.0
        %5037 = vmatpush1.msra.mxu0 0.0
        %5038 = vmatprep.subr.mxu0 0.0
        %5039 = vmatpush1.msra.mxu0 0.0
        %5040 = vmatprep.subr.mxu0 0.0
        %5041 = vmatpush1.msra.mxu0 0.0
        %5042 = vmatprep.subr.mxu0 0.0
        %5043 = vmatpush1.msra.mxu0 0.0
        %5044 = vmatprep.subr.mxu0 0.0
        %5045 = vmatpush1.msra.mxu0 0.0
        %5046 = vmatprep.subr.mxu0 0.0
        %5047 = vmatpush1.msra.mxu0 0.0
        %5048 = vmatprep.subr.mxu0 0.0
        %5049 = vmatpush1.msra.mxu0 %v4850
        %5050 = vmatprep.subr.mxu0 0.0
        %5051 = vmatpush1.msra.mxu0 %v4849
        %5052 = vmatprep.subr.mxu0 0.0
        %5053 = vmatpush1.msra.mxu0 %v4848
        %5054 = vmatprep.subr.mxu0 0.0
        %5055 = vmatpush2.msra.mxu0 0.0
        %5056 = vmatprep.subr.mxu0 0.0
        %5057 = vmatpush2.msra.mxu0 0.0
        %5058 = vmatprep.subr.mxu0 0.0
        %5059 = vmatpush2.msra.mxu0 0.0
        %5060 = vmatprep.subr.mxu0 0.0
        %5061 = vmatpush2.msra.mxu0 0.0
        %5062 = vmatprep.subr.mxu0 0.0
        %5063 = vmatpush2.msra.mxu0 0.0
        %5064 = vmatprep.subr.mxu0 0.0
        %5065 = vmatpush2.msra.mxu0 0.0
        %5066 = vmatprep.subr.mxu0 0.0
        %5067 = vmatpush2.msra.mxu0 0.0
        %5068 = vmatprep.subr.mxu0 0.0
        %5069 = vmatpush2.msra.mxu0 0.0
        %5070 = vmatprep.subr.mxu0 0.0
        %5071 = vmatpush2.msra.mxu0 0.0
        %5072 = vmatprep.subr.mxu0 0.0
        %5073 = vmatpush2.msra.mxu0 0.0
        %5074 = vmatprep.subr.mxu0 0.0
        %5075 = vmatpush2.msra.mxu0 0.0
        %5076 = vmatprep.subr.mxu0 0.0
        %5077 = vmatpush2.msra.mxu0 0.0
        %5078 = vmatprep.subr.mxu0 0.0
        %5079 = vmatpush2.msra.mxu0 0.0
        %5080 = vmatprep.subr.mxu0 0.0
        %5081 = vmatpush2.msra.mxu0 0.0
        %5082 = vmatprep.subr.mxu0 0.0
        %5083 = vmatpush2.msra.mxu0 0.0
        %5084 = vmatprep.subr.mxu0 0.0
        %5085 = vmatpush2.msra.mxu0 0.0
        %5086 = vmatprep.mubr.f32.mxu0 0.0
        %5087 = vmatmul.mubr.f32.gmra.mxu0 %v4853
        %v5088 = vpop.f32.mrf.mxu0
        %v5089 = vadd.f32 0.0, %v5088
        %v5090 = vpop.f32.mrf.mxu0
        %5091 = vmatprep.mubr.f32.mxu0 0.0
        %5092 = vmatmul.mubr.f32.gmra.mxu0 %v4856
        %v5093 = vpop.f32.mrf.mxu0
        %v5094 = vadd.f32 0.0, %v5093
        %v5095 = vpop.f32.mrf.mxu0
        %5096 = vdwg.mxu0
        %5097 = vmatprep.subr.mxu0 0.0
        %5098 = vmatpush1.msra.mxu0 0.0
        %5099 = vmatprep.subr.mxu0 0.0
        %5100 = vmatpush1.msra.mxu0 0.0
        %5101 = vmatprep.subr.mxu0 0.0
        %5102 = vmatpush1.msra.mxu0 0.0
        %5103 = vmatprep.subr.mxu0 0.0
        %5104 = vmatpush1.msra.mxu0 0.0
        %5105 = vmatprep.subr.mxu0 0.0
        %5106 = vmatpush1.msra.mxu0 0.0
        %5107 = vmatprep.subr.mxu0 0.0
        %5108 = vmatpush1.msra.mxu0 0.0
        %5109 = vmatprep.subr.mxu0 0.0
        %5110 = vmatpush1.msra.mxu0 0.0
        %5111 = vmatprep.subr.mxu0 0.0
        %5112 = vmatpush1.msra.mxu0 0.0
        %5113 = vmatprep.subr.mxu0 0.0
        %5114 = vmatpush1.msra.mxu0 0.0
        %5115 = vmatprep.subr.mxu0 0.0
        %5116 = vmatpush1.msra.mxu0 0.0
        %5117 = vmatprep.subr.mxu0 0.0
        %5118 = vmatpush1.msra.mxu0 0.0
        %5119 = vmatprep.subr.mxu0 0.0
        %5120 = vmatpush1.msra.mxu0 0.0
        %5121 = vmatprep.subr.mxu0 0.0
        %5122 = vmatpush1.msra.mxu0 0.0
        %5123 = vmatprep.subr.mxu0 0.0
        %5124 = vmatpush1.msra.mxu0 %v4850
        %5125 = vmatprep.subr.mxu0 0.0
        %5126 = vmatpush1.msra.mxu0 %v4849
        %5127 = vmatprep.subr.mxu0 0.0
        %5128 = vmatpush1.msra.mxu0 %v4848
        %5129 = vmatprep.subr.mxu0 0.0
        %5130 = vmatpush2.msra.mxu0 0.0
        %5131 = vmatprep.subr.mxu0 0.0
        %5132 = vmatpush2.msra.mxu0 0.0
        %5133 = vmatprep.subr.mxu0 0.0
        %5134 = vmatpush2.msra.mxu0 0.0
        %5135 = vmatprep.subr.mxu0 0.0
        %5136 = vmatpush2.msra.mxu0 0.0
        %5137 = vmatprep.subr.mxu0 0.0
        %5138 = vmatpush2.msra.mxu0 0.0
        %5139 = vmatprep.subr.mxu0 0.0
        %5140 = vmatpush2.msra.mxu0 0.0
        %5141 = vmatprep.subr.mxu0 0.0
        %5142 = vmatpush2.msra.mxu0 0.0
        %5143 = vmatprep.subr.mxu0 0.0
        %5144 = vmatpush2.msra.mxu0 0.0
        %5145 = vmatprep.subr.mxu0 0.0
        %5146 = vmatpush2.msra.mxu0 0.0
        %5147 = vmatprep.subr.mxu0 0.0
        %5148 = vmatpush2.msra.mxu0 0.0
        %5149 = vmatprep.subr.mxu0 0.0
        %5150 = vmatpush2.msra.mxu0 0.0
        %5151 = vmatprep.subr.mxu0 0.0
        %5152 = vmatpush2.msra.mxu0 0.0
        %5153 = vmatprep.subr.mxu0 0.0
        %5154 = vmatpush2.msra.mxu0 0.0
        %5155 = vmatprep.subr.mxu0 0.0
        %5156 = vmatpush2.msra.mxu0 0.0
        %5157 = vmatprep.subr.mxu0 0.0
        %5158 = vmatpush2.msra.mxu0 0.0
        %5159 = vmatprep.subr.mxu0 0.0
        %5160 = vmatpush2.msra.mxu0 0.0
        %5161 = vmatprep.mubr.f32.mxu0 0.0
        %5162 = vmatmul.mubr.f32.gmra.mxu0 %v4934
        %v5163 = vpop.f32.mrf.mxu0
        %v5164 = vadd.f32 0.0, %v5163
        %v5165 = vpop.f32.mrf.mxu0
        %5166 = vmatprep.mubr.f32.mxu0 0.0
        %5167 = vmatmul.mubr.f32.gmra.mxu0 %v4937
        %v5168 = vpop.f32.mrf.mxu0
        %v5169 = vadd.f32 0.0, %v5168
        %v5170 = vpop.f32.mrf.mxu0
        %5171 = vdwg.mxu0
        %v5172 = vmax.f32 %v5089, %v5164
        %v5173 = vmax.f32 %v5094, %v5169
        %s5174 = sadd.s32 %s5016, 1
        %s5175 = smul.u32 %s5174, 16
        %s5176 = scalar_lea.vmem [#allocation4], %s5175
        %5177 = vst.msk [vmem:[%s5176] sm:$0xff] %vm2917, %v5172
        %5178 = vst.msk [vmem:[%s5176 + $0x8] sm:$0xf] %vm5020, %v5173
      $region83: #{a_convnet_forward.1} parent=63 // loop_footer
        %s2784 = sadd.s32 1, %s2780
      $region84: #{a_convnet_forward.1} parent=63 // loop_footer_branch
        %2779 = sbr.rel target = $region80
      $region85: #{a_convnet_forward.1} parent=63 // loop_exit
        _
      %v5179 = vld [vmem:[%s8] sm:$0x1]
      %v5180 = vld [vmem:[#allocation4] sm:$0xff]
      %v5181 = vld [vmem:[#allocation4 + $0x8] sm:$0xf]
      %s5182 = scalar_lea.vmem [#allocation4], 16
      %v5183 = vld [vmem:[%s5182] sm:$0xff]
      %v5184 = vld [vmem:[%s5182 + $0x8] sm:$0xf]
      %s5185 = scalar_lea.vmem [#allocation4], 32
      %v5186 = vld [vmem:[%s5185] sm:$0xff]
      %v5187 = vld [vmem:[%s5185 + $0x8] sm:$0xf]
      %s5188 = scalar_lea.vmem [#allocation4], 48
      %v5189 = vld [vmem:[%s5188] sm:$0xff]
      %v5190 = vld [vmem:[%s5188 + $0x8] sm:$0xf]
      %s5191 = scalar_lea.vmem [#allocation4], 64
      %v5192 = vld [vmem:[%s5191] sm:$0xff]
      %v5193 = vld [vmem:[%s5191 + $0x8] sm:$0xf]
      %s5194 = scalar_lea.vmem [#allocation4], 80
      %v5195 = vld [vmem:[%s5194] sm:$0xff]
      %v5196 = vld [vmem:[%s5194 + $0x8] sm:$0xf]
      %s5197 = scalar_lea.vmem [#allocation4], 96
      %v5198 = vld [vmem:[%s5197] sm:$0xff]
      %v5199 = vld [vmem:[%s5197 + $0x8] sm:$0xf]
      %s5200 = scalar_lea.vmem [#allocation4], 112
      %v5201 = vld [vmem:[%s5200] sm:$0xff]
      %v5202 = vld [vmem:[%s5200 + $0x8] sm:$0xf]
      %s5203 = scalar_lea.vmem [#allocation4], 128
      %v5204 = vld [vmem:[%s5203] sm:$0xff]
      %v5205 = vld [vmem:[%s5203 + $0x8] sm:$0xf]
      %s5206 = scalar_lea.vmem [#allocation4], 144
      %v5207 = vld [vmem:[%s5206] sm:$0xff]
      %v5208 = vld [vmem:[%s5206 + $0x8] sm:$0xf]
      %s5209 = scalar_lea.vmem [#allocation4], 160
      %v5210 = vld [vmem:[%s5209] sm:$0xff]
      %v5211 = vld [vmem:[%s5209 + $0x8] sm:$0xf]
      %s5212 = scalar_lea.vmem [#allocation4], 176
      %v5213 = vld [vmem:[%s5212] sm:$0xff]
      %v5214 = vld [vmem:[%s5212 + $0x8] sm:$0xf]
      %5217 = vrot.lane.b32.xlu0 %v5183, 64
      %v5218 = vpop.permute.xlu0 %5217
      %5219 = vrot.lane.b32.xlu0 %v5184, 64
      %v5220 = vpop.permute.xlu0 %5219
      %5225 = vrot.lane.b32.xlu0 %v5189, 64
      %v5226 = vpop.permute.xlu0 %5225
      %5227 = vrot.lane.b32.xlu0 %v5190, 64
      %v5228 = vpop.permute.xlu0 %5227
      %vm5231 = vcmask 523264
      %v5232 = vsel %vm5231, %v5180, %v5218
      %v5233 = vsel %vm5231, %v5181, %v5220
      %v5234 = vsel %vm5231, %v5186, %v5226
      %v5235 = vsel %vm5231, %v5187, %v5228
      %vm5242 = vcmask 1046528
      %v5243 = vrot.slane %v5232, 1
      %v5244 = vrot.slane %v5233, 1
      %v5245 = vsel %vm5242, %v5243, %v5244
      %v5246 = vrot.slane %v5234, 1
      %v5247 = vrot.slane %v5235, 1
      %v5248 = vsel %vm5242, %v5246, %v5247
      %v5249 = vrot.slane %v5192, 1
      %v5250 = vrot.slane %v5193, 1
      %v5251 = vsel %vm5242, %v5249, %v5250
      %5252 = vrot.lane.b32.xlu0 %v5245, 64
      %v5253 = vpop.permute.xlu0 %5252
      %5254 = vrot.lane.b32.xlu0 %v5248, 64
      %v5255 = vpop.permute.xlu0 %5254
      %5256 = vrot.lane.b32.xlu0 %v5251, 64
      %v5257 = vpop.permute.xlu0 %5256
      %v5258 = vsel %vm5231, %v5253, %v5255
      %v5259 = vsel %vm5231, %v5255, %v5257
      %vm5263 = vcmask 1045504
      %v5264 = vrot.slane %v5232, 2
      %v5265 = vrot.slane %v5233, 2
      %v5266 = vsel %vm5263, %v5264, %v5265
      %v5267 = vrot.slane %v5234, 2
      %v5268 = vrot.slane %v5235, 2
      %v5269 = vsel %vm5263, %v5267, %v5268
      %v5270 = vrot.slane %v5192, 2
      %v5271 = vrot.slane %v5193, 2
      %v5272 = vsel %vm5263, %v5270, %v5271
      %vm5276 = vcmask 1044480
      %v5277 = vrot.slane %v5232, 3
      %v5278 = vrot.slane %v5233, 3
      %v5279 = vsel %vm5276, %v5277, %v5278
      %v5280 = vrot.slane %v5234, 3
      %v5281 = vrot.slane %v5235, 3
      %v5282 = vsel %vm5276, %v5280, %v5281
      %v5283 = vrot.slane %v5192, 3
      %v5284 = vrot.slane %v5193, 3
      %v5285 = vsel %vm5276, %v5283, %v5284
      %5286 = vrot.lane.b32.xlu0 %v5279, 64
      %v5287 = vpop.permute.xlu0 %5286
      %5288 = vrot.lane.b32.xlu0 %v5282, 64
      %v5289 = vpop.permute.xlu0 %5288
      %5290 = vrot.lane.b32.xlu0 %v5285, 64
      %v5291 = vpop.permute.xlu0 %5290
      %v5292 = vsel %vm5231, %v5287, %v5289
      %v5293 = vsel %vm5231, %v5289, %v5291
      %vm5297 = vcmask 1043456
      %v5298 = vrot.slane %v5232, 4
      %v5299 = vrot.slane %v5233, 4
      %v5300 = vsel %vm5297, %v5298, %v5299
      %v5301 = vrot.slane %v5234, 4
      %v5302 = vrot.slane %v5235, 4
      %v5303 = vsel %vm5297, %v5301, %v5302
      %v5304 = vrot.slane %v5192, 4
      %v5305 = vrot.slane %v5193, 4
      %v5306 = vsel %vm5297, %v5304, %v5305
      %v5310 = vsel %vm5231, %v5192, %v5253
      %v5311 = vsel %vm5231, %v5272, %v5287
      %5314 = vrot.lane.b32.xlu0 %v5186, 64
      %v5315 = vpop.permute.xlu0 %5314
      %5316 = vrot.lane.b32.xlu0 %v5187, 64
      %v5317 = vpop.permute.xlu0 %5316
      %5320 = vrot.lane.b32.xlu0 %v5192, 64
      %v5321 = vpop.permute.xlu0 %5320
      %5322 = vrot.lane.b32.xlu0 %v5193, 64
      %v5323 = vpop.permute.xlu0 %5322
      %v5326 = vsel %vm5231, %v5183, %v5315
      %v5327 = vsel %vm5231, %v5184, %v5317
      %v5328 = vsel %vm5231, %v5189, %v5321
      %v5329 = vsel %vm5231, %v5190, %v5323
      %v5336 = vrot.slane %v5326, 1
      %v5337 = vrot.slane %v5327, 1
      %v5338 = vsel %vm5242, %v5336, %v5337
      %v5339 = vrot.slane %v5328, 1
      %v5340 = vrot.slane %v5329, 1
      %v5341 = vsel %vm5242, %v5339, %v5340
      %v5342 = vrot.slane %v5195, 1
      %v5343 = vrot.slane %v5196, 1
      %v5344 = vsel %vm5242, %v5342, %v5343
      %5345 = vrot.lane.b32.xlu0 %v5338, 64
      %v5346 = vpop.permute.xlu0 %5345
      %5347 = vrot.lane.b32.xlu0 %v5341, 64
      %v5348 = vpop.permute.xlu0 %5347
      %5349 = vrot.lane.b32.xlu0 %v5344, 64
      %v5350 = vpop.permute.xlu0 %5349
      %v5351 = vsel %vm5231, %v5346, %v5348
      %v5352 = vsel %vm5231, %v5348, %v5350
      %v5356 = vrot.slane %v5326, 2
      %v5357 = vrot.slane %v5327, 2
      %v5358 = vsel %vm5263, %v5356, %v5357
      %v5359 = vrot.slane %v5328, 2
      %v5360 = vrot.slane %v5329, 2
      %v5361 = vsel %vm5263, %v5359, %v5360
      %v5362 = vrot.slane %v5195, 2
      %v5363 = vrot.slane %v5196, 2
      %v5364 = vsel %vm5263, %v5362, %v5363
      %v5368 = vrot.slane %v5326, 3
      %v5369 = vrot.slane %v5327, 3
      %v5370 = vsel %vm5276, %v5368, %v5369
      %v5371 = vrot.slane %v5328, 3
      %v5372 = vrot.slane %v5329, 3
      %v5373 = vsel %vm5276, %v5371, %v5372
      %v5374 = vrot.slane %v5195, 3
      %v5375 = vrot.slane %v5196, 3
      %v5376 = vsel %vm5276, %v5374, %v5375
      %5377 = vrot.lane.b32.xlu0 %v5370, 64
      %v5378 = vpop.permute.xlu0 %5377
      %5379 = vrot.lane.b32.xlu0 %v5373, 64
      %v5380 = vpop.permute.xlu0 %5379
      %5381 = vrot.lane.b32.xlu0 %v5376, 64
      %v5382 = vpop.permute.xlu0 %5381
      %v5383 = vsel %vm5231, %v5378, %v5380
      %v5384 = vsel %vm5231, %v5380, %v5382
      %v5388 = vrot.slane %v5326, 4
      %v5389 = vrot.slane %v5327, 4
      %v5390 = vsel %vm5297, %v5388, %v5389
      %v5391 = vrot.slane %v5328, 4
      %v5392 = vrot.slane %v5329, 4
      %v5393 = vsel %vm5297, %v5391, %v5392
      %v5394 = vrot.slane %v5195, 4
      %v5395 = vrot.slane %v5196, 4
      %v5396 = vsel %vm5297, %v5394, %v5395
      %v5400 = vsel %vm5231, %v5195, %v5346
      %v5401 = vsel %vm5231, %v5364, %v5378
      %5402 = vrot.lane.b32.xlu0 %v5195, 64
      %v5403 = vpop.permute.xlu0 %5402
      %5404 = vrot.lane.b32.xlu0 %v5196, 64
      %v5405 = vpop.permute.xlu0 %5404
      %v5408 = vsel %vm5231, %v5192, %v5403
      %v5409 = vsel %vm5231, %v5193, %v5405
      %v5414 = vrot.slane %v5408, 1
      %v5415 = vrot.slane %v5409, 1
      %v5416 = vsel %vm5242, %v5414, %v5415
      %v5417 = vrot.slane %v5198, 1
      %v5418 = vrot.slane %v5199, 1
      %v5419 = vsel %vm5242, %v5417, %v5418
      %5420 = vrot.lane.b32.xlu0 %v5416, 64
      %v5421 = vpop.permute.xlu0 %5420
      %5422 = vrot.lane.b32.xlu0 %v5419, 64
      %v5423 = vpop.permute.xlu0 %5422
      %v5424 = vsel %vm5231, %v5255, %v5421
      %v5425 = vsel %vm5231, %v5421, %v5423
      %v5429 = vrot.slane %v5408, 2
      %v5430 = vrot.slane %v5409, 2
      %v5431 = vsel %vm5263, %v5429, %v5430
      %v5432 = vrot.slane %v5198, 2
      %v5433 = vrot.slane %v5199, 2
      %v5434 = vsel %vm5263, %v5432, %v5433
      %v5437 = vrot.slane %v5408, 3
      %v5438 = vrot.slane %v5409, 3
      %v5439 = vsel %vm5276, %v5437, %v5438
      %v5440 = vrot.slane %v5198, 3
      %v5441 = vrot.slane %v5199, 3
      %v5442 = vsel %vm5276, %v5440, %v5441
      %5443 = vrot.lane.b32.xlu0 %v5439, 64
      %v5444 = vpop.permute.xlu0 %5443
      %5445 = vrot.lane.b32.xlu0 %v5442, 64
      %v5446 = vpop.permute.xlu0 %5445
      %v5447 = vsel %vm5231, %v5289, %v5444
      %v5448 = vsel %vm5231, %v5444, %v5446
      %v5452 = vrot.slane %v5408, 4
      %v5453 = vrot.slane %v5409, 4
      %v5454 = vsel %vm5297, %v5452, %v5453
      %v5455 = vrot.slane %v5198, 4
      %v5456 = vrot.slane %v5199, 4
      %v5457 = vsel %vm5297, %v5455, %v5456
      %v5460 = vsel %vm5231, %v5198, %v5255
      %v5461 = vsel %vm5231, %v5434, %v5289
      %5462 = vrot.lane.b32.xlu0 %v5198, 64
      %v5463 = vpop.permute.xlu0 %5462
      %5464 = vrot.lane.b32.xlu0 %v5199, 64
      %v5465 = vpop.permute.xlu0 %5464
      %v5468 = vsel %vm5231, %v5195, %v5463
      %v5469 = vsel %vm5231, %v5196, %v5465
      %v5474 = vrot.slane %v5468, 1
      %v5475 = vrot.slane %v5469, 1
      %v5476 = vsel %vm5242, %v5474, %v5475
      %v5477 = vrot.slane %v5201, 1
      %v5478 = vrot.slane %v5202, 1
      %v5479 = vsel %vm5242, %v5477, %v5478
      %5480 = vrot.lane.b32.xlu0 %v5476, 64
      %v5481 = vpop.permute.xlu0 %5480
      %5482 = vrot.lane.b32.xlu0 %v5479, 64
      %v5483 = vpop.permute.xlu0 %5482
      %v5484 = vsel %vm5231, %v5348, %v5481
      %v5485 = vsel %vm5231, %v5481, %v5483
      %v5489 = vrot.slane %v5468, 2
      %v5490 = vrot.slane %v5469, 2
      %v5491 = vsel %vm5263, %v5489, %v5490
      %v5492 = vrot.slane %v5201, 2
      %v5493 = vrot.slane %v5202, 2
      %v5494 = vsel %vm5263, %v5492, %v5493
      %v5497 = vrot.slane %v5468, 3
      %v5498 = vrot.slane %v5469, 3
      %v5499 = vsel %vm5276, %v5497, %v5498
      %v5500 = vrot.slane %v5201, 3
      %v5501 = vrot.slane %v5202, 3
      %v5502 = vsel %vm5276, %v5500, %v5501
      %5503 = vrot.lane.b32.xlu0 %v5499, 64
      %v5504 = vpop.permute.xlu0 %5503
      %5505 = vrot.lane.b32.xlu0 %v5502, 64
      %v5506 = vpop.permute.xlu0 %5505
      %v5507 = vsel %vm5231, %v5380, %v5504
      %v5508 = vsel %vm5231, %v5504, %v5506
      %v5512 = vrot.slane %v5468, 4
      %v5513 = vrot.slane %v5469, 4
      %v5514 = vsel %vm5297, %v5512, %v5513
      %v5515 = vrot.slane %v5201, 4
      %v5516 = vrot.slane %v5202, 4
      %v5517 = vsel %vm5297, %v5515, %v5516
      %v5520 = vsel %vm5231, %v5201, %v5348
      %v5521 = vsel %vm5231, %v5494, %v5380
      %5522 = vrot.lane.b32.xlu0 %v5201, 64
      %v5523 = vpop.permute.xlu0 %5522
      %5524 = vrot.lane.b32.xlu0 %v5202, 64
      %v5525 = vpop.permute.xlu0 %5524
      %v5528 = vsel %vm5231, %v5198, %v5523
      %v5529 = vsel %vm5231, %v5199, %v5525
      %v5534 = vrot.slane %v5528, 1
      %v5535 = vrot.slane %v5529, 1
      %v5536 = vsel %vm5242, %v5534, %v5535
      %v5537 = vrot.slane %v5204, 1
      %v5538 = vrot.slane %v5205, 1
      %v5539 = vsel %vm5242, %v5537, %v5538
      %5540 = vrot.lane.b32.xlu0 %v5536, 64
      %v5541 = vpop.permute.xlu0 %5540
      %5542 = vrot.lane.b32.xlu0 %v5539, 64
      %v5543 = vpop.permute.xlu0 %5542
      %v5544 = vsel %vm5231, %v5421, %v5541
      %v5545 = vsel %vm5231, %v5541, %v5543
      %v5549 = vrot.slane %v5528, 2
      %v5550 = vrot.slane %v5529, 2
      %v5551 = vsel %vm5263, %v5549, %v5550
      %v5552 = vrot.slane %v5204, 2
      %v5553 = vrot.slane %v5205, 2
      %v5554 = vsel %vm5263, %v5552, %v5553
      %v5557 = vrot.slane %v5528, 3
      %v5558 = vrot.slane %v5529, 3
      %v5559 = vsel %vm5276, %v5557, %v5558
      %v5560 = vrot.slane %v5204, 3
      %v5561 = vrot.slane %v5205, 3
      %v5562 = vsel %vm5276, %v5560, %v5561
      %5563 = vrot.lane.b32.xlu0 %v5559, 64
      %v5564 = vpop.permute.xlu0 %5563
      %5565 = vrot.lane.b32.xlu0 %v5562, 64
      %v5566 = vpop.permute.xlu0 %5565
      %v5567 = vsel %vm5231, %v5444, %v5564
      %v5568 = vsel %vm5231, %v5564, %v5566
      %v5572 = vrot.slane %v5528, 4
      %v5573 = vrot.slane %v5529, 4
      %v5574 = vsel %vm5297, %v5572, %v5573
      %v5575 = vrot.slane %v5204, 4
      %v5576 = vrot.slane %v5205, 4
      %v5577 = vsel %vm5297, %v5575, %v5576
      %v5580 = vsel %vm5231, %v5204, %v5421
      %v5581 = vsel %vm5231, %v5554, %v5444
      %5582 = vrot.lane.b32.xlu0 %v5204, 64
      %v5583 = vpop.permute.xlu0 %5582
      %5584 = vrot.lane.b32.xlu0 %v5205, 64
      %v5585 = vpop.permute.xlu0 %5584
      %v5588 = vsel %vm5231, %v5201, %v5583
      %v5589 = vsel %vm5231, %v5202, %v5585
      %v5594 = vrot.slane %v5588, 1
      %v5595 = vrot.slane %v5589, 1
      %v5596 = vsel %vm5242, %v5594, %v5595
      %v5597 = vrot.slane %v5207, 1
      %v5598 = vrot.slane %v5208, 1
      %v5599 = vsel %vm5242, %v5597, %v5598
      %5600 = vrot.lane.b32.xlu0 %v5596, 64
      %v5601 = vpop.permute.xlu0 %5600
      %5602 = vrot.lane.b32.xlu0 %v5599, 64
      %v5603 = vpop.permute.xlu0 %5602
      %v5604 = vsel %vm5231, %v5481, %v5601
      %v5605 = vsel %vm5231, %v5601, %v5603
      %v5609 = vrot.slane %v5588, 2
      %v5610 = vrot.slane %v5589, 2
      %v5611 = vsel %vm5263, %v5609, %v5610
      %v5612 = vrot.slane %v5207, 2
      %v5613 = vrot.slane %v5208, 2
      %v5614 = vsel %vm5263, %v5612, %v5613
      %v5617 = vrot.slane %v5588, 3
      %v5618 = vrot.slane %v5589, 3
      %v5619 = vsel %vm5276, %v5617, %v5618
      %v5620 = vrot.slane %v5207, 3
      %v5621 = vrot.slane %v5208, 3
      %v5622 = vsel %vm5276, %v5620, %v5621
      %5623 = vrot.lane.b32.xlu0 %v5619, 64
      %v5624 = vpop.permute.xlu0 %5623
      %5625 = vrot.lane.b32.xlu0 %v5622, 64
      %v5626 = vpop.permute.xlu0 %5625
      %v5627 = vsel %vm5231, %v5504, %v5624
      %v5628 = vsel %vm5231, %v5624, %v5626
      %v5632 = vrot.slane %v5588, 4
      %v5633 = vrot.slane %v5589, 4
      %v5634 = vsel %vm5297, %v5632, %v5633
      %v5635 = vrot.slane %v5207, 4
      %v5636 = vrot.slane %v5208, 4
      %v5637 = vsel %vm5297, %v5635, %v5636
      %v5640 = vsel %vm5231, %v5207, %v5481
      %v5641 = vsel %vm5231, %v5614, %v5504
      %5642 = vrot.lane.b32.xlu0 %v5207, 64
      %v5643 = vpop.permute.xlu0 %5642
      %5644 = vrot.lane.b32.xlu0 %v5208, 64
      %v5645 = vpop.permute.xlu0 %5644
      %v5648 = vsel %vm5231, %v5204, %v5643
      %v5649 = vsel %vm5231, %v5205, %v5645
      %v5654 = vrot.slane %v5648, 1
      %v5655 = vrot.slane %v5649, 1
      %v5656 = vsel %vm5242, %v5654, %v5655
      %v5657 = vrot.slane %v5210, 1
      %v5658 = vrot.slane %v5211, 1
      %v5659 = vsel %vm5242, %v5657, %v5658
      %5660 = vrot.lane.b32.xlu0 %v5656, 64
      %v5661 = vpop.permute.xlu0 %5660
      %5662 = vrot.lane.b32.xlu0 %v5659, 64
      %v5663 = vpop.permute.xlu0 %5662
      %v5664 = vsel %vm5231, %v5541, %v5661
      %v5665 = vsel %vm5231, %v5661, %v5663
      %v5669 = vrot.slane %v5648, 2
      %v5670 = vrot.slane %v5649, 2
      %v5671 = vsel %vm5263, %v5669, %v5670
      %v5672 = vrot.slane %v5210, 2
      %v5673 = vrot.slane %v5211, 2
      %v5674 = vsel %vm5263, %v5672, %v5673
      %v5677 = vrot.slane %v5648, 3
      %v5678 = vrot.slane %v5649, 3
      %v5679 = vsel %vm5276, %v5677, %v5678
      %v5680 = vrot.slane %v5210, 3
      %v5681 = vrot.slane %v5211, 3
      %v5682 = vsel %vm5276, %v5680, %v5681
      %5683 = vrot.lane.b32.xlu0 %v5679, 64
      %v5684 = vpop.permute.xlu0 %5683
      %5685 = vrot.lane.b32.xlu0 %v5682, 64
      %v5686 = vpop.permute.xlu0 %5685
      %v5687 = vsel %vm5231, %v5564, %v5684
      %v5688 = vsel %vm5231, %v5684, %v5686
      %v5692 = vrot.slane %v5648, 4
      %v5693 = vrot.slane %v5649, 4
      %v5694 = vsel %vm5297, %v5692, %v5693
      %v5695 = vrot.slane %v5210, 4
      %v5696 = vrot.slane %v5211, 4
      %v5697 = vsel %vm5297, %v5695, %v5696
      %v5700 = vsel %vm5231, %v5210, %v5541
      %v5701 = vsel %vm5231, %v5674, %v5564
      %5702 = vrot.lane.b32.xlu0 %v5210, 64
      %v5703 = vpop.permute.xlu0 %5702
      %5704 = vrot.lane.b32.xlu0 %v5211, 64
      %v5705 = vpop.permute.xlu0 %5704
      %v5708 = vsel %vm5231, %v5207, %v5703
      %v5709 = vsel %vm5231, %v5208, %v5705
      %v5714 = vrot.slane %v5708, 1
      %v5715 = vrot.slane %v5709, 1
      %v5716 = vsel %vm5242, %v5714, %v5715
      %v5717 = vrot.slane %v5213, 1
      %v5718 = vrot.slane %v5214, 1
      %v5719 = vsel %vm5242, %v5717, %v5718
      %5720 = vrot.lane.b32.xlu0 %v5716, 64
      %v5721 = vpop.permute.xlu0 %5720
      %5722 = vrot.lane.b32.xlu0 %v5719, 64
      %v5723 = vpop.permute.xlu0 %5722
      %v5724 = vsel %vm5231, %v5601, %v5721
      %v5725 = vsel %vm5231, %v5721, %v5723
      %v5729 = vrot.slane %v5708, 2
      %v5730 = vrot.slane %v5709, 2
      %v5731 = vsel %vm5263, %v5729, %v5730
      %v5732 = vrot.slane %v5213, 2
      %v5733 = vrot.slane %v5214, 2
      %v5734 = vsel %vm5263, %v5732, %v5733
      %v5737 = vrot.slane %v5708, 3
      %v5738 = vrot.slane %v5709, 3
      %v5739 = vsel %vm5276, %v5737, %v5738
      %v5740 = vrot.slane %v5213, 3
      %v5741 = vrot.slane %v5214, 3
      %v5742 = vsel %vm5276, %v5740, %v5741
      %5743 = vrot.lane.b32.xlu0 %v5739, 64
      %v5744 = vpop.permute.xlu0 %5743
      %5745 = vrot.lane.b32.xlu0 %v5742, 64
      %v5746 = vpop.permute.xlu0 %5745
      %v5747 = vsel %vm5231, %v5624, %v5744
      %v5748 = vsel %vm5231, %v5744, %v5746
      %v5752 = vrot.slane %v5708, 4
      %v5753 = vrot.slane %v5709, 4
      %v5754 = vsel %vm5297, %v5752, %v5753
      %v5755 = vrot.slane %v5213, 4
      %v5756 = vrot.slane %v5214, 4
      %v5757 = vsel %vm5297, %v5755, %v5756
      %v5760 = vsel %vm5231, %v5213, %v5601
      %v5761 = vsel %vm5231, %v5734, %v5624
      %v5762 = vpack.c.bf16 %v5326, %v5232
      %v5763 = vpack.c.bf16 %v5328, %v5234
      %v5764 = vpack.c.bf16 %v5400, %v5310
      %v5765 = vpack.c.bf16 %v5351, %v5258
      %v5766 = vpack.c.bf16 %v5352, %v5259
      %v5767 = vpack.c.bf16 %v5358, %v5266
      %v5768 = vpack.c.bf16 %v5361, %v5269
      %v5769 = vpack.c.bf16 %v5401, %v5311
      %v5770 = vpack.c.bf16 %v5383, %v5292
      %v5771 = vpack.c.bf16 %v5384, %v5293
      %v5772 = vpack.c.bf16 %v5390, %v5300
      %v5773 = vpack.c.bf16 %v5393, %v5303
      %v5774 = vpack.c.bf16 %v5396, %v5306
      %v5775 = vpack.c.bf16 %v5468, %v5408
      %v5776 = vpack.c.bf16 %v5520, %v5460
      %v5777 = vpack.c.bf16 %v5484, %v5424
      %v5778 = vpack.c.bf16 %v5485, %v5425
      %v5779 = vpack.c.bf16 %v5491, %v5431
      %v5780 = vpack.c.bf16 %v5521, %v5461
      %v5781 = vpack.c.bf16 %v5507, %v5447
      %v5782 = vpack.c.bf16 %v5508, %v5448
      %v5783 = vpack.c.bf16 %v5514, %v5454
      %v5784 = vpack.c.bf16 %v5517, %v5457
      %v5785 = vpack.c.bf16 %v5588, %v5528
      %v5786 = vpack.c.bf16 %v5640, %v5580
      %v5787 = vpack.c.bf16 %v5604, %v5544
      %v5788 = vpack.c.bf16 %v5605, %v5545
      %v5789 = vpack.c.bf16 %v5611, %v5551
      %v5790 = vpack.c.bf16 %v5641, %v5581
      %v5791 = vpack.c.bf16 %v5627, %v5567
      %v5792 = vpack.c.bf16 %v5628, %v5568
      %v5793 = vpack.c.bf16 %v5634, %v5574
      %v5794 = vpack.c.bf16 %v5637, %v5577
      %v5795 = vpack.c.bf16 %v5708, %v5648
      %v5796 = vpack.c.bf16 %v5760, %v5700
      %v5797 = vpack.c.bf16 %v5724, %v5664
      %v5798 = vpack.c.bf16 %v5725, %v5665
      %v5799 = vpack.c.bf16 %v5731, %v5671
      %v5800 = vpack.c.bf16 %v5761, %v5701
      %v5801 = vpack.c.bf16 %v5747, %v5687
      %v5802 = vpack.c.bf16 %v5748, %v5688
      %v5803 = vpack.c.bf16 %v5754, %v5694
      %v5804 = vpack.c.bf16 %v5757, %v5697
      %v5805 = vld [vmem:[%s7] sm:$0xf]
      %v5806 = vld [vmem:[%s7 + $0x4] sm:$0xf]
      %v5807 = vld [vmem:[%s7 + $0x8] sm:$0xf]
      %v5808 = vld [vmem:[%s7 + $0xc] sm:$0xf]
      %v5809 = vld [vmem:[%s7 + $0x10] sm:$0xf]
      %v5810 = vld [vmem:[%s7 + $0x14] sm:$0xf]
      %v5811 = vld [vmem:[%s7 + $0x18] sm:$0xf]
      %v5812 = vld [vmem:[%s7 + $0x1c] sm:$0xf]
      %v5813 = vld [vmem:[%s7 + $0x20] sm:$0xf]
      %v5814 = vld [vmem:[%s7 + $0x24] sm:$0xf]
      %v5815 = vld [vmem:[%s7 + $0x28] sm:$0xf]
      %v5816 = vld [vmem:[%s7 + $0x2c] sm:$0xf]
      %v5817 = vld [vmem:[%s7 + $0x30] sm:$0xf]
      %v5818 = vld [vmem:[%s7 + $0x34] sm:$0xf]
      %v5819 = vld [vmem:[%s7 + $0x38] sm:$0xf]
      %v5820 = vld [vmem:[%s7 + $0x3c] sm:$0xf]
      %v5821 = vld [vmem:[%s7 + $0x40] sm:$0xf]
      %v5822 = vld [vmem:[%s7 + $0x44] sm:$0xf]
      %v5823 = vld [vmem:[%s7 + $0x48] sm:$0xf]
      %v5824 = vld [vmem:[%s7 + $0x4c] sm:$0xf]
      %v5825 = vld [vmem:[%s7 + $0x50] sm:$0xf]
      %v5826 = vld [vmem:[%s7 + $0x54] sm:$0xf]
      %v5827 = vld [vmem:[%s7 + $0x58] sm:$0xf]
      %v5828 = vld [vmem:[%s7 + $0x5c] sm:$0xf]
      %v5829 = vld [vmem:[%s7 + $0x60] sm:$0xf]
      %v5830 = vld [vmem:[%s7 + $0x64] sm:$0xf]
      %v5831 = vld [vmem:[%s7 + $0x68] sm:$0xf]
      %v5832 = vld [vmem:[%s7 + $0x6c] sm:$0xf]
      %v5833 = vld [vmem:[%s7 + $0x70] sm:$0xf]
      %v5834 = vld [vmem:[%s7 + $0x74] sm:$0xf]
      %v5835 = vld [vmem:[%s7 + $0x78] sm:$0xf]
      %v5836 = vld [vmem:[%s7 + $0x7c] sm:$0xf]
      %v5837 = vld [vmem:[%s7 + $0x80] sm:$0xf]
      %v5838 = vld [vmem:[%s7 + $0x84] sm:$0xf]
      %v5839 = vld [vmem:[%s7 + $0x88] sm:$0xf]
      %v5840 = vld [vmem:[%s7 + $0x8c] sm:$0xf]
      %v5841 = vld [vmem:[%s7 + $0x90] sm:$0xf]
      %v5842 = vld [vmem:[%s7 + $0x94] sm:$0xf]
      %v5843 = vld [vmem:[%s7 + $0x98] sm:$0xf]
      %v5844 = vld [vmem:[%s7 + $0x9c] sm:$0xf]
      %v5845 = vld [vmem:[%s7 + $0xa0] sm:$0xf]
      %v5846 = vld [vmem:[%s7 + $0xa4] sm:$0xf]
      %v5847 = vld [vmem:[%s7 + $0xa8] sm:$0xf]
      %v5848 = vld [vmem:[%s7 + $0xac] sm:$0xf]
      %v5849 = vld [vmem:[%s7 + $0xb0] sm:$0xf]
      %v5850 = vld [vmem:[%s7 + $0xb4] sm:$0xf]
      %v5851 = vld [vmem:[%s7 + $0xb8] sm:$0xf]
      %v5852 = vld [vmem:[%s7 + $0xbc] sm:$0xf]
      %v5853 = vld [vmem:[%s7 + $0xc0] sm:$0xf]
      %v5854 = vld [vmem:[%s7 + $0xc4] sm:$0xf]
      %v5855 = vld [vmem:[%s7 + $0xc8] sm:$0xf]
      %v5856 = vld [vmem:[%s7 + $0xcc] sm:$0xf]
      %v5857 = vld [vmem:[%s7 + $0xd0] sm:$0xf]
      %v5858 = vld [vmem:[%s7 + $0xd4] sm:$0xf]
      %v5859 = vld [vmem:[%s7 + $0xd8] sm:$0xf]
      %v5860 = vld [vmem:[%s7 + $0xdc] sm:$0xf]
      %v5861 = vld [vmem:[%s7 + $0xe0] sm:$0xf]
      %v5862 = vld [vmem:[%s7 + $0xe4] sm:$0xf]
      %v5863 = vld [vmem:[%s7 + $0xe8] sm:$0xf]
      %v5864 = vld [vmem:[%s7 + $0xec] sm:$0xf]
      %v5865 = vld [vmem:[%s7 + $0xf0] sm:$0xf]
      %v5866 = vld [vmem:[%s7 + $0xf4] sm:$0xf]
      %v5867 = vld [vmem:[%s7 + $0xf8] sm:$0xf]
      %v5868 = vld [vmem:[%s7 + $0xfc] sm:$0xf]
      %v5869 = vld [vmem:[%s7 + $0x100] sm:$0xf]
      %v5870 = vld [vmem:[%s7 + $0x104] sm:$0xf]
      %v5871 = vld [vmem:[%s7 + $0x108] sm:$0xf]
      %v5872 = vld [vmem:[%s7 + $0x10c] sm:$0xf]
      %v5873 = vld [vmem:[%s7 + $0x110] sm:$0xf]
      %v5874 = vld [vmem:[%s7 + $0x114] sm:$0xf]
      %v5875 = vld [vmem:[%s7 + $0x118] sm:$0xf]
      %v5876 = vld [vmem:[%s7 + $0x11c] sm:$0xf]
      %v5877 = vld [vmem:[%s7 + $0x120] sm:$0xf]
      %v5878 = vld [vmem:[%s7 + $0x124] sm:$0xf]
      %v5879 = vld [vmem:[%s7 + $0x128] sm:$0xf]
      %v5880 = vld [vmem:[%s7 + $0x12c] sm:$0xf]
      %v5881 = vld [vmem:[%s7 + $0x130] sm:$0xf]
      %v5882 = vld [vmem:[%s7 + $0x134] sm:$0xf]
      %v5883 = vld [vmem:[%s7 + $0x138] sm:$0xf]
      %v5884 = vld [vmem:[%s7 + $0x13c] sm:$0xf]
      %v5885 = vld [vmem:[%s7 + $0x140] sm:$0xf]
      %v5886 = vld [vmem:[%s7 + $0x144] sm:$0xf]
      %v5887 = vld [vmem:[%s7 + $0x148] sm:$0xf]
      %v5888 = vld [vmem:[%s7 + $0x14c] sm:$0xf]
      %v5889 = vld [vmem:[%s7 + $0x150] sm:$0xf]
      %v5890 = vld [vmem:[%s7 + $0x154] sm:$0xf]
      %v5891 = vld [vmem:[%s7 + $0x158] sm:$0xf]
      %v5892 = vld [vmem:[%s7 + $0x15c] sm:$0xf]
      %v5893 = vld [vmem:[%s7 + $0x160] sm:$0xf]
      %v5894 = vld [vmem:[%s7 + $0x164] sm:$0xf]
      %v5895 = vld [vmem:[%s7 + $0x168] sm:$0xf]
      %v5896 = vld [vmem:[%s7 + $0x16c] sm:$0xf]
      %v5897 = vld [vmem:[%s7 + $0x170] sm:$0xf]
      %v5898 = vld [vmem:[%s7 + $0x174] sm:$0xf]
      %v5899 = vld [vmem:[%s7 + $0x178] sm:$0xf]
      %v5900 = vld [vmem:[%s7 + $0x17c] sm:$0xf]
      %v5901 = vld [vmem:[%s7 + $0x180] sm:$0xf]
      %v5902 = vld [vmem:[%s7 + $0x184] sm:$0xf]
      %v5903 = vld [vmem:[%s7 + $0x188] sm:$0xf]
      %v5904 = vld [vmem:[%s7 + $0x18c] sm:$0xf]
      %v5905 = vld [vmem:[%s7 + $0x190] sm:$0xf]
      %v5906 = vld [vmem:[%s7 + $0x194] sm:$0xf]
      %v5907 = vld [vmem:[%s7 + $0x198] sm:$0xf]
      %v5908 = vld [vmem:[%s7 + $0x19c] sm:$0xf]
      %v5909 = vld [vmem:[%s7 + $0x1a0] sm:$0xf]
      %v5910 = vld [vmem:[%s7 + $0x1a4] sm:$0xf]
      %v5911 = vld [vmem:[%s7 + $0x1a8] sm:$0xf]
      %v5912 = vld [vmem:[%s7 + $0x1ac] sm:$0xf]
      %v5913 = vld [vmem:[%s7 + $0x1b0] sm:$0xf]
      %v5914 = vld [vmem:[%s7 + $0x1b4] sm:$0xf]
      %v5915 = vld [vmem:[%s7 + $0x1b8] sm:$0xf]
      %v5916 = vld [vmem:[%s7 + $0x1bc] sm:$0xf]
      %v5917 = vld [vmem:[%s7 + $0x1c0] sm:$0xf]
      %v5918 = vld [vmem:[%s7 + $0x1c4] sm:$0xf]
      %v5919 = vld [vmem:[%s7 + $0x1c8] sm:$0xf]
      %v5920 = vld [vmem:[%s7 + $0x1cc] sm:$0xf]
      %v5921 = vld [vmem:[%s7 + $0x1d0] sm:$0xf]
      %v5922 = vld [vmem:[%s7 + $0x1d4] sm:$0xf]
      %v5923 = vld [vmem:[%s7 + $0x1d8] sm:$0xf]
      %v5924 = vld [vmem:[%s7 + $0x1dc] sm:$0xf]
      %v5925 = vld [vmem:[%s7 + $0x1e0] sm:$0xf]
      %v5926 = vld [vmem:[%s7 + $0x1e4] sm:$0xf]
      %v5927 = vld [vmem:[%s7 + $0x1e8] sm:$0xf]
      %v5928 = vld [vmem:[%s7 + $0x1ec] sm:$0xf]
      %v5929 = vld [vmem:[%s7 + $0x1f0] sm:$0xf]
      %v5930 = vld [vmem:[%s7 + $0x1f4] sm:$0xf]
      %v5931 = vld [vmem:[%s7 + $0x1f8] sm:$0xf]
      %v5932 = vld [vmem:[%s7 + $0x1fc] sm:$0xf]
      %v5933 = vld [vmem:[%s7 + $0x200] sm:$0xf]
      %v5934 = vld [vmem:[%s7 + $0x204] sm:$0xf]
      %v5935 = vld [vmem:[%s7 + $0x208] sm:$0xf]
      %v5936 = vld [vmem:[%s7 + $0x20c] sm:$0xf]
      %v5937 = vld [vmem:[%s7 + $0x210] sm:$0xf]
      %v5938 = vld [vmem:[%s7 + $0x214] sm:$0xf]
      %v5939 = vld [vmem:[%s7 + $0x218] sm:$0xf]
      %v5940 = vld [vmem:[%s7 + $0x21c] sm:$0xf]
      %v5941 = vld [vmem:[%s7 + $0x220] sm:$0xf]
      %v5942 = vld [vmem:[%s7 + $0x224] sm:$0xf]
      %v5943 = vld [vmem:[%s7 + $0x228] sm:$0xf]
      %v5944 = vld [vmem:[%s7 + $0x22c] sm:$0xf]
      %v5945 = vld [vmem:[%s7 + $0x230] sm:$0xf]
      %v5946 = vld [vmem:[%s7 + $0x234] sm:$0xf]
      %v5947 = vld [vmem:[%s7 + $0x238] sm:$0xf]
      %v5948 = vld [vmem:[%s7 + $0x23c] sm:$0xf]
      %v5949 = vld [vmem:[%s7 + $0x240] sm:$0xf]
      %v5950 = vld [vmem:[%s7 + $0x244] sm:$0xf]
      %v5951 = vld [vmem:[%s7 + $0x248] sm:$0xf]
      %v5952 = vld [vmem:[%s7 + $0x24c] sm:$0xf]
      %v5953 = vld [vmem:[%s7 + $0x250] sm:$0xf]
      %v5954 = vld [vmem:[%s7 + $0x254] sm:$0xf]
      %v5955 = vld [vmem:[%s7 + $0x258] sm:$0xf]
      %v5956 = vld [vmem:[%s7 + $0x25c] sm:$0xf]
      %v5957 = vld [vmem:[%s7 + $0x260] sm:$0xf]
      %v5958 = vld [vmem:[%s7 + $0x264] sm:$0xf]
      %v5959 = vld [vmem:[%s7 + $0x268] sm:$0xf]
      %v5960 = vld [vmem:[%s7 + $0x26c] sm:$0xf]
      %v5961 = vld [vmem:[%s7 + $0x270] sm:$0xf]
      %v5962 = vld [vmem:[%s7 + $0x274] sm:$0xf]
      %v5963 = vld [vmem:[%s7 + $0x278] sm:$0xf]
      %v5964 = vld [vmem:[%s7 + $0x27c] sm:$0xf]
      %v5965 = vld [vmem:[%s7 + $0x280] sm:$0xf]
      %v5966 = vld [vmem:[%s7 + $0x284] sm:$0xf]
      %v5967 = vld [vmem:[%s7 + $0x288] sm:$0xf]
      %v5968 = vld [vmem:[%s7 + $0x28c] sm:$0xf]
      %v5969 = vld [vmem:[%s7 + $0x290] sm:$0xf]
      %v5970 = vld [vmem:[%s7 + $0x294] sm:$0xf]
      %v5971 = vld [vmem:[%s7 + $0x298] sm:$0xf]
      %v5972 = vld [vmem:[%s7 + $0x29c] sm:$0xf]
      %v5973 = vld [vmem:[%s7 + $0x2a0] sm:$0xf]
      %v5974 = vld [vmem:[%s7 + $0x2a4] sm:$0xf]
      %v5975 = vld [vmem:[%s7 + $0x2a8] sm:$0xf]
      %v5976 = vld [vmem:[%s7 + $0x2ac] sm:$0xf]
      %v5977 = vld [vmem:[%s7 + $0x2b0] sm:$0xf]
      %v5978 = vld [vmem:[%s7 + $0x2b4] sm:$0xf]
      %v5979 = vld [vmem:[%s7 + $0x2b8] sm:$0xf]
      %v5980 = vld [vmem:[%s7 + $0x2bc] sm:$0xf]
      %v5981 = vld [vmem:[%s7 + $0x2c0] sm:$0xf]
      %v5982 = vld [vmem:[%s7 + $0x2c4] sm:$0xf]
      %v5983 = vld [vmem:[%s7 + $0x2c8] sm:$0xf]
      %v5984 = vld [vmem:[%s7 + $0x2cc] sm:$0xf]
      %v5985 = vld [vmem:[%s7 + $0x2d0] sm:$0xf]
      %v5986 = vld [vmem:[%s7 + $0x2d4] sm:$0xf]
      %v5987 = vld [vmem:[%s7 + $0x2d8] sm:$0xf]
      %v5988 = vld [vmem:[%s7 + $0x2dc] sm:$0xf]
      %v5989 = vld [vmem:[%s7 + $0x2e0] sm:$0xf]
      %v5990 = vld [vmem:[%s7 + $0x2e4] sm:$0xf]
      %v5991 = vld [vmem:[%s7 + $0x2e8] sm:$0xf]
      %v5992 = vld [vmem:[%s7 + $0x2ec] sm:$0xf]
      %v5993 = vld [vmem:[%s7 + $0x2f0] sm:$0xf]
      %v5994 = vld [vmem:[%s7 + $0x2f4] sm:$0xf]
      %v5995 = vld [vmem:[%s7 + $0x2f8] sm:$0xf]
      %v5996 = vld [vmem:[%s7 + $0x2fc] sm:$0xf]
      %v5997 = vld [vmem:[%s7 + $0x300] sm:$0xf]
      %v5998 = vld [vmem:[%s7 + $0x304] sm:$0xf]
      %v5999 = vld [vmem:[%s7 + $0x308] sm:$0xf]
      %v6000 = vld [vmem:[%s7 + $0x30c] sm:$0xf]
      %v6001 = vld [vmem:[%s7 + $0x310] sm:$0xf]
      %v6002 = vld [vmem:[%s7 + $0x314] sm:$0xf]
      %v6003 = vld [vmem:[%s7 + $0x318] sm:$0xf]
      %v6004 = vld [vmem:[%s7 + $0x31c] sm:$0xf]
      %v6006 = vlaneseq
      %v6007 = vshrl.u32 %v6006, 7
      %v6008 = vsub.s32 0, %v6007
      %v6009 = vrot.slane %v5179, %v6008
      %v6211 = vunpack.c.l.b16 %v5805
      %v6212 = vunpack.c.l.b16 %v5806
      %v6213 = vunpack.c.l.b16 %v5807
      %v6214 = vunpack.c.l.b16 %v5808
      %v6215 = vunpack.c.l.b16 %v5809
      %v6216 = vunpack.c.l.b16 %v5810
      %v6217 = vunpack.c.l.b16 %v5811
      %v6218 = vunpack.c.l.b16 %v5812
      %v6219 = vunpack.c.l.b16 %v5813
      %v6220 = vunpack.c.l.b16 %v5814
      %v6221 = vunpack.c.l.b16 %v5815
      %v6222 = vunpack.c.l.b16 %v5816
      %v6223 = vunpack.c.l.b16 %v5817
      %v6224 = vunpack.c.l.b16 %v5818
      %v6225 = vunpack.c.l.b16 %v5819
      %v6226 = vunpack.c.l.b16 %v5820
      %v6227 = vunpack.c.l.b16 %v5821
      %v6228 = vunpack.c.l.b16 %v5822
      %v6229 = vunpack.c.l.b16 %v5823
      %v6230 = vunpack.c.l.b16 %v5824
      %v6231 = vunpack.c.l.b16 %v5825
      %v6232 = vunpack.c.l.b16 %v5826
      %v6233 = vunpack.c.l.b16 %v5827
      %v6234 = vunpack.c.l.b16 %v5828
      %v6235 = vunpack.c.l.b16 %v5829
      %v6236 = vunpack.c.l.b16 %v5830
      %v6237 = vunpack.c.l.b16 %v5831
      %v6238 = vunpack.c.l.b16 %v5832
      %v6239 = vunpack.c.l.b16 %v5833
      %v6240 = vunpack.c.l.b16 %v5834
      %v6241 = vunpack.c.l.b16 %v5835
      %v6242 = vunpack.c.l.b16 %v5836
      %v6243 = vunpack.c.l.b16 %v5837
      %v6244 = vunpack.c.l.b16 %v5838
      %v6245 = vunpack.c.l.b16 %v5839
      %v6246 = vunpack.c.l.b16 %v5840
      %v6247 = vunpack.c.l.b16 %v5841
      %v6248 = vunpack.c.l.b16 %v5842
      %v6249 = vunpack.c.l.b16 %v5843
      %v6250 = vunpack.c.l.b16 %v5844
      %v6251 = vunpack.c.l.b16 %v5845
      %v6252 = vunpack.c.l.b16 %v5846
      %v6253 = vunpack.c.l.b16 %v5847
      %v6254 = vunpack.c.l.b16 %v5848
      %v6255 = vunpack.c.l.b16 %v5849
      %v6256 = vunpack.c.l.b16 %v5850
      %v6257 = vunpack.c.l.b16 %v5851
      %v6258 = vunpack.c.l.b16 %v5852
      %v6259 = vunpack.c.l.b16 %v5853
      %v6260 = vunpack.c.l.b16 %v5854
      %v6261 = vunpack.c.l.b16 %v5855
      %v6262 = vunpack.c.l.b16 %v5856
      %v6263 = vunpack.c.l.b16 %v5857
      %v6264 = vunpack.c.l.b16 %v5858
      %v6265 = vunpack.c.l.b16 %v5859
      %v6266 = vunpack.c.l.b16 %v5860
      %v6267 = vunpack.c.l.b16 %v5861
      %v6268 = vunpack.c.l.b16 %v5862
      %v6269 = vunpack.c.l.b16 %v5863
      %v6270 = vunpack.c.l.b16 %v5864
      %v6271 = vunpack.c.l.b16 %v5865
      %v6272 = vunpack.c.l.b16 %v5866
      %v6273 = vunpack.c.l.b16 %v5867
      %v6274 = vunpack.c.l.b16 %v5868
      %v6275 = vunpack.c.l.b16 %v5869
      %v6276 = vunpack.c.l.b16 %v5870
      %v6277 = vunpack.c.l.b16 %v5871
      %v6278 = vunpack.c.l.b16 %v5872
      %v6279 = vunpack.c.l.b16 %v5873
      %v6280 = vunpack.c.l.b16 %v5874
      %v6281 = vunpack.c.l.b16 %v5875
      %v6282 = vunpack.c.l.b16 %v5876
      %v6283 = vunpack.c.l.b16 %v5877
      %v6284 = vunpack.c.l.b16 %v5878
      %v6285 = vunpack.c.l.b16 %v5879
      %v6286 = vunpack.c.l.b16 %v5880
      %v6287 = vunpack.c.l.b16 %v5881
      %v6288 = vunpack.c.l.b16 %v5882
      %v6289 = vunpack.c.l.b16 %v5883
      %v6290 = vunpack.c.l.b16 %v5884
      %v6291 = vunpack.c.l.b16 %v5885
      %v6292 = vunpack.c.l.b16 %v5886
      %v6293 = vunpack.c.l.b16 %v5887
      %v6294 = vunpack.c.l.b16 %v5888
      %v6295 = vunpack.c.l.b16 %v5889
      %v6296 = vunpack.c.l.b16 %v5890
      %v6297 = vunpack.c.l.b16 %v5891
      %v6298 = vunpack.c.l.b16 %v5892
      %v6299 = vunpack.c.l.b16 %v5893
      %v6300 = vunpack.c.l.b16 %v5894
      %v6301 = vunpack.c.l.b16 %v5895
      %v6302 = vunpack.c.l.b16 %v5896
      %v6303 = vunpack.c.l.b16 %v5897
      %v6304 = vunpack.c.l.b16 %v5898
      %v6305 = vunpack.c.l.b16 %v5899
      %v6306 = vunpack.c.l.b16 %v5900
      %v6307 = vunpack.c.l.b16 %v5901
      %v6308 = vunpack.c.l.b16 %v5902
      %v6309 = vunpack.c.l.b16 %v5903
      %v6310 = vunpack.c.l.b16 %v5904
      %v6311 = vunpack.c.l.b16 %v5905
      %v6312 = vunpack.c.l.b16 %v5906
      %v6313 = vunpack.c.l.b16 %v5907
      %v6314 = vunpack.c.l.b16 %v5908
      %v6315 = vunpack.c.l.b16 %v5909
      %v6316 = vunpack.c.l.b16 %v5910
      %v6317 = vunpack.c.l.b16 %v5911
      %v6318 = vunpack.c.l.b16 %v5912
      %v6319 = vunpack.c.l.b16 %v5913
      %v6320 = vunpack.c.l.b16 %v5914
      %v6321 = vunpack.c.l.b16 %v5915
      %v6322 = vunpack.c.l.b16 %v5916
      %v6323 = vunpack.c.l.b16 %v5917
      %v6324 = vunpack.c.l.b16 %v5918
      %v6325 = vunpack.c.l.b16 %v5919
      %v6326 = vunpack.c.l.b16 %v5920
      %v6327 = vunpack.c.l.b16 %v5921
      %v6328 = vunpack.c.l.b16 %v5922
      %v6329 = vunpack.c.l.b16 %v5923
      %v6330 = vunpack.c.l.b16 %v5924
      %v6331 = vunpack.c.l.b16 %v5925
      %v6332 = vunpack.c.l.b16 %v5926
      %v6333 = vunpack.c.l.b16 %v5927
      %v6334 = vunpack.c.l.b16 %v5928
      %v6335 = vunpack.c.l.b16 %v5929
      %v6336 = vunpack.c.l.b16 %v5930
      %v6337 = vunpack.c.l.b16 %v5931
      %v6338 = vunpack.c.l.b16 %v5932
      %v6339 = vunpack.c.l.b16 %v5933
      %v6340 = vunpack.c.l.b16 %v5934
      %v6341 = vunpack.c.l.b16 %v5935
      %v6342 = vunpack.c.l.b16 %v5936
      %v6343 = vunpack.c.l.b16 %v5937
      %v6344 = vunpack.c.l.b16 %v5938
      %v6345 = vunpack.c.l.b16 %v5939
      %v6346 = vunpack.c.l.b16 %v5940
      %v6347 = vunpack.c.l.b16 %v5941
      %v6348 = vunpack.c.l.b16 %v5942
      %v6349 = vunpack.c.l.b16 %v5943
      %v6350 = vunpack.c.l.b16 %v5944
      %v6351 = vunpack.c.l.b16 %v5945
      %v6352 = vunpack.c.l.b16 %v5946
      %v6353 = vunpack.c.l.b16 %v5947
      %v6354 = vunpack.c.l.b16 %v5948
      %v6355 = vunpack.c.l.b16 %v5949
      %v6356 = vunpack.c.l.b16 %v5950
      %v6357 = vunpack.c.l.b16 %v5951
      %v6358 = vunpack.c.l.b16 %v5952
      %v6359 = vunpack.c.l.b16 %v5953
      %v6360 = vunpack.c.l.b16 %v5954
      %v6361 = vunpack.c.l.b16 %v5955
      %v6362 = vunpack.c.l.b16 %v5956
      %v6363 = vunpack.c.l.b16 %v5957
      %v6364 = vunpack.c.l.b16 %v5958
      %v6365 = vunpack.c.l.b16 %v5959
      %v6366 = vunpack.c.l.b16 %v5960
      %v6367 = vunpack.c.l.b16 %v5961
      %v6368 = vunpack.c.l.b16 %v5962
      %v6369 = vunpack.c.l.b16 %v5963
      %v6370 = vunpack.c.l.b16 %v5964
      %v6371 = vunpack.c.l.b16 %v5965
      %v6372 = vunpack.c.l.b16 %v5966
      %v6373 = vunpack.c.l.b16 %v5967
      %v6374 = vunpack.c.l.b16 %v5968
      %v6375 = vunpack.c.l.b16 %v5969
      %v6376 = vunpack.c.l.b16 %v5970
      %v6377 = vunpack.c.l.b16 %v5971
      %v6378 = vunpack.c.l.b16 %v5972
      %v6379 = vunpack.c.l.b16 %v5973
      %v6380 = vunpack.c.l.b16 %v5974
      %v6381 = vunpack.c.l.b16 %v5975
      %v6382 = vunpack.c.l.b16 %v5976
      %v6383 = vunpack.c.l.b16 %v5977
      %v6384 = vunpack.c.l.b16 %v5978
      %v6385 = vunpack.c.l.b16 %v5979
      %v6386 = vunpack.c.l.b16 %v5980
      %v6387 = vunpack.c.l.b16 %v5981
      %v6388 = vunpack.c.l.b16 %v5982
      %v6389 = vunpack.c.l.b16 %v5983
      %v6390 = vunpack.c.l.b16 %v5984
      %v6391 = vunpack.c.l.b16 %v5985
      %v6392 = vunpack.c.l.b16 %v5986
      %v6393 = vunpack.c.l.b16 %v5987
      %v6394 = vunpack.c.l.b16 %v5988
      %v6395 = vunpack.c.l.b16 %v5989
      %v6396 = vunpack.c.l.b16 %v5990
      %v6397 = vunpack.c.l.b16 %v5991
      %v6398 = vunpack.c.l.b16 %v5992
      %v6399 = vunpack.c.l.b16 %v5993
      %v6400 = vunpack.c.l.b16 %v5994
      %v6401 = vunpack.c.l.b16 %v5995
      %v6402 = vunpack.c.l.b16 %v5996
      %v6403 = vunpack.c.l.b16 %v5997
      %v6404 = vunpack.c.l.b16 %v5998
      %v6405 = vunpack.c.l.b16 %v5999
      %v6406 = vunpack.c.l.b16 %v6000
      %v6407 = vunpack.c.l.b16 %v6001
      %v6408 = vunpack.c.l.b16 %v6002
      %v6409 = vunpack.c.l.b16 %v6003
      %v6410 = vunpack.c.l.b16 %v6004
      %v6411 = vpack.c.b16 %v6212, %v6211
      %v6412 = vpack.c.b16 %v6214, %v6213
      %v6413 = vpack.c.b16 %v6216, %v6215
      %v6414 = vpack.c.b16 %v6218, %v6217
      %v6415 = vpack.c.b16 %v6220, %v6219
      %v6416 = vpack.c.b16 %v6222, %v6221
      %v6417 = vpack.c.b16 %v6224, %v6223
      %v6418 = vpack.c.b16 %v6226, %v6225
      %v6419 = vpack.c.b16 %v6228, %v6227
      %v6420 = vpack.c.b16 %v6230, %v6229
      %v6421 = vpack.c.b16 %v6232, %v6231
      %v6422 = vpack.c.b16 %v6234, %v6233
      %v6423 = vpack.c.b16 %v6236, %v6235
      %v6424 = vpack.c.b16 %v6238, %v6237
      %v6425 = vpack.c.b16 %v6240, %v6239
      %v6426 = vpack.c.b16 %v6242, %v6241
      %v6427 = vpack.c.b16 %v6244, %v6243
      %v6428 = vpack.c.b16 %v6246, %v6245
      %v6429 = vpack.c.b16 %v6248, %v6247
      %v6430 = vpack.c.b16 %v6250, %v6249
      %v6431 = vpack.c.b16 %v6252, %v6251
      %v6432 = vpack.c.b16 %v6254, %v6253
      %v6433 = vpack.c.b16 %v6256, %v6255
      %v6434 = vpack.c.b16 %v6258, %v6257
      %v6435 = vpack.c.b16 %v6260, %v6259
      %v6436 = vpack.c.b16 %v6262, %v6261
      %v6437 = vpack.c.b16 %v6264, %v6263
      %v6438 = vpack.c.b16 %v6266, %v6265
      %v6439 = vpack.c.b16 %v6268, %v6267
      %v6440 = vpack.c.b16 %v6270, %v6269
      %v6441 = vpack.c.b16 %v6272, %v6271
      %v6442 = vpack.c.b16 %v6274, %v6273
      %v6443 = vpack.c.b16 %v6276, %v6275
      %v6444 = vpack.c.b16 %v6278, %v6277
      %v6445 = vpack.c.b16 %v6280, %v6279
      %v6446 = vpack.c.b16 %v6282, %v6281
      %v6447 = vpack.c.b16 %v6284, %v6283
      %v6448 = vpack.c.b16 %v6286, %v6285
      %v6449 = vpack.c.b16 %v6288, %v6287
      %v6450 = vpack.c.b16 %v6290, %v6289
      %v6451 = vpack.c.b16 %v6292, %v6291
      %v6452 = vpack.c.b16 %v6294, %v6293
      %v6453 = vpack.c.b16 %v6296, %v6295
      %v6454 = vpack.c.b16 %v6298, %v6297
      %v6455 = vpack.c.b16 %v6300, %v6299
      %v6456 = vpack.c.b16 %v6302, %v6301
      %v6457 = vpack.c.b16 %v6304, %v6303
      %v6458 = vpack.c.b16 %v6306, %v6305
      %v6459 = vpack.c.b16 %v6308, %v6307
      %v6460 = vpack.c.b16 %v6310, %v6309
      %v6461 = vpack.c.b16 %v6312, %v6311
      %v6462 = vpack.c.b16 %v6314, %v6313
      %v6463 = vpack.c.b16 %v6316, %v6315
      %v6464 = vpack.c.b16 %v6318, %v6317
      %v6465 = vpack.c.b16 %v6320, %v6319
      %v6466 = vpack.c.b16 %v6322, %v6321
      %v6467 = vpack.c.b16 %v6324, %v6323
      %v6468 = vpack.c.b16 %v6326, %v6325
      %v6469 = vpack.c.b16 %v6328, %v6327
      %v6470 = vpack.c.b16 %v6330, %v6329
      %v6471 = vpack.c.b16 %v6332, %v6331
      %v6472 = vpack.c.b16 %v6334, %v6333
      %v6473 = vpack.c.b16 %v6336, %v6335
      %v6474 = vpack.c.b16 %v6338, %v6337
      %v6475 = vpack.c.b16 %v6340, %v6339
      %v6476 = vpack.c.b16 %v6342, %v6341
      %v6477 = vpack.c.b16 %v6344, %v6343
      %v6478 = vpack.c.b16 %v6346, %v6345
      %v6479 = vpack.c.b16 %v6348, %v6347
      %v6480 = vpack.c.b16 %v6350, %v6349
      %v6481 = vpack.c.b16 %v6352, %v6351
      %v6482 = vpack.c.b16 %v6354, %v6353
      %v6483 = vpack.c.b16 %v6356, %v6355
      %v6484 = vpack.c.b16 %v6358, %v6357
      %v6485 = vpack.c.b16 %v6360, %v6359
      %v6486 = vpack.c.b16 %v6362, %v6361
      %v6487 = vpack.c.b16 %v6364, %v6363
      %v6488 = vpack.c.b16 %v6366, %v6365
      %v6489 = vpack.c.b16 %v6368, %v6367
      %v6490 = vpack.c.b16 %v6370, %v6369
      %v6491 = vpack.c.b16 %v6372, %v6371
      %v6492 = vpack.c.b16 %v6374, %v6373
      %v6493 = vpack.c.b16 %v6376, %v6375
      %v6494 = vpack.c.b16 %v6378, %v6377
      %v6495 = vpack.c.b16 %v6380, %v6379
      %v6496 = vpack.c.b16 %v6382, %v6381
      %v6497 = vpack.c.b16 %v6384, %v6383
      %v6498 = vpack.c.b16 %v6386, %v6385
      %v6499 = vpack.c.b16 %v6388, %v6387
      %v6500 = vpack.c.b16 %v6390, %v6389
      %v6501 = vpack.c.b16 %v6392, %v6391
      %v6502 = vpack.c.b16 %v6394, %v6393
      %v6503 = vpack.c.b16 %v6396, %v6395
      %v6504 = vpack.c.b16 %v6398, %v6397
      %v6505 = vpack.c.b16 %v6400, %v6399
      %v6506 = vpack.c.b16 %v6402, %v6401
      %v6507 = vpack.c.b16 %v6404, %v6403
      %v6508 = vpack.c.b16 %v6406, %v6405
      %v6509 = vpack.c.b16 %v6408, %v6407
      %v6510 = vpack.c.b16 %v6410, %v6409
      %v6612 = vsel %vm5231, %v5774, 0
      %v6615 = vsel %vm5231, %v5784, 0
      %v6618 = vsel %vm5231, %v5794, 0
      %v6621 = vsel %vm5231, %v5804, 0
      %6623 = vmatprep.subr.bf16.mxu0 0
      %6624 = vmatpush1.bf16.msra.mxu0 %v6418
      %6625 = vmatprep.subr.bf16.mxu0 0
      %6626 = vmatpush1.bf16.msra.mxu0 %v6417
      %6627 = vmatprep.subr.bf16.mxu0 0
      %6628 = vmatpush1.bf16.msra.mxu0 %v6416
      %6629 = vmatprep.subr.bf16.mxu0 0
      %6630 = vmatpush1.bf16.msra.mxu0 %v6415
      %6631 = vmatprep.subr.bf16.mxu0 0
      %6632 = vmatpush1.bf16.msra.mxu0 %v6414
      %6633 = vmatprep.subr.bf16.mxu0 0
      %6634 = vmatpush1.bf16.msra.mxu0 %v6413
      %6635 = vmatprep.subr.bf16.mxu0 0
      %6636 = vmatpush1.bf16.msra.mxu0 %v6412
      %6637 = vmatprep.subr.bf16.mxu0 0
      %6638 = vmatpush1.bf16.msra.mxu0 %v6411
      %6639 = vmatprep.subr.bf16.mxu0 0
      %6640 = vmatpush2.bf16.msra.mxu0 %v6426
      %6641 = vmatprep.subr.bf16.mxu0 0
      %6642 = vmatpush2.bf16.msra.mxu0 %v6425
      %6643 = vmatprep.subr.bf16.mxu0 0
      %6644 = vmatpush2.bf16.msra.mxu0 %v6424
      %6645 = vmatprep.subr.bf16.mxu0 0
      %6646 = vmatpush2.bf16.msra.mxu0 %v6423
      %6647 = vmatprep.subr.bf16.mxu0 0
      %6648 = vmatpush2.bf16.msra.mxu0 %v6422
      %6649 = vmatprep.subr.bf16.mxu0 0
      %6650 = vmatpush2.bf16.msra.mxu0 %v6421
      %6651 = vmatprep.subr.bf16.mxu0 0
      %6652 = vmatpush2.bf16.msra.mxu0 %v6420
      %6653 = vmatprep.subr.bf16.mxu0 0
      %6654 = vmatpush2.bf16.msra.mxu0 %v6419
      %6655 = vmatprep.mubr.bf16.mxu0 %v5763
      %6656 = vmatmul.mubr.bf16.gmra.mxu0 %v5762
      %v6657 = vpop.f32.mrf.mxu0
      %v6658 = vadd.f32 %v6009, %v6657
      %v6659 = vpop.f32.mrf.mxu0
      %v6660 = vpop.f32.mrf.mxu0
      %v6661 = vadd.f32 %v6009, %v6660
      %v6662 = vpop.f32.mrf.mxu0
      %6663 = vmatprep.mubr.bf16.mxu0 %v5775
      %6664 = vmatmul.mubr.bf16.gmra.mxu0 %v5763
      %v6665 = vpop.f32.mrf.mxu0
      %v6666 = vadd.f32 %v6009, %v6665
      %v6667 = vpop.f32.mrf.mxu0
      %v6668 = vpop.f32.mrf.mxu0
      %v6669 = vadd.f32 %v6009, %v6668
      %v6670 = vpop.f32.mrf.mxu0
      %6671 = vmatprep.mubr.bf16.mxu0 %v5785
      %6672 = vmatmul.mubr.bf16.gmra.mxu0 %v5775
      %v6673 = vpop.f32.mrf.mxu0
      %v6674 = vadd.f32 %v6009, %v6673
      %v6675 = vpop.f32.mrf.mxu0
      %v6676 = vpop.f32.mrf.mxu0
      %v6677 = vadd.f32 %v6009, %v6676
      %v6678 = vpop.f32.mrf.mxu0
      %6679 = vmatprep.mubr.bf16.mxu0 %v5795
      %6680 = vmatmul.mubr.bf16.gmra.mxu0 %v5785
      %v6681 = vpop.f32.mrf.mxu0
      %v6682 = vadd.f32 %v6009, %v6681
      %v6683 = vpop.f32.mrf.mxu0
      %v6684 = vpop.f32.mrf.mxu0
      %v6685 = vadd.f32 %v6009, %v6684
      %v6686 = vpop.f32.mrf.mxu0
      %6687 = vdwg.mxu0
      %6688 = vmatprep.subr.bf16.mxu0 0
      %6689 = vmatpush1.bf16.msra.mxu0 %v6434
      %6690 = vmatprep.subr.bf16.mxu0 0
      %6691 = vmatpush1.bf16.msra.mxu0 %v6433
      %6692 = vmatprep.subr.bf16.mxu0 0
      %6693 = vmatpush1.bf16.msra.mxu0 %v6432
      %6694 = vmatprep.subr.bf16.mxu0 0
      %6695 = vmatpush1.bf16.msra.mxu0 %v6431
      %6696 = vmatprep.subr.bf16.mxu0 0
      %6697 = vmatpush1.bf16.msra.mxu0 %v6430
      %6698 = vmatprep.subr.bf16.mxu0 0
      %6699 = vmatpush1.bf16.msra.mxu0 %v6429
      %6700 = vmatprep.subr.bf16.mxu0 0
      %6701 = vmatpush1.bf16.msra.mxu0 %v6428
      %6702 = vmatprep.subr.bf16.mxu0 0
      %6703 = vmatpush1.bf16.msra.mxu0 %v6427
      %6704 = vmatprep.subr.bf16.mxu0 0
      %6705 = vmatpush2.bf16.msra.mxu0 %v6442
      %6706 = vmatprep.subr.bf16.mxu0 0
      %6707 = vmatpush2.bf16.msra.mxu0 %v6441
      %6708 = vmatprep.subr.bf16.mxu0 0
      %6709 = vmatpush2.bf16.msra.mxu0 %v6440
      %6710 = vmatprep.subr.bf16.mxu0 0
      %6711 = vmatpush2.bf16.msra.mxu0 %v6439
      %6712 = vmatprep.subr.bf16.mxu0 0
      %6713 = vmatpush2.bf16.msra.mxu0 %v6438
      %6714 = vmatprep.subr.bf16.mxu0 0
      %6715 = vmatpush2.bf16.msra.mxu0 %v6437
      %6716 = vmatprep.subr.bf16.mxu0 0
      %6717 = vmatpush2.bf16.msra.mxu0 %v6436
      %6718 = vmatprep.subr.bf16.mxu0 0
      %6719 = vmatpush2.bf16.msra.mxu0 %v6435
      %6720 = vmatprep.mubr.bf16.mxu0 %v5765
      %6721 = vmatmul.mubr.bf16.gmra.mxu0 %v5764
      %v6722 = vpop.f32.mrf.mxu0
      %v6723 = vadd.f32 %v6658, %v6722
      %v6724 = vpop.f32.mrf.mxu0
      %v6725 = vpop.f32.mrf.mxu0
      %v6726 = vadd.f32 %v6661, %v6725
      %v6727 = vpop.f32.mrf.mxu0
      %6728 = vmatprep.mubr.bf16.mxu0 %v5777
      %6729 = vmatmul.mubr.bf16.gmra.mxu0 %v5776
      %v6730 = vpop.f32.mrf.mxu0
      %v6731 = vadd.f32 %v6666, %v6730
      %v6732 = vpop.f32.mrf.mxu0
      %v6733 = vpop.f32.mrf.mxu0
      %v6734 = vadd.f32 %v6669, %v6733
      %v6735 = vpop.f32.mrf.mxu0
      %6736 = vmatprep.mubr.bf16.mxu0 %v5787
      %6737 = vmatmul.mubr.bf16.gmra.mxu0 %v5786
      %v6738 = vpop.f32.mrf.mxu0
      %v6739 = vadd.f32 %v6674, %v6738
      %v6740 = vpop.f32.mrf.mxu0
      %v6741 = vpop.f32.mrf.mxu0
      %v6742 = vadd.f32 %v6677, %v6741
      %v6743 = vpop.f32.mrf.mxu0
      %6744 = vmatprep.mubr.bf16.mxu0 %v5797
      %6745 = vmatmul.mubr.bf16.gmra.mxu0 %v5796
      %v6746 = vpop.f32.mrf.mxu0
      %v6747 = vadd.f32 %v6682, %v6746
      %v6748 = vpop.f32.mrf.mxu0
      %v6749 = vpop.f32.mrf.mxu0
      %v6750 = vadd.f32 %v6685, %v6749
      %v6751 = vpop.f32.mrf.mxu0
      %6752 = vdwg.mxu0
      %6753 = vmatprep.subr.bf16.mxu0 0
      %6754 = vmatpush1.bf16.msra.mxu0 %v6450
      %6755 = vmatprep.subr.bf16.mxu0 0
      %6756 = vmatpush1.bf16.msra.mxu0 %v6449
      %6757 = vmatprep.subr.bf16.mxu0 0
      %6758 = vmatpush1.bf16.msra.mxu0 %v6448
      %6759 = vmatprep.subr.bf16.mxu0 0
      %6760 = vmatpush1.bf16.msra.mxu0 %v6447
      %6761 = vmatprep.subr.bf16.mxu0 0
      %6762 = vmatpush1.bf16.msra.mxu0 %v6446
      %6763 = vmatprep.subr.bf16.mxu0 0
      %6764 = vmatpush1.bf16.msra.mxu0 %v6445
      %6765 = vmatprep.subr.bf16.mxu0 0
      %6766 = vmatpush1.bf16.msra.mxu0 %v6444
      %6767 = vmatprep.subr.bf16.mxu0 0
      %6768 = vmatpush1.bf16.msra.mxu0 %v6443
      %6769 = vmatprep.subr.bf16.mxu0 0
      %6770 = vmatpush2.bf16.msra.mxu0 %v6458
      %6771 = vmatprep.subr.bf16.mxu0 0
      %6772 = vmatpush2.bf16.msra.mxu0 %v6457
      %6773 = vmatprep.subr.bf16.mxu0 0
      %6774 = vmatpush2.bf16.msra.mxu0 %v6456
      %6775 = vmatprep.subr.bf16.mxu0 0
      %6776 = vmatpush2.bf16.msra.mxu0 %v6455
      %6777 = vmatprep.subr.bf16.mxu0 0
      %6778 = vmatpush2.bf16.msra.mxu0 %v6454
      %6779 = vmatprep.subr.bf16.mxu0 0
      %6780 = vmatpush2.bf16.msra.mxu0 %v6453
      %6781 = vmatprep.subr.bf16.mxu0 0
      %6782 = vmatpush2.bf16.msra.mxu0 %v6452
      %6783 = vmatprep.subr.bf16.mxu0 0
      %6784 = vmatpush2.bf16.msra.mxu0 %v6451
      %6785 = vmatprep.mubr.bf16.mxu0 %v5767
      %6786 = vmatmul.mubr.bf16.gmra.mxu0 %v5766
      %v6787 = vpop.f32.mrf.mxu0
      %v6788 = vadd.f32 %v6723, %v6787
      %v6789 = vpop.f32.mrf.mxu0
      %v6790 = vpop.f32.mrf.mxu0
      %v6791 = vadd.f32 %v6726, %v6790
      %v6792 = vpop.f32.mrf.mxu0
      %6793 = vmatprep.mubr.bf16.mxu0 %v5768
      %6794 = vmatmul.mubr.bf16.gmra.mxu0 %v5778
      %v6795 = vpop.f32.mrf.mxu0
      %v6796 = vadd.f32 %v6731, %v6795
      %v6797 = vpop.f32.mrf.mxu0
      %v6798 = vpop.f32.mrf.mxu0
      %v6799 = vadd.f32 %v6734, %v6798
      %v6800 = vpop.f32.mrf.mxu0
      %6801 = vmatprep.mubr.bf16.mxu0 %v5779
      %6802 = vmatmul.mubr.bf16.gmra.mxu0 %v5788
      %v6803 = vpop.f32.mrf.mxu0
      %v6804 = vadd.f32 %v6739, %v6803
      %v6805 = vpop.f32.mrf.mxu0
      %v6806 = vpop.f32.mrf.mxu0
      %v6807 = vadd.f32 %v6742, %v6806
      %v6808 = vpop.f32.mrf.mxu0
      %6809 = vmatprep.mubr.bf16.mxu0 %v5789
      %6810 = vmatmul.mubr.bf16.gmra.mxu0 %v5798
      %v6811 = vpop.f32.mrf.mxu0
      %v6812 = vadd.f32 %v6747, %v6811
      %v6813 = vpop.f32.mrf.mxu0
      %v6814 = vpop.f32.mrf.mxu0
      %v6815 = vadd.f32 %v6750, %v6814
      %v6816 = vpop.f32.mrf.mxu0
      %6817 = vdwg.mxu0
      %6818 = vmatprep.subr.bf16.mxu0 0
      %6819 = vmatpush1.bf16.msra.mxu0 %v6466
      %6820 = vmatprep.subr.bf16.mxu0 0
      %6821 = vmatpush1.bf16.msra.mxu0 %v6465
      %6822 = vmatprep.subr.bf16.mxu0 0
      %6823 = vmatpush1.bf16.msra.mxu0 %v6464
      %6824 = vmatprep.subr.bf16.mxu0 0
      %6825 = vmatpush1.bf16.msra.mxu0 %v6463
      %6826 = vmatprep.subr.bf16.mxu0 0
      %6827 = vmatpush1.bf16.msra.mxu0 %v6462
      %6828 = vmatprep.subr.bf16.mxu0 0
      %6829 = vmatpush1.bf16.msra.mxu0 %v6461
      %6830 = vmatprep.subr.bf16.mxu0 0
      %6831 = vmatpush1.bf16.msra.mxu0 %v6460
      %6832 = vmatprep.subr.bf16.mxu0 0
      %6833 = vmatpush1.bf16.msra.mxu0 %v6459
      %6834 = vmatprep.subr.bf16.mxu0 0
      %6835 = vmatpush2.bf16.msra.mxu0 %v6474
      %6836 = vmatprep.subr.bf16.mxu0 0
      %6837 = vmatpush2.bf16.msra.mxu0 %v6473
      %6838 = vmatprep.subr.bf16.mxu0 0
      %6839 = vmatpush2.bf16.msra.mxu0 %v6472
      %6840 = vmatprep.subr.bf16.mxu0 0
      %6841 = vmatpush2.bf16.msra.mxu0 %v6471
      %6842 = vmatprep.subr.bf16.mxu0 0
      %6843 = vmatpush2.bf16.msra.mxu0 %v6470
      %6844 = vmatprep.subr.bf16.mxu0 0
      %6845 = vmatpush2.bf16.msra.mxu0 %v6469
      %6846 = vmatprep.subr.bf16.mxu0 0
      %6847 = vmatpush2.bf16.msra.mxu0 %v6468
      %6848 = vmatprep.subr.bf16.mxu0 0
      %6849 = vmatpush2.bf16.msra.mxu0 %v6467
      %6850 = vmatprep.mubr.bf16.mxu0 %v5769
      %6851 = vmatmul.mubr.bf16.gmra.mxu0 %v5768
      %v6852 = vpop.f32.mrf.mxu0
      %v6853 = vadd.f32 %v6788, %v6852
      %v6854 = vpop.f32.mrf.mxu0
      %v6855 = vpop.f32.mrf.mxu0
      %v6856 = vadd.f32 %v6791, %v6855
      %v6857 = vpop.f32.mrf.mxu0
      %6858 = vmatprep.mubr.bf16.mxu0 %v5780
      %6859 = vmatmul.mubr.bf16.gmra.mxu0 %v5779
      %v6860 = vpop.f32.mrf.mxu0
      %v6861 = vadd.f32 %v6796, %v6860
      %v6862 = vpop.f32.mrf.mxu0
      %v6863 = vpop.f32.mrf.mxu0
      %v6864 = vadd.f32 %v6799, %v6863
      %v6865 = vpop.f32.mrf.mxu0
      %6866 = vmatprep.mubr.bf16.mxu0 %v5790
      %6867 = vmatmul.mubr.bf16.gmra.mxu0 %v5789
      %v6868 = vpop.f32.mrf.mxu0
      %v6869 = vadd.f32 %v6804, %v6868
      %v6870 = vpop.f32.mrf.mxu0
      %v6871 = vpop.f32.mrf.mxu0
      %v6872 = vadd.f32 %v6807, %v6871
      %v6873 = vpop.f32.mrf.mxu0
      %6874 = vmatprep.mubr.bf16.mxu0 %v5800
      %6875 = vmatmul.mubr.bf16.gmra.mxu0 %v5799
      %v6876 = vpop.f32.mrf.mxu0
      %v6877 = vadd.f32 %v6812, %v6876
      %v6878 = vpop.f32.mrf.mxu0
      %v6879 = vpop.f32.mrf.mxu0
      %v6880 = vadd.f32 %v6815, %v6879
      %v6881 = vpop.f32.mrf.mxu0
      %6882 = vdwg.mxu0
      %6883 = vmatprep.subr.bf16.mxu0 0
      %6884 = vmatpush1.bf16.msra.mxu0 %v6482
      %6885 = vmatprep.subr.bf16.mxu0 0
      %6886 = vmatpush1.bf16.msra.mxu0 %v6481
      %6887 = vmatprep.subr.bf16.mxu0 0
      %6888 = vmatpush1.bf16.msra.mxu0 %v6480
      %6889 = vmatprep.subr.bf16.mxu0 0
      %6890 = vmatpush1.bf16.msra.mxu0 %v6479
      %6891 = vmatprep.subr.bf16.mxu0 0
      %6892 = vmatpush1.bf16.msra.mxu0 %v6478
      %6893 = vmatprep.subr.bf16.mxu0 0
      %6894 = vmatpush1.bf16.msra.mxu0 %v6477
      %6895 = vmatprep.subr.bf16.mxu0 0
      %6896 = vmatpush1.bf16.msra.mxu0 %v6476
      %6897 = vmatprep.subr.bf16.mxu0 0
      %6898 = vmatpush1.bf16.msra.mxu0 %v6475
      %6899 = vmatprep.subr.bf16.mxu0 0
      %6900 = vmatpush2.bf16.msra.mxu0 %v6490
      %6901 = vmatprep.subr.bf16.mxu0 0
      %6902 = vmatpush2.bf16.msra.mxu0 %v6489
      %6903 = vmatprep.subr.bf16.mxu0 0
      %6904 = vmatpush2.bf16.msra.mxu0 %v6488
      %6905 = vmatprep.subr.bf16.mxu0 0
      %6906 = vmatpush2.bf16.msra.mxu0 %v6487
      %6907 = vmatprep.subr.bf16.mxu0 0
      %6908 = vmatpush2.bf16.msra.mxu0 %v6486
      %6909 = vmatprep.subr.bf16.mxu0 0
      %6910 = vmatpush2.bf16.msra.mxu0 %v6485
      %6911 = vmatprep.subr.bf16.mxu0 0
      %6912 = vmatpush2.bf16.msra.mxu0 %v6484
      %6913 = vmatprep.subr.bf16.mxu0 0
      %6914 = vmatpush2.bf16.msra.mxu0 %v6483
      %6915 = vmatprep.mubr.bf16.mxu0 %v5771
      %6916 = vmatmul.mubr.bf16.gmra.mxu0 %v5770
      %v6917 = vpop.f32.mrf.mxu0
      %v6918 = vadd.f32 %v6853, %v6917
      %v6919 = vpop.f32.mrf.mxu0
      %v6920 = vpop.f32.mrf.mxu0
      %v6921 = vadd.f32 %v6856, %v6920
      %v6922 = vpop.f32.mrf.mxu0
      %6923 = vmatprep.mubr.bf16.mxu0 %v5782
      %6924 = vmatmul.mubr.bf16.gmra.mxu0 %v5781
      %v6925 = vpop.f32.mrf.mxu0
      %v6926 = vadd.f32 %v6861, %v6925
      %v6927 = vpop.f32.mrf.mxu0
      %v6928 = vpop.f32.mrf.mxu0
      %v6929 = vadd.f32 %v6864, %v6928
      %v6930 = vpop.f32.mrf.mxu0
      %6931 = vmatprep.mubr.bf16.mxu0 %v5792
      %6932 = vmatmul.mubr.bf16.gmra.mxu0 %v5791
      %v6933 = vpop.f32.mrf.mxu0
      %v6934 = vadd.f32 %v6869, %v6933
      %v6935 = vpop.f32.mrf.mxu0
      %v6936 = vpop.f32.mrf.mxu0
      %v6937 = vadd.f32 %v6872, %v6936
      %v6938 = vpop.f32.mrf.mxu0
      %6939 = vmatprep.mubr.bf16.mxu0 %v5802
      %6940 = vmatmul.mubr.bf16.gmra.mxu0 %v5801
      %v6941 = vpop.f32.mrf.mxu0
      %v6942 = vadd.f32 %v6877, %v6941
      %v6943 = vpop.f32.mrf.mxu0
      %v6944 = vpop.f32.mrf.mxu0
      %v6945 = vadd.f32 %v6880, %v6944
      %v6946 = vpop.f32.mrf.mxu0
      %6947 = vdwg.mxu0
      %6948 = vmatprep.subr.bf16.mxu0 0
      %6949 = vmatpush1.bf16.msra.mxu0 %v6498
      %6950 = vmatprep.subr.bf16.mxu0 0
      %6951 = vmatpush1.bf16.msra.mxu0 %v6497
      %6952 = vmatprep.subr.bf16.mxu0 0
      %6953 = vmatpush1.bf16.msra.mxu0 %v6496
      %6954 = vmatprep.subr.bf16.mxu0 0
      %6955 = vmatpush1.bf16.msra.mxu0 %v6495
      %6956 = vmatprep.subr.bf16.mxu0 0
      %6957 = vmatpush1.bf16.msra.mxu0 %v6494
      %6958 = vmatprep.subr.bf16.mxu0 0
      %6959 = vmatpush1.bf16.msra.mxu0 %v6493
      %6960 = vmatprep.subr.bf16.mxu0 0
      %6961 = vmatpush1.bf16.msra.mxu0 %v6492
      %6962 = vmatprep.subr.bf16.mxu0 0
      %6963 = vmatpush1.bf16.msra.mxu0 %v6491
      %6964 = vmatprep.subr.bf16.mxu0 0
      %6965 = vmatpush2.bf16.msra.mxu0 %v6506
      %6966 = vmatprep.subr.bf16.mxu0 0
      %6967 = vmatpush2.bf16.msra.mxu0 %v6505
      %6968 = vmatprep.subr.bf16.mxu0 0
      %6969 = vmatpush2.bf16.msra.mxu0 %v6504
      %6970 = vmatprep.subr.bf16.mxu0 0
      %6971 = vmatpush2.bf16.msra.mxu0 %v6503
      %6972 = vmatprep.subr.bf16.mxu0 0
      %6973 = vmatpush2.bf16.msra.mxu0 %v6502
      %6974 = vmatprep.subr.bf16.mxu0 0
      %6975 = vmatpush2.bf16.msra.mxu0 %v6501
      %6976 = vmatprep.subr.bf16.mxu0 0
      %6977 = vmatpush2.bf16.msra.mxu0 %v6500
      %6978 = vmatprep.subr.bf16.mxu0 0
      %6979 = vmatpush2.bf16.msra.mxu0 %v6499
      %6980 = vmatprep.mubr.bf16.mxu0 %v5773
      %6981 = vmatmul.mubr.bf16.gmra.mxu0 %v5772
      %v6982 = vpop.f32.mrf.mxu0
      %v6983 = vadd.f32 %v6918, %v6982
      %v6984 = vpop.f32.mrf.mxu0
      %v6985 = vpop.f32.mrf.mxu0
      %v6986 = vadd.f32 %v6921, %v6985
      %v6987 = vpop.f32.mrf.mxu0
      %6988 = vmatprep.mubr.bf16.mxu0 %v5783
      %6989 = vmatmul.mubr.bf16.gmra.mxu0 %v5773
      %v6990 = vpop.f32.mrf.mxu0
      %v6991 = vadd.f32 %v6926, %v6990
      %v6992 = vpop.f32.mrf.mxu0
      %v6993 = vpop.f32.mrf.mxu0
      %v6994 = vadd.f32 %v6929, %v6993
      %v6995 = vpop.f32.mrf.mxu0
      %6996 = vmatprep.mubr.bf16.mxu0 %v5793
      %6997 = vmatmul.mubr.bf16.gmra.mxu0 %v5783
      %v6998 = vpop.f32.mrf.mxu0
      %v6999 = vadd.f32 %v6934, %v6998
      %v7000 = vpop.f32.mrf.mxu0
      %v7001 = vpop.f32.mrf.mxu0
      %v7002 = vadd.f32 %v6937, %v7001
      %v7003 = vpop.f32.mrf.mxu0
      %7004 = vmatprep.mubr.bf16.mxu0 %v5803
      %7005 = vmatmul.mubr.bf16.gmra.mxu0 %v5793
      %v7006 = vpop.f32.mrf.mxu0
      %v7007 = vadd.f32 %v6942, %v7006
      %v7008 = vpop.f32.mrf.mxu0
      %v7009 = vpop.f32.mrf.mxu0
      %v7010 = vadd.f32 %v6945, %v7009
      %v7011 = vpop.f32.mrf.mxu0
      %7012 = vdwg.mxu0
      %7013 = vmatprep.subr.bf16.mxu0 0
      %7014 = vmatpush1.bf16.msra.mxu0 0
      %7015 = vmatprep.subr.bf16.mxu0 0
      %7016 = vmatpush1.bf16.msra.mxu0 0
      %7017 = vmatprep.subr.bf16.mxu0 0
      %7018 = vmatpush1.bf16.msra.mxu0 0
      %7019 = vmatprep.subr.bf16.mxu0 0
      %7020 = vmatpush1.bf16.msra.mxu0 0
      %7021 = vmatprep.subr.bf16.mxu0 0
      %7022 = vmatpush1.bf16.msra.mxu0 %v6510
      %7023 = vmatprep.subr.bf16.mxu0 0
      %7024 = vmatpush1.bf16.msra.mxu0 %v6509
      %7025 = vmatprep.subr.bf16.mxu0 0
      %7026 = vmatpush1.bf16.msra.mxu0 %v6508
      %7027 = vmatprep.subr.bf16.mxu0 0
      %7028 = vmatpush1.bf16.msra.mxu0 %v6507
      %7029 = vmatprep.subr.bf16.mxu0 0
      %7030 = vmatpush2.bf16.msra.mxu0 0
      %7031 = vmatprep.subr.bf16.mxu0 0
      %7032 = vmatpush2.bf16.msra.mxu0 0
      %7033 = vmatprep.subr.bf16.mxu0 0
      %7034 = vmatpush2.bf16.msra.mxu0 0
      %7035 = vmatprep.subr.bf16.mxu0 0
      %7036 = vmatpush2.bf16.msra.mxu0 0
      %7037 = vmatprep.subr.bf16.mxu0 0
      %7038 = vmatpush2.bf16.msra.mxu0 0
      %7039 = vmatprep.subr.bf16.mxu0 0
      %7040 = vmatpush2.bf16.msra.mxu0 0
      %7041 = vmatprep.subr.bf16.mxu0 0
      %7042 = vmatpush2.bf16.msra.mxu0 0
      %7043 = vmatprep.subr.bf16.mxu0 0
      %7044 = vmatpush2.bf16.msra.mxu0 0
      %7045 = vmatprep.mubr.bf16.mxu0 0
      %7046 = vmatmul.mubr.bf16.gmra.mxu0 %v6612
      %v7047 = vpop.f32.mrf.mxu0
      %v7048 = vadd.f32 %v6983, %v7047
      %v7049 = vpop.f32.mrf.mxu0
      %v7050 = vpop.f32.mrf.mxu0
      %v7051 = vadd.f32 %v6986, %v7050
      %v7052 = vpop.f32.mrf.mxu0
      %7053 = vmatprep.mubr.bf16.mxu0 0
      %7054 = vmatmul.mubr.bf16.gmra.mxu0 %v6615
      %v7055 = vpop.f32.mrf.mxu0
      %v7056 = vadd.f32 %v6991, %v7055
      %v7057 = vpop.f32.mrf.mxu0
      %v7058 = vpop.f32.mrf.mxu0
      %v7059 = vadd.f32 %v6994, %v7058
      %v7060 = vpop.f32.mrf.mxu0
      %7061 = vmatprep.mubr.bf16.mxu0 0
      %7062 = vmatmul.mubr.bf16.gmra.mxu0 %v6618
      %v7063 = vpop.f32.mrf.mxu0
      %v7064 = vadd.f32 %v6999, %v7063
      %v7065 = vpop.f32.mrf.mxu0
      %v7066 = vpop.f32.mrf.mxu0
      %v7067 = vadd.f32 %v7002, %v7066
      %v7068 = vpop.f32.mrf.mxu0
      %7069 = vmatprep.mubr.bf16.mxu0 0
      %7070 = vmatmul.mubr.bf16.gmra.mxu0 %v6621
      %v7071 = vpop.f32.mrf.mxu0
      %v7072 = vadd.f32 %v7007, %v7071
      %v7073 = vpop.f32.mrf.mxu0
      %v7074 = vpop.f32.mrf.mxu0
      %v7075 = vadd.f32 %v7010, %v7074
      %v7076 = vpop.f32.mrf.mxu0
      %7077 = vdwg.mxu0
      %v7078 = vmax.f32 %v7048, 0.0
      %v7079 = vmax.f32 %v7051, 0.0
      %v7080 = vmax.f32 %v7056, 0.0
      %v7081 = vmax.f32 %v7059, 0.0
      %v7082 = vmax.f32 %v7064, 0.0
      %v7083 = vmax.f32 %v7067, 0.0
      %v7084 = vmax.f32 %v7072, 0.0
      %v7085 = vmax.f32 %v7075, 0.0
      %v7086 = vld [vmem:[%s9] sm:$0xff]
      %v7087 = vld [vmem:[%s9 + $0x8] sm:$0xff]
      %v7088 = vld [vmem:[%s9 + $0x10] sm:$0xff]
      %v7089 = vld [vmem:[%s9 + $0x18] sm:$0xff]
      %v7090 = vld [vmem:[%s9 + $0x20] sm:$0xff]
      %v7091 = vld [vmem:[%s9 + $0x28] sm:$0xff]
      %v7092 = vld [vmem:[%s9 + $0x30] sm:$0xff]
      %v7093 = vld [vmem:[%s9 + $0x38] sm:$0xff]
      %v7094 = vmul.f32 %v7086, %v7078
      %v7095 = vmul.f32 %v7087, %v7079
      %v7096 = vmul.f32 %v7088, %v7080
      %v7097 = vmul.f32 %v7089, %v7081
      %v7098 = vmul.f32 %v7090, %v7082
      %v7099 = vmul.f32 %v7091, %v7083
      %v7100 = vmul.f32 %v7092, %v7084
      %v7101 = vmul.f32 %v7093, %v7085
      %7102 = vadd.xlane.f32.xlu0 %v7094
      %v7103 = vpop.xlane.xlu0 %7102
      %7104 = vadd.xlane.f32.xlu0 %v7095
      %v7105 = vpop.xlane.xlu0 %7104
      %7106 = vadd.xlane.f32.xlu0 %v7096
      %v7107 = vpop.xlane.xlu0 %7106
      %7108 = vadd.xlane.f32.xlu0 %v7097
      %v7109 = vpop.xlane.xlu0 %7108
      %7110 = vadd.xlane.f32.xlu0 %v7098
      %v7111 = vpop.xlane.xlu0 %7110
      %7112 = vadd.xlane.f32.xlu0 %v7099
      %v7113 = vpop.xlane.xlu0 %7112
      %7114 = vadd.xlane.f32.xlu0 %v7100
      %v7115 = vpop.xlane.xlu0 %7114
      %7116 = vadd.xlane.f32.xlu0 %v7101
      %v7117 = vpop.xlane.xlu0 %7116
      %v7118 = vadd.f32 %v7103, %v7105
      %v7119 = vadd.f32 %v7118, %v7107
      %v7120 = vadd.f32 %v7119, %v7109
      %v7121 = vadd.f32 %v7120, %v7111
      %v7122 = vadd.f32 %v7121, %v7113
      %v7123 = vadd.f32 %v7122, %v7115
      %v7124 = vadd.f32 %v7123, %v7117
      %v7125 = vrot.slane %v7124, 4
      %v7126 = vadd.f32 %v7124, %v7125
      %v7127 = vrot.slane %v7126, 2
      %v7128 = vadd.f32 %v7126, %v7127
      %v7129 = vrot.slane %v7128, 1
      %v7130 = vadd.f32 %v7128, %v7129
      %s7131 = scalar_lea.vmem %s9, 64
      %v7132 = vld [vmem:[%s7131] sm:$0xff]
      %v7133 = vld [vmem:[%s7131 + $0x8] sm:$0xff]
      %v7134 = vld [vmem:[%s7131 + $0x10] sm:$0xff]
      %v7135 = vld [vmem:[%s7131 + $0x18] sm:$0xff]
      %v7136 = vld [vmem:[%s7131 + $0x20] sm:$0xff]
      %v7137 = vld [vmem:[%s7131 + $0x28] sm:$0xff]
      %v7138 = vld [vmem:[%s7131 + $0x30] sm:$0xff]
      %v7139 = vld [vmem:[%s7131 + $0x38] sm:$0xff]
      %v7140 = vmul.f32 %v7132, %v7078
      %v7141 = vmul.f32 %v7133, %v7079
      %v7142 = vmul.f32 %v7134, %v7080
      %v7143 = vmul.f32 %v7135, %v7081
      %v7144 = vmul.f32 %v7136, %v7082
      %v7145 = vmul.f32 %v7137, %v7083
      %v7146 = vmul.f32 %v7138, %v7084
      %v7147 = vmul.f32 %v7139, %v7085
      %7148 = vadd.xlane.f32.xlu0 %v7140
      %v7149 = vpop.xlane.xlu0 %7148
      %7150 = vadd.xlane.f32.xlu0 %v7141
      %v7151 = vpop.xlane.xlu0 %7150
      %7152 = vadd.xlane.f32.xlu0 %v7142
      %v7153 = vpop.xlane.xlu0 %7152
      %7154 = vadd.xlane.f32.xlu0 %v7143
      %v7155 = vpop.xlane.xlu0 %7154
      %7156 = vadd.xlane.f32.xlu0 %v7144
      %v7157 = vpop.xlane.xlu0 %7156
      %7158 = vadd.xlane.f32.xlu0 %v7145
      %v7159 = vpop.xlane.xlu0 %7158
      %7160 = vadd.xlane.f32.xlu0 %v7146
      %v7161 = vpop.xlane.xlu0 %7160
      %7162 = vadd.xlane.f32.xlu0 %v7147
      %v7163 = vpop.xlane.xlu0 %7162
      %v7164 = vadd.f32 %v7149, %v7151
      %v7165 = vadd.f32 %v7164, %v7153
      %v7166 = vadd.f32 %v7165, %v7155
      %v7167 = vadd.f32 %v7166, %v7157
      %v7168 = vadd.f32 %v7167, %v7159
      %v7169 = vadd.f32 %v7168, %v7161
      %v7170 = vadd.f32 %v7169, %v7163
      %v7171 = vrot.slane %v7170, 4
      %v7172 = vadd.f32 %v7170, %v7171
      %v7173 = vrot.slane %v7172, 2
      %v7174 = vadd.f32 %v7172, %v7173
      %v7175 = vrot.slane %v7174, 1
      %v7176 = vadd.f32 %v7174, %v7175
      %s7177 = scalar_lea.vmem %s9, 128
      %v7178 = vld [vmem:[%s7177] sm:$0xff]
      %v7179 = vld [vmem:[%s7177 + $0x8] sm:$0xff]
      %v7180 = vld [vmem:[%s7177 + $0x10] sm:$0xff]
      %v7181 = vld [vmem:[%s7177 + $0x18] sm:$0xff]
      %v7182 = vld [vmem:[%s7177 + $0x20] sm:$0xff]
      %v7183 = vld [vmem:[%s7177 + $0x28] sm:$0xff]
      %v7184 = vld [vmem:[%s7177 + $0x30] sm:$0xff]
      %v7185 = vld [vmem:[%s7177 + $0x38] sm:$0xff]
      %v7186 = vmul.f32 %v7178, %v7078
      %v7187 = vmul.f32 %v7179, %v7079
      %v7188 = vmul.f32 %v7180, %v7080
      %v7189 = vmul.f32 %v7181, %v7081
      %v7190 = vmul.f32 %v7182, %v7082
      %v7191 = vmul.f32 %v7183, %v7083
      %v7192 = vmul.f32 %v7184, %v7084
      %v7193 = vmul.f32 %v7185, %v7085
      %7194 = vadd.xlane.f32.xlu0 %v7186
      %v7195 = vpop.xlane.xlu0 %7194
      %7196 = vadd.xlane.f32.xlu0 %v7187
      %v7197 = vpop.xlane.xlu0 %7196
      %7198 = vadd.xlane.f32.xlu0 %v7188
      %v7199 = vpop.xlane.xlu0 %7198
      %7200 = vadd.xlane.f32.xlu0 %v7189
      %v7201 = vpop.xlane.xlu0 %7200
      %7202 = vadd.xlane.f32.xlu0 %v7190
      %v7203 = vpop.xlane.xlu0 %7202
      %7204 = vadd.xlane.f32.xlu0 %v7191
      %v7205 = vpop.xlane.xlu0 %7204
      %7206 = vadd.xlane.f32.xlu0 %v7192
      %v7207 = vpop.xlane.xlu0 %7206
      %7208 = vadd.xlane.f32.xlu0 %v7193
      %v7209 = vpop.xlane.xlu0 %7208
      %v7210 = vadd.f32 %v7195, %v7197
      %v7211 = vadd.f32 %v7210, %v7199
      %v7212 = vadd.f32 %v7211, %v7201
      %v7213 = vadd.f32 %v7212, %v7203
      %v7214 = vadd.f32 %v7213, %v7205
      %v7215 = vadd.f32 %v7214, %v7207
      %v7216 = vadd.f32 %v7215, %v7209
      %v7217 = vrot.slane %v7216, 4
      %v7218 = vadd.f32 %v7216, %v7217
      %v7219 = vrot.slane %v7218, 2
      %v7220 = vadd.f32 %v7218, %v7219
      %v7221 = vrot.slane %v7220, 1
      %v7222 = vadd.f32 %v7220, %v7221
      %s7223 = scalar_lea.vmem %s9, 192
      %v7224 = vld [vmem:[%s7223] sm:$0xff]
      %v7225 = vld [vmem:[%s7223 + $0x8] sm:$0xff]
      %v7226 = vld [vmem:[%s7223 + $0x10] sm:$0xff]
      %v7227 = vld [vmem:[%s7223 + $0x18] sm:$0xff]
      %v7228 = vld [vmem:[%s7223 + $0x20] sm:$0xff]
      %v7229 = vld [vmem:[%s7223 + $0x28] sm:$0xff]
      %v7230 = vld [vmem:[%s7223 + $0x30] sm:$0xff]
      %v7231 = vld [vmem:[%s7223 + $0x38] sm:$0xff]
      %v7232 = vmul.f32 %v7224, %v7078
      %v7233 = vmul.f32 %v7225, %v7079
      %v7234 = vmul.f32 %v7226, %v7080
      %v7235 = vmul.f32 %v7227, %v7081
      %v7236 = vmul.f32 %v7228, %v7082
      %v7237 = vmul.f32 %v7229, %v7083
      %v7238 = vmul.f32 %v7230, %v7084
      %v7239 = vmul.f32 %v7231, %v7085
      %7240 = vadd.xlane.f32.xlu0 %v7232
      %v7241 = vpop.xlane.xlu0 %7240
      %7242 = vadd.xlane.f32.xlu0 %v7233
      %v7243 = vpop.xlane.xlu0 %7242
      %7244 = vadd.xlane.f32.xlu0 %v7234
      %v7245 = vpop.xlane.xlu0 %7244
      %7246 = vadd.xlane.f32.xlu0 %v7235
      %v7247 = vpop.xlane.xlu0 %7246
      %7248 = vadd.xlane.f32.xlu0 %v7236
      %v7249 = vpop.xlane.xlu0 %7248
      %7250 = vadd.xlane.f32.xlu0 %v7237
      %v7251 = vpop.xlane.xlu0 %7250
      %7252 = vadd.xlane.f32.xlu0 %v7238
      %v7253 = vpop.xlane.xlu0 %7252
      %7254 = vadd.xlane.f32.xlu0 %v7239
      %v7255 = vpop.xlane.xlu0 %7254
      %v7256 = vadd.f32 %v7241, %v7243
      %v7257 = vadd.f32 %v7256, %v7245
      %v7258 = vadd.f32 %v7257, %v7247
      %v7259 = vadd.f32 %v7258, %v7249
      %v7260 = vadd.f32 %v7259, %v7251
      %v7261 = vadd.f32 %v7260, %v7253
      %v7262 = vadd.f32 %v7261, %v7255
      %v7263 = vrot.slane %v7262, 4
      %v7264 = vadd.f32 %v7262, %v7263
      %v7265 = vrot.slane %v7264, 2
      %v7266 = vadd.f32 %v7264, %v7265
      %v7267 = vrot.slane %v7266, 1
      %v7268 = vadd.f32 %v7266, %v7267
      %s7269 = scalar_lea.vmem %s9, 256
      %v7270 = vld [vmem:[%s7269] sm:$0xff]
      %v7271 = vld [vmem:[%s7269 + $0x8] sm:$0xff]
      %v7272 = vld [vmem:[%s7269 + $0x10] sm:$0xff]
      %v7273 = vld [vmem:[%s7269 + $0x18] sm:$0xff]
      %v7274 = vld [vmem:[%s7269 + $0x20] sm:$0xff]
      %v7275 = vld [vmem:[%s7269 + $0x28] sm:$0xff]
      %v7276 = vld [vmem:[%s7269 + $0x30] sm:$0xff]
      %v7277 = vld [vmem:[%s7269 + $0x38] sm:$0xff]
      %v7278 = vmul.f32 %v7270, %v7078
      %v7279 = vmul.f32 %v7271, %v7079
      %v7280 = vmul.f32 %v7272, %v7080
      %v7281 = vmul.f32 %v7273, %v7081
      %v7282 = vmul.f32 %v7274, %v7082
      %v7283 = vmul.f32 %v7275, %v7083
      %v7284 = vmul.f32 %v7276, %v7084
      %v7285 = vmul.f32 %v7277, %v7085
      %7286 = vadd.xlane.f32.xlu0 %v7278
      %v7287 = vpop.xlane.xlu0 %7286
      %7288 = vadd.xlane.f32.xlu0 %v7279
      %v7289 = vpop.xlane.xlu0 %7288
      %7290 = vadd.xlane.f32.xlu0 %v7280
      %v7291 = vpop.xlane.xlu0 %7290
      %7292 = vadd.xlane.f32.xlu0 %v7281
      %v7293 = vpop.xlane.xlu0 %7292
      %7294 = vadd.xlane.f32.xlu0 %v7282
      %v7295 = vpop.xlane.xlu0 %7294
      %7296 = vadd.xlane.f32.xlu0 %v7283
      %v7297 = vpop.xlane.xlu0 %7296
      %7298 = vadd.xlane.f32.xlu0 %v7284
      %v7299 = vpop.xlane.xlu0 %7298
      %7300 = vadd.xlane.f32.xlu0 %v7285
      %v7301 = vpop.xlane.xlu0 %7300
      %v7302 = vadd.f32 %v7287, %v7289
      %v7303 = vadd.f32 %v7302, %v7291
      %v7304 = vadd.f32 %v7303, %v7293
      %v7305 = vadd.f32 %v7304, %v7295
      %v7306 = vadd.f32 %v7305, %v7297
      %v7307 = vadd.f32 %v7306, %v7299
      %v7308 = vadd.f32 %v7307, %v7301
      %v7309 = vrot.slane %v7308, 4
      %v7310 = vadd.f32 %v7308, %v7309
      %v7311 = vrot.slane %v7310, 2
      %v7312 = vadd.f32 %v7310, %v7311
      %v7313 = vrot.slane %v7312, 1
      %v7314 = vadd.f32 %v7312, %v7313
      %s7315 = scalar_lea.vmem %s9, 320
      %v7316 = vld [vmem:[%s7315] sm:$0xff]
      %v7317 = vld [vmem:[%s7315 + $0x8] sm:$0xff]
      %v7318 = vld [vmem:[%s7315 + $0x10] sm:$0xff]
      %v7319 = vld [vmem:[%s7315 + $0x18] sm:$0xff]
      %v7320 = vld [vmem:[%s7315 + $0x20] sm:$0xff]
      %v7321 = vld [vmem:[%s7315 + $0x28] sm:$0xff]
      %v7322 = vld [vmem:[%s7315 + $0x30] sm:$0xff]
      %v7323 = vld [vmem:[%s7315 + $0x38] sm:$0xff]
      %v7324 = vmul.f32 %v7316, %v7078
      %v7325 = vmul.f32 %v7317, %v7079
      %v7326 = vmul.f32 %v7318, %v7080
      %v7327 = vmul.f32 %v7319, %v7081
      %v7328 = vmul.f32 %v7320, %v7082
      %v7329 = vmul.f32 %v7321, %v7083
      %v7330 = vmul.f32 %v7322, %v7084
      %v7331 = vmul.f32 %v7323, %v7085
      %7332 = vadd.xlane.f32.xlu0 %v7324
      %v7333 = vpop.xlane.xlu0 %7332
      %7334 = vadd.xlane.f32.xlu0 %v7325
      %v7335 = vpop.xlane.xlu0 %7334
      %7336 = vadd.xlane.f32.xlu0 %v7326
      %v7337 = vpop.xlane.xlu0 %7336
      %7338 = vadd.xlane.f32.xlu0 %v7327
      %v7339 = vpop.xlane.xlu0 %7338
      %7340 = vadd.xlane.f32.xlu0 %v7328
      %v7341 = vpop.xlane.xlu0 %7340
      %7342 = vadd.xlane.f32.xlu0 %v7329
      %v7343 = vpop.xlane.xlu0 %7342
      %7344 = vadd.xlane.f32.xlu0 %v7330
      %v7345 = vpop.xlane.xlu0 %7344
      %7346 = vadd.xlane.f32.xlu0 %v7331
      %v7347 = vpop.xlane.xlu0 %7346
      %v7348 = vadd.f32 %v7333, %v7335
      %v7349 = vadd.f32 %v7348, %v7337
      %v7350 = vadd.f32 %v7349, %v7339
      %v7351 = vadd.f32 %v7350, %v7341
      %v7352 = vadd.f32 %v7351, %v7343
      %v7353 = vadd.f32 %v7352, %v7345
      %v7354 = vadd.f32 %v7353, %v7347
      %v7355 = vrot.slane %v7354, 4
      %v7356 = vadd.f32 %v7354, %v7355
      %v7357 = vrot.slane %v7356, 2
      %v7358 = vadd.f32 %v7356, %v7357
      %v7359 = vrot.slane %v7358, 1
      %v7360 = vadd.f32 %v7358, %v7359
      %s7361 = scalar_lea.vmem %s9, 384
      %v7362 = vld [vmem:[%s7361] sm:$0xff]
      %v7363 = vld [vmem:[%s7361 + $0x8] sm:$0xff]
      %v7364 = vld [vmem:[%s7361 + $0x10] sm:$0xff]
      %v7365 = vld [vmem:[%s7361 + $0x18] sm:$0xff]
      %v7366 = vld [vmem:[%s7361 + $0x20] sm:$0xff]
      %v7367 = vld [vmem:[%s7361 + $0x28] sm:$0xff]
      %v7368 = vld [vmem:[%s7361 + $0x30] sm:$0xff]
      %v7369 = vld [vmem:[%s7361 + $0x38] sm:$0xff]
      %v7370 = vmul.f32 %v7362, %v7078
      %v7371 = vmul.f32 %v7363, %v7079
      %v7372 = vmul.f32 %v7364, %v7080
      %v7373 = vmul.f32 %v7365, %v7081
      %v7374 = vmul.f32 %v7366, %v7082
      %v7375 = vmul.f32 %v7367, %v7083
      %v7376 = vmul.f32 %v7368, %v7084
      %v7377 = vmul.f32 %v7369, %v7085
      %7378 = vadd.xlane.f32.xlu0 %v7370
      %v7379 = vpop.xlane.xlu0 %7378
      %7380 = vadd.xlane.f32.xlu0 %v7371
      %v7381 = vpop.xlane.xlu0 %7380
      %7382 = vadd.xlane.f32.xlu0 %v7372
      %v7383 = vpop.xlane.xlu0 %7382
      %7384 = vadd.xlane.f32.xlu0 %v7373
      %v7385 = vpop.xlane.xlu0 %7384
      %7386 = vadd.xlane.f32.xlu0 %v7374
      %v7387 = vpop.xlane.xlu0 %7386
      %7388 = vadd.xlane.f32.xlu0 %v7375
      %v7389 = vpop.xlane.xlu0 %7388
      %7390 = vadd.xlane.f32.xlu0 %v7376
      %v7391 = vpop.xlane.xlu0 %7390
      %7392 = vadd.xlane.f32.xlu0 %v7377
      %v7393 = vpop.xlane.xlu0 %7392
      %v7394 = vadd.f32 %v7379, %v7381
      %v7395 = vadd.f32 %v7394, %v7383
      %v7396 = vadd.f32 %v7395, %v7385
      %v7397 = vadd.f32 %v7396, %v7387
      %v7398 = vadd.f32 %v7397, %v7389
      %v7399 = vadd.f32 %v7398, %v7391
      %v7400 = vadd.f32 %v7399, %v7393
      %v7401 = vrot.slane %v7400, 4
      %v7402 = vadd.f32 %v7400, %v7401
      %v7403 = vrot.slane %v7402, 2
      %v7404 = vadd.f32 %v7402, %v7403
      %v7405 = vrot.slane %v7404, 1
      %v7406 = vadd.f32 %v7404, %v7405
      %s7407 = scalar_lea.vmem %s9, 448
      %v7408 = vld [vmem:[%s7407] sm:$0xff]
      %v7409 = vld [vmem:[%s7407 + $0x8] sm:$0xff]
      %v7410 = vld [vmem:[%s7407 + $0x10] sm:$0xff]
      %v7411 = vld [vmem:[%s7407 + $0x18] sm:$0xff]
      %v7412 = vld [vmem:[%s7407 + $0x20] sm:$0xff]
      %v7413 = vld [vmem:[%s7407 + $0x28] sm:$0xff]
      %v7414 = vld [vmem:[%s7407 + $0x30] sm:$0xff]
      %v7415 = vld [vmem:[%s7407 + $0x38] sm:$0xff]
      %v7416 = vmul.f32 %v7408, %v7078
      %v7417 = vmul.f32 %v7409, %v7079
      %v7418 = vmul.f32 %v7410, %v7080
      %v7419 = vmul.f32 %v7411, %v7081
      %v7420 = vmul.f32 %v7412, %v7082
      %v7421 = vmul.f32 %v7413, %v7083
      %v7422 = vmul.f32 %v7414, %v7084
      %v7423 = vmul.f32 %v7415, %v7085
      %7424 = vadd.xlane.f32.xlu0 %v7416
      %v7425 = vpop.xlane.xlu0 %7424
      %7426 = vadd.xlane.f32.xlu0 %v7417
      %v7427 = vpop.xlane.xlu0 %7426
      %7428 = vadd.xlane.f32.xlu0 %v7418
      %v7429 = vpop.xlane.xlu0 %7428
      %7430 = vadd.xlane.f32.xlu0 %v7419
      %v7431 = vpop.xlane.xlu0 %7430
      %7432 = vadd.xlane.f32.xlu0 %v7420
      %v7433 = vpop.xlane.xlu0 %7432
      %7434 = vadd.xlane.f32.xlu0 %v7421
      %v7435 = vpop.xlane.xlu0 %7434
      %7436 = vadd.xlane.f32.xlu0 %v7422
      %v7437 = vpop.xlane.xlu0 %7436
      %7438 = vadd.xlane.f32.xlu0 %v7423
      %v7439 = vpop.xlane.xlu0 %7438
      %v7440 = vadd.f32 %v7425, %v7427
      %v7441 = vadd.f32 %v7440, %v7429
      %v7442 = vadd.f32 %v7441, %v7431
      %v7443 = vadd.f32 %v7442, %v7433
      %v7444 = vadd.f32 %v7443, %v7435
      %v7445 = vadd.f32 %v7444, %v7437
      %v7446 = vadd.f32 %v7445, %v7439
      %v7447 = vrot.slane %v7446, 4
      %v7448 = vadd.f32 %v7446, %v7447
      %v7449 = vrot.slane %v7448, 2
      %v7450 = vadd.f32 %v7448, %v7449
      %v7451 = vrot.slane %v7450, 1
      %v7452 = vadd.f32 %v7450, %v7451
      %s7453 = scalar_lea.vmem %s9, 512
      %v7454 = vld [vmem:[%s7453] sm:$0xff]
      %v7455 = vld [vmem:[%s7453 + $0x8] sm:$0xff]
      %v7456 = vld [vmem:[%s7453 + $0x10] sm:$0xff]
      %v7457 = vld [vmem:[%s7453 + $0x18] sm:$0xff]
      %v7458 = vld [vmem:[%s7453 + $0x20] sm:$0xff]
      %v7459 = vld [vmem:[%s7453 + $0x28] sm:$0xff]
      %v7460 = vld [vmem:[%s7453 + $0x30] sm:$0xff]
      %v7461 = vld [vmem:[%s7453 + $0x38] sm:$0xff]
      %v7462 = vmul.f32 %v7454, %v7078
      %v7463 = vmul.f32 %v7455, %v7079
      %v7464 = vmul.f32 %v7456, %v7080
      %v7465 = vmul.f32 %v7457, %v7081
      %v7466 = vmul.f32 %v7458, %v7082
      %v7467 = vmul.f32 %v7459, %v7083
      %v7468 = vmul.f32 %v7460, %v7084
      %v7469 = vmul.f32 %v7461, %v7085
      %7470 = vadd.xlane.f32.xlu0 %v7462
      %v7471 = vpop.xlane.xlu0 %7470
      %7472 = vadd.xlane.f32.xlu0 %v7463
      %v7473 = vpop.xlane.xlu0 %7472
      %7474 = vadd.xlane.f32.xlu0 %v7464
      %v7475 = vpop.xlane.xlu0 %7474
      %7476 = vadd.xlane.f32.xlu0 %v7465
      %v7477 = vpop.xlane.xlu0 %7476
      %7478 = vadd.xlane.f32.xlu0 %v7466
      %v7479 = vpop.xlane.xlu0 %7478
      %7480 = vadd.xlane.f32.xlu0 %v7467
      %v7481 = vpop.xlane.xlu0 %7480
      %7482 = vadd.xlane.f32.xlu0 %v7468
      %v7483 = vpop.xlane.xlu0 %7482
      %7484 = vadd.xlane.f32.xlu0 %v7469
      %v7485 = vpop.xlane.xlu0 %7484
      %v7486 = vadd.f32 %v7471, %v7473
      %v7487 = vadd.f32 %v7486, %v7475
      %v7488 = vadd.f32 %v7487, %v7477
      %v7489 = vadd.f32 %v7488, %v7479
      %v7490 = vadd.f32 %v7489, %v7481
      %v7491 = vadd.f32 %v7490, %v7483
      %v7492 = vadd.f32 %v7491, %v7485
      %v7493 = vrot.slane %v7492, 4
      %v7494 = vadd.f32 %v7492, %v7493
      %v7495 = vrot.slane %v7494, 2
      %v7496 = vadd.f32 %v7494, %v7495
      %v7497 = vrot.slane %v7496, 1
      %v7498 = vadd.f32 %v7496, %v7497
      %s7499 = scalar_lea.vmem %s9, 576
      %v7500 = vld [vmem:[%s7499] sm:$0xff]
      %v7501 = vld [vmem:[%s7499 + $0x8] sm:$0xff]
      %v7502 = vld [vmem:[%s7499 + $0x10] sm:$0xff]
      %v7503 = vld [vmem:[%s7499 + $0x18] sm:$0xff]
      %v7504 = vld [vmem:[%s7499 + $0x20] sm:$0xff]
      %v7505 = vld [vmem:[%s7499 + $0x28] sm:$0xff]
      %v7506 = vld [vmem:[%s7499 + $0x30] sm:$0xff]
      %v7507 = vld [vmem:[%s7499 + $0x38] sm:$0xff]
      %v7508 = vmul.f32 %v7500, %v7078
      %v7509 = vmul.f32 %v7501, %v7079
      %v7510 = vmul.f32 %v7502, %v7080
      %v7511 = vmul.f32 %v7503, %v7081
      %v7512 = vmul.f32 %v7504, %v7082
      %v7513 = vmul.f32 %v7505, %v7083
      %v7514 = vmul.f32 %v7506, %v7084
      %v7515 = vmul.f32 %v7507, %v7085
      %7516 = vadd.xlane.f32.xlu0 %v7508
      %v7517 = vpop.xlane.xlu0 %7516
      %7518 = vadd.xlane.f32.xlu0 %v7509
      %v7519 = vpop.xlane.xlu0 %7518
      %7520 = vadd.xlane.f32.xlu0 %v7510
      %v7521 = vpop.xlane.xlu0 %7520
      %7522 = vadd.xlane.f32.xlu0 %v7511
      %v7523 = vpop.xlane.xlu0 %7522
      %7524 = vadd.xlane.f32.xlu0 %v7512
      %v7525 = vpop.xlane.xlu0 %7524
      %7526 = vadd.xlane.f32.xlu0 %v7513
      %v7527 = vpop.xlane.xlu0 %7526
      %7528 = vadd.xlane.f32.xlu0 %v7514
      %v7529 = vpop.xlane.xlu0 %7528
      %7530 = vadd.xlane.f32.xlu0 %v7515
      %v7531 = vpop.xlane.xlu0 %7530
      %v7532 = vadd.f32 %v7517, %v7519
      %v7533 = vadd.f32 %v7532, %v7521
      %v7534 = vadd.f32 %v7533, %v7523
      %v7535 = vadd.f32 %v7534, %v7525
      %v7536 = vadd.f32 %v7535, %v7527
      %v7537 = vadd.f32 %v7536, %v7529
      %v7538 = vadd.f32 %v7537, %v7531
      %v7539 = vrot.slane %v7538, 4
      %v7540 = vadd.f32 %v7538, %v7539
      %v7541 = vrot.slane %v7540, 2
      %v7542 = vadd.f32 %v7540, %v7541
      %v7543 = vrot.slane %v7542, 1
      %v7544 = vadd.f32 %v7542, %v7543
      %vm7545 = vcmask 1040384
      %v7546 = vsel %vm7545, %v7130, %v7176
      %vm7547 = vcmask 1041408
      %v7548 = vsel %vm7547, %v7546, %v7222
      %vm7549 = vcmask 1042432
      %v7550 = vsel %vm7549, %v7548, %v7268
      %v7551 = vsel %vm5297, %v7550, %v7314
      %v7552 = vsel %vm5276, %v7551, %v7360
      %v7553 = vsel %vm5263, %v7552, %v7406
      %v7554 = vsel %vm5242, %v7553, %v7452
      %v7555 = vsel %vm7545, %v7498, %v7544
      %v7556 = vld [vmem:[%s10] sm:$0xff]
      %v7557 = vld [vmem:[%s10 + $0x8] sm:$0x3]
      %v7558 = vadd.f32 %v7554, %v7556
      %v7559 = vadd.f32 %v7555, %v7557
      %vm7560 = vcmask 7168
      %7561 = vst.msk [vmem:[%s386] sm:$0xff] %vm7560, %v7558
      %vm7562 = vcmask 1024
      %7563 = vst.msk [vmem:[%s386 + $0x8] sm:$0x3] %vm7562, %v7559
      %p7564 = scmp.lt.s32.totalorder %s22, 1
      %s7565 = scalar_select %p7564, %s22, 1
      %s7566 = smul.addr %s7565, 2
      %s7567 = smul.addr %s7566, 8
      %s7568 = scalar_lea.vmem %s11, %s7567
      // Predicated region
      $region86: #{a_convnet_forward.1} parent=63 // pred_check
        %p7569 = pneg %p276
      $region87: #{a_convnet_forward.1} parent=63 // pred_check_branch
        %7571 = sbr.rel (%p7569) target = $region89
      $region88: #{a_convnet_forward.1} parent=63 // pred_region
        _
      $region89: #{a_convnet_forward.1} parent=63 // pred_fallthru
        _
    $region64: #{a_convnet_forward.1} parent=5 // pred_fallthru
      _
    %p7572 = scmp.le.s32.totalorder 2, %s17
    // Predicated region
    $region90: #{a_convnet_forward.1} parent=5 // pred_check
      %p7573 = pneg %p7572
    $region91: #{a_convnet_forward.1} parent=5 // pred_check_branch
      %7575 = sbr.rel (%p7573) target = $region93
    $region92: #{a_convnet_forward.1} parent=5 // pred_region
      %s7576 = ssub.s32 %s17, 2
      // Predicated region
      $region94: #{a_convnet_forward.1} parent=92 // pred_check
        %p7577 = pneg %p282
      $region95: #{a_convnet_forward.1} parent=92 // pred_check_branch
        %7579 = sbr.rel (%p7577) target = $region97
      $region96: #{a_convnet_forward.1} parent=92 // pred_region
        %p7580 = scmp.lt.s32.totalorder %s23, 1
        %s7581 = scalar_select %p7580, %s23, 1
        %s7582 = smul.addr %s7581, 2
        %s7583 = smul.addr %s7582, 8
        %s7584 = scalar_lea.vmem %s11, %s7583
      $region97: #{a_convnet_forward.1} parent=92 // pred_fallthru
        _
    $region93: #{a_convnet_forward.1} parent=5 // pred_fallthru
      _
  $region6: #{a_convnet_forward.1} parent=0 // loop_footer
    %s21 = sadd.s32 1, %s17
  $region7: #{a_convnet_forward.1} parent=0 // loop_footer_branch
    %16 = sbr.rel target = $region3
  $region8: #{a_convnet_forward.1} parent=0 // loop_exit
    _

</llo_original>
